<compile_context>
chip_gen: v5e
topology: v5e:2x2
jax: 0.10.0
libtpu: 0.0.40
codegen_flags: <defaults>
</compile_context>

<pallas_src>
import functools

import numpy as np
import jax
import jax.numpy as jnp
from jax.experimental import pallas as pl
from jax.experimental.pallas import tpu as pltpu

VMEM = pltpu.MemorySpace.VMEM


def _layer_norm(x, w, b, eps=1e-5):
  mu = jnp.mean(x, axis=-1, keepdims=True)
  xc = x - mu
  var = jnp.mean(xc * xc, axis=-1, keepdims=True)
  return xc * jax.lax.rsqrt(var + eps) * w + b


# ---------------------------------------------------------------------------
# Fused forward kernel
# ---------------------------------------------------------------------------
def dt_forward_kernel(st_ref, ac_ref, rw_ref,
                      wst_ref, bst_ref, wac_ref, bac_ref, wrw_ref, brw_ref,
                      pos_ref,
                      wqkv_ref, bqkv_ref, wo_ref, bo_ref, ln1w_ref, ln1b_ref,
                      w1_ref, b1_ref, w2_ref, b2_ref, ln2w_ref, ln2b_ref,
                      wout_ref, bout_ref,
                      o_ref, *, nhead):
  B = st_ref.shape[0]
  S, D = pos_ref.shape                  # S == 3 (state, action, reward tokens)
  H = nhead
  hd = D // H
  SB = S * B
  L = wqkv_ref.shape[0]
  scale = 1.0 / float(np.sqrt(hd))
  bf16 = jnp.bfloat16

  def dense(v, w, b):
    # Weights stored bf16; cast the activation to bf16 at the matmul input so
    # the MXU runs a single bf16 pass with f32 accumulation. Bias add in f32.
    return jnp.dot(v.astype(bf16), w, preferred_element_type=jnp.float32) + b

  # --- token embeddings + positional encoding ------------------------------
  # Seq-major activation slab: rows [s_0..s_{B-1}, a_0..a_{B-1}, r_0..r_{B-1}]
  # (== PyTorch's seq-first (3, B, D) flattened); x[-1] == rows (S-1)*B:.
  s_emb = dense(st_ref[...], wst_ref[...], bst_ref[...]) + pos_ref[0:1, :]
  a_emb = dense(ac_ref[...], wac_ref[...], bac_ref[...]) + pos_ref[1:2, :]
  # reward Linear has in_features == 1 -> broadcast multiply, not a K=1 matmul
  r_emb = rw_ref[...] * wrw_ref[...] + brw_ref[...] + pos_ref[2:3, :]
  x = jnp.concatenate([s_emb, a_emb, r_emb], axis=0)          # (S*B, D) f32

  # --- masks, hoisted out of the layer loop --------------------------------
  # Rows i, j belong to the same batch element iff (i - j) is a multiple of B.
  row = jax.lax.broadcasted_iota(jnp.int32, (SB, SB), 0)
  col = jax.lax.broadcasted_iota(jnp.int32, (SB, SB), 1)
  diff = row - col
  same_batch = functools.reduce(
      jnp.logical_or, [diff == m * B for m in range(-(S - 1), S)])
  attn_bias = jnp.where(same_batch, 0.0, -1e30)               # (SB, SB) f32
  attn_bias_stacked = jnp.concatenate([attn_bias] * H, axis=0)  # (H*SB, SB)
  lane = jax.lax.broadcasted_iota(jnp.int32, (1, D), 1)
  head_masks = [((lane >= h * hd) & (lane < (h + 1) * hd)).astype(jnp.float32)
                for h in range(H)]

  # --- post-norm transformer encoder layers --------------------------------
  for l in range(L):
    # Fused QKV projection: one (D, 3D) weight tile, static lane slices out.
    qkv = dense(x, wqkv_ref[l], bqkv_ref[l])                  # (SB, 3D) f32
    q = qkv[:, 0 * D:1 * D]
    k = qkv[:, 1 * D:2 * D]
    v = qkv[:, 2 * D:3 * D]

    # One k-transpose per layer (not per head).
    kt = k.T                                                  # (D, SB)

    # Stack lane-masked per-head queries along sublanes -> (H*SB, D).
    # Zeroed lanes in each block make the full-D contraction equal the
    # per-head (hd-wide) contraction.
    q_stacked = jnp.concatenate([q * hm for hm in head_masks], axis=0)

    logits = (jnp.dot(q_stacked.astype(bf16), kt.astype(bf16),
                      preferred_element_type=jnp.float32) * scale
              + attn_bias_stacked)                            # (H*SB, SB)
    m = jnp.max(logits, axis=-1, keepdims=True)
    p = jnp.exp(logits - m)
    p = p * pl.reciprocal(jnp.sum(p, axis=-1, keepdims=True), approx=True)

    # One PV matmul for all heads, then lane-mask each head's sublane block
    # back into its own D/H lanes and sum.
    pv = jnp.dot(p.astype(bf16), v.astype(bf16),
                 preferred_element_type=jnp.float32)          # (H*SB, D)
    attn = functools.reduce(
        jnp.add,
        [pv[h * SB:(h + 1) * SB, :] * head_masks[h] for h in range(H)])

    attn = dense(attn, wo_ref[l], bo_ref[l])
    x = _layer_norm(x + attn, ln1w_ref[l], ln1b_ref[l])

    h1 = jnp.maximum(dense(x, w1_ref[l], b1_ref[l]), 0.0)
    ff = dense(h1, w2_ref[l], b2_ref[l])
    x = _layer_norm(x + ff, ln2w_ref[l], ln2b_ref[l])

  # --- output head on the last (reward) token, fused epilogue --------------
  x_last = x[(S - 1) * B:, :]                                 # == x[-1] in torch
  o_ref[...] = dense(x_last, wout_ref[...], bout_ref[...])


# ---------------------------------------------------------------------------
# Wrapper: one pallas_call, everything resident in VMEM
# ---------------------------------------------------------------------------
def decision_transformer_forward(states, actions, rewards, prep, *, nhead):
  B = states.shape[0]
  A = prep['b_out'].shape[-1]
  n_inputs = 24
  return pl.pallas_call(
      functools.partial(dt_forward_kernel, nhead=nhead),
      out_shape=jax.ShapeDtypeStruct((B, A), jnp.float32),
      in_specs=[pl.BlockSpec(memory_space=VMEM)] * n_inputs,
      out_specs=pl.BlockSpec(memory_space=VMEM),
      compiler_params=pltpu.CompilerParams(
          vmem_limit_bytes=32 * 1024 * 1024),
  )(states, actions, rewards,
    prep['w_state_t'], prep['b_state'],
    prep['w_action_t'], prep['b_action'],
    prep['w_reward_row'], prep['b_reward'],
    prep['pos'],
    prep['w_qkv_t'], prep['b_qkv'],
    prep['wo_t'], prep['bo'], prep['ln1_w'], prep['ln1_b'],
    prep['w1_t'], prep['b1'], prep['w2_t'], prep['b2'],
    prep['ln2_w'], prep['ln2_b'],
    prep['w_out_t'], prep['b_out'])


# ---------------------------------------------------------------------------
# One-time parameter preparation (outside the hot path)
# ---------------------------------------------------------------------------
def prepare_params(params):
  """Pre-transpose to (in, out), stack per-layer weights, bf16-cast matmul weights."""

  def stack(key):
    return jnp.stack([lyr[key] for lyr in params['layers']], axis=0)

  def t_bf16(w):  # (..., out, in) -> (..., in, out) bf16
    return jnp.swapaxes(w, -1, -2).astype(jnp.bfloat16)

  in_w = stack('in_proj_w')                      # (L, 3D, D)
  in_b = stack('in_proj_b')                      # (L, 3D)

  return dict(
      w_state_t=params['w_state'].T.astype(jnp.bfloat16),   # (state, D)
      b_state=params['b_state'][None, :],
      w_action_t=params['w_action'].T.astype(jnp.bfloat16),
      b_action=params['b_action'][None, :],
      w_reward_row=params['w_reward'].T,         # (1, D) f32 (broadcast mult)
      b_reward=params['b_reward'][None, :],
      pos=params['pos'][0],                      # (3, D)
      w_qkv_t=t_bf16(in_w),                      # (L, D, 3D) bf16, packed QKV
      b_qkv=in_b[:, None, :],                    # (L, 1, 3D)
      wo_t=t_bf16(stack('out_proj_w')),          # (L, D, D) bf16
      bo=stack('out_proj_b')[:, None, :],
      ln1_w=stack('ln1_w')[:, None, :],
      ln1_b=stack('ln1_b')[:, None, :],
      w1_t=t_bf16(stack('lin1_w')),              # (L, D, DFF) bf16
      b1=stack('lin1_b')[:, None, :],
      w2_t=t_bf16(stack('lin2_w')),              # (L, DFF, D) bf16
      b2=stack('lin2_b')[:, None, :],
      ln2_w=stack('ln2_w')[:, None, :],
      ln2_b=stack('ln2_b')[:, None, :],
      w_out_t=params['w_out'].T.astype(jnp.bfloat16),  # (D, A)
      b_out=params['b_out'][None, :],
  )


# ---------------------------------------------------------------------------
# Pure-JAX references for validation
# ---------------------------------------------------------------------------
def ref_forward(states, actions, rewards, params, *, nhead):
  """Full-f32 reference (mirrors the PyTorch forward)."""
  s = states @ params['w_state'].T + params['b_state']
  a = actions @ params['w_action'].T + params['b_action']
  r = rewards @ params['w_reward'].T + params['b_reward']
  x = jnp.stack([s, a, r], axis=1) + params['pos']    # (B, 3, D)
  B, S, D = x.shape
  hd = D // nhead
  for lyr in params['layers']:
    qkv = x @ lyr['in_proj_w'].T + lyr['in_proj_b']
    q, k, v = jnp.split(qkv, 3, axis=-1)
    def heads(t):
      return t.reshape(B, S, nhead, hd).transpose(0, 2, 1, 3)
    qh, kh, vh = heads(q), heads(k), heads(v)
    att = jnp.einsum('bhqd,bhkd->bhqk', qh, kh) / np.sqrt(hd)
    att = jax.nn.softmax(att, axis=-1)
    o = jnp.einsum('bhqk,bhkd->bhqd', att, vh).transpose(0, 2, 1, 3)
    o = o.reshape(B, S, D) @ lyr['out_proj_w'].T + lyr['out_proj_b']
    x = _layer_norm(x + o, lyr['ln1_w'], lyr['ln1_b'])
    h = jax.nn.relu(x @ lyr['lin1_w'].T + lyr['lin1_b'])
    f = h @ lyr['lin2_w'].T + lyr['lin2_b']
    x = _layer_norm(x + f, lyr['ln2_w'], lyr['ln2_b'])
  return x[:, -1] @ params['w_out'].T + params['b_out']


def ref_forward_mixed(states, actions, rewards, params, *, nhead):
  """Reference mirroring the kernel's precision policy: bf16 weights and bf16
  activation casts at every matmul (f32 accumulation); LayerNorm / softmax /
  residuals in f32."""
  bf = jnp.bfloat16
  f32 = jnp.float32

  def mm(x, w):  # x @ w.T with torch-layout (out, in) weight, bf16 x bf16
    return jnp.dot(x.astype(bf), w.T.astype(bf), preferred_element_type=f32)

  s = mm(states, params['w_state']) + params['b_state']
  a = mm(actions, params['w_action']) + params['b_action']
  r = rewards * params['w_reward'].T + params['b_reward']     # f32 broadcast
  x = jnp.stack([s, a, r], axis=1) + params['pos']            # (B, 3, D)
  B, S, D = x.shape
  hd = D // nhead
  for lyr in params['layers']:
    qkv = mm(x, lyr['in_proj_w']) + lyr['in_proj_b']
    q, k, v = jnp.split(qkv, 3, axis=-1)
    def heads(t):
      return t.reshape(B, S, nhead, hd).transpose(0, 2, 1, 3)
    qh, kh, vh = heads(q), heads(k), heads(v)
    att = jnp.einsum('bhqd,bhkd->bhqk', qh.astype(bf), kh.astype(bf),
                     preferred_element_type=f32) / np.sqrt(hd)
    att = jax.nn.softmax(att, axis=-1)
    o = jnp.einsum('bhqk,bhkd->bhqd', att.astype(bf), vh.astype(bf),
                   preferred_element_type=f32).transpose(0, 2, 1, 3)
    o = mm(o.reshape(B, S, D), lyr['out_proj_w']) + lyr['out_proj_b']
    x = _layer_norm(x + o, lyr['ln1_w'], lyr['ln1_b'])
    h = jax.nn.relu(mm(x, lyr['lin1_w']) + lyr['lin1_b'])
    f = mm(h, lyr['lin2_w']) + lyr['lin2_b']
    x = _layer_norm(x + f, lyr['ln2_w'], lyr['ln2_b'])
  return mm(x[:, -1], params['w_out']) + params['b_out']


# ---------------------------------------------------------------------------
# Deterministic parameter construction (shapes follow DecisionTransformer.__init__)
# ---------------------------------------------------------------------------
def make_params(key, state_size, action_size, hidden, nhead, num_layers, dff):
  def nrm(k, shape, scale=0.05):
    return scale * jax.random.normal(k, shape, jnp.float32)

  keys = iter(jax.random.split(key, 16 + 8 * num_layers))
  params = {
      'w_state': nrm(next(keys), (hidden, state_size)),
      'b_state': nrm(next(keys), (hidden,)),
      'w_action': nrm(next(keys), (hidden, action_size)),
      'b_action': nrm(next(keys), (hidden,)),
      'w_reward': nrm(next(keys), (hidden, 1)),
      'b_reward': nrm(next(keys), (hidden,)),
      'pos': nrm(next(keys), (1, 3, hidden)),
      'w_out': nrm(next(keys), (action_size, hidden)),
      'b_out': nrm(next(keys), (action_size,)),
      'layers': [],
  }
  for _ in range(num_layers):
    params['layers'].append({
        'in_proj_w': nrm(next(keys), (3 * hidden, hidden)),
        'in_proj_b': nrm(next(keys), (3 * hidden,)),
        'out_proj_w': nrm(next(keys), (hidden, hidden)),
        'out_proj_b': nrm(next(keys), (hidden,)),
        'ln1_w': jnp.ones((hidden,), jnp.float32),
        'ln1_b': jnp.zeros((hidden,), jnp.float32),
        'lin1_w': nrm(next(keys), (dff, hidden)),
        'lin1_b': nrm(next(keys), (dff,)),
        'lin2_w': nrm(next(keys), (hidden, dff)),
        'lin2_b': nrm(next(keys), (hidden,)),
        'ln2_w': jnp.ones((hidden,), jnp.float32),
        'ln2_b': jnp.zeros((hidden,), jnp.float32),
    })
  return params


if __name__ == "__main__":
  B = 2
  STATE_SIZE = 12
  ACTION_SIZE = 6
  HIDDEN = 32
  NHEAD = 4
  NUM_LAYERS = 5
  DFF = 2048  # nn.TransformerEncoderLayer default dim_feedforward

  key = jax.random.PRNGKey(0)
  k_s, k_a, k_r, k_p = jax.random.split(key, 4)
  states = jax.random.normal(k_s, (B, STATE_SIZE), jnp.float32)
  actions = jax.random.normal(k_a, (B, ACTION_SIZE), jnp.float32)
  rewards = jax.random.normal(k_r, (B, 1), jnp.float32)
  params = make_params(k_p, STATE_SIZE, ACTION_SIZE, HIDDEN, NHEAD,
                       NUM_LAYERS, DFF)

  prep = prepare_params(params)   # one-time transpose / stack / bf16 cast

  fwd = jax.jit(functools.partial(decision_transformer_forward, nhead=NHEAD))
  out = jax.block_until_ready(fwd(states, actions, rewards, prep))
  assert out.shape == (B, ACTION_SIZE)

  # Strict check against a reference using the SAME precision policy as the
  # kernel (bf16 weights + bf16 matmul activations, f32 everything else);
  # tolerance also covers the approx-reciprocal softmax denominator.
  ref_q = jax.block_until_ready(
      ref_forward_mixed(states, actions, rewards, params, nhead=NHEAD))
  np.testing.assert_allclose(np.asarray(out), np.asarray(ref_q),
                             rtol=1e-2, atol=1e-2)

  # Loose check against the full-f32 reference (covers the intentional bf16
  # weight/activation quantization).
  ref_f32 = jax.block_until_ready(
      ref_forward(states, actions, rewards, params, nhead=NHEAD))
  np.testing.assert_allclose(np.asarray(out), np.asarray(ref_f32),
                             rtol=5e-2, atol=5e-2)

  print("KERNEL_OK")
</pallas_src>

<mosaic_0001>
module attributes {stable_mosaic.version = 11 : i64} {
  func.func @dt_forward_kernel(%arg0: memref<2x12xf32, #tpu.memory_space<vmem>>, %arg1: memref<2x6xf32, #tpu.memory_space<vmem>>, %arg2: memref<2x1xf32, #tpu.memory_space<vmem>>, %arg3: memref<12x32xbf16, #tpu.memory_space<vmem>>, %arg4: memref<1x32xf32, #tpu.memory_space<vmem>>, %arg5: memref<6x32xbf16, #tpu.memory_space<vmem>>, %arg6: memref<1x32xf32, #tpu.memory_space<vmem>>, %arg7: memref<1x32xf32, #tpu.memory_space<vmem>>, %arg8: memref<1x32xf32, #tpu.memory_space<vmem>>, %arg9: memref<3x32xf32, #tpu.memory_space<vmem>>, %arg10: memref<5x32x96xbf16, #tpu.memory_space<vmem>>, %arg11: memref<5x1x96xf32, #tpu.memory_space<vmem>>, %arg12: memref<5x32x32xbf16, #tpu.memory_space<vmem>>, %arg13: memref<5x1x32xf32, #tpu.memory_space<vmem>>, %arg14: memref<5x1x32xf32, #tpu.memory_space<vmem>>, %arg15: memref<5x1x32xf32, #tpu.memory_space<vmem>>, %arg16: memref<5x32x2048xbf16, #tpu.memory_space<vmem>>, %arg17: memref<5x1x2048xf32, #tpu.memory_space<vmem>>, %arg18: memref<5x2048x32xbf16, #tpu.memory_space<vmem>>, %arg19: memref<5x1x32xf32, #tpu.memory_space<vmem>>, %arg20: memref<5x1x32xf32, #tpu.memory_space<vmem>>, %arg21: memref<5x1x32xf32, #tpu.memory_space<vmem>>, %arg22: memref<32x6xbf16, #tpu.memory_space<vmem>>, %arg23: memref<1x6xf32, #tpu.memory_space<vmem>>, %arg24: memref<2x6xf32, #tpu.memory_space<vmem>>) attributes {dimension_semantics = [], scalar_prefetch = 0 : i64, scratch_operands = 0 : i64, tpu.core_type = #tpu.core_type<tc>} {
    %c0 = arith.constant 0 : index
    %c0_0 = arith.constant 0 : index
    %0 = vector.load %arg0[%c0, %c0_0] : memref<2x12xf32, #tpu.memory_space<vmem>>, vector<2x12xf32>
    %c0_1 = arith.constant 0 : index
    %c0_2 = arith.constant 0 : index
    %1 = vector.load %arg3[%c0_1, %c0_2] : memref<12x32xbf16, #tpu.memory_space<vmem>>, vector<12x32xbf16>
    %c0_3 = arith.constant 0 : index
    %c0_4 = arith.constant 0 : index
    %2 = vector.load %arg4[%c0_3, %c0_4] : memref<1x32xf32, #tpu.memory_space<vmem>>, vector<1x32xf32>
    %3 = arith.truncf %0 : vector<2x12xf32> to vector<2x12xbf16>
    %cst = arith.constant dense<0.000000e+00> : vector<2x32xf32>
    %4 = tpu.matmul %3, %1, %cst {dimension_numbers = #tpu.dot_dimension_numbers<[1], [0], [0], [1], [0, 0, 1, 1], [], []>} : vector<2x12xbf16>, vector<12x32xbf16>, vector<2x32xf32> -> vector<2x32xf32>
    %5 = vector.broadcast %2 : vector<1x32xf32> to vector<2x32xf32>
    %6 = arith.addf %4, %5 : vector<2x32xf32>
    %c0_5 = arith.constant 0 : index
    %c0_6 = arith.constant 0 : index
    %7 = vector.load %arg9[%c0_5, %c0_6] : memref<3x32xf32, #tpu.memory_space<vmem>>, vector<1x32xf32>
    %8 = vector.broadcast %7 : vector<1x32xf32> to vector<2x32xf32>
    %9 = arith.addf %6, %8 : vector<2x32xf32>
    %c0_7 = arith.constant 0 : index
    %c0_8 = arith.constant 0 : index
    %10 = vector.load %arg1[%c0_7, %c0_8] : memref<2x6xf32, #tpu.memory_space<vmem>>, vector<2x6xf32>
    %c0_9 = arith.constant 0 : index
    %c0_10 = arith.constant 0 : index
    %11 = vector.load %arg5[%c0_9, %c0_10] : memref<6x32xbf16, #tpu.memory_space<vmem>>, vector<6x32xbf16>
    %c0_11 = arith.constant 0 : index
    %c0_12 = arith.constant 0 : index
    %12 = vector.load %arg6[%c0_11, %c0_12] : memref<1x32xf32, #tpu.memory_space<vmem>>, vector<1x32xf32>
    %13 = arith.truncf %10 : vector<2x6xf32> to vector<2x6xbf16>
    %cst_13 = arith.constant dense<0.000000e+00> : vector<2x32xf32>
    %14 = tpu.matmul %13, %11, %cst_13 {dimension_numbers = #tpu.dot_dimension_numbers<[1], [0], [0], [1], [0, 0, 1, 1], [], []>} : vector<2x6xbf16>, vector<6x32xbf16>, vector<2x32xf32> -> vector<2x32xf32>
    %15 = vector.broadcast %12 : vector<1x32xf32> to vector<2x32xf32>
    %16 = arith.addf %14, %15 : vector<2x32xf32>
    %c1 = arith.constant 1 : index
    %c0_14 = arith.constant 0 : index
    %17 = vector.load %arg9[%c1, %c0_14] : memref<3x32xf32, #tpu.memory_space<vmem>>, vector<1x32xf32>
    %18 = vector.broadcast %17 : vector<1x32xf32> to vector<2x32xf32>
    %19 = arith.addf %16, %18 : vector<2x32xf32>
    %c0_15 = arith.constant 0 : index
    %c0_16 = arith.constant 0 : index
    %20 = vector.load %arg2[%c0_15, %c0_16] : memref<2x1xf32, #tpu.memory_space<vmem>>, vector<2x1xf32>
    %c0_17 = arith.constant 0 : index
    %c0_18 = arith.constant 0 : index
    %21 = vector.load %arg7[%c0_17, %c0_18] : memref<1x32xf32, #tpu.memory_space<vmem>>, vector<1x32xf32>
    %22 = vector.broadcast %20 : vector<2x1xf32> to vector<2x32xf32>
    %23 = vector.broadcast %21 : vector<1x32xf32> to vector<2x32xf32>
    %24 = arith.mulf %22, %23 : vector<2x32xf32>
    %c0_19 = arith.constant 0 : index
    %c0_20 = arith.constant 0 : index
    %25 = vector.load %arg8[%c0_19, %c0_20] : memref<1x32xf32, #tpu.memory_space<vmem>>, vector<1x32xf32>
    %26 = vector.broadcast %25 : vector<1x32xf32> to vector<2x32xf32>
    %27 = arith.addf %24, %26 : vector<2x32xf32>
    %c2 = arith.constant 2 : index
    %c0_21 = arith.constant 0 : index
    %28 = vector.load %arg9[%c2, %c0_21] : memref<3x32xf32, #tpu.memory_space<vmem>>, vector<1x32xf32>
    %29 = vector.broadcast %28 : vector<1x32xf32> to vector<2x32xf32>
    %30 = arith.addf %27, %29 : vector<2x32xf32>
    %31 = tpu.concatenate %9, %19, %30 in 0 : vector<2x32xf32>, vector<2x32xf32>, vector<2x32xf32> -> vector<6x32xf32>
    %32 = tpu.iota {dimensions = array<i32: 0>} : vector<6x6xi32>
    %33 = tpu.iota {dimensions = array<i32: 1>} : vector<6x6xi32>
    %34 = arith.subi %32, %33 : vector<6x6xi32>
    %c-4_i32 = arith.constant -4 : i32
    %35 = vector.broadcast %c-4_i32 : i32 to vector<6x6xi32>
    %36 = arith.cmpi eq, %34, %35 : vector<6x6xi32>
    %c-2_i32 = arith.constant -2 : i32
    %37 = vector.broadcast %c-2_i32 : i32 to vector<6x6xi32>
    %38 = arith.cmpi eq, %34, %37 : vector<6x6xi32>
    %c0_i32 = arith.constant 0 : i32
    %39 = vector.broadcast %c0_i32 : i32 to vector<6x6xi32>
    %40 = arith.cmpi eq, %34, %39 : vector<6x6xi32>
    %c2_i32 = arith.constant 2 : i32
    %41 = vector.broadcast %c2_i32 : i32 to vector<6x6xi32>
    %42 = arith.cmpi eq, %34, %41 : vector<6x6xi32>
    %c4_i32 = arith.constant 4 : i32
    %43 = vector.broadcast %c4_i32 : i32 to vector<6x6xi32>
    %44 = arith.cmpi eq, %34, %43 : vector<6x6xi32>
    %45 = arith.ori %36, %38 : vector<6x6xi1>
    %46 = arith.ori %45, %40 : vector<6x6xi1>
    %47 = arith.ori %46, %42 : vector<6x6xi1>
    %48 = arith.ori %47, %44 : vector<6x6xi1>
    %cst_22 = arith.constant 0.000000e+00 : f32
    %cst_23 = arith.constant -1.000000e+30 : f32
    %49 = vector.broadcast %cst_22 : f32 to vector<6x6xf32>
    %50 = vector.broadcast %cst_23 : f32 to vector<6x6xf32>
    %51 = arith.select %48, %49, %50 : vector<6x6xi1>, vector<6x6xf32>
    %52 = tpu.concatenate %51, %51, %51, %51 in 0 : vector<6x6xf32>, vector<6x6xf32>, vector<6x6xf32>, vector<6x6xf32> -> vector<24x6xf32>
    %53 = tpu.iota {dimensions = array<i32: 1>} : vector<1x32xi32>
    %c0_i32_24 = arith.constant 0 : i32
    %54 = vector.broadcast %c0_i32_24 : i32 to vector<1x32xi32>
    %55 = arith.cmpi sge, %53, %54 : vector<1x32xi32>
    %c8_i32 = arith.constant 8 : i32
    %56 = vector.broadcast %c8_i32 : i32 to vector<1x32xi32>
    %57 = arith.cmpi slt, %53, %56 : vector<1x32xi32>
    %58 = arith.andi %55, %57 : vector<1x32xi1>
    %59 = arith.extui %58 : vector<1x32xi1> to vector<1x32xi32>
    %60 = arith.sitofp %59 : vector<1x32xi32> to vector<1x32xf32>
    %c8_i32_25 = arith.constant 8 : i32
    %61 = vector.broadcast %c8_i32_25 : i32 to vector<1x32xi32>
    %62 = arith.cmpi sge, %53, %61 : vector<1x32xi32>
    %c16_i32 = arith.constant 16 : i32
    %63 = vector.broadcast %c16_i32 : i32 to vector<1x32xi32>
    %64 = arith.cmpi slt, %53, %63 : vector<1x32xi32>
    %65 = arith.andi %62, %64 : vector<1x32xi1>
    %66 = arith.extui %65 : vector<1x32xi1> to vector<1x32xi32>
    %67 = arith.sitofp %66 : vector<1x32xi32> to vector<1x32xf32>
    %c16_i32_26 = arith.constant 16 : i32
    %68 = vector.broadcast %c16_i32_26 : i32 to vector<1x32xi32>
    %69 = arith.cmpi sge, %53, %68 : vector<1x32xi32>
    %c24_i32 = arith.constant 24 : i32
    %70 = vector.broadcast %c24_i32 : i32 to vector<1x32xi32>
    %71 = arith.cmpi slt, %53, %70 : vector<1x32xi32>
    %72 = arith.andi %69, %71 : vector<1x32xi1>
    %73 = arith.extui %72 : vector<1x32xi1> to vector<1x32xi32>
    %74 = arith.sitofp %73 : vector<1x32xi32> to vector<1x32xf32>
    %c24_i32_27 = arith.constant 24 : i32
    %75 = vector.broadcast %c24_i32_27 : i32 to vector<1x32xi32>
    %76 = arith.cmpi sge, %53, %75 : vector<1x32xi32>
    %c32_i32 = arith.constant 32 : i32
    %77 = vector.broadcast %c32_i32 : i32 to vector<1x32xi32>
    %78 = arith.cmpi slt, %53, %77 : vector<1x32xi32>
    %79 = arith.andi %76, %78 : vector<1x32xi1>
    %80 = arith.extui %79 : vector<1x32xi1> to vector<1x32xi32>
    %81 = arith.sitofp %80 : vector<1x32xi32> to vector<1x32xf32>
    %c0_28 = arith.constant 0 : index
    %c0_29 = arith.constant 0 : index
    %c0_30 = arith.constant 0 : index
    %82 = vector.load %arg10[%c0_28, %c0_29, %c0_30] : memref<5x32x96xbf16, #tpu.memory_space<vmem>>, vector<1x32x96xbf16>
    %83 = vector.shape_cast %82 : vector<1x32x96xbf16> to vector<32x96xbf16>
    %c0_31 = arith.constant 0 : index
    %c0_32 = arith.constant 0 : index
    %c0_33 = arith.constant 0 : index
    %84 = vector.load %arg11[%c0_31, %c0_32, %c0_33] : memref<5x1x96xf32, #tpu.memory_space<vmem>>, vector<1x1x96xf32>
    %85 = vector.shape_cast %84 : vector<1x1x96xf32> to vector<1x96xf32>
    %86 = arith.truncf %31 : vector<6x32xf32> to vector<6x32xbf16>
    %cst_34 = arith.constant dense<0.000000e+00> : vector<6x96xf32>
    %87 = tpu.matmul %86, %83, %cst_34 {dimension_numbers = #tpu.dot_dimension_numbers<[1], [0], [0], [1], [0, 0, 1, 1], [], []>} : vector<6x32xbf16>, vector<32x96xbf16>, vector<6x96xf32> -> vector<6x96xf32>
    %88 = vector.broadcast %85 : vector<1x96xf32> to vector<6x96xf32>
    %89 = arith.addf %87, %88 : vector<6x96xf32>
    %90 = vector.extract_strided_slice %89 {offsets = [0, 0], sizes = [6, 32], strides = [1, 1]} : vector<6x96xf32> to vector<6x32xf32>
    %91 = vector.extract_strided_slice %89 {offsets = [0, 32], sizes = [6, 32], strides = [1, 1]} : vector<6x96xf32> to vector<6x32xf32>
    %92 = vector.extract_strided_slice %89 {offsets = [0, 64], sizes = [6, 32], strides = [1, 1]} : vector<6x96xf32> to vector<6x32xf32>
    %93 = tpu.transpose %91, [1, 0] : vector<6x32xf32> -> vector<32x6xf32>
    %94 = vector.broadcast %60 : vector<1x32xf32> to vector<6x32xf32>
    %95 = arith.mulf %90, %94 : vector<6x32xf32>
    %96 = vector.broadcast %67 : vector<1x32xf32> to vector<6x32xf32>
    %97 = arith.mulf %90, %96 : vector<6x32xf32>
    %98 = vector.broadcast %74 : vector<1x32xf32> to vector<6x32xf32>
    %99 = arith.mulf %90, %98 : vector<6x32xf32>
    %100 = vector.broadcast %81 : vector<1x32xf32> to vector<6x32xf32>
    %101 = arith.mulf %90, %100 : vector<6x32xf32>
    %102 = tpu.concatenate %95, %97, %99, %101 in 0 : vector<6x32xf32>, vector<6x32xf32>, vector<6x32xf32>, vector<6x32xf32> -> vector<24x32xf32>
    %103 = arith.truncf %102 : vector<24x32xf32> to vector<24x32xbf16>
    %104 = arith.truncf %93 : vector<32x6xf32> to vector<32x6xbf16>
    %cst_35 = arith.constant dense<0.000000e+00> : vector<24x6xf32>
    %105 = tpu.matmul %103, %104, %cst_35 {dimension_numbers = #tpu.dot_dimension_numbers<[1], [0], [0], [1], [0, 0, 1, 1], [], []>} : vector<24x32xbf16>, vector<32x6xbf16>, vector<24x6xf32> -> vector<24x6xf32>
    %cst_36 = arith.constant 0.353553385 : f32
    %106 = vector.broadcast %cst_36 : f32 to vector<24x6xf32>
    %107 = arith.mulf %105, %106 : vector<24x6xf32>
    %108 = arith.addf %107, %52 : vector<24x6xf32>
    %cst_37 = arith.constant dense<0xFF800000> : vector<24xf32>
    %109 = vector.multi_reduction <maximumf>, %108, %cst_37 [1] : vector<24x6xf32> to vector<24xf32>
    %110 = vector.shape_cast %109 : vector<24xf32> to vector<24x1xf32>
    %111 = vector.broadcast %110 : vector<24x1xf32> to vector<24x6xf32>
    %112 = arith.subf %108, %111 : vector<24x6xf32>
    %113 = math.exp %112 : vector<24x6xf32>
    %cst_38 = arith.constant dense<0.000000e+00> : vector<24xf32>
    %114 = vector.multi_reduction <add>, %113, %cst_38 [1] : vector<24x6xf32> to vector<24xf32>
    %115 = vector.shape_cast %114 : vector<24xf32> to vector<24x1xf32>
    %116 = tpu.reciprocal %115 {approx = true} : vector<24x1xf32> -> vector<24x1xf32>
    %117 = vector.broadcast %116 : vector<24x1xf32> to vector<24x6xf32>
    %118 = arith.mulf %113, %117 : vector<24x6xf32>
    %119 = arith.truncf %118 : vector<24x6xf32> to vector<24x6xbf16>
    %120 = arith.truncf %92 : vector<6x32xf32> to vector<6x32xbf16>
    %cst_39 = arith.constant dense<0.000000e+00> : vector<24x32xf32>
    %121 = tpu.matmul %119, %120, %cst_39 {dimension_numbers = #tpu.dot_dimension_numbers<[1], [0], [0], [1], [0, 0, 1, 1], [], []>} : vector<24x6xbf16>, vector<6x32xbf16>, vector<24x32xf32> -> vector<24x32xf32>
    %122 = vector.extract_strided_slice %121 {offsets = [0, 0], sizes = [6, 32], strides = [1, 1]} : vector<24x32xf32> to vector<6x32xf32>
    %123 = vector.broadcast %60 : vector<1x32xf32> to vector<6x32xf32>
    %124 = arith.mulf %122, %123 : vector<6x32xf32>
    %125 = vector.extract_strided_slice %121 {offsets = [6, 0], sizes = [6, 32], strides = [1, 1]} : vector<24x32xf32> to vector<6x32xf32>
    %126 = vector.broadcast %67 : vector<1x32xf32> to vector<6x32xf32>
    %127 = arith.mulf %125, %126 : vector<6x32xf32>
    %128 = vector.extract_strided_slice %121 {offsets = [12, 0], sizes = [6, 32], strides = [1, 1]} : vector<24x32xf32> to vector<6x32xf32>
    %129 = vector.broadcast %74 : vector<1x32xf32> to vector<6x32xf32>
    %130 = arith.mulf %128, %129 : vector<6x32xf32>
    %131 = vector.extract_strided_slice %121 {offsets = [18, 0], sizes = [6, 32], strides = [1, 1]} : vector<24x32xf32> to vector<6x32xf32>
    %132 = vector.broadcast %81 : vector<1x32xf32> to vector<6x32xf32>
    %133 = arith.mulf %131, %132 : vector<6x32xf32>
    %134 = arith.addf %124, %127 : vector<6x32xf32>
    %135 = arith.addf %134, %130 : vector<6x32xf32>
    %136 = arith.addf %135, %133 : vector<6x32xf32>
    %c0_40 = arith.constant 0 : index
    %c0_41 = arith.constant 0 : index
    %c0_42 = arith.constant 0 : index
    %137 = vector.load %arg12[%c0_40, %c0_41, %c0_42] : memref<5x32x32xbf16, #tpu.memory_space<vmem>>, vector<1x32x32xbf16>
    %138 = vector.shape_cast %137 : vector<1x32x32xbf16> to vector<32x32xbf16>
    %c0_43 = arith.constant 0 : index
    %c0_44 = arith.constant 0 : index
    %c0_45 = arith.constant 0 : index
    %139 = vector.load %arg13[%c0_43, %c0_44, %c0_45] : memref<5x1x32xf32, #tpu.memory_space<vmem>>, vector<1x1x32xf32>
    %140 = vector.shape_cast %139 : vector<1x1x32xf32> to vector<1x32xf32>
    %141 = arith.truncf %136 : vector<6x32xf32> to vector<6x32xbf16>
    %cst_46 = arith.constant dense<0.000000e+00> : vector<6x32xf32>
    %142 = tpu.matmul %141, %138, %cst_46 {dimension_numbers = #tpu.dot_dimension_numbers<[1], [0], [0], [1], [0, 0, 1, 1], [], []>} : vector<6x32xbf16>, vector<32x32xbf16>, vector<6x32xf32> -> vector<6x32xf32>
    %143 = vector.broadcast %140 : vector<1x32xf32> to vector<6x32xf32>
    %144 = arith.addf %142, %143 : vector<6x32xf32>
    %145 = arith.addf %31, %144 : vector<6x32xf32>
    %c0_47 = arith.constant 0 : index
    %c0_48 = arith.constant 0 : index
    %c0_49 = arith.constant 0 : index
    %146 = vector.load %arg14[%c0_47, %c0_48, %c0_49] : memref<5x1x32xf32, #tpu.memory_space<vmem>>, vector<1x1x32xf32>
    %147 = vector.shape_cast %146 : vector<1x1x32xf32> to vector<1x32xf32>
    %c0_50 = arith.constant 0 : index
    %c0_51 = arith.constant 0 : index
    %c0_52 = arith.constant 0 : index
    %148 = vector.load %arg15[%c0_50, %c0_51, %c0_52] : memref<5x1x32xf32, #tpu.memory_space<vmem>>, vector<1x1x32xf32>
    %149 = vector.shape_cast %148 : vector<1x1x32xf32> to vector<1x32xf32>
    %cst_53 = arith.constant dense<0.000000e+00> : vector<6xf32>
    %150 = vector.multi_reduction <add>, %145, %cst_53 [1] : vector<6x32xf32> to vector<6xf32>
    %151 = vector.shape_cast %150 : vector<6xf32> to vector<6x1xf32>
    %cst_54 = arith.constant 3.200000e+01 : f32
    %152 = vector.broadcast %cst_54 : f32 to vector<6x1xf32>
    %153 = arith.divf %151, %152 : vector<6x1xf32>
    %154 = vector.broadcast %153 : vector<6x1xf32> to vector<6x32xf32>
    %155 = arith.subf %145, %154 : vector<6x32xf32>
    %156 = arith.mulf %155, %155 : vector<6x32xf32>
    %cst_55 = arith.constant dense<0.000000e+00> : vector<6xf32>
    %157 = vector.multi_reduction <add>, %156, %cst_55 [1] : vector<6x32xf32> to vector<6xf32>
    %158 = vector.shape_cast %157 : vector<6xf32> to vector<6x1xf32>
    %cst_56 = arith.constant 3.200000e+01 : f32
    %159 = vector.broadcast %cst_56 : f32 to vector<6x1xf32>
    %160 = arith.divf %158, %159 : vector<6x1xf32>
    %cst_57 = arith.constant 9.99999974E-6 : f32
    %161 = vector.broadcast %cst_57 : f32 to vector<6x1xf32>
    %162 = arith.addf %160, %161 : vector<6x1xf32>
    %163 = math.rsqrt %162 : vector<6x1xf32>
    %164 = vector.broadcast %163 : vector<6x1xf32> to vector<6x32xf32>
    %165 = arith.mulf %155, %164 : vector<6x32xf32>
    %166 = vector.broadcast %147 : vector<1x32xf32> to vector<6x32xf32>
    %167 = arith.mulf %165, %166 : vector<6x32xf32>
    %168 = vector.broadcast %149 : vector<1x32xf32> to vector<6x32xf32>
    %169 = arith.addf %167, %168 : vector<6x32xf32>
    %c0_58 = arith.constant 0 : index
    %c0_59 = arith.constant 0 : index
    %c0_60 = arith.constant 0 : index
    %170 = vector.load %arg16[%c0_58, %c0_59, %c0_60] : memref<5x32x2048xbf16, #tpu.memory_space<vmem>>, vector<1x32x2048xbf16>
    %171 = vector.shape_cast %170 : vector<1x32x2048xbf16> to vector<32x2048xbf16>
    %c0_61 = arith.constant 0 : index
    %c0_62 = arith.constant 0 : index
    %c0_63 = arith.constant 0 : index
    %172 = vector.load %arg17[%c0_61, %c0_62, %c0_63] : memref<5x1x2048xf32, #tpu.memory_space<vmem>>, vector<1x1x2048xf32>
    %173 = vector.shape_cast %172 : vector<1x1x2048xf32> to vector<1x2048xf32>
    %174 = arith.truncf %169 : vector<6x32xf32> to vector<6x32xbf16>
    %cst_64 = arith.constant dense<0.000000e+00> : vector<6x2048xf32>
    %175 = tpu.matmul %174, %171, %cst_64 {dimension_numbers = #tpu.dot_dimension_numbers<[1], [0], [0], [1], [0, 0, 1, 1], [], []>} : vector<6x32xbf16>, vector<32x2048xbf16>, vector<6x2048xf32> -> vector<6x2048xf32>
    %176 = vector.broadcast %173 : vector<1x2048xf32> to vector<6x2048xf32>
    %177 = arith.addf %175, %176 : vector<6x2048xf32>
    %cst_65 = arith.constant 0.000000e+00 : f32
    %178 = vector.broadcast %cst_65 : f32 to vector<6x2048xf32>
    %179 = arith.maximumf %177, %178 : vector<6x2048xf32>
    %c0_66 = arith.constant 0 : index
    %c0_67 = arith.constant 0 : index
    %c0_68 = arith.constant 0 : index
    %180 = vector.load %arg18[%c0_66, %c0_67, %c0_68] : memref<5x2048x32xbf16, #tpu.memory_space<vmem>>, vector<1x2048x32xbf16>
    %181 = vector.shape_cast %180 : vector<1x2048x32xbf16> to vector<2048x32xbf16>
    %c0_69 = arith.constant 0 : index
    %c0_70 = arith.constant 0 : index
    %c0_71 = arith.constant 0 : index
    %182 = vector.load %arg19[%c0_69, %c0_70, %c0_71] : memref<5x1x32xf32, #tpu.memory_space<vmem>>, vector<1x1x32xf32>
    %183 = vector.shape_cast %182 : vector<1x1x32xf32> to vector<1x32xf32>
    %184 = arith.truncf %179 : vector<6x2048xf32> to vector<6x2048xbf16>
    %cst_72 = arith.constant dense<0.000000e+00> : vector<6x32xf32>
    %185 = tpu.matmul %184, %181, %cst_72 {dimension_numbers = #tpu.dot_dimension_numbers<[1], [0], [0], [1], [0, 0, 1, 1], [], []>} : vector<6x2048xbf16>, vector<2048x32xbf16>, vector<6x32xf32> -> vector<6x32xf32>
    %186 = vector.broadcast %183 : vector<1x32xf32> to vector<6x32xf32>
    %187 = arith.addf %185, %186 : vector<6x32xf32>
    %188 = arith.addf %169, %187 : vector<6x32xf32>
    %c0_73 = arith.constant 0 : index
    %c0_74 = arith.constant 0 : index
    %c0_75 = arith.constant 0 : index
    %189 = vector.load %arg20[%c0_73, %c0_74, %c0_75] : memref<5x1x32xf32, #tpu.memory_space<vmem>>, vector<1x1x32xf32>
    %190 = vector.shape_cast %189 : vector<1x1x32xf32> to vector<1x32xf32>
    %c0_76 = arith.constant 0 : index
    %c0_77 = arith.constant 0 : index
    %c0_78 = arith.constant 0 : index
    %191 = vector.load %arg21[%c0_76, %c0_77, %c0_78] : memref<5x1x32xf32, #tpu.memory_space<vmem>>, vector<1x1x32xf32>
    %192 = vector.shape_cast %191 : vector<1x1x32xf32> to vector<1x32xf32>
    %cst_79 = arith.constant dense<0.000000e+00> : vector<6xf32>
    %193 = vector.multi_reduction <add>, %188, %cst_79 [1] : vector<6x32xf32> to vector<6xf32>
    %194 = vector.shape_cast %193 : vector<6xf32> to vector<6x1xf32>
    %cst_80 = arith.constant 3.200000e+01 : f32
    %195 = vector.broadcast %cst_80 : f32 to vector<6x1xf32>
    %196 = arith.divf %194, %195 : vector<6x1xf32>
    %197 = vector.broadcast %196 : vector<6x1xf32> to vector<6x32xf32>
    %198 = arith.subf %188, %197 : vector<6x32xf32>
    %199 = arith.mulf %198, %198 : vector<6x32xf32>
    %cst_81 = arith.constant dense<0.000000e+00> : vector<6xf32>
    %200 = vector.multi_reduction <add>, %199, %cst_81 [1] : vector<6x32xf32> to vector<6xf32>
    %201 = vector.shape_cast %200 : vector<6xf32> to vector<6x1xf32>
    %cst_82 = arith.constant 3.200000e+01 : f32
    %202 = vector.broadcast %cst_82 : f32 to vector<6x1xf32>
    %203 = arith.divf %201, %202 : vector<6x1xf32>
    %cst_83 = arith.constant 9.99999974E-6 : f32
    %204 = vector.broadcast %cst_83 : f32 to vector<6x1xf32>
    %205 = arith.addf %203, %204 : vector<6x1xf32>
    %206 = math.rsqrt %205 : vector<6x1xf32>
    %207 = vector.broadcast %206 : vector<6x1xf32> to vector<6x32xf32>
    %208 = arith.mulf %198, %207 : vector<6x32xf32>
    %209 = vector.broadcast %190 : vector<1x32xf32> to vector<6x32xf32>
    %210 = arith.mulf %208, %209 : vector<6x32xf32>
    %211 = vector.broadcast %192 : vector<1x32xf32> to vector<6x32xf32>
    %212 = arith.addf %210, %211 : vector<6x32xf32>
    %c1_84 = arith.constant 1 : index
    %c0_85 = arith.constant 0 : index
    %c0_86 = arith.constant 0 : index
    %213 = vector.load %arg10[%c1_84, %c0_85, %c0_86] : memref<5x32x96xbf16, #tpu.memory_space<vmem>>, vector<1x32x96xbf16>
    %214 = vector.shape_cast %213 : vector<1x32x96xbf16> to vector<32x96xbf16>
    %c1_87 = arith.constant 1 : index
    %c0_88 = arith.constant 0 : index
    %c0_89 = arith.constant 0 : index
    %215 = vector.load %arg11[%c1_87, %c0_88, %c0_89] : memref<5x1x96xf32, #tpu.memory_space<vmem>>, vector<1x1x96xf32>
    %216 = vector.shape_cast %215 : vector<1x1x96xf32> to vector<1x96xf32>
    %217 = arith.truncf %212 : vector<6x32xf32> to vector<6x32xbf16>
    %cst_90 = arith.constant dense<0.000000e+00> : vector<6x96xf32>
    %218 = tpu.matmul %217, %214, %cst_90 {dimension_numbers = #tpu.dot_dimension_numbers<[1], [0], [0], [1], [0, 0, 1, 1], [], []>} : vector<6x32xbf16>, vector<32x96xbf16>, vector<6x96xf32> -> vector<6x96xf32>
    %219 = vector.broadcast %216 : vector<1x96xf32> to vector<6x96xf32>
    %220 = arith.addf %218, %219 : vector<6x96xf32>
    %221 = vector.extract_strided_slice %220 {offsets = [0, 0], sizes = [6, 32], strides = [1, 1]} : vector<6x96xf32> to vector<6x32xf32>
    %222 = vector.extract_strided_slice %220 {offsets = [0, 32], sizes = [6, 32], strides = [1, 1]} : vector<6x96xf32> to vector<6x32xf32>
    %223 = vector.extract_strided_slice %220 {offsets = [0, 64], sizes = [6, 32], strides = [1, 1]} : vector<6x96xf32> to vector<6x32xf32>
    %224 = tpu.transpose %222, [1, 0] : vector<6x32xf32> -> vector<32x6xf32>
    %225 = vector.broadcast %60 : vector<1x32xf32> to vector<6x32xf32>
    %226 = arith.mulf %221, %225 : vector<6x32xf32>
    %227 = vector.broadcast %67 : vector<1x32xf32> to vector<6x32xf32>
    %228 = arith.mulf %221, %227 : vector<6x32xf32>
    %229 = vector.broadcast %74 : vector<1x32xf32> to vector<6x32xf32>
    %230 = arith.mulf %221, %229 : vector<6x32xf32>
    %231 = vector.broadcast %81 : vector<1x32xf32> to vector<6x32xf32>
    %232 = arith.mulf %221, %231 : vector<6x32xf32>
    %233 = tpu.concatenate %226, %228, %230, %232 in 0 : vector<6x32xf32>, vector<6x32xf32>, vector<6x32xf32>, vector<6x32xf32> -> vector<24x32xf32>
    %234 = arith.truncf %233 : vector<24x32xf32> to vector<24x32xbf16>
    %235 = arith.truncf %224 : vector<32x6xf32> to vector<32x6xbf16>
    %cst_91 = arith.constant dense<0.000000e+00> : vector<24x6xf32>
    %236 = tpu.matmul %234, %235, %cst_91 {dimension_numbers = #tpu.dot_dimension_numbers<[1], [0], [0], [1], [0, 0, 1, 1], [], []>} : vector<24x32xbf16>, vector<32x6xbf16>, vector<24x6xf32> -> vector<24x6xf32>
    %cst_92 = arith.constant 0.353553385 : f32
    %237 = vector.broadcast %cst_92 : f32 to vector<24x6xf32>
    %238 = arith.mulf %236, %237 : vector<24x6xf32>
    %239 = arith.addf %238, %52 : vector<24x6xf32>
    %cst_93 = arith.constant dense<0xFF800000> : vector<24xf32>
    %240 = vector.multi_reduction <maximumf>, %239, %cst_93 [1] : vector<24x6xf32> to vector<24xf32>
    %241 = vector.shape_cast %240 : vector<24xf32> to vector<24x1xf32>
    %242 = vector.broadcast %241 : vector<24x1xf32> to vector<24x6xf32>
    %243 = arith.subf %239, %242 : vector<24x6xf32>
    %244 = math.exp %243 : vector<24x6xf32>
    %cst_94 = arith.constant dense<0.000000e+00> : vector<24xf32>
    %245 = vector.multi_reduction <add>, %244, %cst_94 [1] : vector<24x6xf32> to vector<24xf32>
    %246 = vector.shape_cast %245 : vector<24xf32> to vector<24x1xf32>
    %247 = tpu.reciprocal %246 {approx = true} : vector<24x1xf32> -> vector<24x1xf32>
    %248 = vector.broadcast %247 : vector<24x1xf32> to vector<24x6xf32>
    %249 = arith.mulf %244, %248 : vector<24x6xf32>
    %250 = arith.truncf %249 : vector<24x6xf32> to vector<24x6xbf16>
    %251 = arith.truncf %223 : vector<6x32xf32> to vector<6x32xbf16>
    %cst_95 = arith.constant dense<0.000000e+00> : vector<24x32xf32>
    %252 = tpu.matmul %250, %251, %cst_95 {dimension_numbers = #tpu.dot_dimension_numbers<[1], [0], [0], [1], [0, 0, 1, 1], [], []>} : vector<24x6xbf16>, vector<6x32xbf16>, vector<24x32xf32> -> vector<24x32xf32>
    %253 = vector.extract_strided_slice %252 {offsets = [0, 0], sizes = [6, 32], strides = [1, 1]} : vector<24x32xf32> to vector<6x32xf32>
    %254 = vector.broadcast %60 : vector<1x32xf32> to vector<6x32xf32>
    %255 = arith.mulf %253, %254 : vector<6x32xf32>
    %256 = vector.extract_strided_slice %252 {offsets = [6, 0], sizes = [6, 32], strides = [1, 1]} : vector<24x32xf32> to vector<6x32xf32>
    %257 = vector.broadcast %67 : vector<1x32xf32> to vector<6x32xf32>
    %258 = arith.mulf %256, %257 : vector<6x32xf32>
    %259 = vector.extract_strided_slice %252 {offsets = [12, 0], sizes = [6, 32], strides = [1, 1]} : vector<24x32xf32> to vector<6x32xf32>
    %260 = vector.broadcast %74 : vector<1x32xf32> to vector<6x32xf32>
    %261 = arith.mulf %259, %260 : vector<6x32xf32>
    %262 = vector.extract_strided_slice %252 {offsets = [18, 0], sizes = [6, 32], strides = [1, 1]} : vector<24x32xf32> to vector<6x32xf32>
    %263 = vector.broadcast %81 : vector<1x32xf32> to vector<6x32xf32>
    %264 = arith.mulf %262, %263 : vector<6x32xf32>
    %265 = arith.addf %255, %258 : vector<6x32xf32>
    %266 = arith.addf %265, %261 : vector<6x32xf32>
    %267 = arith.addf %266, %264 : vector<6x32xf32>
    %c1_96 = arith.constant 1 : index
    %c0_97 = arith.constant 0 : index
    %c0_98 = arith.constant 0 : index
    %268 = vector.load %arg12[%c1_96, %c0_97, %c0_98] : memref<5x32x32xbf16, #tpu.memory_space<vmem>>, vector<1x32x32xbf16>
    %269 = vector.shape_cast %268 : vector<1x32x32xbf16> to vector<32x32xbf16>
    %c1_99 = arith.constant 1 : index
    %c0_100 = arith.constant 0 : index
    %c0_101 = arith.constant 0 : index
    %270 = vector.load %arg13[%c1_99, %c0_100, %c0_101] : memref<5x1x32xf32, #tpu.memory_space<vmem>>, vector<1x1x32xf32>
    %271 = vector.shape_cast %270 : vector<1x1x32xf32> to vector<1x32xf32>
    %272 = arith.truncf %267 : vector<6x32xf32> to vector<6x32xbf16>
    %cst_102 = arith.constant dense<0.000000e+00> : vector<6x32xf32>
    %273 = tpu.matmul %272, %269, %cst_102 {dimension_numbers = #tpu.dot_dimension_numbers<[1], [0], [0], [1], [0, 0, 1, 1], [], []>} : vector<6x32xbf16>, vector<32x32xbf16>, vector<6x32xf32> -> vector<6x32xf32>
    %274 = vector.broadcast %271 : vector<1x32xf32> to vector<6x32xf32>
    %275 = arith.addf %273, %274 : vector<6x32xf32>
    %276 = arith.addf %212, %275 : vector<6x32xf32>
    %c1_103 = arith.constant 1 : index
    %c0_104 = arith.constant 0 : index
    %c0_105 = arith.constant 0 : index
    %277 = vector.load %arg14[%c1_103, %c0_104, %c0_105] : memref<5x1x32xf32, #tpu.memory_space<vmem>>, vector<1x1x32xf32>
    %278 = vector.shape_cast %277 : vector<1x1x32xf32> to vector<1x32xf32>
    %c1_106 = arith.constant 1 : index
    %c0_107 = arith.constant 0 : index
    %c0_108 = arith.constant 0 : index
    %279 = vector.load %arg15[%c1_106, %c0_107, %c0_108] : memref<5x1x32xf32, #tpu.memory_space<vmem>>, vector<1x1x32xf32>
    %280 = vector.shape_cast %279 : vector<1x1x32xf32> to vector<1x32xf32>
    %cst_109 = arith.constant dense<0.000000e+00> : vector<6xf32>
    %281 = vector.multi_reduction <add>, %276, %cst_109 [1] : vector<6x32xf32> to vector<6xf32>
    %282 = vector.shape_cast %281 : vector<6xf32> to vector<6x1xf32>
    %cst_110 = arith.constant 3.200000e+01 : f32
    %283 = vector.broadcast %cst_110 : f32 to vector<6x1xf32>
    %284 = arith.divf %282, %283 : vector<6x1xf32>
    %285 = vector.broadcast %284 : vector<6x1xf32> to vector<6x32xf32>
    %286 = arith.subf %276, %285 : vector<6x32xf32>
    %287 = arith.mulf %286, %286 : vector<6x32xf32>
    %cst_111 = arith.constant dense<0.000000e+00> : vector<6xf32>
    %288 = vector.multi_reduction <add>, %287, %cst_111 [1] : vector<6x32xf32> to vector<6xf32>
    %289 = vector.shape_cast %288 : vector<6xf32> to vector<6x1xf32>
    %cst_112 = arith.constant 3.200000e+01 : f32
    %290 = vector.broadcast %cst_112 : f32 to vector<6x1xf32>
    %291 = arith.divf %289, %290 : vector<6x1xf32>
    %cst_113 = arith.constant 9.99999974E-6 : f32
    %292 = vector.broadcast %cst_113 : f32 to vector<6x1xf32>
    %293 = arith.addf %291, %292 : vector<6x1xf32>
    %294 = math.rsqrt %293 : vector<6x1xf32>
    %295 = vector.broadcast %294 : vector<6x1xf32> to vector<6x32xf32>
    %296 = arith.mulf %286, %295 : vector<6x32xf32>
    %297 = vector.broadcast %278 : vector<1x32xf32> to vector<6x32xf32>
    %298 = arith.mulf %296, %297 : vector<6x32xf32>
    %299 = vector.broadcast %280 : vector<1x32xf32> to vector<6x32xf32>
    %300 = arith.addf %298, %299 : vector<6x32xf32>
    %c1_114 = arith.constant 1 : index
    %c0_115 = arith.constant 0 : index
    %c0_116 = arith.constant 0 : index
    %301 = vector.load %arg16[%c1_114, %c0_115, %c0_116] : memref<5x32x2048xbf16, #tpu.memory_space<vmem>>, vector<1x32x2048xbf16>
    %302 = vector.shape_cast %301 : vector<1x32x2048xbf16> to vector<32x2048xbf16>
    %c1_117 = arith.constant 1 : index
    %c0_118 = arith.constant 0 : index
    %c0_119 = arith.constant 0 : index
    %303 = vector.load %arg17[%c1_117, %c0_118, %c0_119] : memref<5x1x2048xf32, #tpu.memory_space<vmem>>, vector<1x1x2048xf32>
    %304 = vector.shape_cast %303 : vector<1x1x2048xf32> to vector<1x2048xf32>
    %305 = arith.truncf %300 : vector<6x32xf32> to vector<6x32xbf16>
    %cst_120 = arith.constant dense<0.000000e+00> : vector<6x2048xf32>
    %306 = tpu.matmul %305, %302, %cst_120 {dimension_numbers = #tpu.dot_dimension_numbers<[1], [0], [0], [1], [0, 0, 1, 1], [], []>} : vector<6x32xbf16>, vector<32x2048xbf16>, vector<6x2048xf32> -> vector<6x2048xf32>
    %307 = vector.broadcast %304 : vector<1x2048xf32> to vector<6x2048xf32>
    %308 = arith.addf %306, %307 : vector<6x2048xf32>
    %cst_121 = arith.constant 0.000000e+00 : f32
    %309 = vector.broadcast %cst_121 : f32 to vector<6x2048xf32>
    %310 = arith.maximumf %308, %309 : vector<6x2048xf32>
    %c1_122 = arith.constant 1 : index
    %c0_123 = arith.constant 0 : index
    %c0_124 = arith.constant 0 : index
    %311 = vector.load %arg18[%c1_122, %c0_123, %c0_124] : memref<5x2048x32xbf16, #tpu.memory_space<vmem>>, vector<1x2048x32xbf16>
    %312 = vector.shape_cast %311 : vector<1x2048x32xbf16> to vector<2048x32xbf16>
    %c1_125 = arith.constant 1 : index
    %c0_126 = arith.constant 0 : index
    %c0_127 = arith.constant 0 : index
    %313 = vector.load %arg19[%c1_125, %c0_126, %c0_127] : memref<5x1x32xf32, #tpu.memory_space<vmem>>, vector<1x1x32xf32>
    %314 = vector.shape_cast %313 : vector<1x1x32xf32> to vector<1x32xf32>
    %315 = arith.truncf %310 : vector<6x2048xf32> to vector<6x2048xbf16>
    %cst_128 = arith.constant dense<0.000000e+00> : vector<6x32xf32>
    %316 = tpu.matmul %315, %312, %cst_128 {dimension_numbers = #tpu.dot_dimension_numbers<[1], [0], [0], [1], [0, 0, 1, 1], [], []>} : vector<6x2048xbf16>, vector<2048x32xbf16>, vector<6x32xf32> -> vector<6x32xf32>
    %317 = vector.broadcast %314 : vector<1x32xf32> to vector<6x32xf32>
    %318 = arith.addf %316, %317 : vector<6x32xf32>
    %319 = arith.addf %300, %318 : vector<6x32xf32>
    %c1_129 = arith.constant 1 : index
    %c0_130 = arith.constant 0 : index
    %c0_131 = arith.constant 0 : index
    %320 = vector.load %arg20[%c1_129, %c0_130, %c0_131] : memref<5x1x32xf32, #tpu.memory_space<vmem>>, vector<1x1x32xf32>
    %321 = vector.shape_cast %320 : vector<1x1x32xf32> to vector<1x32xf32>
    %c1_132 = arith.constant 1 : index
    %c0_133 = arith.constant 0 : index
    %c0_134 = arith.constant 0 : index
    %322 = vector.load %arg21[%c1_132, %c0_133, %c0_134] : memref<5x1x32xf32, #tpu.memory_space<vmem>>, vector<1x1x32xf32>
    %323 = vector.shape_cast %322 : vector<1x1x32xf32> to vector<1x32xf32>
    %cst_135 = arith.constant dense<0.000000e+00> : vector<6xf32>
    %324 = vector.multi_reduction <add>, %319, %cst_135 [1] : vector<6x32xf32> to vector<6xf32>
    %325 = vector.shape_cast %324 : vector<6xf32> to vector<6x1xf32>
    %cst_136 = arith.constant 3.200000e+01 : f32
    %326 = vector.broadcast %cst_136 : f32 to vector<6x1xf32>
    %327 = arith.divf %325, %326 : vector<6x1xf32>
    %328 = vector.broadcast %327 : vector<6x1xf32> to vector<6x32xf32>
    %329 = arith.subf %319, %328 : vector<6x32xf32>
    %330 = arith.mulf %329, %329 : vector<6x32xf32>
    %cst_137 = arith.constant dense<0.000000e+00> : vector<6xf32>
    %331 = vector.multi_reduction <add>, %330, %cst_137 [1] : vector<6x32xf32> to vector<6xf32>
    %332 = vector.shape_cast %331 : vector<6xf32> to vector<6x1xf32>
    %cst_138 = arith.constant 3.200000e+01 : f32
    %333 = vector.broadcast %cst_138 : f32 to vector<6x1xf32>
    %334 = arith.divf %332, %333 : vector<6x1xf32>
    %cst_139 = arith.constant 9.99999974E-6 : f32
    %335 = vector.broadcast %cst_139 : f32 to vector<6x1xf32>
    %336 = arith.addf %334, %335 : vector<6x1xf32>
    %337 = math.rsqrt %336 : vector<6x1xf32>
    %338 = vector.broadcast %337 : vector<6x1xf32> to vector<6x32xf32>
    %339 = arith.mulf %329, %338 : vector<6x32xf32>
    %340 = vector.broadcast %321 : vector<1x32xf32> to vector<6x32xf32>
    %341 = arith.mulf %339, %340 : vector<6x32xf32>
    %342 = vector.broadcast %323 : vector<1x32xf32> to vector<6x32xf32>
    %343 = arith.addf %341, %342 : vector<6x32xf32>
    %c2_140 = arith.constant 2 : index
    %c0_141 = arith.constant 0 : index
    %c0_142 = arith.constant 0 : index
    %344 = vector.load %arg10[%c2_140, %c0_141, %c0_142] : memref<5x32x96xbf16, #tpu.memory_space<vmem>>, vector<1x32x96xbf16>
    %345 = vector.shape_cast %344 : vector<1x32x96xbf16> to vector<32x96xbf16>
    %c2_143 = arith.constant 2 : index
    %c0_144 = arith.constant 0 : index
    %c0_145 = arith.constant 0 : index
    %346 = vector.load %arg11[%c2_143, %c0_144, %c0_145] : memref<5x1x96xf32, #tpu.memory_space<vmem>>, vector<1x1x96xf32>
    %347 = vector.shape_cast %346 : vector<1x1x96xf32> to vector<1x96xf32>
    %348 = arith.truncf %343 : vector<6x32xf32> to vector<6x32xbf16>
    %cst_146 = arith.constant dense<0.000000e+00> : vector<6x96xf32>
    %349 = tpu.matmul %348, %345, %cst_146 {dimension_numbers = #tpu.dot_dimension_numbers<[1], [0], [0], [1], [0, 0, 1, 1], [], []>} : vector<6x32xbf16>, vector<32x96xbf16>, vector<6x96xf32> -> vector<6x96xf32>
    %350 = vector.broadcast %347 : vector<1x96xf32> to vector<6x96xf32>
    %351 = arith.addf %349, %350 : vector<6x96xf32>
    %352 = vector.extract_strided_slice %351 {offsets = [0, 0], sizes = [6, 32], strides = [1, 1]} : vector<6x96xf32> to vector<6x32xf32>
    %353 = vector.extract_strided_slice %351 {offsets = [0, 32], sizes = [6, 32], strides = [1, 1]} : vector<6x96xf32> to vector<6x32xf32>
    %354 = vector.extract_strided_slice %351 {offsets = [0, 64], sizes = [6, 32], strides = [1, 1]} : vector<6x96xf32> to vector<6x32xf32>
    %355 = tpu.transpose %353, [1, 0] : vector<6x32xf32> -> vector<32x6xf32>
    %356 = vector.broadcast %60 : vector<1x32xf32> to vector<6x32xf32>
    %357 = arith.mulf %352, %356 : vector<6x32xf32>
    %358 = vector.broadcast %67 : vector<1x32xf32> to vector<6x32xf32>
    %359 = arith.mulf %352, %358 : vector<6x32xf32>
    %360 = vector.broadcast %74 : vector<1x32xf32> to vector<6x32xf32>
    %361 = arith.mulf %352, %360 : vector<6x32xf32>
    %362 = vector.broadcast %81 : vector<1x32xf32> to vector<6x32xf32>
    %363 = arith.mulf %352, %362 : vector<6x32xf32>
    %364 = tpu.concatenate %357, %359, %361, %363 in 0 : vector<6x32xf32>, vector<6x32xf32>, vector<6x32xf32>, vector<6x32xf32> -> vector<24x32xf32>
    %365 = arith.truncf %364 : vector<24x32xf32> to vector<24x32xbf16>
    %366 = arith.truncf %355 : vector<32x6xf32> to vector<32x6xbf16>
    %cst_147 = arith.constant dense<0.000000e+00> : vector<24x6xf32>
    %367 = tpu.matmul %365, %366, %cst_147 {dimension_numbers = #tpu.dot_dimension_numbers<[1], [0], [0], [1], [0, 0, 1, 1], [], []>} : vector<24x32xbf16>, vector<32x6xbf16>, vector<24x6xf32> -> vector<24x6xf32>
    %cst_148 = arith.constant 0.353553385 : f32
    %368 = vector.broadcast %cst_148 : f32 to vector<24x6xf32>
    %369 = arith.mulf %367, %368 : vector<24x6xf32>
    %370 = arith.addf %369, %52 : vector<24x6xf32>
    %cst_149 = arith.constant dense<0xFF800000> : vector<24xf32>
    %371 = vector.multi_reduction <maximumf>, %370, %cst_149 [1] : vector<24x6xf32> to vector<24xf32>
    %372 = vector.shape_cast %371 : vector<24xf32> to vector<24x1xf32>
    %373 = vector.broadcast %372 : vector<24x1xf32> to vector<24x6xf32>
    %374 = arith.subf %370, %373 : vector<24x6xf32>
    %375 = math.exp %374 : vector<24x6xf32>
    %cst_150 = arith.constant dense<0.000000e+00> : vector<24xf32>
    %376 = vector.multi_reduction <add>, %375, %cst_150 [1] : vector<24x6xf32> to vector<24xf32>
    %377 = vector.shape_cast %376 : vector<24xf32> to vector<24x1xf32>
    %378 = tpu.reciprocal %377 {approx = true} : vector<24x1xf32> -> vector<24x1xf32>
    %379 = vector.broadcast %378 : vector<24x1xf32> to vector<24x6xf32>
    %380 = arith.mulf %375, %379 : vector<24x6xf32>
    %381 = arith.truncf %380 : vector<24x6xf32> to vector<24x6xbf16>
    %382 = arith.truncf %354 : vector<6x32xf32> to vector<6x32xbf16>
    %cst_151 = arith.constant dense<0.000000e+00> : vector<24x32xf32>
    %383 = tpu.matmul %381, %382, %cst_151 {dimension_numbers = #tpu.dot_dimension_numbers<[1], [0], [0], [1], [0, 0, 1, 1], [], []>} : vector<24x6xbf16>, vector<6x32xbf16>, vector<24x32xf32> -> vector<24x32xf32>
    %384 = vector.extract_strided_slice %383 {offsets = [0, 0], sizes = [6, 32], strides = [1, 1]} : vector<24x32xf32> to vector<6x32xf32>
    %385 = vector.broadcast %60 : vector<1x32xf32> to vector<6x32xf32>
    %386 = arith.mulf %384, %385 : vector<6x32xf32>
    %387 = vector.extract_strided_slice %383 {offsets = [6, 0], sizes = [6, 32], strides = [1, 1]} : vector<24x32xf32> to vector<6x32xf32>
    %388 = vector.broadcast %67 : vector<1x32xf32> to vector<6x32xf32>
    %389 = arith.mulf %387, %388 : vector<6x32xf32>
    %390 = vector.extract_strided_slice %383 {offsets = [12, 0], sizes = [6, 32], strides = [1, 1]} : vector<24x32xf32> to vector<6x32xf32>
    %391 = vector.broadcast %74 : vector<1x32xf32> to vector<6x32xf32>
    %392 = arith.mulf %390, %391 : vector<6x32xf32>
    %393 = vector.extract_strided_slice %383 {offsets = [18, 0], sizes = [6, 32], strides = [1, 1]} : vector<24x32xf32> to vector<6x32xf32>
    %394 = vector.broadcast %81 : vector<1x32xf32> to vector<6x32xf32>
    %395 = arith.mulf %393, %394 : vector<6x32xf32>
    %396 = arith.addf %386, %389 : vector<6x32xf32>
    %397 = arith.addf %396, %392 : vector<6x32xf32>
    %398 = arith.addf %397, %395 : vector<6x32xf32>
    %c2_152 = arith.constant 2 : index
    %c0_153 = arith.constant 0 : index
    %c0_154 = arith.constant 0 : index
    %399 = vector.load %arg12[%c2_152, %c0_153, %c0_154] : memref<5x32x32xbf16, #tpu.memory_space<vmem>>, vector<1x32x32xbf16>
    %400 = vector.shape_cast %399 : vector<1x32x32xbf16> to vector<32x32xbf16>
    %c2_155 = arith.constant 2 : index
    %c0_156 = arith.constant 0 : index
    %c0_157 = arith.constant 0 : index
    %401 = vector.load %arg13[%c2_155, %c0_156, %c0_157] : memref<5x1x32xf32, #tpu.memory_space<vmem>>, vector<1x1x32xf32>
    %402 = vector.shape_cast %401 : vector<1x1x32xf32> to vector<1x32xf32>
    %403 = arith.truncf %398 : vector<6x32xf32> to vector<6x32xbf16>
    %cst_158 = arith.constant dense<0.000000e+00> : vector<6x32xf32>
    %404 = tpu.matmul %403, %400, %cst_158 {dimension_numbers = #tpu.dot_dimension_numbers<[1], [0], [0], [1], [0, 0, 1, 1], [], []>} : vector<6x32xbf16>, vector<32x32xbf16>, vector<6x32xf32> -> vector<6x32xf32>
    %405 = vector.broadcast %402 : vector<1x32xf32> to vector<6x32xf32>
    %406 = arith.addf %404, %405 : vector<6x32xf32>
    %407 = arith.addf %343, %406 : vector<6x32xf32>
    %c2_159 = arith.constant 2 : index
    %c0_160 = arith.constant 0 : index
    %c0_161 = arith.constant 0 : index
    %408 = vector.load %arg14[%c2_159, %c0_160, %c0_161] : memref<5x1x32xf32, #tpu.memory_space<vmem>>, vector<1x1x32xf32>
    %409 = vector.shape_cast %408 : vector<1x1x32xf32> to vector<1x32xf32>
    %c2_162 = arith.constant 2 : index
    %c0_163 = arith.constant 0 : index
    %c0_164 = arith.constant 0 : index
    %410 = vector.load %arg15[%c2_162, %c0_163, %c0_164] : memref<5x1x32xf32, #tpu.memory_space<vmem>>, vector<1x1x32xf32>
    %411 = vector.shape_cast %410 : vector<1x1x32xf32> to vector<1x32xf32>
    %cst_165 = arith.constant dense<0.000000e+00> : vector<6xf32>
    %412 = vector.multi_reduction <add>, %407, %cst_165 [1] : vector<6x32xf32> to vector<6xf32>
    %413 = vector.shape_cast %412 : vector<6xf32> to vector<6x1xf32>
    %cst_166 = arith.constant 3.200000e+01 : f32
    %414 = vector.broadcast %cst_166 : f32 to vector<6x1xf32>
    %415 = arith.divf %413, %414 : vector<6x1xf32>
    %416 = vector.broadcast %415 : vector<6x1xf32> to vector<6x32xf32>
    %417 = arith.subf %407, %416 : vector<6x32xf32>
    %418 = arith.mulf %417, %417 : vector<6x32xf32>
    %cst_167 = arith.constant dense<0.000000e+00> : vector<6xf32>
    %419 = vector.multi_reduction <add>, %418, %cst_167 [1] : vector<6x32xf32> to vector<6xf32>
    %420 = vector.shape_cast %419 : vector<6xf32> to vector<6x1xf32>
    %cst_168 = arith.constant 3.200000e+01 : f32
    %421 = vector.broadcast %cst_168 : f32 to vector<6x1xf32>
    %422 = arith.divf %420, %421 : vector<6x1xf32>
    %cst_169 = arith.constant 9.99999974E-6 : f32
    %423 = vector.broadcast %cst_169 : f32 to vector<6x1xf32>
    %424 = arith.addf %422, %423 : vector<6x1xf32>
    %425 = math.rsqrt %424 : vector<6x1xf32>
    %426 = vector.broadcast %425 : vector<6x1xf32> to vector<6x32xf32>
    %427 = arith.mulf %417, %426 : vector<6x32xf32>
    %428 = vector.broadcast %409 : vector<1x32xf32> to vector<6x32xf32>
    %429 = arith.mulf %427, %428 : vector<6x32xf32>
    %430 = vector.broadcast %411 : vector<1x32xf32> to vector<6x32xf32>
    %431 = arith.addf %429, %430 : vector<6x32xf32>
    %c2_170 = arith.constant 2 : index
    %c0_171 = arith.constant 0 : index
    %c0_172 = arith.constant 0 : index
    %432 = vector.load %arg16[%c2_170, %c0_171, %c0_172] : memref<5x32x2048xbf16, #tpu.memory_space<vmem>>, vector<1x32x2048xbf16>
    %433 = vector.shape_cast %432 : vector<1x32x2048xbf16> to vector<32x2048xbf16>
    %c2_173 = arith.constant 2 : index
    %c0_174 = arith.constant 0 : index
    %c0_175 = arith.constant 0 : index
    %434 = vector.load %arg17[%c2_173, %c0_174, %c0_175] : memref<5x1x2048xf32, #tpu.memory_space<vmem>>, vector<1x1x2048xf32>
    %435 = vector.shape_cast %434 : vector<1x1x2048xf32> to vector<1x2048xf32>
    %436 = arith.truncf %431 : vector<6x32xf32> to vector<6x32xbf16>
    %cst_176 = arith.constant dense<0.000000e+00> : vector<6x2048xf32>
    %437 = tpu.matmul %436, %433, %cst_176 {dimension_numbers = #tpu.dot_dimension_numbers<[1], [0], [0], [1], [0, 0, 1, 1], [], []>} : vector<6x32xbf16>, vector<32x2048xbf16>, vector<6x2048xf32> -> vector<6x2048xf32>
    %438 = vector.broadcast %435 : vector<1x2048xf32> to vector<6x2048xf32>
    %439 = arith.addf %437, %438 : vector<6x2048xf32>
    %cst_177 = arith.constant 0.000000e+00 : f32
    %440 = vector.broadcast %cst_177 : f32 to vector<6x2048xf32>
    %441 = arith.maximumf %439, %440 : vector<6x2048xf32>
    %c2_178 = arith.constant 2 : index
    %c0_179 = arith.constant 0 : index
    %c0_180 = arith.constant 0 : index
    %442 = vector.load %arg18[%c2_178, %c0_179, %c0_180] : memref<5x2048x32xbf16, #tpu.memory_space<vmem>>, vector<1x2048x32xbf16>
    %443 = vector.shape_cast %442 : vector<1x2048x32xbf16> to vector<2048x32xbf16>
    %c2_181 = arith.constant 2 : index
    %c0_182 = arith.constant 0 : index
    %c0_183 = arith.constant 0 : index
    %444 = vector.load %arg19[%c2_181, %c0_182, %c0_183] : memref<5x1x32xf32, #tpu.memory_space<vmem>>, vector<1x1x32xf32>
    %445 = vector.shape_cast %444 : vector<1x1x32xf32> to vector<1x32xf32>
    %446 = arith.truncf %441 : vector<6x2048xf32> to vector<6x2048xbf16>
    %cst_184 = arith.constant dense<0.000000e+00> : vector<6x32xf32>
    %447 = tpu.matmul %446, %443, %cst_184 {dimension_numbers = #tpu.dot_dimension_numbers<[1], [0], [0], [1], [0, 0, 1, 1], [], []>} : vector<6x2048xbf16>, vector<2048x32xbf16>, vector<6x32xf32> -> vector<6x32xf32>
    %448 = vector.broadcast %445 : vector<1x32xf32> to vector<6x32xf32>
    %449 = arith.addf %447, %448 : vector<6x32xf32>
    %450 = arith.addf %431, %449 : vector<6x32xf32>
    %c2_185 = arith.constant 2 : index
    %c0_186 = arith.constant 0 : index
    %c0_187 = arith.constant 0 : index
    %451 = vector.load %arg20[%c2_185, %c0_186, %c0_187] : memref<5x1x32xf32, #tpu.memory_space<vmem>>, vector<1x1x32xf32>
    %452 = vector.shape_cast %451 : vector<1x1x32xf32> to vector<1x32xf32>
    %c2_188 = arith.constant 2 : index
    %c0_189 = arith.constant 0 : index
    %c0_190 = arith.constant 0 : index
    %453 = vector.load %arg21[%c2_188, %c0_189, %c0_190] : memref<5x1x32xf32, #tpu.memory_space<vmem>>, vector<1x1x32xf32>
    %454 = vector.shape_cast %453 : vector<1x1x32xf32> to vector<1x32xf32>
    %cst_191 = arith.constant dense<0.000000e+00> : vector<6xf32>
    %455 = vector.multi_reduction <add>, %450, %cst_191 [1] : vector<6x32xf32> to vector<6xf32>
    %456 = vector.shape_cast %455 : vector<6xf32> to vector<6x1xf32>
    %cst_192 = arith.constant 3.200000e+01 : f32
    %457 = vector.broadcast %cst_192 : f32 to vector<6x1xf32>
    %458 = arith.divf %456, %457 : vector<6x1xf32>
    %459 = vector.broadcast %458 : vector<6x1xf32> to vector<6x32xf32>
    %460 = arith.subf %450, %459 : vector<6x32xf32>
    %461 = arith.mulf %460, %460 : vector<6x32xf32>
    %cst_193 = arith.constant dense<0.000000e+00> : vector<6xf32>
    %462 = vector.multi_reduction <add>, %461, %cst_193 [1] : vector<6x32xf32> to vector<6xf32>
    %463 = vector.shape_cast %462 : vector<6xf32> to vector<6x1xf32>
    %cst_194 = arith.constant 3.200000e+01 : f32
    %464 = vector.broadcast %cst_194 : f32 to vector<6x1xf32>
    %465 = arith.divf %463, %464 : vector<6x1xf32>
    %cst_195 = arith.constant 9.99999974E-6 : f32
    %466 = vector.broadcast %cst_195 : f32 to vector<6x1xf32>
    %467 = arith.addf %465, %466 : vector<6x1xf32>
    %468 = math.rsqrt %467 : vector<6x1xf32>
    %469 = vector.broadcast %468 : vector<6x1xf32> to vector<6x32xf32>
    %470 = arith.mulf %460, %469 : vector<6x32xf32>
    %471 = vector.broadcast %452 : vector<1x32xf32> to vector<6x32xf32>
    %472 = arith.mulf %470, %471 : vector<6x32xf32>
    %473 = vector.broadcast %454 : vector<1x32xf32> to vector<6x32xf32>
    %474 = arith.addf %472, %473 : vector<6x32xf32>
    %c3 = arith.constant 3 : index
    %c0_196 = arith.constant 0 : index
    %c0_197 = arith.constant 0 : index
    %475 = vector.load %arg10[%c3, %c0_196, %c0_197] : memref<5x32x96xbf16, #tpu.memory_space<vmem>>, vector<1x32x96xbf16>
    %476 = vector.shape_cast %475 : vector<1x32x96xbf16> to vector<32x96xbf16>
    %c3_198 = arith.constant 3 : index
    %c0_199 = arith.constant 0 : index
    %c0_200 = arith.constant 0 : index
    %477 = vector.load %arg11[%c3_198, %c0_199, %c0_200] : memref<5x1x96xf32, #tpu.memory_space<vmem>>, vector<1x1x96xf32>
    %478 = vector.shape_cast %477 : vector<1x1x96xf32> to vector<1x96xf32>
    %479 = arith.truncf %474 : vector<6x32xf32> to vector<6x32xbf16>
    %cst_201 = arith.constant dense<0.000000e+00> : vector<6x96xf32>
    %480 = tpu.matmul %479, %476, %cst_201 {dimension_numbers = #tpu.dot_dimension_numbers<[1], [0], [0], [1], [0, 0, 1, 1], [], []>} : vector<6x32xbf16>, vector<32x96xbf16>, vector<6x96xf32> -> vector<6x96xf32>
    %481 = vector.broadcast %478 : vector<1x96xf32> to vector<6x96xf32>
    %482 = arith.addf %480, %481 : vector<6x96xf32>
    %483 = vector.extract_strided_slice %482 {offsets = [0, 0], sizes = [6, 32], strides = [1, 1]} : vector<6x96xf32> to vector<6x32xf32>
    %484 = vector.extract_strided_slice %482 {offsets = [0, 32], sizes = [6, 32], strides = [1, 1]} : vector<6x96xf32> to vector<6x32xf32>
    %485 = vector.extract_strided_slice %482 {offsets = [0, 64], sizes = [6, 32], strides = [1, 1]} : vector<6x96xf32> to vector<6x32xf32>
    %486 = tpu.transpose %484, [1, 0] : vector<6x32xf32> -> vector<32x6xf32>
    %487 = vector.broadcast %60 : vector<1x32xf32> to vector<6x32xf32>
    %488 = arith.mulf %483, %487 : vector<6x32xf32>
    %489 = vector.broadcast %67 : vector<1x32xf32> to vector<6x32xf32>
    %490 = arith.mulf %483, %489 : vector<6x32xf32>
    %491 = vector.broadcast %74 : vector<1x32xf32> to vector<6x32xf32>
    %492 = arith.mulf %483, %491 : vector<6x32xf32>
    %493 = vector.broadcast %81 : vector<1x32xf32> to vector<6x32xf32>
    %494 = arith.mulf %483, %493 : vector<6x32xf32>
    %495 = tpu.concatenate %488, %490, %492, %494 in 0 : vector<6x32xf32>, vector<6x32xf32>, vector<6x32xf32>, vector<6x32xf32> -> vector<24x32xf32>
    %496 = arith.truncf %495 : vector<24x32xf32> to vector<24x32xbf16>
    %497 = arith.truncf %486 : vector<32x6xf32> to vector<32x6xbf16>
    %cst_202 = arith.constant dense<0.000000e+00> : vector<24x6xf32>
    %498 = tpu.matmul %496, %497, %cst_202 {dimension_numbers = #tpu.dot_dimension_numbers<[1], [0], [0], [1], [0, 0, 1, 1], [], []>} : vector<24x32xbf16>, vector<32x6xbf16>, vector<24x6xf32> -> vector<24x6xf32>
    %cst_203 = arith.constant 0.353553385 : f32
    %499 = vector.broadcast %cst_203 : f32 to vector<24x6xf32>
    %500 = arith.mulf %498, %499 : vector<24x6xf32>
    %501 = arith.addf %500, %52 : vector<24x6xf32>
    %cst_204 = arith.constant dense<0xFF800000> : vector<24xf32>
    %502 = vector.multi_reduction <maximumf>, %501, %cst_204 [1] : vector<24x6xf32> to vector<24xf32>
    %503 = vector.shape_cast %502 : vector<24xf32> to vector<24x1xf32>
    %504 = vector.broadcast %503 : vector<24x1xf32> to vector<24x6xf32>
    %505 = arith.subf %501, %504 : vector<24x6xf32>
    %506 = math.exp %505 : vector<24x6xf32>
    %cst_205 = arith.constant dense<0.000000e+00> : vector<24xf32>
    %507 = vector.multi_reduction <add>, %506, %cst_205 [1] : vector<24x6xf32> to vector<24xf32>
    %508 = vector.shape_cast %507 : vector<24xf32> to vector<24x1xf32>
    %509 = tpu.reciprocal %508 {approx = true} : vector<24x1xf32> -> vector<24x1xf32>
    %510 = vector.broadcast %509 : vector<24x1xf32> to vector<24x6xf32>
    %511 = arith.mulf %506, %510 : vector<24x6xf32>
    %512 = arith.truncf %511 : vector<24x6xf32> to vector<24x6xbf16>
    %513 = arith.truncf %485 : vector<6x32xf32> to vector<6x32xbf16>
    %cst_206 = arith.constant dense<0.000000e+00> : vector<24x32xf32>
    %514 = tpu.matmul %512, %513, %cst_206 {dimension_numbers = #tpu.dot_dimension_numbers<[1], [0], [0], [1], [0, 0, 1, 1], [], []>} : vector<24x6xbf16>, vector<6x32xbf16>, vector<24x32xf32> -> vector<24x32xf32>
    %515 = vector.extract_strided_slice %514 {offsets = [0, 0], sizes = [6, 32], strides = [1, 1]} : vector<24x32xf32> to vector<6x32xf32>
    %516 = vector.broadcast %60 : vector<1x32xf32> to vector<6x32xf32>
    %517 = arith.mulf %515, %516 : vector<6x32xf32>
    %518 = vector.extract_strided_slice %514 {offsets = [6, 0], sizes = [6, 32], strides = [1, 1]} : vector<24x32xf32> to vector<6x32xf32>
    %519 = vector.broadcast %67 : vector<1x32xf32> to vector<6x32xf32>
    %520 = arith.mulf %518, %519 : vector<6x32xf32>
    %521 = vector.extract_strided_slice %514 {offsets = [12, 0], sizes = [6, 32], strides = [1, 1]} : vector<24x32xf32> to vector<6x32xf32>
    %522 = vector.broadcast %74 : vector<1x32xf32> to vector<6x32xf32>
    %523 = arith.mulf %521, %522 : vector<6x32xf32>
    %524 = vector.extract_strided_slice %514 {offsets = [18, 0], sizes = [6, 32], strides = [1, 1]} : vector<24x32xf32> to vector<6x32xf32>
    %525 = vector.broadcast %81 : vector<1x32xf32> to vector<6x32xf32>
    %526 = arith.mulf %524, %525 : vector<6x32xf32>
    %527 = arith.addf %517, %520 : vector<6x32xf32>
    %528 = arith.addf %527, %523 : vector<6x32xf32>
    %529 = arith.addf %528, %526 : vector<6x32xf32>
    %c3_207 = arith.constant 3 : index
    %c0_208 = arith.constant 0 : index
    %c0_209 = arith.constant 0 : index
    %530 = vector.load %arg12[%c3_207, %c0_208, %c0_209] : memref<5x32x32xbf16, #tpu.memory_space<vmem>>, vector<1x32x32xbf16>
    %531 = vector.shape_cast %530 : vector<1x32x32xbf16> to vector<32x32xbf16>
    %c3_210 = arith.constant 3 : index
    %c0_211 = arith.constant 0 : index
    %c0_212 = arith.constant 0 : index
    %532 = vector.load %arg13[%c3_210, %c0_211, %c0_212] : memref<5x1x32xf32, #tpu.memory_space<vmem>>, vector<1x1x32xf32>
    %533 = vector.shape_cast %532 : vector<1x1x32xf32> to vector<1x32xf32>
    %534 = arith.truncf %529 : vector<6x32xf32> to vector<6x32xbf16>
    %cst_213 = arith.constant dense<0.000000e+00> : vector<6x32xf32>
    %535 = tpu.matmul %534, %531, %cst_213 {dimension_numbers = #tpu.dot_dimension_numbers<[1], [0], [0], [1], [0, 0, 1, 1], [], []>} : vector<6x32xbf16>, vector<32x32xbf16>, vector<6x32xf32> -> vector<6x32xf32>
    %536 = vector.broadcast %533 : vector<1x32xf32> to vector<6x32xf32>
    %537 = arith.addf %535, %536 : vector<6x32xf32>
    %538 = arith.addf %474, %537 : vector<6x32xf32>
    %c3_214 = arith.constant 3 : index
    %c0_215 = arith.constant 0 : index
    %c0_216 = arith.constant 0 : index
    %539 = vector.load %arg14[%c3_214, %c0_215, %c0_216] : memref<5x1x32xf32, #tpu.memory_space<vmem>>, vector<1x1x32xf32>
    %540 = vector.shape_cast %539 : vector<1x1x32xf32> to vector<1x32xf32>
    %c3_217 = arith.constant 3 : index
    %c0_218 = arith.constant 0 : index
    %c0_219 = arith.constant 0 : index
    %541 = vector.load %arg15[%c3_217, %c0_218, %c0_219] : memref<5x1x32xf32, #tpu.memory_space<vmem>>, vector<1x1x32xf32>
    %542 = vector.shape_cast %541 : vector<1x1x32xf32> to vector<1x32xf32>
    %cst_220 = arith.constant dense<0.000000e+00> : vector<6xf32>
    %543 = vector.multi_reduction <add>, %538, %cst_220 [1] : vector<6x32xf32> to vector<6xf32>
    %544 = vector.shape_cast %543 : vector<6xf32> to vector<6x1xf32>
    %cst_221 = arith.constant 3.200000e+01 : f32
    %545 = vector.broadcast %cst_221 : f32 to vector<6x1xf32>
    %546 = arith.divf %544, %545 : vector<6x1xf32>
    %547 = vector.broadcast %546 : vector<6x1xf32> to vector<6x32xf32>
    %548 = arith.subf %538, %547 : vector<6x32xf32>
    %549 = arith.mulf %548, %548 : vector<6x32xf32>
    %cst_222 = arith.constant dense<0.000000e+00> : vector<6xf32>
    %550 = vector.multi_reduction <add>, %549, %cst_222 [1] : vector<6x32xf32> to vector<6xf32>
    %551 = vector.shape_cast %550 : vector<6xf32> to vector<6x1xf32>
    %cst_223 = arith.constant 3.200000e+01 : f32
    %552 = vector.broadcast %cst_223 : f32 to vector<6x1xf32>
    %553 = arith.divf %551, %552 : vector<6x1xf32>
    %cst_224 = arith.constant 9.99999974E-6 : f32
    %554 = vector.broadcast %cst_224 : f32 to vector<6x1xf32>
    %555 = arith.addf %553, %554 : vector<6x1xf32>
    %556 = math.rsqrt %555 : vector<6x1xf32>
    %557 = vector.broadcast %556 : vector<6x1xf32> to vector<6x32xf32>
    %558 = arith.mulf %548, %557 : vector<6x32xf32>
    %559 = vector.broadcast %540 : vector<1x32xf32> to vector<6x32xf32>
    %560 = arith.mulf %558, %559 : vector<6x32xf32>
    %561 = vector.broadcast %542 : vector<1x32xf32> to vector<6x32xf32>
    %562 = arith.addf %560, %561 : vector<6x32xf32>
    %c3_225 = arith.constant 3 : index
    %c0_226 = arith.constant 0 : index
    %c0_227 = arith.constant 0 : index
    %563 = vector.load %arg16[%c3_225, %c0_226, %c0_227] : memref<5x32x2048xbf16, #tpu.memory_space<vmem>>, vector<1x32x2048xbf16>
    %564 = vector.shape_cast %563 : vector<1x32x2048xbf16> to vector<32x2048xbf16>
    %c3_228 = arith.constant 3 : index
    %c0_229 = arith.constant 0 : index
    %c0_230 = arith.constant 0 : index
    %565 = vector.load %arg17[%c3_228, %c0_229, %c0_230] : memref<5x1x2048xf32, #tpu.memory_space<vmem>>, vector<1x1x2048xf32>
    %566 = vector.shape_cast %565 : vector<1x1x2048xf32> to vector<1x2048xf32>
    %567 = arith.truncf %562 : vector<6x32xf32> to vector<6x32xbf16>
    %cst_231 = arith.constant dense<0.000000e+00> : vector<6x2048xf32>
    %568 = tpu.matmul %567, %564, %cst_231 {dimension_numbers = #tpu.dot_dimension_numbers<[1], [0], [0], [1], [0, 0, 1, 1], [], []>} : vector<6x32xbf16>, vector<32x2048xbf16>, vector<6x2048xf32> -> vector<6x2048xf32>
    %569 = vector.broadcast %566 : vector<1x2048xf32> to vector<6x2048xf32>
    %570 = arith.addf %568, %569 : vector<6x2048xf32>
    %cst_232 = arith.constant 0.000000e+00 : f32
    %571 = vector.broadcast %cst_232 : f32 to vector<6x2048xf32>
    %572 = arith.maximumf %570, %571 : vector<6x2048xf32>
    %c3_233 = arith.constant 3 : index
    %c0_234 = arith.constant 0 : index
    %c0_235 = arith.constant 0 : index
    %573 = vector.load %arg18[%c3_233, %c0_234, %c0_235] : memref<5x2048x32xbf16, #tpu.memory_space<vmem>>, vector<1x2048x32xbf16>
    %574 = vector.shape_cast %573 : vector<1x2048x32xbf16> to vector<2048x32xbf16>
    %c3_236 = arith.constant 3 : index
    %c0_237 = arith.constant 0 : index
    %c0_238 = arith.constant 0 : index
    %575 = vector.load %arg19[%c3_236, %c0_237, %c0_238] : memref<5x1x32xf32, #tpu.memory_space<vmem>>, vector<1x1x32xf32>
    %576 = vector.shape_cast %575 : vector<1x1x32xf32> to vector<1x32xf32>
    %577 = arith.truncf %572 : vector<6x2048xf32> to vector<6x2048xbf16>
    %cst_239 = arith.constant dense<0.000000e+00> : vector<6x32xf32>
    %578 = tpu.matmul %577, %574, %cst_239 {dimension_numbers = #tpu.dot_dimension_numbers<[1], [0], [0], [1], [0, 0, 1, 1], [], []>} : vector<6x2048xbf16>, vector<2048x32xbf16>, vector<6x32xf32> -> vector<6x32xf32>
    %579 = vector.broadcast %576 : vector<1x32xf32> to vector<6x32xf32>
    %580 = arith.addf %578, %579 : vector<6x32xf32>
    %581 = arith.addf %562, %580 : vector<6x32xf32>
    %c3_240 = arith.constant 3 : index
    %c0_241 = arith.constant 0 : index
    %c0_242 = arith.constant 0 : index
    %582 = vector.load %arg20[%c3_240, %c0_241, %c0_242] : memref<5x1x32xf32, #tpu.memory_space<vmem>>, vector<1x1x32xf32>
    %583 = vector.shape_cast %582 : vector<1x1x32xf32> to vector<1x32xf32>
    %c3_243 = arith.constant 3 : index
    %c0_244 = arith.constant 0 : index
    %c0_245 = arith.constant 0 : index
    %584 = vector.load %arg21[%c3_243, %c0_244, %c0_245] : memref<5x1x32xf32, #tpu.memory_space<vmem>>, vector<1x1x32xf32>
    %585 = vector.shape_cast %584 : vector<1x1x32xf32> to vector<1x32xf32>
    %cst_246 = arith.constant dense<0.000000e+00> : vector<6xf32>
    %586 = vector.multi_reduction <add>, %581, %cst_246 [1] : vector<6x32xf32> to vector<6xf32>
    %587 = vector.shape_cast %586 : vector<6xf32> to vector<6x1xf32>
    %cst_247 = arith.constant 3.200000e+01 : f32
    %588 = vector.broadcast %cst_247 : f32 to vector<6x1xf32>
    %589 = arith.divf %587, %588 : vector<6x1xf32>
    %590 = vector.broadcast %589 : vector<6x1xf32> to vector<6x32xf32>
    %591 = arith.subf %581, %590 : vector<6x32xf32>
    %592 = arith.mulf %591, %591 : vector<6x32xf32>
    %cst_248 = arith.constant dense<0.000000e+00> : vector<6xf32>
    %593 = vector.multi_reduction <add>, %592, %cst_248 [1] : vector<6x32xf32> to vector<6xf32>
    %594 = vector.shape_cast %593 : vector<6xf32> to vector<6x1xf32>
    %cst_249 = arith.constant 3.200000e+01 : f32
    %595 = vector.broadcast %cst_249 : f32 to vector<6x1xf32>
    %596 = arith.divf %594, %595 : vector<6x1xf32>
    %cst_250 = arith.constant 9.99999974E-6 : f32
    %597 = vector.broadcast %cst_250 : f32 to vector<6x1xf32>
    %598 = arith.addf %596, %597 : vector<6x1xf32>
    %599 = math.rsqrt %598 : vector<6x1xf32>
    %600 = vector.broadcast %599 : vector<6x1xf32> to vector<6x32xf32>
    %601 = arith.mulf %591, %600 : vector<6x32xf32>
    %602 = vector.broadcast %583 : vector<1x32xf32> to vector<6x32xf32>
    %603 = arith.mulf %601, %602 : vector<6x32xf32>
    %604 = vector.broadcast %585 : vector<1x32xf32> to vector<6x32xf32>
    %605 = arith.addf %603, %604 : vector<6x32xf32>
    %c4 = arith.constant 4 : index
    %c0_251 = arith.constant 0 : index
    %c0_252 = arith.constant 0 : index
    %606 = vector.load %arg10[%c4, %c0_251, %c0_252] : memref<5x32x96xbf16, #tpu.memory_space<vmem>>, vector<1x32x96xbf16>
    %607 = vector.shape_cast %606 : vector<1x32x96xbf16> to vector<32x96xbf16>
    %c4_253 = arith.constant 4 : index
    %c0_254 = arith.constant 0 : index
    %c0_255 = arith.constant 0 : index
    %608 = vector.load %arg11[%c4_253, %c0_254, %c0_255] : memref<5x1x96xf32, #tpu.memory_space<vmem>>, vector<1x1x96xf32>
    %609 = vector.shape_cast %608 : vector<1x1x96xf32> to vector<1x96xf32>
    %610 = arith.truncf %605 : vector<6x32xf32> to vector<6x32xbf16>
    %cst_256 = arith.constant dense<0.000000e+00> : vector<6x96xf32>
    %611 = tpu.matmul %610, %607, %cst_256 {dimension_numbers = #tpu.dot_dimension_numbers<[1], [0], [0], [1], [0, 0, 1, 1], [], []>} : vector<6x32xbf16>, vector<32x96xbf16>, vector<6x96xf32> -> vector<6x96xf32>
    %612 = vector.broadcast %609 : vector<1x96xf32> to vector<6x96xf32>
    %613 = arith.addf %611, %612 : vector<6x96xf32>
    %614 = vector.extract_strided_slice %613 {offsets = [0, 0], sizes = [6, 32], strides = [1, 1]} : vector<6x96xf32> to vector<6x32xf32>
    %615 = vector.extract_strided_slice %613 {offsets = [0, 32], sizes = [6, 32], strides = [1, 1]} : vector<6x96xf32> to vector<6x32xf32>
    %616 = vector.extract_strided_slice %613 {offsets = [0, 64], sizes = [6, 32], strides = [1, 1]} : vector<6x96xf32> to vector<6x32xf32>
    %617 = tpu.transpose %615, [1, 0] : vector<6x32xf32> -> vector<32x6xf32>
    %618 = vector.broadcast %60 : vector<1x32xf32> to vector<6x32xf32>
    %619 = arith.mulf %614, %618 : vector<6x32xf32>
    %620 = vector.broadcast %67 : vector<1x32xf32> to vector<6x32xf32>
    %621 = arith.mulf %614, %620 : vector<6x32xf32>
    %622 = vector.broadcast %74 : vector<1x32xf32> to vector<6x32xf32>
    %623 = arith.mulf %614, %622 : vector<6x32xf32>
    %624 = vector.broadcast %81 : vector<1x32xf32> to vector<6x32xf32>
    %625 = arith.mulf %614, %624 : vector<6x32xf32>
    %626 = tpu.concatenate %619, %621, %623, %625 in 0 : vector<6x32xf32>, vector<6x32xf32>, vector<6x32xf32>, vector<6x32xf32> -> vector<24x32xf32>
    %627 = arith.truncf %626 : vector<24x32xf32> to vector<24x32xbf16>
    %628 = arith.truncf %617 : vector<32x6xf32> to vector<32x6xbf16>
    %cst_257 = arith.constant dense<0.000000e+00> : vector<24x6xf32>
    %629 = tpu.matmul %627, %628, %cst_257 {dimension_numbers = #tpu.dot_dimension_numbers<[1], [0], [0], [1], [0, 0, 1, 1], [], []>} : vector<24x32xbf16>, vector<32x6xbf16>, vector<24x6xf32> -> vector<24x6xf32>
    %cst_258 = arith.constant 0.353553385 : f32
    %630 = vector.broadcast %cst_258 : f32 to vector<24x6xf32>
    %631 = arith.mulf %629, %630 : vector<24x6xf32>
    %632 = arith.addf %631, %52 : vector<24x6xf32>
    %cst_259 = arith.constant dense<0xFF800000> : vector<24xf32>
    %633 = vector.multi_reduction <maximumf>, %632, %cst_259 [1] : vector<24x6xf32> to vector<24xf32>
    %634 = vector.shape_cast %633 : vector<24xf32> to vector<24x1xf32>
    %635 = vector.broadcast %634 : vector<24x1xf32> to vector<24x6xf32>
    %636 = arith.subf %632, %635 : vector<24x6xf32>
    %637 = math.exp %636 : vector<24x6xf32>
    %cst_260 = arith.constant dense<0.000000e+00> : vector<24xf32>
    %638 = vector.multi_reduction <add>, %637, %cst_260 [1] : vector<24x6xf32> to vector<24xf32>
    %639 = vector.shape_cast %638 : vector<24xf32> to vector<24x1xf32>
    %640 = tpu.reciprocal %639 {approx = true} : vector<24x1xf32> -> vector<24x1xf32>
    %641 = vector.broadcast %640 : vector<24x1xf32> to vector<24x6xf32>
    %642 = arith.mulf %637, %641 : vector<24x6xf32>
    %643 = arith.truncf %642 : vector<24x6xf32> to vector<24x6xbf16>
    %644 = arith.truncf %616 : vector<6x32xf32> to vector<6x32xbf16>
    %cst_261 = arith.constant dense<0.000000e+00> : vector<24x32xf32>
    %645 = tpu.matmul %643, %644, %cst_261 {dimension_numbers = #tpu.dot_dimension_numbers<[1], [0], [0], [1], [0, 0, 1, 1], [], []>} : vector<24x6xbf16>, vector<6x32xbf16>, vector<24x32xf32> -> vector<24x32xf32>
    %646 = vector.extract_strided_slice %645 {offsets = [0, 0], sizes = [6, 32], strides = [1, 1]} : vector<24x32xf32> to vector<6x32xf32>
    %647 = vector.broadcast %60 : vector<1x32xf32> to vector<6x32xf32>
    %648 = arith.mulf %646, %647 : vector<6x32xf32>
    %649 = vector.extract_strided_slice %645 {offsets = [6, 0], sizes = [6, 32], strides = [1, 1]} : vector<24x32xf32> to vector<6x32xf32>
    %650 = vector.broadcast %67 : vector<1x32xf32> to vector<6x32xf32>
    %651 = arith.mulf %649, %650 : vector<6x32xf32>
    %652 = vector.extract_strided_slice %645 {offsets = [12, 0], sizes = [6, 32], strides = [1, 1]} : vector<24x32xf32> to vector<6x32xf32>
    %653 = vector.broadcast %74 : vector<1x32xf32> to vector<6x32xf32>
    %654 = arith.mulf %652, %653 : vector<6x32xf32>
    %655 = vector.extract_strided_slice %645 {offsets = [18, 0], sizes = [6, 32], strides = [1, 1]} : vector<24x32xf32> to vector<6x32xf32>
    %656 = vector.broadcast %81 : vector<1x32xf32> to vector<6x32xf32>
    %657 = arith.mulf %655, %656 : vector<6x32xf32>
    %658 = arith.addf %648, %651 : vector<6x32xf32>
    %659 = arith.addf %658, %654 : vector<6x32xf32>
    %660 = arith.addf %659, %657 : vector<6x32xf32>
    %c4_262 = arith.constant 4 : index
    %c0_263 = arith.constant 0 : index
    %c0_264 = arith.constant 0 : index
    %661 = vector.load %arg12[%c4_262, %c0_263, %c0_264] : memref<5x32x32xbf16, #tpu.memory_space<vmem>>, vector<1x32x32xbf16>
    %662 = vector.shape_cast %661 : vector<1x32x32xbf16> to vector<32x32xbf16>
    %c4_265 = arith.constant 4 : index
    %c0_266 = arith.constant 0 : index
    %c0_267 = arith.constant 0 : index
    %663 = vector.load %arg13[%c4_265, %c0_266, %c0_267] : memref<5x1x32xf32, #tpu.memory_space<vmem>>, vector<1x1x32xf32>
    %664 = vector.shape_cast %663 : vector<1x1x32xf32> to vector<1x32xf32>
    %665 = arith.truncf %660 : vector<6x32xf32> to vector<6x32xbf16>
    %cst_268 = arith.constant dense<0.000000e+00> : vector<6x32xf32>
    %666 = tpu.matmul %665, %662, %cst_268 {dimension_numbers = #tpu.dot_dimension_numbers<[1], [0], [0], [1], [0, 0, 1, 1], [], []>} : vector<6x32xbf16>, vector<32x32xbf16>, vector<6x32xf32> -> vector<6x32xf32>
    %667 = vector.broadcast %664 : vector<1x32xf32> to vector<6x32xf32>
    %668 = arith.addf %666, %667 : vector<6x32xf32>
    %669 = arith.addf %605, %668 : vector<6x32xf32>
    %c4_269 = arith.constant 4 : index
    %c0_270 = arith.constant 0 : index
    %c0_271 = arith.constant 0 : index
    %670 = vector.load %arg14[%c4_269, %c0_270, %c0_271] : memref<5x1x32xf32, #tpu.memory_space<vmem>>, vector<1x1x32xf32>
    %671 = vector.shape_cast %670 : vector<1x1x32xf32> to vector<1x32xf32>
    %c4_272 = arith.constant 4 : index
    %c0_273 = arith.constant 0 : index
    %c0_274 = arith.constant 0 : index
    %672 = vector.load %arg15[%c4_272, %c0_273, %c0_274] : memref<5x1x32xf32, #tpu.memory_space<vmem>>, vector<1x1x32xf32>
    %673 = vector.shape_cast %672 : vector<1x1x32xf32> to vector<1x32xf32>
    %cst_275 = arith.constant dense<0.000000e+00> : vector<6xf32>
    %674 = vector.multi_reduction <add>, %669, %cst_275 [1] : vector<6x32xf32> to vector<6xf32>
    %675 = vector.shape_cast %674 : vector<6xf32> to vector<6x1xf32>
    %cst_276 = arith.constant 3.200000e+01 : f32
    %676 = vector.broadcast %cst_276 : f32 to vector<6x1xf32>
    %677 = arith.divf %675, %676 : vector<6x1xf32>
    %678 = vector.broadcast %677 : vector<6x1xf32> to vector<6x32xf32>
    %679 = arith.subf %669, %678 : vector<6x32xf32>
    %680 = arith.mulf %679, %679 : vector<6x32xf32>
    %cst_277 = arith.constant dense<0.000000e+00> : vector<6xf32>
    %681 = vector.multi_reduction <add>, %680, %cst_277 [1] : vector<6x32xf32> to vector<6xf32>
    %682 = vector.shape_cast %681 : vector<6xf32> to vector<6x1xf32>
    %cst_278 = arith.constant 3.200000e+01 : f32
    %683 = vector.broadcast %cst_278 : f32 to vector<6x1xf32>
    %684 = arith.divf %682, %683 : vector<6x1xf32>
    %cst_279 = arith.constant 9.99999974E-6 : f32
    %685 = vector.broadcast %cst_279 : f32 to vector<6x1xf32>
    %686 = arith.addf %684, %685 : vector<6x1xf32>
    %687 = math.rsqrt %686 : vector<6x1xf32>
    %688 = vector.broadcast %687 : vector<6x1xf32> to vector<6x32xf32>
    %689 = arith.mulf %679, %688 : vector<6x32xf32>
    %690 = vector.broadcast %671 : vector<1x32xf32> to vector<6x32xf32>
    %691 = arith.mulf %689, %690 : vector<6x32xf32>
    %692 = vector.broadcast %673 : vector<1x32xf32> to vector<6x32xf32>
    %693 = arith.addf %691, %692 : vector<6x32xf32>
    %c4_280 = arith.constant 4 : index
    %c0_281 = arith.constant 0 : index
    %c0_282 = arith.constant 0 : index
    %694 = vector.load %arg16[%c4_280, %c0_281, %c0_282] : memref<5x32x2048xbf16, #tpu.memory_space<vmem>>, vector<1x32x2048xbf16>
    %695 = vector.shape_cast %694 : vector<1x32x2048xbf16> to vector<32x2048xbf16>
    %c4_283 = arith.constant 4 : index
    %c0_284 = arith.constant 0 : index
    %c0_285 = arith.constant 0 : index
    %696 = vector.load %arg17[%c4_283, %c0_284, %c0_285] : memref<5x1x2048xf32, #tpu.memory_space<vmem>>, vector<1x1x2048xf32>
    %697 = vector.shape_cast %696 : vector<1x1x2048xf32> to vector<1x2048xf32>
    %698 = arith.truncf %693 : vector<6x32xf32> to vector<6x32xbf16>
    %cst_286 = arith.constant dense<0.000000e+00> : vector<6x2048xf32>
    %699 = tpu.matmul %698, %695, %cst_286 {dimension_numbers = #tpu.dot_dimension_numbers<[1], [0], [0], [1], [0, 0, 1, 1], [], []>} : vector<6x32xbf16>, vector<32x2048xbf16>, vector<6x2048xf32> -> vector<6x2048xf32>
    %700 = vector.broadcast %697 : vector<1x2048xf32> to vector<6x2048xf32>
    %701 = arith.addf %699, %700 : vector<6x2048xf32>
    %cst_287 = arith.constant 0.000000e+00 : f32
    %702 = vector.broadcast %cst_287 : f32 to vector<6x2048xf32>
    %703 = arith.maximumf %701, %702 : vector<6x2048xf32>
    %c4_288 = arith.constant 4 : index
    %c0_289 = arith.constant 0 : index
    %c0_290 = arith.constant 0 : index
    %704 = vector.load %arg18[%c4_288, %c0_289, %c0_290] : memref<5x2048x32xbf16, #tpu.memory_space<vmem>>, vector<1x2048x32xbf16>
    %705 = vector.shape_cast %704 : vector<1x2048x32xbf16> to vector<2048x32xbf16>
    %c4_291 = arith.constant 4 : index
    %c0_292 = arith.constant 0 : index
    %c0_293 = arith.constant 0 : index
    %706 = vector.load %arg19[%c4_291, %c0_292, %c0_293] : memref<5x1x32xf32, #tpu.memory_space<vmem>>, vector<1x1x32xf32>
    %707 = vector.shape_cast %706 : vector<1x1x32xf32> to vector<1x32xf32>
    %708 = arith.truncf %703 : vector<6x2048xf32> to vector<6x2048xbf16>
    %cst_294 = arith.constant dense<0.000000e+00> : vector<6x32xf32>
    %709 = tpu.matmul %708, %705, %cst_294 {dimension_numbers = #tpu.dot_dimension_numbers<[1], [0], [0], [1], [0, 0, 1, 1], [], []>} : vector<6x2048xbf16>, vector<2048x32xbf16>, vector<6x32xf32> -> vector<6x32xf32>
    %710 = vector.broadcast %707 : vector<1x32xf32> to vector<6x32xf32>
    %711 = arith.addf %709, %710 : vector<6x32xf32>
    %712 = arith.addf %693, %711 : vector<6x32xf32>
    %c4_295 = arith.constant 4 : index
    %c0_296 = arith.constant 0 : index
    %c0_297 = arith.constant 0 : index
    %713 = vector.load %arg20[%c4_295, %c0_296, %c0_297] : memref<5x1x32xf32, #tpu.memory_space<vmem>>, vector<1x1x32xf32>
    %714 = vector.shape_cast %713 : vector<1x1x32xf32> to vector<1x32xf32>
    %c4_298 = arith.constant 4 : index
    %c0_299 = arith.constant 0 : index
    %c0_300 = arith.constant 0 : index
    %715 = vector.load %arg21[%c4_298, %c0_299, %c0_300] : memref<5x1x32xf32, #tpu.memory_space<vmem>>, vector<1x1x32xf32>
    %716 = vector.shape_cast %715 : vector<1x1x32xf32> to vector<1x32xf32>
    %cst_301 = arith.constant dense<0.000000e+00> : vector<6xf32>
    %717 = vector.multi_reduction <add>, %712, %cst_301 [1] : vector<6x32xf32> to vector<6xf32>
    %718 = vector.shape_cast %717 : vector<6xf32> to vector<6x1xf32>
    %cst_302 = arith.constant 3.200000e+01 : f32
    %719 = vector.broadcast %cst_302 : f32 to vector<6x1xf32>
    %720 = arith.divf %718, %719 : vector<6x1xf32>
    %721 = vector.broadcast %720 : vector<6x1xf32> to vector<6x32xf32>
    %722 = arith.subf %712, %721 : vector<6x32xf32>
    %723 = arith.mulf %722, %722 : vector<6x32xf32>
    %cst_303 = arith.constant dense<0.000000e+00> : vector<6xf32>
    %724 = vector.multi_reduction <add>, %723, %cst_303 [1] : vector<6x32xf32> to vector<6xf32>
    %725 = vector.shape_cast %724 : vector<6xf32> to vector<6x1xf32>
    %cst_304 = arith.constant 3.200000e+01 : f32
    %726 = vector.broadcast %cst_304 : f32 to vector<6x1xf32>
    %727 = arith.divf %725, %726 : vector<6x1xf32>
    %cst_305 = arith.constant 9.99999974E-6 : f32
    %728 = vector.broadcast %cst_305 : f32 to vector<6x1xf32>
    %729 = arith.addf %727, %728 : vector<6x1xf32>
    %730 = math.rsqrt %729 : vector<6x1xf32>
    %731 = vector.broadcast %730 : vector<6x1xf32> to vector<6x32xf32>
    %732 = arith.mulf %722, %731 : vector<6x32xf32>
    %733 = vector.broadcast %714 : vector<1x32xf32> to vector<6x32xf32>
    %734 = arith.mulf %732, %733 : vector<6x32xf32>
    %735 = vector.broadcast %716 : vector<1x32xf32> to vector<6x32xf32>
    %736 = arith.addf %734, %735 : vector<6x32xf32>
    %737 = vector.extract_strided_slice %736 {offsets = [4, 0], sizes = [2, 32], strides = [1, 1]} : vector<6x32xf32> to vector<2x32xf32>
    %c0_306 = arith.constant 0 : index
    %c0_307 = arith.constant 0 : index
    %738 = vector.load %arg22[%c0_306, %c0_307] : memref<32x6xbf16, #tpu.memory_space<vmem>>, vector<32x6xbf16>
    %c0_308 = arith.constant 0 : index
    %c0_309 = arith.constant 0 : index
    %739 = vector.load %arg23[%c0_308, %c0_309] : memref<1x6xf32, #tpu.memory_space<vmem>>, vector<1x6xf32>
    %740 = arith.truncf %737 : vector<2x32xf32> to vector<2x32xbf16>
    %cst_310 = arith.constant dense<0.000000e+00> : vector<2x6xf32>
    %741 = tpu.matmul %740, %738, %cst_310 {dimension_numbers = #tpu.dot_dimension_numbers<[1], [0], [0], [1], [0, 0, 1, 1], [], []>} : vector<2x32xbf16>, vector<32x6xbf16>, vector<2x6xf32> -> vector<2x6xf32>
    %742 = vector.broadcast %739 : vector<1x6xf32> to vector<2x6xf32>
    %743 = arith.addf %741, %742 : vector<2x6xf32>
    %c0_311 = arith.constant 0 : index
    %c0_312 = arith.constant 0 : index
    %744 = vector.load %arg24[%c0_311, %c0_312] : memref<2x6xf32, #tpu.memory_space<vmem>>, vector<2x6xf32>
    tpu.vector_store %arg24[%c0_311, %c0_312], %743 {strides = array<i32>} : memref<2x6xf32, #tpu.memory_space<vmem>>, vector<2x6xf32>,
    return
  }
}

</mosaic_0001>

<llo_original>
// kernel: decision_transformer_forward.1
$region0: #{decision_transformer_forward.1}
  #allocation0 [shape = 'u32[]', space=smem, size = 0x4, offset = 0x4, fixed_abs, tag = 'smem constant byte address 0x4 - core index']
  #allocation1 [shape = 'u32[72,128]{1,0:T(1,128)}', space=vmem, size = 0x9000, scoped, tag = 'internal scratch']
  %s0 = inlined_call_operand.vmem [shape: f32[2,12], index: 0, kind: input, shape index: {}]
  %s1 = inlined_call_operand.vmem [shape: f32[2,6], index: 1, kind: input, shape index: {}]
  %s2 = inlined_call_operand.vmem [shape: f32[2,1], index: 2, kind: input, shape index: {}]
  %s3 = inlined_call_operand.vmem [shape: bf16[12,32], index: 3, kind: input, shape index: {}]
  %s4 = inlined_call_operand.vmem [shape: f32[1,32], index: 4, kind: input, shape index: {}]
  %s5 = inlined_call_operand.vmem [shape: bf16[6,32], index: 5, kind: input, shape index: {}]
  %s6 = inlined_call_operand.vmem [shape: f32[1,32], index: 6, kind: input, shape index: {}]
  %s7 = inlined_call_operand.vmem [shape: f32[1,32], index: 7, kind: input, shape index: {}]
  %s8 = inlined_call_operand.vmem [shape: f32[1,32], index: 8, kind: input, shape index: {}]
  %s9 = inlined_call_operand.vmem [shape: f32[3,32], index: 9, kind: input, shape index: {}]
  %s10 = inlined_call_operand.vmem [shape: bf16[5,32,96], index: 10, kind: input, shape index: {}]
  %s11 = inlined_call_operand.vmem [shape: f32[5,1,96], index: 11, kind: input, shape index: {}]
  %s12 = inlined_call_operand.vmem [shape: bf16[5,32,32], index: 12, kind: input, shape index: {}]
  %s13 = inlined_call_operand.vmem [shape: f32[5,1,32], index: 13, kind: input, shape index: {}]
  %s14 = inlined_call_operand.vmem [shape: f32[5,1,32], index: 14, kind: input, shape index: {}]
  %s15 = inlined_call_operand.vmem [shape: f32[5,1,32], index: 15, kind: input, shape index: {}]
  %s16 = inlined_call_operand.vmem [shape: bf16[5,32,2048], index: 16, kind: input, shape index: {}]
  %s17 = inlined_call_operand.vmem [shape: f32[5,1,2048], index: 17, kind: input, shape index: {}]
  %s18 = inlined_call_operand.vmem [shape: bf16[5,2048,32], index: 18, kind: input, shape index: {}]
  %s19 = inlined_call_operand.vmem [shape: f32[5,1,32], index: 19, kind: input, shape index: {}]
  %s20 = inlined_call_operand.vmem [shape: f32[5,1,32], index: 20, kind: input, shape index: {}]
  %s21 = inlined_call_operand.vmem [shape: f32[5,1,32], index: 21, kind: input, shape index: {}]
  %s22 = inlined_call_operand.vmem [shape: bf16[32,6], index: 22, kind: input, shape index: {}]
  %s23 = inlined_call_operand.vmem [shape: f32[1,6], index: 23, kind: input, shape index: {}]
  %s24 = inlined_call_operand.hbm [shape: f32[2,6], index: 24, kind: output, shape index: {}]
  %s25 = sld [smem:[#allocation0]]
  $region106: #{decision_transformer_forward.1} parent=0
    _
  %s27 = ssub.s32 1, %s25
  %s28 = scalar_select 0, %s27, %s25
  $region1: #{decision_transformer_forward.1} parent=0
    #allocation2 [shape = 'u8[1024]{0}', space=vmem, size = 0x400, scoped, tag = 'output window, operand 0, single buffered']
    #allocation3 [shape = 's32[1]{0}', space=sflag, size = 0x4, scoped, tag = 'scoped memory for decision_transformer_forward.1']
    %29 = vsyncpa [#allocation3], 0
    // Predicated region
    $region2: #{decision_transformer_forward.1} parent=1 // pred_check
      _
    $region3: #{decision_transformer_forward.1} parent=1 // pred_check_branch
      %31 = sbr.rel (0) target = $region5
    $region4: #{decision_transformer_forward.1} parent=1 // pred_region
      _
    $region5: #{decision_transformer_forward.1} parent=1 // pred_fallthru
      _
    // Predicated region
    $region6: #{decision_transformer_forward.1} parent=1 // pred_check
      _
    $region7: #{decision_transformer_forward.1} parent=1 // pred_check_branch
      %33 = sbr.rel (0) target = $region9
    $region8: #{decision_transformer_forward.1} parent=1 // pred_region
      _
    $region9: #{decision_transformer_forward.1} parent=1 // pred_fallthru
      _
    // Predicated region
    $region10: #{decision_transformer_forward.1} parent=1 // pred_check
      _
    $region11: #{decision_transformer_forward.1} parent=1 // pred_check_branch
      %35 = sbr.rel (0) target = $region13
    $region12: #{decision_transformer_forward.1} parent=1 // pred_region
      _
    $region13: #{decision_transformer_forward.1} parent=1 // pred_fallthru
      _
    // Predicated region
    $region14: #{decision_transformer_forward.1} parent=1 // pred_check
      _
    $region15: #{decision_transformer_forward.1} parent=1 // pred_check_branch
      %37 = sbr.rel (0) target = $region17
    $region16: #{decision_transformer_forward.1} parent=1 // pred_region
      _
    $region17: #{decision_transformer_forward.1} parent=1 // pred_fallthru
      _
    // Predicated region
    $region18: #{decision_transformer_forward.1} parent=1 // pred_check
      _
    $region19: #{decision_transformer_forward.1} parent=1 // pred_check_branch
      %39 = sbr.rel (0) target = $region21
    $region20: #{decision_transformer_forward.1} parent=1 // pred_region
      _
    $region21: #{decision_transformer_forward.1} parent=1 // pred_fallthru
      _
    // Predicated region
    $region22: #{decision_transformer_forward.1} parent=1 // pred_check
      _
    $region23: #{decision_transformer_forward.1} parent=1 // pred_check_branch
      %41 = sbr.rel (0) target = $region25
    $region24: #{decision_transformer_forward.1} parent=1 // pred_region
      _
    $region25: #{decision_transformer_forward.1} parent=1 // pred_fallthru
      _
    // Predicated region
    $region26: #{decision_transformer_forward.1} parent=1 // pred_check
      _
    $region27: #{decision_transformer_forward.1} parent=1 // pred_check_branch
      %43 = sbr.rel (0) target = $region29
    $region28: #{decision_transformer_forward.1} parent=1 // pred_region
      _
    $region29: #{decision_transformer_forward.1} parent=1 // pred_fallthru
      _
    // Predicated region
    $region30: #{decision_transformer_forward.1} parent=1 // pred_check
      _
    $region31: #{decision_transformer_forward.1} parent=1 // pred_check_branch
      %45 = sbr.rel (0) target = $region33
    $region32: #{decision_transformer_forward.1} parent=1 // pred_region
      _
    $region33: #{decision_transformer_forward.1} parent=1 // pred_fallthru
      _
    // Predicated region
    $region34: #{decision_transformer_forward.1} parent=1 // pred_check
      _
    $region35: #{decision_transformer_forward.1} parent=1 // pred_check_branch
      %47 = sbr.rel (0) target = $region37
    $region36: #{decision_transformer_forward.1} parent=1 // pred_region
      _
    $region37: #{decision_transformer_forward.1} parent=1 // pred_fallthru
      _
    // Predicated region
    $region38: #{decision_transformer_forward.1} parent=1 // pred_check
      _
    $region39: #{decision_transformer_forward.1} parent=1 // pred_check_branch
      %49 = sbr.rel (0) target = $region41
    $region40: #{decision_transformer_forward.1} parent=1 // pred_region
      _
    $region41: #{decision_transformer_forward.1} parent=1 // pred_fallthru
      _
    // Predicated region
    $region42: #{decision_transformer_forward.1} parent=1 // pred_check
      _
    $region43: #{decision_transformer_forward.1} parent=1 // pred_check_branch
      %51 = sbr.rel (0) target = $region45
    $region44: #{decision_transformer_forward.1} parent=1 // pred_region
      _
    $region45: #{decision_transformer_forward.1} parent=1 // pred_fallthru
      _
    // Predicated region
    $region46: #{decision_transformer_forward.1} parent=1 // pred_check
      _
    $region47: #{decision_transformer_forward.1} parent=1 // pred_check_branch
      %53 = sbr.rel (0) target = $region49
    $region48: #{decision_transformer_forward.1} parent=1 // pred_region
      _
    $region49: #{decision_transformer_forward.1} parent=1 // pred_fallthru
      _
    // Predicated region
    $region50: #{decision_transformer_forward.1} parent=1 // pred_check
      _
    $region51: #{decision_transformer_forward.1} parent=1 // pred_check_branch
      %55 = sbr.rel (0) target = $region53
    $region52: #{decision_transformer_forward.1} parent=1 // pred_region
      _
    $region53: #{decision_transformer_forward.1} parent=1 // pred_fallthru
      _
    // Predicated region
    $region54: #{decision_transformer_forward.1} parent=1 // pred_check
      _
    $region55: #{decision_transformer_forward.1} parent=1 // pred_check_branch
      %57 = sbr.rel (0) target = $region57
    $region56: #{decision_transformer_forward.1} parent=1 // pred_region
      _
    $region57: #{decision_transformer_forward.1} parent=1 // pred_fallthru
      _
    // Predicated region
    $region58: #{decision_transformer_forward.1} parent=1 // pred_check
      _
    $region59: #{decision_transformer_forward.1} parent=1 // pred_check_branch
      %59 = sbr.rel (0) target = $region61
    $region60: #{decision_transformer_forward.1} parent=1 // pred_region
      _
    $region61: #{decision_transformer_forward.1} parent=1 // pred_fallthru
      _
    // Predicated region
    $region62: #{decision_transformer_forward.1} parent=1 // pred_check
      _
    $region63: #{decision_transformer_forward.1} parent=1 // pred_check_branch
      %61 = sbr.rel (0) target = $region65
    $region64: #{decision_transformer_forward.1} parent=1 // pred_region
      _
    $region65: #{decision_transformer_forward.1} parent=1 // pred_fallthru
      _
    // Predicated region
    $region66: #{decision_transformer_forward.1} parent=1 // pred_check
      _
    $region67: #{decision_transformer_forward.1} parent=1 // pred_check_branch
      %63 = sbr.rel (0) target = $region69
    $region68: #{decision_transformer_forward.1} parent=1 // pred_region
      _
    $region69: #{decision_transformer_forward.1} parent=1 // pred_fallthru
      _
    // Predicated region
    $region70: #{decision_transformer_forward.1} parent=1 // pred_check
      _
    $region71: #{decision_transformer_forward.1} parent=1 // pred_check_branch
      %65 = sbr.rel (0) target = $region73
    $region72: #{decision_transformer_forward.1} parent=1 // pred_region
      _
    $region73: #{decision_transformer_forward.1} parent=1 // pred_fallthru
      _
    // Predicated region
    $region74: #{decision_transformer_forward.1} parent=1 // pred_check
      _
    $region75: #{decision_transformer_forward.1} parent=1 // pred_check_branch
      %67 = sbr.rel (0) target = $region77
    $region76: #{decision_transformer_forward.1} parent=1 // pred_region
      _
    $region77: #{decision_transformer_forward.1} parent=1 // pred_fallthru
      _
    // Predicated region
    $region78: #{decision_transformer_forward.1} parent=1 // pred_check
      _
    $region79: #{decision_transformer_forward.1} parent=1 // pred_check_branch
      %69 = sbr.rel (0) target = $region81
    $region80: #{decision_transformer_forward.1} parent=1 // pred_region
      _
    $region81: #{decision_transformer_forward.1} parent=1 // pred_fallthru
      _
    // Predicated region
    $region82: #{decision_transformer_forward.1} parent=1 // pred_check
      _
    $region83: #{decision_transformer_forward.1} parent=1 // pred_check_branch
      %71 = sbr.rel (0) target = $region85
    $region84: #{decision_transformer_forward.1} parent=1 // pred_region
      _
    $region85: #{decision_transformer_forward.1} parent=1 // pred_fallthru
      _
    // Predicated region
    $region86: #{decision_transformer_forward.1} parent=1 // pred_check
      _
    $region87: #{decision_transformer_forward.1} parent=1 // pred_check_branch
      %73 = sbr.rel (0) target = $region89
    $region88: #{decision_transformer_forward.1} parent=1 // pred_region
      _
    $region89: #{decision_transformer_forward.1} parent=1 // pred_fallthru
      _
    // Predicated region
    $region90: #{decision_transformer_forward.1} parent=1 // pred_check
      _
    $region91: #{decision_transformer_forward.1} parent=1 // pred_check_branch
      %75 = sbr.rel (0) target = $region93
    $region92: #{decision_transformer_forward.1} parent=1 // pred_region
      _
    $region93: #{decision_transformer_forward.1} parent=1 // pred_fallthru
      _
    // Predicated region
    $region94: #{decision_transformer_forward.1} parent=1 // pred_check
      _
    $region95: #{decision_transformer_forward.1} parent=1 // pred_check_branch
      %77 = sbr.rel (0) target = $region97
    $region96: #{decision_transformer_forward.1} parent=1 // pred_region
      _
    $region97: #{decision_transformer_forward.1} parent=1 // pred_fallthru
      _
    %v79 = vld [vmem:[%s0] sm:$0x3]
    %v80 = vld [vmem:[%s3] sm:$0xf]
    %v81 = vld [vmem:[%s3 + $0x4] sm:$0x3]
    %v82 = vld [vmem:[%s4] sm:$0x1]
    %v83 = vpack.c.bf16 %v79, %v79
    %v85 = vperm.slane %v82, 0
    %v89 = vunpack.c.l.b16 %v80
    %v90 = vunpack.c.l.b16 %v81
    %v91 = vpack.c.b16 %v90, %v89
    %vm92 = vcmask 97280
    %v94 = vsel %vm92, %v83, 0
    %vm96 = vcmask 1045504
    %v98 = vsel %vm96, %v91, 0
    %100 = vmatpush.bf16.msra.mxu0 0
    %101 = vmatpush.bf16.msra.mxu0 0
    %102 = vmatpush.bf16.msra.mxu0 0
    %103 = vmatpush.bf16.msra.mxu0 0
    %104 = vmatpush.bf16.msra.mxu0 0
    %105 = vmatpush.bf16.msra.mxu0 0
    %106 = vmatpush.bf16.msra.mxu0 0
    %107 = vmatpush.bf16.msra.mxu0 %v98
    %108 = vmatmul.bf16.gmra.mxu0 %v94
    %v109 = vpop.f32.mrf.mxu0
    %v110 = vadd.f32 %v85, %v109
    %v111 = vpop.f32.mrf.mxu0
    %112 = vdwg.mxu0
    %v113 = vld [vmem:[%s9] sm:$0x1]
    %v114 = vperm.slane %v113, 0
    %v115 = vadd.f32 %v110, %v114
    %v116 = vld [vmem:[%s1] sm:$0x3]
    %v117 = vld [vmem:[%s5] sm:$0x7]
    %v118 = vld [vmem:[%s6] sm:$0x1]
    %v119 = vpack.c.bf16 %v116, %v116
    %v121 = vperm.slane %v118, 0
    %vm123 = vcmask 48128
    %v125 = vsel %vm123, %v119, 0
    %vm127 = vcmask 1042432
    %v129 = vsel %vm127, %v117, 0
    %131 = vmatpush.bf16.msra.mxu0 0
    %132 = vmatpush.bf16.msra.mxu0 0
    %133 = vmatpush.bf16.msra.mxu0 0
    %134 = vmatpush.bf16.msra.mxu0 0
    %135 = vmatpush.bf16.msra.mxu0 0
    %136 = vmatpush.bf16.msra.mxu0 0
    %137 = vmatpush.bf16.msra.mxu0 0
    %138 = vmatpush.bf16.msra.mxu0 %v129
    %139 = vmatmul.bf16.gmra.mxu0 %v125
    %v140 = vpop.f32.mrf.mxu0
    %v141 = vadd.f32 %v121, %v140
    %v142 = vpop.f32.mrf.mxu0
    %143 = vdwg.mxu0
    %v144 = vld [vmem:[%s9 + $0x1] sm:$0x1]
    %v145 = vperm.slane %v144, 0
    %v146 = vadd.f32 %v141, %v145
    %v147 = vld [vmem:[%s2] sm:$0x3]
    %v148 = vld [vmem:[%s7] sm:$0x1]
    %150 = vset.pattern.permute.xlu0 0
    %151 = vperm.xlu0 %150, %v147
    %v152 = vpop.permute.xlu0 %151
    %v155 = vperm.slane %v148, 0
    %v157 = vmul.f32 %v152, %v155
    %v158 = vld [vmem:[%s8] sm:$0x1]
    %v160 = vperm.slane %v158, 0
    %v162 = vadd.f32 %v157, %v160
    %v163 = vld [vmem:[%s9 + $0x2] sm:$0x1]
    %v164 = vperm.slane %v163, 0
    %v165 = vadd.f32 %v162, %v164
    %v167 = vrot.slane %v146, 6
    %v170 = vrot.slane %v165, 4
    %vm172 = vcmask 1041408
    %v173 = vsel %vm172, %v115, %v167
    %vm174 = vcmask 1043456
    %v175 = vsel %vm174, %v173, %v170
    %v176 = vlaneseq
    %v177 = vshrl.u32 %v176, 7
    %v178 = vlaneseq
    %v179 = vand.u32 %v178, 127
    %v180 = vsub.s32 %v177, %v179
    %vm181 = vcmp.eq.s32.totalorder %v180, 4294967292
    %vm182 = vcmp.eq.s32.totalorder %v180, 4294967294
    %vm183 = vcmp.eq.s32.totalorder %v180, 0
    %vm184 = vcmp.eq.s32.totalorder %v180, 2
    %vm185 = vcmp.eq.s32.totalorder %v180, 4
    %vm186 = vmor %vm181, %vm182
    %vm187 = vmor %vm186, %vm183
    %vm188 = vmor %vm187, %vm184
    %vm189 = vmor %vm188, %vm185
    %v190 = vsel %vm189, 0.0, -1e+30
    %v192 = vrot.slane %v190, 2
    %v194 = vrot.slane %v190, 4
    %v196 = vrot.slane %v190, 6
    %v198 = vsel %vm96, %v190, %v192
    %v199 = vsel %vm174, %v192, %v194
    %v200 = vsel %vm172, %v194, %v196
    %vm201 = vcmp.ge.s32.totalorder %v179, 0
    %vm202 = vcmp.lt.s32.totalorder %v179, 8
    %vm203 = vmand %vm201, %vm202
    %v204 = vsel %vm203, 1, 0
    %v205 = vcvt.s32.f32 %v204
    %vm206 = vcmp.ge.s32.totalorder %v179, 8
    %vm207 = vcmp.lt.s32.totalorder %v179, 16
    %vm208 = vmand %vm206, %vm207
    %v209 = vsel %vm208, 1, 0
    %v210 = vcvt.s32.f32 %v209
    %vm211 = vcmp.ge.s32.totalorder %v179, 16
    %vm212 = vcmp.lt.s32.totalorder %v179, 24
    %vm213 = vmand %vm211, %vm212
    %v214 = vsel %vm213, 1, 0
    %v215 = vcvt.s32.f32 %v214
    %vm216 = vcmp.ge.s32.totalorder %v179, 24
    %vm217 = vcmp.lt.s32.totalorder %v179, 32
    %vm218 = vmand %vm216, %vm217
    %v219 = vsel %vm218, 1, 0
    %v220 = vcvt.s32.f32 %v219
    %v221 = vld [vmem:[%s10] sm:$0xf]
    %v222 = vld [vmem:[%s10 + $0x4] sm:$0xf]
    %v223 = vld [vmem:[%s10 + $0x8] sm:$0xf]
    %v224 = vld [vmem:[%s10 + $0xc] sm:$0xf]
    %v225 = vld [vmem:[%s11] sm:$0x1]
    %v226 = vpack.c.bf16 %v175, %v175
    %v228 = vperm.slane %v225, 0
    %v234 = vunpack.c.l.b16 %v221
    %v235 = vunpack.c.l.b16 %v222
    %v236 = vunpack.c.l.b16 %v223
    %v237 = vunpack.c.l.b16 %v224
    %v238 = vpack.c.b16 %v235, %v234
    %v239 = vpack.c.b16 %v237, %v236
    %vm242 = vcmask 261120
    %v244 = vsel %vm242, %v226, 0
    %246 = vmatpush.bf16.msra.mxu0 0
    %247 = vmatpush.bf16.msra.mxu0 0
    %248 = vmatpush.bf16.msra.mxu0 0
    %249 = vmatpush.bf16.msra.mxu0 0
    %250 = vmatpush.bf16.msra.mxu0 0
    %251 = vmatpush.bf16.msra.mxu0 0
    %252 = vmatpush.bf16.msra.mxu0 %v239
    %253 = vmatpush.bf16.msra.mxu0 %v238
    %254 = vmatmul.bf16.gmra.mxu0 %v244
    %v255 = vpop.f32.mrf.mxu0
    %v256 = vadd.f32 %v228, %v255
    %v257 = vpop.f32.mrf.mxu0
    %258 = vdwg.mxu0
    %260 = vrot.lane.b32.xlu0 %v256, 96
    %v261 = vpop.permute.xlu0 %260
    %263 = vxpose.xlu0.b32.start [1/16] %v261, 128
    %264 = vxpose.xlu0.b32.cont [2/16] 0.0, 128
    %265 = vxpose.xlu0.b32.cont [3/16] 0.0, 128
    %266 = vxpose.xlu0.b32.cont [4/16] 0.0, 128
    %267 = vxpose.xlu0.b32.cont [5/16] 0.0, 128
    %268 = vxpose.xlu0.b32.cont [6/16] 0.0, 128
    %269 = vxpose.xlu0.b32.cont [7/16] 0.0, 128
    %270 = vxpose.xlu0.b32.cont [8/16] 0.0, 128
    %271 = vxpose.xlu0.b32.cont [9/16] 0.0, 128
    %272 = vxpose.xlu0.b32.cont [10/16] 0.0, 128
    %273 = vxpose.xlu0.b32.cont [11/16] 0.0, 128
    %274 = vxpose.xlu0.b32.cont [12/16] 0.0, 128
    %275 = vxpose.xlu0.b32.cont [13/16] 0.0, 128
    %276 = vxpose.xlu0.b32.cont [14/16] 0.0, 128
    %277 = vxpose.xlu0.b32.cont [15/16] 0.0, 128
    %278 = vxpose.xlu0.b32.end [16/16] 0.0, 128
    %v279 = vpop.trf.xlu0
    %v280 = vpop.trf.xlu0
    %v281 = vpop.trf.xlu0
    %v282 = vpop.trf.xlu0
    %v283 = vpop.trf.xlu0
    %v284 = vpop.trf.xlu0
    %v285 = vpop.trf.xlu0
    %v286 = vpop.trf.xlu0
    %v287 = vpop.trf.xlu0
    %v288 = vpop.trf.xlu0
    %v289 = vpop.trf.xlu0
    %v290 = vpop.trf.xlu0
    %v291 = vpop.trf.xlu0
    %v292 = vpop.trf.xlu0
    %v293 = vpop.trf.xlu0
    %v294 = vpop.trf.xlu0
    %v295 = vmul.f32 %v256, %v205
    %v296 = vmul.f32 %v256, %v210
    %v297 = vmul.f32 %v256, %v215
    %v298 = vmul.f32 %v256, %v220
    %v300 = vrot.slane %v296, 2
    %v303 = vrot.slane %v297, 4
    %v306 = vrot.slane %v298, 6
    %v308 = vsel %vm96, %v295, %v300
    %v309 = vsel %vm174, %v300, %v303
    %v310 = vsel %vm172, %v303, %v306
    %v311 = vpack.c.bf16 %v309, %v308
    %v312 = vpack.c.bf16 %v310, %v310
    %v313 = vpack.c.bf16 %v280, %v279
    %v314 = vpack.c.bf16 %v282, %v281
    %v316 = vsel %vm242, %v311, 0
    %v319 = vsel %vm242, %v312, 0
    %321 = vmatpush.bf16.msra.mxu0 0
    %322 = vmatpush.bf16.msra.mxu0 0
    %323 = vmatpush.bf16.msra.mxu0 0
    %324 = vmatpush.bf16.msra.mxu0 0
    %325 = vmatpush.bf16.msra.mxu0 0
    %326 = vmatpush.bf16.msra.mxu0 0
    %327 = vmatpush.bf16.msra.mxu0 %v314
    %328 = vmatpush.bf16.msra.mxu0 %v313
    %329 = vmatmul.bf16.gmra.mxu0 %v316
    %v330 = vpop.f32.mrf.mxu0
    %v331 = vadd.f32 0.0, %v330
    %v332 = vpop.f32.mrf.mxu0
    %v333 = vadd.f32 0.0, %v332
    %334 = vmatmul.bf16.gmra.mxu0 %v319
    %v335 = vpop.f32.mrf.mxu0
    %v336 = vadd.f32 0.0, %v335
    %v337 = vpop.f32.mrf.mxu0
    %338 = vdwg.mxu0
    %v339 = vmul.f32 %v331, 0.35355338
    %v340 = vmul.f32 %v333, 0.35355338
    %v341 = vmul.f32 %v336, 0.35355338
    %v342 = vadd.f32 %v339, %v198
    %v343 = vadd.f32 %v340, %v199
    %v344 = vadd.f32 %v341, %v200
    %v345 = vsel %vm123, %v342, -inf
    %346 = vmax.xlane.f32.xlu0 %v345
    %v347 = vpop.xlane.xlu0 %346
    %v348 = vsel %vm123, %v343, -inf
    %349 = vmax.xlane.f32.xlu0 %v348
    %v350 = vpop.xlane.xlu0 %349
    %v351 = vsel %vm123, %v344, -inf
    %352 = vmax.xlane.f32.xlu0 %v351
    %v353 = vpop.xlane.xlu0 %352
    %v354 = vsub.f32 %v342, %v347
    %v355 = vsub.f32 %v343, %v350
    %v356 = vsub.f32 %v344, %v353
    %v357 = vmul.f32 %v354, 1.442695
    %v358 = vpow.pop %v357
    %v359 = vmul.f32 %v355, 1.442695
    %v360 = vpow.pop %v359
    %v361 = vmul.f32 %v356, 1.442695
    %v362 = vpow.pop %v361
    %v363 = vsel %vm123, %v358, 0.0
    %364 = vadd.xlane.f32.xlu0 %v363
    %v365 = vpop.xlane.xlu0 %364
    %v366 = vsel %vm123, %v360, 0.0
    %367 = vadd.xlane.f32.xlu0 %v366
    %v368 = vpop.xlane.xlu0 %367
    %v369 = vsel %vm123, %v362, 0.0
    %370 = vadd.xlane.f32.xlu0 %v369
    %v371 = vpop.xlane.xlu0 %370
    %v372 = vrcp.pop %v365
    %v373 = vrcp.pop %v368
    %v374 = vrcp.pop %v371
    %v375 = vmul.f32 %v358, %v372
    %v376 = vmul.f32 %v360, %v373
    %v377 = vmul.f32 %v362, %v374
    %v378 = vpack.c.bf16 %v376, %v375
    %v379 = vpack.c.bf16 %v377, %v377
    %v380 = vpack.c.bf16 %v256, %v256
    %382 = vrot.lane.b32.xlu0 %v380, 64
    %v383 = vpop.permute.xlu0 %382
    %v385 = vsel %vm123, %v378, 0
    %v388 = vsel %vm123, %v379, 0
    %v391 = vsel %vm127, %v383, 0
    %393 = vmatpush.bf16.msra.mxu0 0
    %394 = vmatpush.bf16.msra.mxu0 0
    %395 = vmatpush.bf16.msra.mxu0 0
    %396 = vmatpush.bf16.msra.mxu0 0
    %397 = vmatpush.bf16.msra.mxu0 0
    %398 = vmatpush.bf16.msra.mxu0 0
    %399 = vmatpush.bf16.msra.mxu0 0
    %400 = vmatpush.bf16.msra.mxu0 %v391
    %401 = vmatmul.bf16.gmra.mxu0 %v385
    %v402 = vpop.f32.mrf.mxu0
    %v403 = vadd.f32 0.0, %v402
    %v404 = vpop.f32.mrf.mxu0
    %v405 = vadd.f32 0.0, %v404
    %406 = vmatmul.bf16.gmra.mxu0 %v388
    %v407 = vpop.f32.mrf.mxu0
    %v408 = vadd.f32 0.0, %v407
    %v409 = vpop.f32.mrf.mxu0
    %410 = vdwg.mxu0
    %v411 = vmul.f32 %v403, %v205
    %v412 = vmul.f32 %v403, %v210
    %v413 = vmul.f32 %v405, %v210
    %v414 = vmul.f32 %v405, %v215
    %v415 = vmul.f32 %v408, %v215
    %v416 = vmul.f32 %v408, %v220
    %v419 = vrot.slane %v412, 6
    %v420 = vrot.slane %v413, 6
    %v421 = vsel %vm172, %v419, %v420
    %v423 = vadd.f32 %v411, %v421
    %v426 = vrot.slane %v414, 4
    %v427 = vrot.slane %v415, 4
    %v428 = vsel %vm174, %v426, %v427
    %v430 = vadd.f32 %v423, %v428
    %v432 = vrot.slane %v416, 2
    %v434 = vadd.f32 %v430, %v432
    %v435 = vld [vmem:[%s12] sm:$0xf]
    %v436 = vld [vmem:[%s12 + $0x4] sm:$0xf]
    %v437 = vld [vmem:[%s12 + $0x8] sm:$0xf]
    %v438 = vld [vmem:[%s12 + $0xc] sm:$0xf]
    %v439 = vld [vmem:[%s13] sm:$0x1]
    %v440 = vpack.c.bf16 %v434, %v434
    %v442 = vperm.slane %v439, 0
    %v448 = vunpack.c.l.b16 %v435
    %v449 = vunpack.c.l.b16 %v436
    %v450 = vunpack.c.l.b16 %v437
    %v451 = vunpack.c.l.b16 %v438
    %v452 = vpack.c.b16 %v449, %v448
    %v453 = vpack.c.b16 %v451, %v450
    %v457 = vsel %vm242, %v440, 0
    %459 = vmatpush.bf16.msra.mxu0 0
    %460 = vmatpush.bf16.msra.mxu0 0
    %461 = vmatpush.bf16.msra.mxu0 0
    %462 = vmatpush.bf16.msra.mxu0 0
    %463 = vmatpush.bf16.msra.mxu0 0
    %464 = vmatpush.bf16.msra.mxu0 0
    %465 = vmatpush.bf16.msra.mxu0 %v453
    %466 = vmatpush.bf16.msra.mxu0 %v452
    %467 = vmatmul.bf16.gmra.mxu0 %v457
    %v468 = vpop.f32.mrf.mxu0
    %v469 = vadd.f32 %v442, %v468
    %v470 = vpop.f32.mrf.mxu0
    %471 = vdwg.mxu0
    %v472 = vadd.f32 %v175, %v469
    %v473 = vld [vmem:[%s14] sm:$0x1]
    %v474 = vld [vmem:[%s15] sm:$0x1]
    %vm475 = vcmask 259072
    %v476 = vsel %vm475, %v472, 0.0
    %477 = vadd.xlane.f32.xlu0 %v476
    %v478 = vpop.xlane.xlu0 %477
    %v479 = vrcp.pop 32.0
    %v480 = vmul.f32 32.0, %v479
    %v481 = vsub.f32 1.0, %v480
    %v482 = vmul.f32 %v479, %v481
    %v483 = vadd.f32 %v479, %v482
    %vm484 = vweird.f32 %v479
    %v485 = vsel %vm484, %v479, %v483
    %v486 = vmul.f32 %v478, %v485
    %v487 = vsub.f32 %v472, %v486
    %v488 = vmul.f32 %v487, %v487
    %v489 = vsel %vm475, %v488, 0.0
    %490 = vadd.xlane.f32.xlu0 %v489
    %v491 = vpop.xlane.xlu0 %490
    %v492 = vmul.f32 %v491, %v485
    %v493 = vadd.f32 %v492, 1e-05
    %v494 = vrsqrt.pop %v493
    %v495 = vmul.f32 %v494, %v493
    %v496 = vmul.f32 %v495, %v494
    %v497 = vmul.f32 0.5, %v496
    %v498 = vsub.f32 1.5, %v497
    %v499 = vmul.f32 %v494, %v498
    %vm500 = vweird.f32 %v493
    %vm501 = vweird.f32 %v494
    %vm502 = vmor %vm500, %vm501
    %v503 = vsel %vm502, %v494, %v499
    %v504 = vmul.f32 %v487, %v503
    %v506 = vperm.slane %v473, 0
    %v508 = vmul.f32 %v504, %v506
    %v510 = vperm.slane %v474, 0
    %v512 = vadd.f32 %v508, %v510
    %v513 = vld [vmem:[%s16] sm:$0xff]
    %v514 = vld [vmem:[%s16 + $0x8] sm:$0xff]
    %v515 = vld [vmem:[%s16 + $0x10] sm:$0xff]
    %v516 = vld [vmem:[%s16 + $0x18] sm:$0xff]
    %v517 = vld [vmem:[%s16 + $0x20] sm:$0xff]
    %v518 = vld [vmem:[%s16 + $0x28] sm:$0xff]
    %v519 = vld [vmem:[%s16 + $0x30] sm:$0xff]
    %v520 = vld [vmem:[%s16 + $0x38] sm:$0xff]
    %v521 = vld [vmem:[%s16 + $0x40] sm:$0xff]
    %v522 = vld [vmem:[%s16 + $0x48] sm:$0xff]
    %v523 = vld [vmem:[%s16 + $0x50] sm:$0xff]
    %v524 = vld [vmem:[%s16 + $0x58] sm:$0xff]
    %v525 = vld [vmem:[%s16 + $0x60] sm:$0xff]
    %v526 = vld [vmem:[%s16 + $0x68] sm:$0xff]
    %v527 = vld [vmem:[%s16 + $0x70] sm:$0xff]
    %v528 = vld [vmem:[%s16 + $0x78] sm:$0xff]
    %v529 = vld [vmem:[%s16 + $0x80] sm:$0xff]
    %v530 = vld [vmem:[%s16 + $0x88] sm:$0xff]
    %v531 = vld [vmem:[%s16 + $0x90] sm:$0xff]
    %v532 = vld [vmem:[%s16 + $0x98] sm:$0xff]
    %v533 = vld [vmem:[%s16 + $0xa0] sm:$0xff]
    %v534 = vld [vmem:[%s16 + $0xa8] sm:$0xff]
    %v535 = vld [vmem:[%s16 + $0xb0] sm:$0xff]
    %v536 = vld [vmem:[%s16 + $0xb8] sm:$0xff]
    %v537 = vld [vmem:[%s16 + $0xc0] sm:$0xff]
    %v538 = vld [vmem:[%s16 + $0xc8] sm:$0xff]
    %v539 = vld [vmem:[%s16 + $0xd0] sm:$0xff]
    %v540 = vld [vmem:[%s16 + $0xd8] sm:$0xff]
    %v541 = vld [vmem:[%s16 + $0xe0] sm:$0xff]
    %v542 = vld [vmem:[%s16 + $0xe8] sm:$0xff]
    %v543 = vld [vmem:[%s16 + $0xf0] sm:$0xff]
    %v544 = vld [vmem:[%s16 + $0xf8] sm:$0xff]
    %v545 = vld [vmem:[%s17] sm:$0xff]
    %v546 = vld [vmem:[%s17 + $0x8] sm:$0xff]
    %v547 = vpack.c.bf16 %v512, %v512
    %v550 = vperm.slane %v545, 0
    %v551 = vperm.slane %v545, 1
    %v552 = vperm.slane %v545, 2
    %v553 = vperm.slane %v545, 3
    %v554 = vperm.slane %v545, 4
    %v555 = vperm.slane %v545, 5
    %v556 = vperm.slane %v545, 6
    %v557 = vperm.slane %v545, 7
    %v558 = vperm.slane %v546, 0
    %v559 = vperm.slane %v546, 1
    %v560 = vperm.slane %v546, 2
    %v561 = vperm.slane %v546, 3
    %v562 = vperm.slane %v546, 4
    %v563 = vperm.slane %v546, 5
    %v564 = vperm.slane %v546, 6
    %v565 = vperm.slane %v546, 7
    %v614 = vunpack.c.l.b16 %v513
    %v615 = vunpack.c.h.b16 %v513
    %v616 = vunpack.c.l.b16 %v514
    %v617 = vunpack.c.h.b16 %v514
    %v618 = vunpack.c.l.b16 %v515
    %v619 = vunpack.c.h.b16 %v515
    %v620 = vunpack.c.l.b16 %v516
    %v621 = vunpack.c.h.b16 %v516
    %v622 = vunpack.c.l.b16 %v517
    %v623 = vunpack.c.h.b16 %v517
    %v624 = vunpack.c.l.b16 %v518
    %v625 = vunpack.c.h.b16 %v518
    %v626 = vunpack.c.l.b16 %v519
    %v627 = vunpack.c.h.b16 %v519
    %v628 = vunpack.c.l.b16 %v520
    %v629 = vunpack.c.h.b16 %v520
    %v630 = vunpack.c.l.b16 %v521
    %v631 = vunpack.c.h.b16 %v521
    %v632 = vunpack.c.l.b16 %v522
    %v633 = vunpack.c.h.b16 %v522
    %v634 = vunpack.c.l.b16 %v523
    %v635 = vunpack.c.h.b16 %v523
    %v636 = vunpack.c.l.b16 %v524
    %v637 = vunpack.c.h.b16 %v524
    %v638 = vunpack.c.l.b16 %v525
    %v639 = vunpack.c.h.b16 %v525
    %v640 = vunpack.c.l.b16 %v526
    %v641 = vunpack.c.h.b16 %v526
    %v642 = vunpack.c.l.b16 %v527
    %v643 = vunpack.c.h.b16 %v527
    %v644 = vunpack.c.l.b16 %v528
    %v645 = vunpack.c.h.b16 %v528
    %v646 = vunpack.c.l.b16 %v529
    %v647 = vunpack.c.h.b16 %v529
    %v648 = vunpack.c.l.b16 %v530
    %v649 = vunpack.c.h.b16 %v530
    %v650 = vunpack.c.l.b16 %v531
    %v651 = vunpack.c.h.b16 %v531
    %v652 = vunpack.c.l.b16 %v532
    %v653 = vunpack.c.h.b16 %v532
    %v654 = vunpack.c.l.b16 %v533
    %v655 = vunpack.c.h.b16 %v533
    %v656 = vunpack.c.l.b16 %v534
    %v657 = vunpack.c.h.b16 %v534
    %v658 = vunpack.c.l.b16 %v535
    %v659 = vunpack.c.h.b16 %v535
    %v660 = vunpack.c.l.b16 %v536
    %v661 = vunpack.c.h.b16 %v536
    %v662 = vunpack.c.l.b16 %v537
    %v663 = vunpack.c.h.b16 %v537
    %v664 = vunpack.c.l.b16 %v538
    %v665 = vunpack.c.h.b16 %v538
    %v666 = vunpack.c.l.b16 %v539
    %v667 = vunpack.c.h.b16 %v539
    %v668 = vunpack.c.l.b16 %v540
    %v669 = vunpack.c.h.b16 %v540
    %v670 = vunpack.c.l.b16 %v541
    %v671 = vunpack.c.h.b16 %v541
    %v672 = vunpack.c.l.b16 %v542
    %v673 = vunpack.c.h.b16 %v542
    %v674 = vunpack.c.l.b16 %v543
    %v675 = vunpack.c.h.b16 %v543
    %v676 = vunpack.c.l.b16 %v544
    %v677 = vunpack.c.h.b16 %v544
    %v678 = vpack.c.b16 %v630, %v614
    %v679 = vpack.c.b16 %v631, %v615
    %v680 = vpack.c.b16 %v632, %v616
    %v681 = vpack.c.b16 %v633, %v617
    %v682 = vpack.c.b16 %v634, %v618
    %v683 = vpack.c.b16 %v635, %v619
    %v684 = vpack.c.b16 %v636, %v620
    %v685 = vpack.c.b16 %v637, %v621
    %v686 = vpack.c.b16 %v638, %v622
    %v687 = vpack.c.b16 %v639, %v623
    %v688 = vpack.c.b16 %v640, %v624
    %v689 = vpack.c.b16 %v641, %v625
    %v690 = vpack.c.b16 %v642, %v626
    %v691 = vpack.c.b16 %v643, %v627
    %v692 = vpack.c.b16 %v644, %v628
    %v693 = vpack.c.b16 %v645, %v629
    %v694 = vpack.c.b16 %v662, %v646
    %v695 = vpack.c.b16 %v663, %v647
    %v696 = vpack.c.b16 %v664, %v648
    %v697 = vpack.c.b16 %v665, %v649
    %v698 = vpack.c.b16 %v666, %v650
    %v699 = vpack.c.b16 %v667, %v651
    %v700 = vpack.c.b16 %v668, %v652
    %v701 = vpack.c.b16 %v669, %v653
    %v702 = vpack.c.b16 %v670, %v654
    %v703 = vpack.c.b16 %v671, %v655
    %v704 = vpack.c.b16 %v672, %v656
    %v705 = vpack.c.b16 %v673, %v657
    %v706 = vpack.c.b16 %v674, %v658
    %v707 = vpack.c.b16 %v675, %v659
    %v708 = vpack.c.b16 %v676, %v660
    %v709 = vpack.c.b16 %v677, %v661
    %v743 = vsel %vm242, %v547, 0
    %745 = vmatpush.bf16.msra.mxu0 0
    %746 = vmatpush.bf16.msra.mxu0 0
    %747 = vmatpush.bf16.msra.mxu0 0
    %748 = vmatpush.bf16.msra.mxu0 0
    %749 = vmatpush.bf16.msra.mxu0 0
    %750 = vmatpush.bf16.msra.mxu0 0
    %751 = vmatpush.bf16.msra.mxu0 %v694
    %752 = vmatpush.bf16.msra.mxu0 %v678
    %753 = vmatmul.bf16.gmra.mxu0 %v743
    %v754 = vpop.f32.mrf.mxu0
    %v755 = vadd.f32 %v550, %v754
    %v756 = vpop.f32.mrf.mxu0
    %757 = vdwg.mxu0
    %758 = vmatpush.bf16.msra.mxu0 0
    %759 = vmatpush.bf16.msra.mxu0 0
    %760 = vmatpush.bf16.msra.mxu0 0
    %761 = vmatpush.bf16.msra.mxu0 0
    %762 = vmatpush.bf16.msra.mxu0 0
    %763 = vmatpush.bf16.msra.mxu0 0
    %764 = vmatpush.bf16.msra.mxu0 %v695
    %765 = vmatpush.bf16.msra.mxu0 %v679
    %766 = vmatmul.bf16.gmra.mxu0 %v743
    %v767 = vpop.f32.mrf.mxu0
    %v768 = vadd.f32 %v551, %v767
    %v769 = vpop.f32.mrf.mxu0
    %770 = vdwg.mxu0
    %771 = vmatpush.bf16.msra.mxu0 0
    %772 = vmatpush.bf16.msra.mxu0 0
    %773 = vmatpush.bf16.msra.mxu0 0
    %774 = vmatpush.bf16.msra.mxu0 0
    %775 = vmatpush.bf16.msra.mxu0 0
    %776 = vmatpush.bf16.msra.mxu0 0
    %777 = vmatpush.bf16.msra.mxu0 %v696
    %778 = vmatpush.bf16.msra.mxu0 %v680
    %779 = vmatmul.bf16.gmra.mxu0 %v743
    %v780 = vpop.f32.mrf.mxu0
    %v781 = vadd.f32 %v552, %v780
    %v782 = vpop.f32.mrf.mxu0
    %783 = vdwg.mxu0
    %784 = vmatpush.bf16.msra.mxu0 0
    %785 = vmatpush.bf16.msra.mxu0 0
    %786 = vmatpush.bf16.msra.mxu0 0
    %787 = vmatpush.bf16.msra.mxu0 0
    %788 = vmatpush.bf16.msra.mxu0 0
    %789 = vmatpush.bf16.msra.mxu0 0
    %790 = vmatpush.bf16.msra.mxu0 %v697
    %791 = vmatpush.bf16.msra.mxu0 %v681
    %792 = vmatmul.bf16.gmra.mxu0 %v743
    %v793 = vpop.f32.mrf.mxu0
    %v794 = vadd.f32 %v553, %v793
    %v795 = vpop.f32.mrf.mxu0
    %796 = vdwg.mxu0
    %797 = vmatpush.bf16.msra.mxu0 0
    %798 = vmatpush.bf16.msra.mxu0 0
    %799 = vmatpush.bf16.msra.mxu0 0
    %800 = vmatpush.bf16.msra.mxu0 0
    %801 = vmatpush.bf16.msra.mxu0 0
    %802 = vmatpush.bf16.msra.mxu0 0
    %803 = vmatpush.bf16.msra.mxu0 %v698
    %804 = vmatpush.bf16.msra.mxu0 %v682
    %805 = vmatmul.bf16.gmra.mxu0 %v743
    %v806 = vpop.f32.mrf.mxu0
    %v807 = vadd.f32 %v554, %v806
    %v808 = vpop.f32.mrf.mxu0
    %809 = vdwg.mxu0
    %810 = vmatpush.bf16.msra.mxu0 0
    %811 = vmatpush.bf16.msra.mxu0 0
    %812 = vmatpush.bf16.msra.mxu0 0
    %813 = vmatpush.bf16.msra.mxu0 0
    %814 = vmatpush.bf16.msra.mxu0 0
    %815 = vmatpush.bf16.msra.mxu0 0
    %816 = vmatpush.bf16.msra.mxu0 %v699
    %817 = vmatpush.bf16.msra.mxu0 %v683
    %818 = vmatmul.bf16.gmra.mxu0 %v743
    %v819 = vpop.f32.mrf.mxu0
    %v820 = vadd.f32 %v555, %v819
    %v821 = vpop.f32.mrf.mxu0
    %822 = vdwg.mxu0
    %823 = vmatpush.bf16.msra.mxu0 0
    %824 = vmatpush.bf16.msra.mxu0 0
    %825 = vmatpush.bf16.msra.mxu0 0
    %826 = vmatpush.bf16.msra.mxu0 0
    %827 = vmatpush.bf16.msra.mxu0 0
    %828 = vmatpush.bf16.msra.mxu0 0
    %829 = vmatpush.bf16.msra.mxu0 %v700
    %830 = vmatpush.bf16.msra.mxu0 %v684
    %831 = vmatmul.bf16.gmra.mxu0 %v743
    %v832 = vpop.f32.mrf.mxu0
    %v833 = vadd.f32 %v556, %v832
    %v834 = vpop.f32.mrf.mxu0
    %835 = vdwg.mxu0
    %836 = vmatpush.bf16.msra.mxu0 0
    %837 = vmatpush.bf16.msra.mxu0 0
    %838 = vmatpush.bf16.msra.mxu0 0
    %839 = vmatpush.bf16.msra.mxu0 0
    %840 = vmatpush.bf16.msra.mxu0 0
    %841 = vmatpush.bf16.msra.mxu0 0
    %842 = vmatpush.bf16.msra.mxu0 %v701
    %843 = vmatpush.bf16.msra.mxu0 %v685
    %844 = vmatmul.bf16.gmra.mxu0 %v743
    %v845 = vpop.f32.mrf.mxu0
    %v846 = vadd.f32 %v557, %v845
    %v847 = vpop.f32.mrf.mxu0
    %848 = vdwg.mxu0
    %849 = vmatpush.bf16.msra.mxu0 0
    %850 = vmatpush.bf16.msra.mxu0 0
    %851 = vmatpush.bf16.msra.mxu0 0
    %852 = vmatpush.bf16.msra.mxu0 0
    %853 = vmatpush.bf16.msra.mxu0 0
    %854 = vmatpush.bf16.msra.mxu0 0
    %855 = vmatpush.bf16.msra.mxu0 %v702
    %856 = vmatpush.bf16.msra.mxu0 %v686
    %857 = vmatmul.bf16.gmra.mxu0 %v743
    %v858 = vpop.f32.mrf.mxu0
    %v859 = vadd.f32 %v558, %v858
    %v860 = vpop.f32.mrf.mxu0
    %861 = vdwg.mxu0
    %862 = vmatpush.bf16.msra.mxu0 0
    %863 = vmatpush.bf16.msra.mxu0 0
    %864 = vmatpush.bf16.msra.mxu0 0
    %865 = vmatpush.bf16.msra.mxu0 0
    %866 = vmatpush.bf16.msra.mxu0 0
    %867 = vmatpush.bf16.msra.mxu0 0
    %868 = vmatpush.bf16.msra.mxu0 %v703
    %869 = vmatpush.bf16.msra.mxu0 %v687
    %870 = vmatmul.bf16.gmra.mxu0 %v743
    %v871 = vpop.f32.mrf.mxu0
    %v872 = vadd.f32 %v559, %v871
    %v873 = vpop.f32.mrf.mxu0
    %874 = vdwg.mxu0
    %875 = vmatpush.bf16.msra.mxu0 0
    %876 = vmatpush.bf16.msra.mxu0 0
    %877 = vmatpush.bf16.msra.mxu0 0
    %878 = vmatpush.bf16.msra.mxu0 0
    %879 = vmatpush.bf16.msra.mxu0 0
    %880 = vmatpush.bf16.msra.mxu0 0
    %881 = vmatpush.bf16.msra.mxu0 %v704
    %882 = vmatpush.bf16.msra.mxu0 %v688
    %883 = vmatmul.bf16.gmra.mxu0 %v743
    %v884 = vpop.f32.mrf.mxu0
    %v885 = vadd.f32 %v560, %v884
    %v886 = vpop.f32.mrf.mxu0
    %887 = vdwg.mxu0
    %888 = vmatpush.bf16.msra.mxu0 0
    %889 = vmatpush.bf16.msra.mxu0 0
    %890 = vmatpush.bf16.msra.mxu0 0
    %891 = vmatpush.bf16.msra.mxu0 0
    %892 = vmatpush.bf16.msra.mxu0 0
    %893 = vmatpush.bf16.msra.mxu0 0
    %894 = vmatpush.bf16.msra.mxu0 %v705
    %895 = vmatpush.bf16.msra.mxu0 %v689
    %896 = vmatmul.bf16.gmra.mxu0 %v743
    %v897 = vpop.f32.mrf.mxu0
    %v898 = vadd.f32 %v561, %v897
    %v899 = vpop.f32.mrf.mxu0
    %900 = vdwg.mxu0
    %901 = vmatpush.bf16.msra.mxu0 0
    %902 = vmatpush.bf16.msra.mxu0 0
    %903 = vmatpush.bf16.msra.mxu0 0
    %904 = vmatpush.bf16.msra.mxu0 0
    %905 = vmatpush.bf16.msra.mxu0 0
    %906 = vmatpush.bf16.msra.mxu0 0
    %907 = vmatpush.bf16.msra.mxu0 %v706
    %908 = vmatpush.bf16.msra.mxu0 %v690
    %909 = vmatmul.bf16.gmra.mxu0 %v743
    %v910 = vpop.f32.mrf.mxu0
    %v911 = vadd.f32 %v562, %v910
    %v912 = vpop.f32.mrf.mxu0
    %913 = vdwg.mxu0
    %914 = vmatpush.bf16.msra.mxu0 0
    %915 = vmatpush.bf16.msra.mxu0 0
    %916 = vmatpush.bf16.msra.mxu0 0
    %917 = vmatpush.bf16.msra.mxu0 0
    %918 = vmatpush.bf16.msra.mxu0 0
    %919 = vmatpush.bf16.msra.mxu0 0
    %920 = vmatpush.bf16.msra.mxu0 %v707
    %921 = vmatpush.bf16.msra.mxu0 %v691
    %922 = vmatmul.bf16.gmra.mxu0 %v743
    %v923 = vpop.f32.mrf.mxu0
    %v924 = vadd.f32 %v563, %v923
    %v925 = vpop.f32.mrf.mxu0
    %926 = vdwg.mxu0
    %927 = vmatpush.bf16.msra.mxu0 0
    %928 = vmatpush.bf16.msra.mxu0 0
    %929 = vmatpush.bf16.msra.mxu0 0
    %930 = vmatpush.bf16.msra.mxu0 0
    %931 = vmatpush.bf16.msra.mxu0 0
    %932 = vmatpush.bf16.msra.mxu0 0
    %933 = vmatpush.bf16.msra.mxu0 %v708
    %934 = vmatpush.bf16.msra.mxu0 %v692
    %935 = vmatmul.bf16.gmra.mxu0 %v743
    %v936 = vpop.f32.mrf.mxu0
    %v937 = vadd.f32 %v564, %v936
    %v938 = vpop.f32.mrf.mxu0
    %939 = vdwg.mxu0
    %940 = vmatpush.bf16.msra.mxu0 0
    %941 = vmatpush.bf16.msra.mxu0 0
    %942 = vmatpush.bf16.msra.mxu0 0
    %943 = vmatpush.bf16.msra.mxu0 0
    %944 = vmatpush.bf16.msra.mxu0 0
    %945 = vmatpush.bf16.msra.mxu0 0
    %946 = vmatpush.bf16.msra.mxu0 %v709
    %947 = vmatpush.bf16.msra.mxu0 %v693
    %948 = vmatmul.bf16.gmra.mxu0 %v743
    %v949 = vpop.f32.mrf.mxu0
    %v950 = vadd.f32 %v565, %v949
    %v951 = vpop.f32.mrf.mxu0
    %952 = vdwg.mxu0
    %v953 = vmax.f32 %v755, 0.0
    %v954 = vmax.f32 %v768, 0.0
    %v955 = vmax.f32 %v781, 0.0
    %v956 = vmax.f32 %v794, 0.0
    %v957 = vmax.f32 %v807, 0.0
    %v958 = vmax.f32 %v820, 0.0
    %v959 = vmax.f32 %v833, 0.0
    %v960 = vmax.f32 %v846, 0.0
    %v961 = vmax.f32 %v859, 0.0
    %v962 = vmax.f32 %v872, 0.0
    %v963 = vmax.f32 %v885, 0.0
    %v964 = vmax.f32 %v898, 0.0
    %v965 = vmax.f32 %v911, 0.0
    %v966 = vmax.f32 %v924, 0.0
    %v967 = vmax.f32 %v937, 0.0
    %v968 = vmax.f32 %v950, 0.0
    %v969 = vld [vmem:[%s18] sm:$0xf]
    %v970 = vld [vmem:[%s18 + $0x4] sm:$0xf]
    %v971 = vld [vmem:[%s18 + $0x8] sm:$0xf]
    %v972 = vld [vmem:[%s18 + $0xc] sm:$0xf]
    %v973 = vld [vmem:[%s18 + $0x10] sm:$0xf]
    %v974 = vld [vmem:[%s18 + $0x14] sm:$0xf]
    %v975 = vld [vmem:[%s18 + $0x18] sm:$0xf]
    %v976 = vld [vmem:[%s18 + $0x1c] sm:$0xf]
    %v977 = vld [vmem:[%s18 + $0x20] sm:$0xf]
    %v978 = vld [vmem:[%s18 + $0x24] sm:$0xf]
    %v979 = vld [vmem:[%s18 + $0x28] sm:$0xf]
    %v980 = vld [vmem:[%s18 + $0x2c] sm:$0xf]
    %v981 = vld [vmem:[%s18 + $0x30] sm:$0xf]
    %v982 = vld [vmem:[%s18 + $0x34] sm:$0xf]
    %v983 = vld [vmem:[%s18 + $0x38] sm:$0xf]
    %v984 = vld [vmem:[%s18 + $0x3c] sm:$0xf]
    %v985 = vld [vmem:[%s18 + $0x40] sm:$0xf]
    %v986 = vld [vmem:[%s18 + $0x44] sm:$0xf]
    %v987 = vld [vmem:[%s18 + $0x48] sm:$0xf]
    %v988 = vld [vmem:[%s18 + $0x4c] sm:$0xf]
    %v989 = vld [vmem:[%s18 + $0x50] sm:$0xf]
    %v990 = vld [vmem:[%s18 + $0x54] sm:$0xf]
    %v991 = vld [vmem:[%s18 + $0x58] sm:$0xf]
    %v992 = vld [vmem:[%s18 + $0x5c] sm:$0xf]
    %v993 = vld [vmem:[%s18 + $0x60] sm:$0xf]
    %v994 = vld [vmem:[%s18 + $0x64] sm:$0xf]
    %v995 = vld [vmem:[%s18 + $0x68] sm:$0xf]
    %v996 = vld [vmem:[%s18 + $0x6c] sm:$0xf]
    %v997 = vld [vmem:[%s18 + $0x70] sm:$0xf]
    %v998 = vld [vmem:[%s18 + $0x74] sm:$0xf]
    %v999 = vld [vmem:[%s18 + $0x78] sm:$0xf]
    %v1000 = vld [vmem:[%s18 + $0x7c] sm:$0xf]
    %v1001 = vld [vmem:[%s18 + $0x80] sm:$0xf]
    %v1002 = vld [vmem:[%s18 + $0x84] sm:$0xf]
    %v1003 = vld [vmem:[%s18 + $0x88] sm:$0xf]
    %v1004 = vld [vmem:[%s18 + $0x8c] sm:$0xf]
    %v1005 = vld [vmem:[%s18 + $0x90] sm:$0xf]
    %v1006 = vld [vmem:[%s18 + $0x94] sm:$0xf]
    %v1007 = vld [vmem:[%s18 + $0x98] sm:$0xf]
    %v1008 = vld [vmem:[%s18 + $0x9c] sm:$0xf]
    %v1009 = vld [vmem:[%s18 + $0xa0] sm:$0xf]
    %v1010 = vld [vmem:[%s18 + $0xa4] sm:$0xf]
    %v1011 = vld [vmem:[%s18 + $0xa8] sm:$0xf]
    %v1012 = vld [vmem:[%s18 + $0xac] sm:$0xf]
    %v1013 = vld [vmem:[%s18 + $0xb0] sm:$0xf]
    %v1014 = vld [vmem:[%s18 + $0xb4] sm:$0xf]
    %v1015 = vld [vmem:[%s18 + $0xb8] sm:$0xf]
    %v1016 = vld [vmem:[%s18 + $0xbc] sm:$0xf]
    %v1017 = vld [vmem:[%s18 + $0xc0] sm:$0xf]
    %v1018 = vld [vmem:[%s18 + $0xc4] sm:$0xf]
    %v1019 = vld [vmem:[%s18 + $0xc8] sm:$0xf]
    %v1020 = vld [vmem:[%s18 + $0xcc] sm:$0xf]
    %v1021 = vld [vmem:[%s18 + $0xd0] sm:$0xf]
    %v1022 = vld [vmem:[%s18 + $0xd4] sm:$0xf]
    %v1023 = vld [vmem:[%s18 + $0xd8] sm:$0xf]
    %v1024 = vld [vmem:[%s18 + $0xdc] sm:$0xf]
    %v1025 = vld [vmem:[%s18 + $0xe0] sm:$0xf]
    %v1026 = vld [vmem:[%s18 + $0xe4] sm:$0xf]
    %v1027 = vld [vmem:[%s18 + $0xe8] sm:$0xf]
    %v1028 = vld [vmem:[%s18 + $0xec] sm:$0xf]
    %v1029 = vld [vmem:[%s18 + $0xf0] sm:$0xf]
    %v1030 = vld [vmem:[%s18 + $0xf4] sm:$0xf]
    %v1031 = vld [vmem:[%s18 + $0xf8] sm:$0xf]
    %v1032 = vld [vmem:[%s18 + $0xfc] sm:$0xf]
    %v1033 = vld [vmem:[%s18 + $0x100] sm:$0xf]
    %v1034 = vld [vmem:[%s18 + $0x104] sm:$0xf]
    %v1035 = vld [vmem:[%s18 + $0x108] sm:$0xf]
    %v1036 = vld [vmem:[%s18 + $0x10c] sm:$0xf]
    %v1037 = vld [vmem:[%s18 + $0x110] sm:$0xf]
    %v1038 = vld [vmem:[%s18 + $0x114] sm:$0xf]
    %v1039 = vld [vmem:[%s18 + $0x118] sm:$0xf]
    %v1040 = vld [vmem:[%s18 + $0x11c] sm:$0xf]
    %v1041 = vld [vmem:[%s18 + $0x120] sm:$0xf]
    %v1042 = vld [vmem:[%s18 + $0x124] sm:$0xf]
    %v1043 = vld [vmem:[%s18 + $0x128] sm:$0xf]
    %v1044 = vld [vmem:[%s18 + $0x12c] sm:$0xf]
    %v1045 = vld [vmem:[%s18 + $0x130] sm:$0xf]
    %v1046 = vld [vmem:[%s18 + $0x134] sm:$0xf]
    %v1047 = vld [vmem:[%s18 + $0x138] sm:$0xf]
    %v1048 = vld [vmem:[%s18 + $0x13c] sm:$0xf]
    %v1049 = vld [vmem:[%s18 + $0x140] sm:$0xf]
    %v1050 = vld [vmem:[%s18 + $0x144] sm:$0xf]
    %v1051 = vld [vmem:[%s18 + $0x148] sm:$0xf]
    %v1052 = vld [vmem:[%s18 + $0x14c] sm:$0xf]
    %v1053 = vld [vmem:[%s18 + $0x150] sm:$0xf]
    %v1054 = vld [vmem:[%s18 + $0x154] sm:$0xf]
    %v1055 = vld [vmem:[%s18 + $0x158] sm:$0xf]
    %v1056 = vld [vmem:[%s18 + $0x15c] sm:$0xf]
    %v1057 = vld [vmem:[%s18 + $0x160] sm:$0xf]
    %v1058 = vld [vmem:[%s18 + $0x164] sm:$0xf]
    %v1059 = vld [vmem:[%s18 + $0x168] sm:$0xf]
    %v1060 = vld [vmem:[%s18 + $0x16c] sm:$0xf]
    %v1061 = vld [vmem:[%s18 + $0x170] sm:$0xf]
    %v1062 = vld [vmem:[%s18 + $0x174] sm:$0xf]
    %v1063 = vld [vmem:[%s18 + $0x178] sm:$0xf]
    %v1064 = vld [vmem:[%s18 + $0x17c] sm:$0xf]
    %v1065 = vld [vmem:[%s18 + $0x180] sm:$0xf]
    %v1066 = vld [vmem:[%s18 + $0x184] sm:$0xf]
    %v1067 = vld [vmem:[%s18 + $0x188] sm:$0xf]
    %v1068 = vld [vmem:[%s18 + $0x18c] sm:$0xf]
    %v1069 = vld [vmem:[%s18 + $0x190] sm:$0xf]
    %v1070 = vld [vmem:[%s18 + $0x194] sm:$0xf]
    %v1071 = vld [vmem:[%s18 + $0x198] sm:$0xf]
    %v1072 = vld [vmem:[%s18 + $0x19c] sm:$0xf]
    %v1073 = vld [vmem:[%s18 + $0x1a0] sm:$0xf]
    %v1074 = vld [vmem:[%s18 + $0x1a4] sm:$0xf]
    %v1075 = vld [vmem:[%s18 + $0x1a8] sm:$0xf]
    %v1076 = vld [vmem:[%s18 + $0x1ac] sm:$0xf]
    %v1077 = vld [vmem:[%s18 + $0x1b0] sm:$0xf]
    %v1078 = vld [vmem:[%s18 + $0x1b4] sm:$0xf]
    %v1079 = vld [vmem:[%s18 + $0x1b8] sm:$0xf]
    %v1080 = vld [vmem:[%s18 + $0x1bc] sm:$0xf]
    %v1081 = vld [vmem:[%s18 + $0x1c0] sm:$0xf]
    %v1082 = vld [vmem:[%s18 + $0x1c4] sm:$0xf]
    %v1083 = vld [vmem:[%s18 + $0x1c8] sm:$0xf]
    %v1084 = vld [vmem:[%s18 + $0x1cc] sm:$0xf]
    %v1085 = vld [vmem:[%s18 + $0x1d0] sm:$0xf]
    %v1086 = vld [vmem:[%s18 + $0x1d4] sm:$0xf]
    %v1087 = vld [vmem:[%s18 + $0x1d8] sm:$0xf]
    %v1088 = vld [vmem:[%s18 + $0x1dc] sm:$0xf]
    %v1089 = vld [vmem:[%s18 + $0x1e0] sm:$0xf]
    %v1090 = vld [vmem:[%s18 + $0x1e4] sm:$0xf]
    %v1091 = vld [vmem:[%s18 + $0x1e8] sm:$0xf]
    %v1092 = vld [vmem:[%s18 + $0x1ec] sm:$0xf]
    %v1093 = vld [vmem:[%s18 + $0x1f0] sm:$0xf]
    %v1094 = vld [vmem:[%s18 + $0x1f4] sm:$0xf]
    %v1095 = vld [vmem:[%s18 + $0x1f8] sm:$0xf]
    %v1096 = vld [vmem:[%s18 + $0x1fc] sm:$0xf]
    %v1097 = vld [vmem:[%s18 + $0x200] sm:$0xf]
    %v1098 = vld [vmem:[%s18 + $0x204] sm:$0xf]
    %v1099 = vld [vmem:[%s18 + $0x208] sm:$0xf]
    %v1100 = vld [vmem:[%s18 + $0x20c] sm:$0xf]
    %v1101 = vld [vmem:[%s18 + $0x210] sm:$0xf]
    %v1102 = vld [vmem:[%s18 + $0x214] sm:$0xf]
    %v1103 = vld [vmem:[%s18 + $0x218] sm:$0xf]
    %v1104 = vld [vmem:[%s18 + $0x21c] sm:$0xf]
    %v1105 = vld [vmem:[%s18 + $0x220] sm:$0xf]
    %v1106 = vld [vmem:[%s18 + $0x224] sm:$0xf]
    %v1107 = vld [vmem:[%s18 + $0x228] sm:$0xf]
    %v1108 = vld [vmem:[%s18 + $0x22c] sm:$0xf]
    %v1109 = vld [vmem:[%s18 + $0x230] sm:$0xf]
    %v1110 = vld [vmem:[%s18 + $0x234] sm:$0xf]
    %v1111 = vld [vmem:[%s18 + $0x238] sm:$0xf]
    %v1112 = vld [vmem:[%s18 + $0x23c] sm:$0xf]
    %v1113 = vld [vmem:[%s18 + $0x240] sm:$0xf]
    %v1114 = vld [vmem:[%s18 + $0x244] sm:$0xf]
    %v1115 = vld [vmem:[%s18 + $0x248] sm:$0xf]
    %v1116 = vld [vmem:[%s18 + $0x24c] sm:$0xf]
    %v1117 = vld [vmem:[%s18 + $0x250] sm:$0xf]
    %v1118 = vld [vmem:[%s18 + $0x254] sm:$0xf]
    %v1119 = vld [vmem:[%s18 + $0x258] sm:$0xf]
    %v1120 = vld [vmem:[%s18 + $0x25c] sm:$0xf]
    %v1121 = vld [vmem:[%s18 + $0x260] sm:$0xf]
    %v1122 = vld [vmem:[%s18 + $0x264] sm:$0xf]
    %v1123 = vld [vmem:[%s18 + $0x268] sm:$0xf]
    %v1124 = vld [vmem:[%s18 + $0x26c] sm:$0xf]
    %v1125 = vld [vmem:[%s18 + $0x270] sm:$0xf]
    %v1126 = vld [vmem:[%s18 + $0x274] sm:$0xf]
    %v1127 = vld [vmem:[%s18 + $0x278] sm:$0xf]
    %v1128 = vld [vmem:[%s18 + $0x27c] sm:$0xf]
    %v1129 = vld [vmem:[%s18 + $0x280] sm:$0xf]
    %v1130 = vld [vmem:[%s18 + $0x284] sm:$0xf]
    %v1131 = vld [vmem:[%s18 + $0x288] sm:$0xf]
    %v1132 = vld [vmem:[%s18 + $0x28c] sm:$0xf]
    %v1133 = vld [vmem:[%s18 + $0x290] sm:$0xf]
    %v1134 = vld [vmem:[%s18 + $0x294] sm:$0xf]
    %v1135 = vld [vmem:[%s18 + $0x298] sm:$0xf]
    %v1136 = vld [vmem:[%s18 + $0x29c] sm:$0xf]
    %v1137 = vld [vmem:[%s18 + $0x2a0] sm:$0xf]
    %v1138 = vld [vmem:[%s18 + $0x2a4] sm:$0xf]
    %v1139 = vld [vmem:[%s18 + $0x2a8] sm:$0xf]
    %v1140 = vld [vmem:[%s18 + $0x2ac] sm:$0xf]
    %v1141 = vld [vmem:[%s18 + $0x2b0] sm:$0xf]
    %v1142 = vld [vmem:[%s18 + $0x2b4] sm:$0xf]
    %v1143 = vld [vmem:[%s18 + $0x2b8] sm:$0xf]
    %v1144 = vld [vmem:[%s18 + $0x2bc] sm:$0xf]
    %v1145 = vld [vmem:[%s18 + $0x2c0] sm:$0xf]
    %v1146 = vld [vmem:[%s18 + $0x2c4] sm:$0xf]
    %v1147 = vld [vmem:[%s18 + $0x2c8] sm:$0xf]
    %v1148 = vld [vmem:[%s18 + $0x2cc] sm:$0xf]
    %v1149 = vld [vmem:[%s18 + $0x2d0] sm:$0xf]
    %v1150 = vld [vmem:[%s18 + $0x2d4] sm:$0xf]
    %v1151 = vld [vmem:[%s18 + $0x2d8] sm:$0xf]
    %v1152 = vld [vmem:[%s18 + $0x2dc] sm:$0xf]
    %v1153 = vld [vmem:[%s18 + $0x2e0] sm:$0xf]
    %v1154 = vld [vmem:[%s18 + $0x2e4] sm:$0xf]
    %v1155 = vld [vmem:[%s18 + $0x2e8] sm:$0xf]
    %v1156 = vld [vmem:[%s18 + $0x2ec] sm:$0xf]
    %v1157 = vld [vmem:[%s18 + $0x2f0] sm:$0xf]
    %v1158 = vld [vmem:[%s18 + $0x2f4] sm:$0xf]
    %v1159 = vld [vmem:[%s18 + $0x2f8] sm:$0xf]
    %v1160 = vld [vmem:[%s18 + $0x2fc] sm:$0xf]
    %v1161 = vld [vmem:[%s18 + $0x300] sm:$0xf]
    %v1162 = vld [vmem:[%s18 + $0x304] sm:$0xf]
    %v1163 = vld [vmem:[%s18 + $0x308] sm:$0xf]
    %v1164 = vld [vmem:[%s18 + $0x30c] sm:$0xf]
    %v1165 = vld [vmem:[%s18 + $0x310] sm:$0xf]
    %v1166 = vld [vmem:[%s18 + $0x314] sm:$0xf]
    %v1167 = vld [vmem:[%s18 + $0x318] sm:$0xf]
    %v1168 = vld [vmem:[%s18 + $0x31c] sm:$0xf]
    %v1169 = vld [vmem:[%s18 + $0x320] sm:$0xf]
    %v1170 = vld [vmem:[%s18 + $0x324] sm:$0xf]
    %v1171 = vld [vmem:[%s18 + $0x328] sm:$0xf]
    %v1172 = vld [vmem:[%s18 + $0x32c] sm:$0xf]
    %v1173 = vld [vmem:[%s18 + $0x330] sm:$0xf]
    %v1174 = vld [vmem:[%s18 + $0x334] sm:$0xf]
    %v1175 = vld [vmem:[%s18 + $0x338] sm:$0xf]
    %v1176 = vld [vmem:[%s18 + $0x33c] sm:$0xf]
    %v1177 = vld [vmem:[%s18 + $0x340] sm:$0xf]
    %v1178 = vld [vmem:[%s18 + $0x344] sm:$0xf]
    %v1179 = vld [vmem:[%s18 + $0x348] sm:$0xf]
    %v1180 = vld [vmem:[%s18 + $0x34c] sm:$0xf]
    %v1181 = vld [vmem:[%s18 + $0x350] sm:$0xf]
    %v1182 = vld [vmem:[%s18 + $0x354] sm:$0xf]
    %v1183 = vld [vmem:[%s18 + $0x358] sm:$0xf]
    %v1184 = vld [vmem:[%s18 + $0x35c] sm:$0xf]
    %v1185 = vld [vmem:[%s18 + $0x360] sm:$0xf]
    %v1186 = vld [vmem:[%s18 + $0x364] sm:$0xf]
    %v1187 = vld [vmem:[%s18 + $0x368] sm:$0xf]
    %v1188 = vld [vmem:[%s18 + $0x36c] sm:$0xf]
    %v1189 = vld [vmem:[%s18 + $0x370] sm:$0xf]
    %v1190 = vld [vmem:[%s18 + $0x374] sm:$0xf]
    %v1191 = vld [vmem:[%s18 + $0x378] sm:$0xf]
    %v1192 = vld [vmem:[%s18 + $0x37c] sm:$0xf]
    %v1193 = vld [vmem:[%s18 + $0x380] sm:$0xf]
    %v1194 = vld [vmem:[%s18 + $0x384] sm:$0xf]
    %v1195 = vld [vmem:[%s18 + $0x388] sm:$0xf]
    %v1196 = vld [vmem:[%s18 + $0x38c] sm:$0xf]
    %v1197 = vld [vmem:[%s18 + $0x390] sm:$0xf]
    %v1198 = vld [vmem:[%s18 + $0x394] sm:$0xf]
    %v1199 = vld [vmem:[%s18 + $0x398] sm:$0xf]
    %v1200 = vld [vmem:[%s18 + $0x39c] sm:$0xf]
    %v1201 = vld [vmem:[%s18 + $0x3a0] sm:$0xf]
    %v1202 = vld [vmem:[%s18 + $0x3a4] sm:$0xf]
    %v1203 = vld [vmem:[%s18 + $0x3a8] sm:$0xf]
    %v1204 = vld [vmem:[%s18 + $0x3ac] sm:$0xf]
    %v1205 = vld [vmem:[%s18 + $0x3b0] sm:$0xf]
    %v1206 = vld [vmem:[%s18 + $0x3b4] sm:$0xf]
    %v1207 = vld [vmem:[%s18 + $0x3b8] sm:$0xf]
    %v1208 = vld [vmem:[%s18 + $0x3bc] sm:$0xf]
    %v1209 = vld [vmem:[%s18 + $0x3c0] sm:$0xf]
    %v1210 = vld [vmem:[%s18 + $0x3c4] sm:$0xf]
    %v1211 = vld [vmem:[%s18 + $0x3c8] sm:$0xf]
    %v1212 = vld [vmem:[%s18 + $0x3cc] sm:$0xf]
    %v1213 = vld [vmem:[%s18 + $0x3d0] sm:$0xf]
    %v1214 = vld [vmem:[%s18 + $0x3d4] sm:$0xf]
    %v1215 = vld [vmem:[%s18 + $0x3d8] sm:$0xf]
    %v1216 = vld [vmem:[%s18 + $0x3dc] sm:$0xf]
    %v1217 = vld [vmem:[%s18 + $0x3e0] sm:$0xf]
    %v1218 = vld [vmem:[%s18 + $0x3e4] sm:$0xf]
    %v1219 = vld [vmem:[%s18 + $0x3e8] sm:$0xf]
    %v1220 = vld [vmem:[%s18 + $0x3ec] sm:$0xf]
    %v1221 = vld [vmem:[%s18 + $0x3f0] sm:$0xf]
    %v1222 = vld [vmem:[%s18 + $0x3f4] sm:$0xf]
    %v1223 = vld [vmem:[%s18 + $0x3f8] sm:$0xf]
    %v1224 = vld [vmem:[%s18 + $0x3fc] sm:$0xf]
    %v1225 = vld [vmem:[%s19] sm:$0x1]
    %v1226 = vpack.c.bf16 %v953, %v953
    %v1227 = vpack.c.bf16 %v954, %v954
    %v1228 = vpack.c.bf16 %v955, %v955
    %v1229 = vpack.c.bf16 %v956, %v956
    %v1230 = vpack.c.bf16 %v957, %v957
    %v1231 = vpack.c.bf16 %v958, %v958
    %v1232 = vpack.c.bf16 %v959, %v959
    %v1233 = vpack.c.bf16 %v960, %v960
    %v1234 = vpack.c.bf16 %v961, %v961
    %v1235 = vpack.c.bf16 %v962, %v962
    %v1236 = vpack.c.bf16 %v963, %v963
    %v1237 = vpack.c.bf16 %v964, %v964
    %v1238 = vpack.c.bf16 %v965, %v965
    %v1239 = vpack.c.bf16 %v966, %v966
    %v1240 = vpack.c.bf16 %v967, %v967
    %v1241 = vpack.c.bf16 %v968, %v968
    %v1243 = vperm.slane %v1225, 0
    %v1501 = vunpack.c.l.b16 %v969
    %v1502 = vunpack.c.l.b16 %v970
    %v1503 = vunpack.c.l.b16 %v971
    %v1504 = vunpack.c.l.b16 %v972
    %v1505 = vunpack.c.l.b16 %v973
    %v1506 = vunpack.c.l.b16 %v974
    %v1507 = vunpack.c.l.b16 %v975
    %v1508 = vunpack.c.l.b16 %v976
    %v1509 = vunpack.c.l.b16 %v977
    %v1510 = vunpack.c.l.b16 %v978
    %v1511 = vunpack.c.l.b16 %v979
    %v1512 = vunpack.c.l.b16 %v980
    %v1513 = vunpack.c.l.b16 %v981
    %v1514 = vunpack.c.l.b16 %v982
    %v1515 = vunpack.c.l.b16 %v983
    %v1516 = vunpack.c.l.b16 %v984
    %v1517 = vunpack.c.l.b16 %v985
    %v1518 = vunpack.c.l.b16 %v986
    %v1519 = vunpack.c.l.b16 %v987
    %v1520 = vunpack.c.l.b16 %v988
    %v1521 = vunpack.c.l.b16 %v989
    %v1522 = vunpack.c.l.b16 %v990
    %v1523 = vunpack.c.l.b16 %v991
    %v1524 = vunpack.c.l.b16 %v992
    %v1525 = vunpack.c.l.b16 %v993
    %v1526 = vunpack.c.l.b16 %v994
    %v1527 = vunpack.c.l.b16 %v995
    %v1528 = vunpack.c.l.b16 %v996
    %v1529 = vunpack.c.l.b16 %v997
    %v1530 = vunpack.c.l.b16 %v998
    %v1531 = vunpack.c.l.b16 %v999
    %v1532 = vunpack.c.l.b16 %v1000
    %v1533 = vunpack.c.l.b16 %v1001
    %v1534 = vunpack.c.l.b16 %v1002
    %v1535 = vunpack.c.l.b16 %v1003
    %v1536 = vunpack.c.l.b16 %v1004
    %v1537 = vunpack.c.l.b16 %v1005
    %v1538 = vunpack.c.l.b16 %v1006
    %v1539 = vunpack.c.l.b16 %v1007
    %v1540 = vunpack.c.l.b16 %v1008
    %v1541 = vunpack.c.l.b16 %v1009
    %v1542 = vunpack.c.l.b16 %v1010
    %v1543 = vunpack.c.l.b16 %v1011
    %v1544 = vunpack.c.l.b16 %v1012
    %v1545 = vunpack.c.l.b16 %v1013
    %v1546 = vunpack.c.l.b16 %v1014
    %v1547 = vunpack.c.l.b16 %v1015
    %v1548 = vunpack.c.l.b16 %v1016
    %v1549 = vunpack.c.l.b16 %v1017
    %v1550 = vunpack.c.l.b16 %v1018
    %v1551 = vunpack.c.l.b16 %v1019
    %v1552 = vunpack.c.l.b16 %v1020
    %v1553 = vunpack.c.l.b16 %v1021
    %v1554 = vunpack.c.l.b16 %v1022
    %v1555 = vunpack.c.l.b16 %v1023
    %v1556 = vunpack.c.l.b16 %v1024
    %v1557 = vunpack.c.l.b16 %v1025
    %v1558 = vunpack.c.l.b16 %v1026
    %v1559 = vunpack.c.l.b16 %v1027
    %v1560 = vunpack.c.l.b16 %v1028
    %v1561 = vunpack.c.l.b16 %v1029
    %v1562 = vunpack.c.l.b16 %v1030
    %v1563 = vunpack.c.l.b16 %v1031
    %v1564 = vunpack.c.l.b16 %v1032
    %v1565 = vunpack.c.l.b16 %v1033
    %v1566 = vunpack.c.l.b16 %v1034
    %v1567 = vunpack.c.l.b16 %v1035
    %v1568 = vunpack.c.l.b16 %v1036
    %v1569 = vunpack.c.l.b16 %v1037
    %v1570 = vunpack.c.l.b16 %v1038
    %v1571 = vunpack.c.l.b16 %v1039
    %v1572 = vunpack.c.l.b16 %v1040
    %v1573 = vunpack.c.l.b16 %v1041
    %v1574 = vunpack.c.l.b16 %v1042
    %v1575 = vunpack.c.l.b16 %v1043
    %v1576 = vunpack.c.l.b16 %v1044
    %v1577 = vunpack.c.l.b16 %v1045
    %v1578 = vunpack.c.l.b16 %v1046
    %v1579 = vunpack.c.l.b16 %v1047
    %v1580 = vunpack.c.l.b16 %v1048
    %v1581 = vunpack.c.l.b16 %v1049
    %v1582 = vunpack.c.l.b16 %v1050
    %v1583 = vunpack.c.l.b16 %v1051
    %v1584 = vunpack.c.l.b16 %v1052
    %v1585 = vunpack.c.l.b16 %v1053
    %v1586 = vunpack.c.l.b16 %v1054
    %v1587 = vunpack.c.l.b16 %v1055
    %v1588 = vunpack.c.l.b16 %v1056
    %v1589 = vunpack.c.l.b16 %v1057
    %v1590 = vunpack.c.l.b16 %v1058
    %v1591 = vunpack.c.l.b16 %v1059
    %v1592 = vunpack.c.l.b16 %v1060
    %v1593 = vunpack.c.l.b16 %v1061
    %v1594 = vunpack.c.l.b16 %v1062
    %v1595 = vunpack.c.l.b16 %v1063
    %v1596 = vunpack.c.l.b16 %v1064
    %v1597 = vunpack.c.l.b16 %v1065
    %v1598 = vunpack.c.l.b16 %v1066
    %v1599 = vunpack.c.l.b16 %v1067
    %v1600 = vunpack.c.l.b16 %v1068
    %v1601 = vunpack.c.l.b16 %v1069
    %v1602 = vunpack.c.l.b16 %v1070
    %v1603 = vunpack.c.l.b16 %v1071
    %v1604 = vunpack.c.l.b16 %v1072
    %v1605 = vunpack.c.l.b16 %v1073
    %v1606 = vunpack.c.l.b16 %v1074
    %v1607 = vunpack.c.l.b16 %v1075
    %v1608 = vunpack.c.l.b16 %v1076
    %v1609 = vunpack.c.l.b16 %v1077
    %v1610 = vunpack.c.l.b16 %v1078
    %v1611 = vunpack.c.l.b16 %v1079
    %v1612 = vunpack.c.l.b16 %v1080
    %v1613 = vunpack.c.l.b16 %v1081
    %v1614 = vunpack.c.l.b16 %v1082
    %v1615 = vunpack.c.l.b16 %v1083
    %v1616 = vunpack.c.l.b16 %v1084
    %v1617 = vunpack.c.l.b16 %v1085
    %v1618 = vunpack.c.l.b16 %v1086
    %v1619 = vunpack.c.l.b16 %v1087
    %v1620 = vunpack.c.l.b16 %v1088
    %v1621 = vunpack.c.l.b16 %v1089
    %v1622 = vunpack.c.l.b16 %v1090
    %v1623 = vunpack.c.l.b16 %v1091
    %v1624 = vunpack.c.l.b16 %v1092
    %v1625 = vunpack.c.l.b16 %v1093
    %v1626 = vunpack.c.l.b16 %v1094
    %v1627 = vunpack.c.l.b16 %v1095
    %v1628 = vunpack.c.l.b16 %v1096
    %v1629 = vunpack.c.l.b16 %v1097
    %v1630 = vunpack.c.l.b16 %v1098
    %v1631 = vunpack.c.l.b16 %v1099
    %v1632 = vunpack.c.l.b16 %v1100
    %v1633 = vunpack.c.l.b16 %v1101
    %v1634 = vunpack.c.l.b16 %v1102
    %v1635 = vunpack.c.l.b16 %v1103
    %v1636 = vunpack.c.l.b16 %v1104
    %v1637 = vunpack.c.l.b16 %v1105
    %v1638 = vunpack.c.l.b16 %v1106
    %v1639 = vunpack.c.l.b16 %v1107
    %v1640 = vunpack.c.l.b16 %v1108
    %v1641 = vunpack.c.l.b16 %v1109
    %v1642 = vunpack.c.l.b16 %v1110
    %v1643 = vunpack.c.l.b16 %v1111
    %v1644 = vunpack.c.l.b16 %v1112
    %v1645 = vunpack.c.l.b16 %v1113
    %v1646 = vunpack.c.l.b16 %v1114
    %v1647 = vunpack.c.l.b16 %v1115
    %v1648 = vunpack.c.l.b16 %v1116
    %v1649 = vunpack.c.l.b16 %v1117
    %v1650 = vunpack.c.l.b16 %v1118
    %v1651 = vunpack.c.l.b16 %v1119
    %v1652 = vunpack.c.l.b16 %v1120
    %v1653 = vunpack.c.l.b16 %v1121
    %v1654 = vunpack.c.l.b16 %v1122
    %v1655 = vunpack.c.l.b16 %v1123
    %v1656 = vunpack.c.l.b16 %v1124
    %v1657 = vunpack.c.l.b16 %v1125
    %v1658 = vunpack.c.l.b16 %v1126
    %v1659 = vunpack.c.l.b16 %v1127
    %v1660 = vunpack.c.l.b16 %v1128
    %v1661 = vunpack.c.l.b16 %v1129
    %v1662 = vunpack.c.l.b16 %v1130
    %v1663 = vunpack.c.l.b16 %v1131
    %v1664 = vunpack.c.l.b16 %v1132
    %v1665 = vunpack.c.l.b16 %v1133
    %v1666 = vunpack.c.l.b16 %v1134
    %v1667 = vunpack.c.l.b16 %v1135
    %v1668 = vunpack.c.l.b16 %v1136
    %v1669 = vunpack.c.l.b16 %v1137
    %v1670 = vunpack.c.l.b16 %v1138
    %v1671 = vunpack.c.l.b16 %v1139
    %v1672 = vunpack.c.l.b16 %v1140
    %v1673 = vunpack.c.l.b16 %v1141
    %v1674 = vunpack.c.l.b16 %v1142
    %v1675 = vunpack.c.l.b16 %v1143
    %v1676 = vunpack.c.l.b16 %v1144
    %v1677 = vunpack.c.l.b16 %v1145
    %v1678 = vunpack.c.l.b16 %v1146
    %v1679 = vunpack.c.l.b16 %v1147
    %v1680 = vunpack.c.l.b16 %v1148
    %v1681 = vunpack.c.l.b16 %v1149
    %v1682 = vunpack.c.l.b16 %v1150
    %v1683 = vunpack.c.l.b16 %v1151
    %v1684 = vunpack.c.l.b16 %v1152
    %v1685 = vunpack.c.l.b16 %v1153
    %v1686 = vunpack.c.l.b16 %v1154
    %v1687 = vunpack.c.l.b16 %v1155
    %v1688 = vunpack.c.l.b16 %v1156
    %v1689 = vunpack.c.l.b16 %v1157
    %v1690 = vunpack.c.l.b16 %v1158
    %v1691 = vunpack.c.l.b16 %v1159
    %v1692 = vunpack.c.l.b16 %v1160
    %v1693 = vunpack.c.l.b16 %v1161
    %v1694 = vunpack.c.l.b16 %v1162
    %v1695 = vunpack.c.l.b16 %v1163
    %v1696 = vunpack.c.l.b16 %v1164
    %v1697 = vunpack.c.l.b16 %v1165
    %v1698 = vunpack.c.l.b16 %v1166
    %v1699 = vunpack.c.l.b16 %v1167
    %v1700 = vunpack.c.l.b16 %v1168
    %v1701 = vunpack.c.l.b16 %v1169
    %v1702 = vunpack.c.l.b16 %v1170
    %v1703 = vunpack.c.l.b16 %v1171
    %v1704 = vunpack.c.l.b16 %v1172
    %v1705 = vunpack.c.l.b16 %v1173
    %v1706 = vunpack.c.l.b16 %v1174
    %v1707 = vunpack.c.l.b16 %v1175
    %v1708 = vunpack.c.l.b16 %v1176
    %v1709 = vunpack.c.l.b16 %v1177
    %v1710 = vunpack.c.l.b16 %v1178
    %v1711 = vunpack.c.l.b16 %v1179
    %v1712 = vunpack.c.l.b16 %v1180
    %v1713 = vunpack.c.l.b16 %v1181
    %v1714 = vunpack.c.l.b16 %v1182
    %v1715 = vunpack.c.l.b16 %v1183
    %v1716 = vunpack.c.l.b16 %v1184
    %v1717 = vunpack.c.l.b16 %v1185
    %v1718 = vunpack.c.l.b16 %v1186
    %v1719 = vunpack.c.l.b16 %v1187
    %v1720 = vunpack.c.l.b16 %v1188
    %v1721 = vunpack.c.l.b16 %v1189
    %v1722 = vunpack.c.l.b16 %v1190
    %v1723 = vunpack.c.l.b16 %v1191
    %v1724 = vunpack.c.l.b16 %v1192
    %v1725 = vunpack.c.l.b16 %v1193
    %v1726 = vunpack.c.l.b16 %v1194
    %v1727 = vunpack.c.l.b16 %v1195
    %v1728 = vunpack.c.l.b16 %v1196
    %v1729 = vunpack.c.l.b16 %v1197
    %v1730 = vunpack.c.l.b16 %v1198
    %v1731 = vunpack.c.l.b16 %v1199
    %v1732 = vunpack.c.l.b16 %v1200
    %v1733 = vunpack.c.l.b16 %v1201
    %v1734 = vunpack.c.l.b16 %v1202
    %v1735 = vunpack.c.l.b16 %v1203
    %v1736 = vunpack.c.l.b16 %v1204
    %v1737 = vunpack.c.l.b16 %v1205
    %v1738 = vunpack.c.l.b16 %v1206
    %v1739 = vunpack.c.l.b16 %v1207
    %v1740 = vunpack.c.l.b16 %v1208
    %v1741 = vunpack.c.l.b16 %v1209
    %v1742 = vunpack.c.l.b16 %v1210
    %v1743 = vunpack.c.l.b16 %v1211
    %v1744 = vunpack.c.l.b16 %v1212
    %v1745 = vunpack.c.l.b16 %v1213
    %v1746 = vunpack.c.l.b16 %v1214
    %v1747 = vunpack.c.l.b16 %v1215
    %v1748 = vunpack.c.l.b16 %v1216
    %v1749 = vunpack.c.l.b16 %v1217
    %v1750 = vunpack.c.l.b16 %v1218
    %v1751 = vunpack.c.l.b16 %v1219
    %v1752 = vunpack.c.l.b16 %v1220
    %v1753 = vunpack.c.l.b16 %v1221
    %v1754 = vunpack.c.l.b16 %v1222
    %v1755 = vunpack.c.l.b16 %v1223
    %v1756 = vunpack.c.l.b16 %v1224
    %v1757 = vpack.c.b16 %v1502, %v1501
    %v1758 = vpack.c.b16 %v1504, %v1503
    %v1759 = vpack.c.b16 %v1506, %v1505
    %v1760 = vpack.c.b16 %v1508, %v1507
    %v1761 = vpack.c.b16 %v1510, %v1509
    %v1762 = vpack.c.b16 %v1512, %v1511
    %v1763 = vpack.c.b16 %v1514, %v1513
    %v1764 = vpack.c.b16 %v1516, %v1515
    %v1765 = vpack.c.b16 %v1518, %v1517
    %v1766 = vpack.c.b16 %v1520, %v1519
    %v1767 = vpack.c.b16 %v1522, %v1521
    %v1768 = vpack.c.b16 %v1524, %v1523
    %v1769 = vpack.c.b16 %v1526, %v1525
    %v1770 = vpack.c.b16 %v1528, %v1527
    %v1771 = vpack.c.b16 %v1530, %v1529
    %v1772 = vpack.c.b16 %v1532, %v1531
    %v1773 = vpack.c.b16 %v1534, %v1533
    %v1774 = vpack.c.b16 %v1536, %v1535
    %v1775 = vpack.c.b16 %v1538, %v1537
    %v1776 = vpack.c.b16 %v1540, %v1539
    %v1777 = vpack.c.b16 %v1542, %v1541
    %v1778 = vpack.c.b16 %v1544, %v1543
    %v1779 = vpack.c.b16 %v1546, %v1545
    %v1780 = vpack.c.b16 %v1548, %v1547
    %v1781 = vpack.c.b16 %v1550, %v1549
    %v1782 = vpack.c.b16 %v1552, %v1551
    %v1783 = vpack.c.b16 %v1554, %v1553
    %v1784 = vpack.c.b16 %v1556, %v1555
    %v1785 = vpack.c.b16 %v1558, %v1557
    %v1786 = vpack.c.b16 %v1560, %v1559
    %v1787 = vpack.c.b16 %v1562, %v1561
    %v1788 = vpack.c.b16 %v1564, %v1563
    %v1789 = vpack.c.b16 %v1566, %v1565
    %v1790 = vpack.c.b16 %v1568, %v1567
    %v1791 = vpack.c.b16 %v1570, %v1569
    %v1792 = vpack.c.b16 %v1572, %v1571
    %v1793 = vpack.c.b16 %v1574, %v1573
    %v1794 = vpack.c.b16 %v1576, %v1575
    %v1795 = vpack.c.b16 %v1578, %v1577
    %v1796 = vpack.c.b16 %v1580, %v1579
    %v1797 = vpack.c.b16 %v1582, %v1581
    %v1798 = vpack.c.b16 %v1584, %v1583
    %v1799 = vpack.c.b16 %v1586, %v1585
    %v1800 = vpack.c.b16 %v1588, %v1587
    %v1801 = vpack.c.b16 %v1590, %v1589
    %v1802 = vpack.c.b16 %v1592, %v1591
    %v1803 = vpack.c.b16 %v1594, %v1593
    %v1804 = vpack.c.b16 %v1596, %v1595
    %v1805 = vpack.c.b16 %v1598, %v1597
    %v1806 = vpack.c.b16 %v1600, %v1599
    %v1807 = vpack.c.b16 %v1602, %v1601
    %v1808 = vpack.c.b16 %v1604, %v1603
    %v1809 = vpack.c.b16 %v1606, %v1605
    %v1810 = vpack.c.b16 %v1608, %v1607
    %v1811 = vpack.c.b16 %v1610, %v1609
    %v1812 = vpack.c.b16 %v1612, %v1611
    %v1813 = vpack.c.b16 %v1614, %v1613
    %v1814 = vpack.c.b16 %v1616, %v1615
    %v1815 = vpack.c.b16 %v1618, %v1617
    %v1816 = vpack.c.b16 %v1620, %v1619
    %v1817 = vpack.c.b16 %v1622, %v1621
    %v1818 = vpack.c.b16 %v1624, %v1623
    %v1819 = vpack.c.b16 %v1626, %v1625
    %v1820 = vpack.c.b16 %v1628, %v1627
    %v1821 = vpack.c.b16 %v1630, %v1629
    %v1822 = vpack.c.b16 %v1632, %v1631
    %v1823 = vpack.c.b16 %v1634, %v1633
    %v1824 = vpack.c.b16 %v1636, %v1635
    %v1825 = vpack.c.b16 %v1638, %v1637
    %v1826 = vpack.c.b16 %v1640, %v1639
    %v1827 = vpack.c.b16 %v1642, %v1641
    %v1828 = vpack.c.b16 %v1644, %v1643
    %v1829 = vpack.c.b16 %v1646, %v1645
    %v1830 = vpack.c.b16 %v1648, %v1647
    %v1831 = vpack.c.b16 %v1650, %v1649
    %v1832 = vpack.c.b16 %v1652, %v1651
    %v1833 = vpack.c.b16 %v1654, %v1653
    %v1834 = vpack.c.b16 %v1656, %v1655
    %v1835 = vpack.c.b16 %v1658, %v1657
    %v1836 = vpack.c.b16 %v1660, %v1659
    %v1837 = vpack.c.b16 %v1662, %v1661
    %v1838 = vpack.c.b16 %v1664, %v1663
    %v1839 = vpack.c.b16 %v1666, %v1665
    %v1840 = vpack.c.b16 %v1668, %v1667
    %v1841 = vpack.c.b16 %v1670, %v1669
    %v1842 = vpack.c.b16 %v1672, %v1671
    %v1843 = vpack.c.b16 %v1674, %v1673
    %v1844 = vpack.c.b16 %v1676, %v1675
    %v1845 = vpack.c.b16 %v1678, %v1677
    %v1846 = vpack.c.b16 %v1680, %v1679
    %v1847 = vpack.c.b16 %v1682, %v1681
    %v1848 = vpack.c.b16 %v1684, %v1683
    %v1849 = vpack.c.b16 %v1686, %v1685
    %v1850 = vpack.c.b16 %v1688, %v1687
    %v1851 = vpack.c.b16 %v1690, %v1689
    %v1852 = vpack.c.b16 %v1692, %v1691
    %v1853 = vpack.c.b16 %v1694, %v1693
    %v1854 = vpack.c.b16 %v1696, %v1695
    %v1855 = vpack.c.b16 %v1698, %v1697
    %v1856 = vpack.c.b16 %v1700, %v1699
    %v1857 = vpack.c.b16 %v1702, %v1701
    %v1858 = vpack.c.b16 %v1704, %v1703
    %v1859 = vpack.c.b16 %v1706, %v1705
    %v1860 = vpack.c.b16 %v1708, %v1707
    %v1861 = vpack.c.b16 %v1710, %v1709
    %v1862 = vpack.c.b16 %v1712, %v1711
    %v1863 = vpack.c.b16 %v1714, %v1713
    %v1864 = vpack.c.b16 %v1716, %v1715
    %v1865 = vpack.c.b16 %v1718, %v1717
    %v1866 = vpack.c.b16 %v1720, %v1719
    %v1867 = vpack.c.b16 %v1722, %v1721
    %v1868 = vpack.c.b16 %v1724, %v1723
    %v1869 = vpack.c.b16 %v1726, %v1725
    %v1870 = vpack.c.b16 %v1728, %v1727
    %v1871 = vpack.c.b16 %v1730, %v1729
    %v1872 = vpack.c.b16 %v1732, %v1731
    %v1873 = vpack.c.b16 %v1734, %v1733
    %v1874 = vpack.c.b16 %v1736, %v1735
    %v1875 = vpack.c.b16 %v1738, %v1737
    %v1876 = vpack.c.b16 %v1740, %v1739
    %v1877 = vpack.c.b16 %v1742, %v1741
    %v1878 = vpack.c.b16 %v1744, %v1743
    %v1879 = vpack.c.b16 %v1746, %v1745
    %v1880 = vpack.c.b16 %v1748, %v1747
    %v1881 = vpack.c.b16 %v1750, %v1749
    %v1882 = vpack.c.b16 %v1752, %v1751
    %v1883 = vpack.c.b16 %v1754, %v1753
    %v1884 = vpack.c.b16 %v1756, %v1755
    %2013 = vmatpush.bf16.msra.mxu0 %v1764
    %2014 = vmatpush.bf16.msra.mxu0 %v1763
    %2015 = vmatpush.bf16.msra.mxu0 %v1762
    %2016 = vmatpush.bf16.msra.mxu0 %v1761
    %2017 = vmatpush.bf16.msra.mxu0 %v1760
    %2018 = vmatpush.bf16.msra.mxu0 %v1759
    %2019 = vmatpush.bf16.msra.mxu0 %v1758
    %2020 = vmatpush.bf16.msra.mxu0 %v1757
    %2021 = vmatmul.bf16.gmra.mxu0 %v1226
    %v2022 = vpop.f32.mrf.mxu0
    %v2023 = vadd.f32 %v1243, %v2022
    %v2024 = vpop.f32.mrf.mxu0
    %2025 = vdwg.mxu0
    %2026 = vmatpush.bf16.msra.mxu0 %v1772
    %2027 = vmatpush.bf16.msra.mxu0 %v1771
    %2028 = vmatpush.bf16.msra.mxu0 %v1770
    %2029 = vmatpush.bf16.msra.mxu0 %v1769
    %2030 = vmatpush.bf16.msra.mxu0 %v1768
    %2031 = vmatpush.bf16.msra.mxu0 %v1767
    %2032 = vmatpush.bf16.msra.mxu0 %v1766
    %2033 = vmatpush.bf16.msra.mxu0 %v1765
    %2034 = vmatmul.bf16.gmra.mxu0 %v1227
    %v2035 = vpop.f32.mrf.mxu0
    %v2036 = vadd.f32 %v2023, %v2035
    %v2037 = vpop.f32.mrf.mxu0
    %2038 = vdwg.mxu0
    %2039 = vmatpush.bf16.msra.mxu0 %v1780
    %2040 = vmatpush.bf16.msra.mxu0 %v1779
    %2041 = vmatpush.bf16.msra.mxu0 %v1778
    %2042 = vmatpush.bf16.msra.mxu0 %v1777
    %2043 = vmatpush.bf16.msra.mxu0 %v1776
    %2044 = vmatpush.bf16.msra.mxu0 %v1775
    %2045 = vmatpush.bf16.msra.mxu0 %v1774
    %2046 = vmatpush.bf16.msra.mxu0 %v1773
    %2047 = vmatmul.bf16.gmra.mxu0 %v1228
    %v2048 = vpop.f32.mrf.mxu0
    %v2049 = vadd.f32 %v2036, %v2048
    %v2050 = vpop.f32.mrf.mxu0
    %2051 = vdwg.mxu0
    %2052 = vmatpush.bf16.msra.mxu0 %v1788
    %2053 = vmatpush.bf16.msra.mxu0 %v1787
    %2054 = vmatpush.bf16.msra.mxu0 %v1786
    %2055 = vmatpush.bf16.msra.mxu0 %v1785
    %2056 = vmatpush.bf16.msra.mxu0 %v1784
    %2057 = vmatpush.bf16.msra.mxu0 %v1783
    %2058 = vmatpush.bf16.msra.mxu0 %v1782
    %2059 = vmatpush.bf16.msra.mxu0 %v1781
    %2060 = vmatmul.bf16.gmra.mxu0 %v1229
    %v2061 = vpop.f32.mrf.mxu0
    %v2062 = vadd.f32 %v2049, %v2061
    %v2063 = vpop.f32.mrf.mxu0
    %2064 = vdwg.mxu0
    %2065 = vmatpush.bf16.msra.mxu0 %v1796
    %2066 = vmatpush.bf16.msra.mxu0 %v1795
    %2067 = vmatpush.bf16.msra.mxu0 %v1794
    %2068 = vmatpush.bf16.msra.mxu0 %v1793
    %2069 = vmatpush.bf16.msra.mxu0 %v1792
    %2070 = vmatpush.bf16.msra.mxu0 %v1791
    %2071 = vmatpush.bf16.msra.mxu0 %v1790
    %2072 = vmatpush.bf16.msra.mxu0 %v1789
    %2073 = vmatmul.bf16.gmra.mxu0 %v1230
    %v2074 = vpop.f32.mrf.mxu0
    %v2075 = vadd.f32 %v2062, %v2074
    %v2076 = vpop.f32.mrf.mxu0
    %2077 = vdwg.mxu0
    %2078 = vmatpush.bf16.msra.mxu0 %v1804
    %2079 = vmatpush.bf16.msra.mxu0 %v1803
    %2080 = vmatpush.bf16.msra.mxu0 %v1802
    %2081 = vmatpush.bf16.msra.mxu0 %v1801
    %2082 = vmatpush.bf16.msra.mxu0 %v1800
    %2083 = vmatpush.bf16.msra.mxu0 %v1799
    %2084 = vmatpush.bf16.msra.mxu0 %v1798
    %2085 = vmatpush.bf16.msra.mxu0 %v1797
    %2086 = vmatmul.bf16.gmra.mxu0 %v1231
    %v2087 = vpop.f32.mrf.mxu0
    %v2088 = vadd.f32 %v2075, %v2087
    %v2089 = vpop.f32.mrf.mxu0
    %2090 = vdwg.mxu0
    %2091 = vmatpush.bf16.msra.mxu0 %v1812
    %2092 = vmatpush.bf16.msra.mxu0 %v1811
    %2093 = vmatpush.bf16.msra.mxu0 %v1810
    %2094 = vmatpush.bf16.msra.mxu0 %v1809
    %2095 = vmatpush.bf16.msra.mxu0 %v1808
    %2096 = vmatpush.bf16.msra.mxu0 %v1807
    %2097 = vmatpush.bf16.msra.mxu0 %v1806
    %2098 = vmatpush.bf16.msra.mxu0 %v1805
    %2099 = vmatmul.bf16.gmra.mxu0 %v1232
    %v2100 = vpop.f32.mrf.mxu0
    %v2101 = vadd.f32 %v2088, %v2100
    %v2102 = vpop.f32.mrf.mxu0
    %2103 = vdwg.mxu0
    %2104 = vmatpush.bf16.msra.mxu0 %v1820
    %2105 = vmatpush.bf16.msra.mxu0 %v1819
    %2106 = vmatpush.bf16.msra.mxu0 %v1818
    %2107 = vmatpush.bf16.msra.mxu0 %v1817
    %2108 = vmatpush.bf16.msra.mxu0 %v1816
    %2109 = vmatpush.bf16.msra.mxu0 %v1815
    %2110 = vmatpush.bf16.msra.mxu0 %v1814
    %2111 = vmatpush.bf16.msra.mxu0 %v1813
    %2112 = vmatmul.bf16.gmra.mxu0 %v1233
    %v2113 = vpop.f32.mrf.mxu0
    %v2114 = vadd.f32 %v2101, %v2113
    %v2115 = vpop.f32.mrf.mxu0
    %2116 = vdwg.mxu0
    %2117 = vmatpush.bf16.msra.mxu0 %v1828
    %2118 = vmatpush.bf16.msra.mxu0 %v1827
    %2119 = vmatpush.bf16.msra.mxu0 %v1826
    %2120 = vmatpush.bf16.msra.mxu0 %v1825
    %2121 = vmatpush.bf16.msra.mxu0 %v1824
    %2122 = vmatpush.bf16.msra.mxu0 %v1823
    %2123 = vmatpush.bf16.msra.mxu0 %v1822
    %2124 = vmatpush.bf16.msra.mxu0 %v1821
    %2125 = vmatmul.bf16.gmra.mxu0 %v1234
    %v2126 = vpop.f32.mrf.mxu0
    %v2127 = vadd.f32 %v2114, %v2126
    %v2128 = vpop.f32.mrf.mxu0
    %2129 = vdwg.mxu0
    %2130 = vmatpush.bf16.msra.mxu0 %v1836
    %2131 = vmatpush.bf16.msra.mxu0 %v1835
    %2132 = vmatpush.bf16.msra.mxu0 %v1834
    %2133 = vmatpush.bf16.msra.mxu0 %v1833
    %2134 = vmatpush.bf16.msra.mxu0 %v1832
    %2135 = vmatpush.bf16.msra.mxu0 %v1831
    %2136 = vmatpush.bf16.msra.mxu0 %v1830
    %2137 = vmatpush.bf16.msra.mxu0 %v1829
    %2138 = vmatmul.bf16.gmra.mxu0 %v1235
    %v2139 = vpop.f32.mrf.mxu0
    %v2140 = vadd.f32 %v2127, %v2139
    %v2141 = vpop.f32.mrf.mxu0
    %2142 = vdwg.mxu0
    %2143 = vmatpush.bf16.msra.mxu0 %v1844
    %2144 = vmatpush.bf16.msra.mxu0 %v1843
    %2145 = vmatpush.bf16.msra.mxu0 %v1842
    %2146 = vmatpush.bf16.msra.mxu0 %v1841
    %2147 = vmatpush.bf16.msra.mxu0 %v1840
    %2148 = vmatpush.bf16.msra.mxu0 %v1839
    %2149 = vmatpush.bf16.msra.mxu0 %v1838
    %2150 = vmatpush.bf16.msra.mxu0 %v1837
    %2151 = vmatmul.bf16.gmra.mxu0 %v1236
    %v2152 = vpop.f32.mrf.mxu0
    %v2153 = vadd.f32 %v2140, %v2152
    %v2154 = vpop.f32.mrf.mxu0
    %2155 = vdwg.mxu0
    %2156 = vmatpush.bf16.msra.mxu0 %v1852
    %2157 = vmatpush.bf16.msra.mxu0 %v1851
    %2158 = vmatpush.bf16.msra.mxu0 %v1850
    %2159 = vmatpush.bf16.msra.mxu0 %v1849
    %2160 = vmatpush.bf16.msra.mxu0 %v1848
    %2161 = vmatpush.bf16.msra.mxu0 %v1847
    %2162 = vmatpush.bf16.msra.mxu0 %v1846
    %2163 = vmatpush.bf16.msra.mxu0 %v1845
    %2164 = vmatmul.bf16.gmra.mxu0 %v1237
    %v2165 = vpop.f32.mrf.mxu0
    %v2166 = vadd.f32 %v2153, %v2165
    %v2167 = vpop.f32.mrf.mxu0
    %2168 = vdwg.mxu0
    %2169 = vmatpush.bf16.msra.mxu0 %v1860
    %2170 = vmatpush.bf16.msra.mxu0 %v1859
    %2171 = vmatpush.bf16.msra.mxu0 %v1858
    %2172 = vmatpush.bf16.msra.mxu0 %v1857
    %2173 = vmatpush.bf16.msra.mxu0 %v1856
    %2174 = vmatpush.bf16.msra.mxu0 %v1855
    %2175 = vmatpush.bf16.msra.mxu0 %v1854
    %2176 = vmatpush.bf16.msra.mxu0 %v1853
    %2177 = vmatmul.bf16.gmra.mxu0 %v1238
    %v2178 = vpop.f32.mrf.mxu0
    %v2179 = vadd.f32 %v2166, %v2178
    %v2180 = vpop.f32.mrf.mxu0
    %2181 = vdwg.mxu0
    %2182 = vmatpush.bf16.msra.mxu0 %v1868
    %2183 = vmatpush.bf16.msra.mxu0 %v1867
    %2184 = vmatpush.bf16.msra.mxu0 %v1866
    %2185 = vmatpush.bf16.msra.mxu0 %v1865
    %2186 = vmatpush.bf16.msra.mxu0 %v1864
    %2187 = vmatpush.bf16.msra.mxu0 %v1863
    %2188 = vmatpush.bf16.msra.mxu0 %v1862
    %2189 = vmatpush.bf16.msra.mxu0 %v1861
    %2190 = vmatmul.bf16.gmra.mxu0 %v1239
    %v2191 = vpop.f32.mrf.mxu0
    %v2192 = vadd.f32 %v2179, %v2191
    %v2193 = vpop.f32.mrf.mxu0
    %2194 = vdwg.mxu0
    %2195 = vmatpush.bf16.msra.mxu0 %v1876
    %2196 = vmatpush.bf16.msra.mxu0 %v1875
    %2197 = vmatpush.bf16.msra.mxu0 %v1874
    %2198 = vmatpush.bf16.msra.mxu0 %v1873
    %2199 = vmatpush.bf16.msra.mxu0 %v1872
    %2200 = vmatpush.bf16.msra.mxu0 %v1871
    %2201 = vmatpush.bf16.msra.mxu0 %v1870
    %2202 = vmatpush.bf16.msra.mxu0 %v1869
    %2203 = vmatmul.bf16.gmra.mxu0 %v1240
    %v2204 = vpop.f32.mrf.mxu0
    %v2205 = vadd.f32 %v2192, %v2204
    %v2206 = vpop.f32.mrf.mxu0
    %2207 = vdwg.mxu0
    %2208 = vmatpush.bf16.msra.mxu0 %v1884
    %2209 = vmatpush.bf16.msra.mxu0 %v1883
    %2210 = vmatpush.bf16.msra.mxu0 %v1882
    %2211 = vmatpush.bf16.msra.mxu0 %v1881
    %2212 = vmatpush.bf16.msra.mxu0 %v1880
    %2213 = vmatpush.bf16.msra.mxu0 %v1879
    %2214 = vmatpush.bf16.msra.mxu0 %v1878
    %2215 = vmatpush.bf16.msra.mxu0 %v1877
    %2216 = vmatmul.bf16.gmra.mxu0 %v1241
    %v2217 = vpop.f32.mrf.mxu0
    %v2218 = vadd.f32 %v2205, %v2217
    %v2219 = vpop.f32.mrf.mxu0
    %2220 = vdwg.mxu0
    %v2221 = vadd.f32 %v512, %v2218
    %v2222 = vld [vmem:[%s20] sm:$0x1]
    %v2223 = vld [vmem:[%s21] sm:$0x1]
    %v2224 = vsel %vm475, %v2221, 0.0
    %2225 = vadd.xlane.f32.xlu0 %v2224
    %v2226 = vpop.xlane.xlu0 %2225
    %v2227 = vmul.f32 %v2226, %v485
    %v2228 = vsub.f32 %v2221, %v2227
    %v2229 = vmul.f32 %v2228, %v2228
    %v2230 = vsel %vm475, %v2229, 0.0
    %2231 = vadd.xlane.f32.xlu0 %v2230
    %v2232 = vpop.xlane.xlu0 %2231
    %v2233 = vmul.f32 %v2232, %v485
    %v2234 = vadd.f32 %v2233, 1e-05
    %v2235 = vrsqrt.pop %v2234
    %v2236 = vmul.f32 %v2235, %v2234
    %v2237 = vmul.f32 %v2236, %v2235
    %v2238 = vmul.f32 0.5, %v2237
    %v2239 = vsub.f32 1.5, %v2238
    %v2240 = vmul.f32 %v2235, %v2239
    %vm2241 = vweird.f32 %v2234
    %vm2242 = vweird.f32 %v2235
    %vm2243 = vmor %vm2241, %vm2242
    %v2244 = vsel %vm2243, %v2235, %v2240
    %v2245 = vmul.f32 %v2228, %v2244
    %v2247 = vperm.slane %v2222, 0
    %v2249 = vmul.f32 %v2245, %v2247
    %v2251 = vperm.slane %v2223, 0
    %v2253 = vadd.f32 %v2249, %v2251
    %s2254 = scalar_lea.vmem %s10, 16
    %v2255 = vld [vmem:[%s2254] sm:$0xf]
    %v2256 = vld [vmem:[%s2254 + $0x4] sm:$0xf]
    %v2257 = vld [vmem:[%s2254 + $0x8] sm:$0xf]
    %v2258 = vld [vmem:[%s2254 + $0xc] sm:$0xf]
    %s2259 = scalar_lea.vmem %s11, 1
    %v2260 = vld [vmem:[%s2259] sm:$0x1]
    %v2261 = vpack.c.bf16 %v2253, %v2253
    %v2263 = vperm.slane %v2260, 0
    %v2269 = vunpack.c.l.b16 %v2255
    %v2270 = vunpack.c.l.b16 %v2256
    %v2271 = vunpack.c.l.b16 %v2257
    %v2272 = vunpack.c.l.b16 %v2258
    %v2273 = vpack.c.b16 %v2270, %v2269
    %v2274 = vpack.c.b16 %v2272, %v2271
    %v2278 = vsel %vm242, %v2261, 0
    %2280 = vmatpush.bf16.msra.mxu0 0
    %2281 = vmatpush.bf16.msra.mxu0 0
    %2282 = vmatpush.bf16.msra.mxu0 0
    %2283 = vmatpush.bf16.msra.mxu0 0
    %2284 = vmatpush.bf16.msra.mxu0 0
    %2285 = vmatpush.bf16.msra.mxu0 0
    %2286 = vmatpush.bf16.msra.mxu0 %v2274
    %2287 = vmatpush.bf16.msra.mxu0 %v2273
    %2288 = vmatmul.bf16.gmra.mxu0 %v2278
    %v2289 = vpop.f32.mrf.mxu0
    %v2290 = vadd.f32 %v2263, %v2289
    %v2291 = vpop.f32.mrf.mxu0
    %2292 = vdwg.mxu0
    %2294 = vrot.lane.b32.xlu0 %v2290, 96
    %v2295 = vpop.permute.xlu0 %2294
    %2297 = vxpose.xlu0.b32.start [1/16] %v2295, 128
    %2298 = vxpose.xlu0.b32.cont [2/16] 0.0, 128
    %2299 = vxpose.xlu0.b32.cont [3/16] 0.0, 128
    %2300 = vxpose.xlu0.b32.cont [4/16] 0.0, 128
    %2301 = vxpose.xlu0.b32.cont [5/16] 0.0, 128
    %2302 = vxpose.xlu0.b32.cont [6/16] 0.0, 128
    %2303 = vxpose.xlu0.b32.cont [7/16] 0.0, 128
    %2304 = vxpose.xlu0.b32.cont [8/16] 0.0, 128
    %2305 = vxpose.xlu0.b32.cont [9/16] 0.0, 128
    %2306 = vxpose.xlu0.b32.cont [10/16] 0.0, 128
    %2307 = vxpose.xlu0.b32.cont [11/16] 0.0, 128
    %2308 = vxpose.xlu0.b32.cont [12/16] 0.0, 128
    %2309 = vxpose.xlu0.b32.cont [13/16] 0.0, 128
    %2310 = vxpose.xlu0.b32.cont [14/16] 0.0, 128
    %2311 = vxpose.xlu0.b32.cont [15/16] 0.0, 128
    %2312 = vxpose.xlu0.b32.end [16/16] 0.0, 128
    %v2313 = vpop.trf.xlu0
    %v2314 = vpop.trf.xlu0
    %v2315 = vpop.trf.xlu0
    %v2316 = vpop.trf.xlu0
    %v2317 = vpop.trf.xlu0
    %v2318 = vpop.trf.xlu0
    %v2319 = vpop.trf.xlu0
    %v2320 = vpop.trf.xlu0
    %v2321 = vpop.trf.xlu0
    %v2322 = vpop.trf.xlu0
    %v2323 = vpop.trf.xlu0
    %v2324 = vpop.trf.xlu0
    %v2325 = vpop.trf.xlu0
    %v2326 = vpop.trf.xlu0
    %v2327 = vpop.trf.xlu0
    %v2328 = vpop.trf.xlu0
    %v2329 = vmul.f32 %v2290, %v205
    %v2330 = vmul.f32 %v2290, %v210
    %v2331 = vmul.f32 %v2290, %v215
    %v2332 = vmul.f32 %v2290, %v220
    %v2334 = vrot.slane %v2330, 2
    %v2337 = vrot.slane %v2331, 4
    %v2340 = vrot.slane %v2332, 6
    %v2342 = vsel %vm96, %v2329, %v2334
    %v2343 = vsel %vm174, %v2334, %v2337
    %v2344 = vsel %vm172, %v2337, %v2340
    %v2345 = vpack.c.bf16 %v2343, %v2342
    %v2346 = vpack.c.bf16 %v2344, %v2344
    %v2347 = vpack.c.bf16 %v2314, %v2313
    %v2348 = vpack.c.bf16 %v2316, %v2315
    %v2350 = vsel %vm242, %v2345, 0
    %v2353 = vsel %vm242, %v2346, 0
    %2355 = vmatpush.bf16.msra.mxu0 0
    %2356 = vmatpush.bf16.msra.mxu0 0
    %2357 = vmatpush.bf16.msra.mxu0 0
    %2358 = vmatpush.bf16.msra.mxu0 0
    %2359 = vmatpush.bf16.msra.mxu0 0
    %2360 = vmatpush.bf16.msra.mxu0 0
    %2361 = vmatpush.bf16.msra.mxu0 %v2348
    %2362 = vmatpush.bf16.msra.mxu0 %v2347
    %2363 = vmatmul.bf16.gmra.mxu0 %v2350
    %v2364 = vpop.f32.mrf.mxu0
    %v2365 = vadd.f32 0.0, %v2364
    %v2366 = vpop.f32.mrf.mxu0
    %v2367 = vadd.f32 0.0, %v2366
    %2368 = vmatmul.bf16.gmra.mxu0 %v2353
    %v2369 = vpop.f32.mrf.mxu0
    %v2370 = vadd.f32 0.0, %v2369
    %v2371 = vpop.f32.mrf.mxu0
    %2372 = vdwg.mxu0
    %v2373 = vmul.f32 %v2365, 0.35355338
    %v2374 = vmul.f32 %v2367, 0.35355338
    %v2375 = vmul.f32 %v2370, 0.35355338
    %v2376 = vadd.f32 %v2373, %v198
    %v2377 = vadd.f32 %v2374, %v199
    %v2378 = vadd.f32 %v2375, %v200
    %v2379 = vsel %vm123, %v2376, -inf
    %2380 = vmax.xlane.f32.xlu0 %v2379
    %v2381 = vpop.xlane.xlu0 %2380
    %v2382 = vsel %vm123, %v2377, -inf
    %2383 = vmax.xlane.f32.xlu0 %v2382
    %v2384 = vpop.xlane.xlu0 %2383
    %v2385 = vsel %vm123, %v2378, -inf
    %2386 = vmax.xlane.f32.xlu0 %v2385
    %v2387 = vpop.xlane.xlu0 %2386
    %v2388 = vsub.f32 %v2376, %v2381
    %v2389 = vsub.f32 %v2377, %v2384
    %v2390 = vsub.f32 %v2378, %v2387
    %v2391 = vmul.f32 %v2388, 1.442695
    %v2392 = vpow.pop %v2391
    %v2393 = vmul.f32 %v2389, 1.442695
    %v2394 = vpow.pop %v2393
    %v2395 = vmul.f32 %v2390, 1.442695
    %v2396 = vpow.pop %v2395
    %v2397 = vsel %vm123, %v2392, 0.0
    %2398 = vadd.xlane.f32.xlu0 %v2397
    %v2399 = vpop.xlane.xlu0 %2398
    %v2400 = vsel %vm123, %v2394, 0.0
    %2401 = vadd.xlane.f32.xlu0 %v2400
    %v2402 = vpop.xlane.xlu0 %2401
    %v2403 = vsel %vm123, %v2396, 0.0
    %2404 = vadd.xlane.f32.xlu0 %v2403
    %v2405 = vpop.xlane.xlu0 %2404
    %v2406 = vrcp.pop %v2399
    %v2407 = vrcp.pop %v2402
    %v2408 = vrcp.pop %v2405
    %v2409 = vmul.f32 %v2392, %v2406
    %v2410 = vmul.f32 %v2394, %v2407
    %v2411 = vmul.f32 %v2396, %v2408
    %v2412 = vpack.c.bf16 %v2410, %v2409
    %v2413 = vpack.c.bf16 %v2411, %v2411
    %v2414 = vpack.c.bf16 %v2290, %v2290
    %2416 = vrot.lane.b32.xlu0 %v2414, 64
    %v2417 = vpop.permute.xlu0 %2416
    %v2419 = vsel %vm123, %v2412, 0
    %v2422 = vsel %vm123, %v2413, 0
    %v2425 = vsel %vm127, %v2417, 0
    %2427 = vmatpush.bf16.msra.mxu0 0
    %2428 = vmatpush.bf16.msra.mxu0 0
    %2429 = vmatpush.bf16.msra.mxu0 0
    %2430 = vmatpush.bf16.msra.mxu0 0
    %2431 = vmatpush.bf16.msra.mxu0 0
    %2432 = vmatpush.bf16.msra.mxu0 0
    %2433 = vmatpush.bf16.msra.mxu0 0
    %2434 = vmatpush.bf16.msra.mxu0 %v2425
    %2435 = vmatmul.bf16.gmra.mxu0 %v2419
    %v2436 = vpop.f32.mrf.mxu0
    %v2437 = vadd.f32 0.0, %v2436
    %v2438 = vpop.f32.mrf.mxu0
    %v2439 = vadd.f32 0.0, %v2438
    %2440 = vmatmul.bf16.gmra.mxu0 %v2422
    %v2441 = vpop.f32.mrf.mxu0
    %v2442 = vadd.f32 0.0, %v2441
    %v2443 = vpop.f32.mrf.mxu0
    %2444 = vdwg.mxu0
    %v2445 = vmul.f32 %v2437, %v205
    %v2446 = vmul.f32 %v2437, %v210
    %v2447 = vmul.f32 %v2439, %v210
    %v2448 = vmul.f32 %v2439, %v215
    %v2449 = vmul.f32 %v2442, %v215
    %v2450 = vmul.f32 %v2442, %v220
    %v2453 = vrot.slane %v2446, 6
    %v2454 = vrot.slane %v2447, 6
    %v2455 = vsel %vm172, %v2453, %v2454
    %v2457 = vadd.f32 %v2445, %v2455
    %v2460 = vrot.slane %v2448, 4
    %v2461 = vrot.slane %v2449, 4
    %v2462 = vsel %vm174, %v2460, %v2461
    %v2464 = vadd.f32 %v2457, %v2462
    %v2466 = vrot.slane %v2450, 2
    %v2468 = vadd.f32 %v2464, %v2466
    %s2469 = scalar_lea.vmem %s12, 16
    %v2470 = vld [vmem:[%s2469] sm:$0xf]
    %v2471 = vld [vmem:[%s2469 + $0x4] sm:$0xf]
    %v2472 = vld [vmem:[%s2469 + $0x8] sm:$0xf]
    %v2473 = vld [vmem:[%s2469 + $0xc] sm:$0xf]
    %s2474 = scalar_lea.vmem %s13, 1
    %v2475 = vld [vmem:[%s2474] sm:$0x1]
    %v2476 = vpack.c.bf16 %v2468, %v2468
    %v2478 = vperm.slane %v2475, 0
    %v2484 = vunpack.c.l.b16 %v2470
    %v2485 = vunpack.c.l.b16 %v2471
    %v2486 = vunpack.c.l.b16 %v2472
    %v2487 = vunpack.c.l.b16 %v2473
    %v2488 = vpack.c.b16 %v2485, %v2484
    %v2489 = vpack.c.b16 %v2487, %v2486
    %v2493 = vsel %vm242, %v2476, 0
    %2495 = vmatpush.bf16.msra.mxu0 0
    %2496 = vmatpush.bf16.msra.mxu0 0
    %2497 = vmatpush.bf16.msra.mxu0 0
    %2498 = vmatpush.bf16.msra.mxu0 0
    %2499 = vmatpush.bf16.msra.mxu0 0
    %2500 = vmatpush.bf16.msra.mxu0 0
    %2501 = vmatpush.bf16.msra.mxu0 %v2489
    %2502 = vmatpush.bf16.msra.mxu0 %v2488
    %2503 = vmatmul.bf16.gmra.mxu0 %v2493
    %v2504 = vpop.f32.mrf.mxu0
    %v2505 = vadd.f32 %v2478, %v2504
    %v2506 = vpop.f32.mrf.mxu0
    %2507 = vdwg.mxu0
    %v2508 = vadd.f32 %v2253, %v2505
    %s2509 = scalar_lea.vmem %s14, 1
    %v2510 = vld [vmem:[%s2509] sm:$0x1]
    %s2511 = scalar_lea.vmem %s15, 1
    %v2512 = vld [vmem:[%s2511] sm:$0x1]
    %v2513 = vsel %vm475, %v2508, 0.0
    %2514 = vadd.xlane.f32.xlu0 %v2513
    %v2515 = vpop.xlane.xlu0 %2514
    %v2516 = vmul.f32 %v2515, %v485
    %v2517 = vsub.f32 %v2508, %v2516
    %v2518 = vmul.f32 %v2517, %v2517
    %v2519 = vsel %vm475, %v2518, 0.0
    %2520 = vadd.xlane.f32.xlu0 %v2519
    %v2521 = vpop.xlane.xlu0 %2520
    %v2522 = vmul.f32 %v2521, %v485
    %v2523 = vadd.f32 %v2522, 1e-05
    %v2524 = vrsqrt.pop %v2523
    %v2525 = vmul.f32 %v2524, %v2523
    %v2526 = vmul.f32 %v2525, %v2524
    %v2527 = vmul.f32 0.5, %v2526
    %v2528 = vsub.f32 1.5, %v2527
    %v2529 = vmul.f32 %v2524, %v2528
    %vm2530 = vweird.f32 %v2523
    %vm2531 = vweird.f32 %v2524
    %vm2532 = vmor %vm2530, %vm2531
    %v2533 = vsel %vm2532, %v2524, %v2529
    %v2534 = vmul.f32 %v2517, %v2533
    %v2536 = vperm.slane %v2510, 0
    %v2538 = vmul.f32 %v2534, %v2536
    %v2540 = vperm.slane %v2512, 0
    %v2542 = vadd.f32 %v2538, %v2540
    %s2543 = scalar_lea.vmem %s16, 256
    %v2544 = vld [vmem:[%s2543] sm:$0xff]
    %v2545 = vld [vmem:[%s2543 + $0x8] sm:$0xff]
    %v2546 = vld [vmem:[%s2543 + $0x10] sm:$0xff]
    %v2547 = vld [vmem:[%s2543 + $0x18] sm:$0xff]
    %v2548 = vld [vmem:[%s2543 + $0x20] sm:$0xff]
    %v2549 = vld [vmem:[%s2543 + $0x28] sm:$0xff]
    %v2550 = vld [vmem:[%s2543 + $0x30] sm:$0xff]
    %v2551 = vld [vmem:[%s2543 + $0x38] sm:$0xff]
    %v2552 = vld [vmem:[%s2543 + $0x40] sm:$0xff]
    %v2553 = vld [vmem:[%s2543 + $0x48] sm:$0xff]
    %v2554 = vld [vmem:[%s2543 + $0x50] sm:$0xff]
    %v2555 = vld [vmem:[%s2543 + $0x58] sm:$0xff]
    %v2556 = vld [vmem:[%s2543 + $0x60] sm:$0xff]
    %v2557 = vld [vmem:[%s2543 + $0x68] sm:$0xff]
    %v2558 = vld [vmem:[%s2543 + $0x70] sm:$0xff]
    %v2559 = vld [vmem:[%s2543 + $0x78] sm:$0xff]
    %v2560 = vld [vmem:[%s2543 + $0x80] sm:$0xff]
    %v2561 = vld [vmem:[%s2543 + $0x88] sm:$0xff]
    %v2562 = vld [vmem:[%s2543 + $0x90] sm:$0xff]
    %v2563 = vld [vmem:[%s2543 + $0x98] sm:$0xff]
    %v2564 = vld [vmem:[%s2543 + $0xa0] sm:$0xff]
    %v2565 = vld [vmem:[%s2543 + $0xa8] sm:$0xff]
    %v2566 = vld [vmem:[%s2543 + $0xb0] sm:$0xff]
    %v2567 = vld [vmem:[%s2543 + $0xb8] sm:$0xff]
    %v2568 = vld [vmem:[%s2543 + $0xc0] sm:$0xff]
    %v2569 = vld [vmem:[%s2543 + $0xc8] sm:$0xff]
    %v2570 = vld [vmem:[%s2543 + $0xd0] sm:$0xff]
    %v2571 = vld [vmem:[%s2543 + $0xd8] sm:$0xff]
    %v2572 = vld [vmem:[%s2543 + $0xe0] sm:$0xff]
    %v2573 = vld [vmem:[%s2543 + $0xe8] sm:$0xff]
    %v2574 = vld [vmem:[%s2543 + $0xf0] sm:$0xff]
    %v2575 = vld [vmem:[%s2543 + $0xf8] sm:$0xff]
    %s2576 = scalar_lea.vmem %s17, 16
    %v2577 = vld [vmem:[%s2576] sm:$0xff]
    %v2578 = vld [vmem:[%s2576 + $0x8] sm:$0xff]
    %v2579 = vpack.c.bf16 %v2542, %v2542
    %v2582 = vperm.slane %v2577, 0
    %v2583 = vperm.slane %v2577, 1
    %v2584 = vperm.slane %v2577, 2
    %v2585 = vperm.slane %v2577, 3
    %v2586 = vperm.slane %v2577, 4
    %v2587 = vperm.slane %v2577, 5
    %v2588 = vperm.slane %v2577, 6
    %v2589 = vperm.slane %v2577, 7
    %v2590 = vperm.slane %v2578, 0
    %v2591 = vperm.slane %v2578, 1
    %v2592 = vperm.slane %v2578, 2
    %v2593 = vperm.slane %v2578, 3
    %v2594 = vperm.slane %v2578, 4
    %v2595 = vperm.slane %v2578, 5
    %v2596 = vperm.slane %v2578, 6
    %v2597 = vperm.slane %v2578, 7
    %v2646 = vunpack.c.l.b16 %v2544
    %v2647 = vunpack.c.h.b16 %v2544
    %v2648 = vunpack.c.l.b16 %v2545
    %v2649 = vunpack.c.h.b16 %v2545
    %v2650 = vunpack.c.l.b16 %v2546
    %v2651 = vunpack.c.h.b16 %v2546
    %v2652 = vunpack.c.l.b16 %v2547
    %v2653 = vunpack.c.h.b16 %v2547
    %v2654 = vunpack.c.l.b16 %v2548
    %v2655 = vunpack.c.h.b16 %v2548
    %v2656 = vunpack.c.l.b16 %v2549
    %v2657 = vunpack.c.h.b16 %v2549
    %v2658 = vunpack.c.l.b16 %v2550
    %v2659 = vunpack.c.h.b16 %v2550
    %v2660 = vunpack.c.l.b16 %v2551
    %v2661 = vunpack.c.h.b16 %v2551
    %v2662 = vunpack.c.l.b16 %v2552
    %v2663 = vunpack.c.h.b16 %v2552
    %v2664 = vunpack.c.l.b16 %v2553
    %v2665 = vunpack.c.h.b16 %v2553
    %v2666 = vunpack.c.l.b16 %v2554
    %v2667 = vunpack.c.h.b16 %v2554
    %v2668 = vunpack.c.l.b16 %v2555
    %v2669 = vunpack.c.h.b16 %v2555
    %v2670 = vunpack.c.l.b16 %v2556
    %v2671 = vunpack.c.h.b16 %v2556
    %v2672 = vunpack.c.l.b16 %v2557
    %v2673 = vunpack.c.h.b16 %v2557
    %v2674 = vunpack.c.l.b16 %v2558
    %v2675 = vunpack.c.h.b16 %v2558
    %v2676 = vunpack.c.l.b16 %v2559
    %v2677 = vunpack.c.h.b16 %v2559
    %v2678 = vunpack.c.l.b16 %v2560
    %v2679 = vunpack.c.h.b16 %v2560
    %v2680 = vunpack.c.l.b16 %v2561
    %v2681 = vunpack.c.h.b16 %v2561
    %v2682 = vunpack.c.l.b16 %v2562
    %v2683 = vunpack.c.h.b16 %v2562
    %v2684 = vunpack.c.l.b16 %v2563
    %v2685 = vunpack.c.h.b16 %v2563
    %v2686 = vunpack.c.l.b16 %v2564
    %v2687 = vunpack.c.h.b16 %v2564
    %v2688 = vunpack.c.l.b16 %v2565
    %v2689 = vunpack.c.h.b16 %v2565
    %v2690 = vunpack.c.l.b16 %v2566
    %v2691 = vunpack.c.h.b16 %v2566
    %v2692 = vunpack.c.l.b16 %v2567
    %v2693 = vunpack.c.h.b16 %v2567
    %v2694 = vunpack.c.l.b16 %v2568
    %v2695 = vunpack.c.h.b16 %v2568
    %v2696 = vunpack.c.l.b16 %v2569
    %v2697 = vunpack.c.h.b16 %v2569
    %v2698 = vunpack.c.l.b16 %v2570
    %v2699 = vunpack.c.h.b16 %v2570
    %v2700 = vunpack.c.l.b16 %v2571
    %v2701 = vunpack.c.h.b16 %v2571
    %v2702 = vunpack.c.l.b16 %v2572
    %v2703 = vunpack.c.h.b16 %v2572
    %v2704 = vunpack.c.l.b16 %v2573
    %v2705 = vunpack.c.h.b16 %v2573
    %v2706 = vunpack.c.l.b16 %v2574
    %v2707 = vunpack.c.h.b16 %v2574
    %v2708 = vunpack.c.l.b16 %v2575
    %v2709 = vunpack.c.h.b16 %v2575
    %v2710 = vpack.c.b16 %v2662, %v2646
    %v2711 = vpack.c.b16 %v2663, %v2647
    %v2712 = vpack.c.b16 %v2664, %v2648
    %v2713 = vpack.c.b16 %v2665, %v2649
    %v2714 = vpack.c.b16 %v2666, %v2650
    %v2715 = vpack.c.b16 %v2667, %v2651
    %v2716 = vpack.c.b16 %v2668, %v2652
    %v2717 = vpack.c.b16 %v2669, %v2653
    %v2718 = vpack.c.b16 %v2670, %v2654
    %v2719 = vpack.c.b16 %v2671, %v2655
    %v2720 = vpack.c.b16 %v2672, %v2656
    %v2721 = vpack.c.b16 %v2673, %v2657
    %v2722 = vpack.c.b16 %v2674, %v2658
    %v2723 = vpack.c.b16 %v2675, %v2659
    %v2724 = vpack.c.b16 %v2676, %v2660
    %v2725 = vpack.c.b16 %v2677, %v2661
    %v2726 = vpack.c.b16 %v2694, %v2678
    %v2727 = vpack.c.b16 %v2695, %v2679
    %v2728 = vpack.c.b16 %v2696, %v2680
    %v2729 = vpack.c.b16 %v2697, %v2681
    %v2730 = vpack.c.b16 %v2698, %v2682
    %v2731 = vpack.c.b16 %v2699, %v2683
    %v2732 = vpack.c.b16 %v2700, %v2684
    %v2733 = vpack.c.b16 %v2701, %v2685
    %v2734 = vpack.c.b16 %v2702, %v2686
    %v2735 = vpack.c.b16 %v2703, %v2687
    %v2736 = vpack.c.b16 %v2704, %v2688
    %v2737 = vpack.c.b16 %v2705, %v2689
    %v2738 = vpack.c.b16 %v2706, %v2690
    %v2739 = vpack.c.b16 %v2707, %v2691
    %v2740 = vpack.c.b16 %v2708, %v2692
    %v2741 = vpack.c.b16 %v2709, %v2693
    %v2775 = vsel %vm242, %v2579, 0
    %2777 = vmatpush.bf16.msra.mxu0 0
    %2778 = vmatpush.bf16.msra.mxu0 0
    %2779 = vmatpush.bf16.msra.mxu0 0
    %2780 = vmatpush.bf16.msra.mxu0 0
    %2781 = vmatpush.bf16.msra.mxu0 0
    %2782 = vmatpush.bf16.msra.mxu0 0
    %2783 = vmatpush.bf16.msra.mxu0 %v2726
    %2784 = vmatpush.bf16.msra.mxu0 %v2710
    %2785 = vmatmul.bf16.gmra.mxu0 %v2775
    %v2786 = vpop.f32.mrf.mxu0
    %v2787 = vadd.f32 %v2582, %v2786
    %v2788 = vpop.f32.mrf.mxu0
    %2789 = vdwg.mxu0
    %2790 = vmatpush.bf16.msra.mxu0 0
    %2791 = vmatpush.bf16.msra.mxu0 0
    %2792 = vmatpush.bf16.msra.mxu0 0
    %2793 = vmatpush.bf16.msra.mxu0 0
    %2794 = vmatpush.bf16.msra.mxu0 0
    %2795 = vmatpush.bf16.msra.mxu0 0
    %2796 = vmatpush.bf16.msra.mxu0 %v2727
    %2797 = vmatpush.bf16.msra.mxu0 %v2711
    %2798 = vmatmul.bf16.gmra.mxu0 %v2775
    %v2799 = vpop.f32.mrf.mxu0
    %v2800 = vadd.f32 %v2583, %v2799
    %v2801 = vpop.f32.mrf.mxu0
    %2802 = vdwg.mxu0
    %2803 = vmatpush.bf16.msra.mxu0 0
    %2804 = vmatpush.bf16.msra.mxu0 0
    %2805 = vmatpush.bf16.msra.mxu0 0
    %2806 = vmatpush.bf16.msra.mxu0 0
    %2807 = vmatpush.bf16.msra.mxu0 0
    %2808 = vmatpush.bf16.msra.mxu0 0
    %2809 = vmatpush.bf16.msra.mxu0 %v2728
    %2810 = vmatpush.bf16.msra.mxu0 %v2712
    %2811 = vmatmul.bf16.gmra.mxu0 %v2775
    %v2812 = vpop.f32.mrf.mxu0
    %v2813 = vadd.f32 %v2584, %v2812
    %v2814 = vpop.f32.mrf.mxu0
    %2815 = vdwg.mxu0
    %2816 = vmatpush.bf16.msra.mxu0 0
    %2817 = vmatpush.bf16.msra.mxu0 0
    %2818 = vmatpush.bf16.msra.mxu0 0
    %2819 = vmatpush.bf16.msra.mxu0 0
    %2820 = vmatpush.bf16.msra.mxu0 0
    %2821 = vmatpush.bf16.msra.mxu0 0
    %2822 = vmatpush.bf16.msra.mxu0 %v2729
    %2823 = vmatpush.bf16.msra.mxu0 %v2713
    %2824 = vmatmul.bf16.gmra.mxu0 %v2775
    %v2825 = vpop.f32.mrf.mxu0
    %v2826 = vadd.f32 %v2585, %v2825
    %v2827 = vpop.f32.mrf.mxu0
    %2828 = vdwg.mxu0
    %2829 = vmatpush.bf16.msra.mxu0 0
    %2830 = vmatpush.bf16.msra.mxu0 0
    %2831 = vmatpush.bf16.msra.mxu0 0
    %2832 = vmatpush.bf16.msra.mxu0 0
    %2833 = vmatpush.bf16.msra.mxu0 0
    %2834 = vmatpush.bf16.msra.mxu0 0
    %2835 = vmatpush.bf16.msra.mxu0 %v2730
    %2836 = vmatpush.bf16.msra.mxu0 %v2714
    %2837 = vmatmul.bf16.gmra.mxu0 %v2775
    %v2838 = vpop.f32.mrf.mxu0
    %v2839 = vadd.f32 %v2586, %v2838
    %v2840 = vpop.f32.mrf.mxu0
    %2841 = vdwg.mxu0
    %2842 = vmatpush.bf16.msra.mxu0 0
    %2843 = vmatpush.bf16.msra.mxu0 0
    %2844 = vmatpush.bf16.msra.mxu0 0
    %2845 = vmatpush.bf16.msra.mxu0 0
    %2846 = vmatpush.bf16.msra.mxu0 0
    %2847 = vmatpush.bf16.msra.mxu0 0
    %2848 = vmatpush.bf16.msra.mxu0 %v2731
    %2849 = vmatpush.bf16.msra.mxu0 %v2715
    %2850 = vmatmul.bf16.gmra.mxu0 %v2775
    %v2851 = vpop.f32.mrf.mxu0
    %v2852 = vadd.f32 %v2587, %v2851
    %v2853 = vpop.f32.mrf.mxu0
    %2854 = vdwg.mxu0
    %2855 = vmatpush.bf16.msra.mxu0 0
    %2856 = vmatpush.bf16.msra.mxu0 0
    %2857 = vmatpush.bf16.msra.mxu0 0
    %2858 = vmatpush.bf16.msra.mxu0 0
    %2859 = vmatpush.bf16.msra.mxu0 0
    %2860 = vmatpush.bf16.msra.mxu0 0
    %2861 = vmatpush.bf16.msra.mxu0 %v2732
    %2862 = vmatpush.bf16.msra.mxu0 %v2716
    %2863 = vmatmul.bf16.gmra.mxu0 %v2775
    %v2864 = vpop.f32.mrf.mxu0
    %v2865 = vadd.f32 %v2588, %v2864
    %v2866 = vpop.f32.mrf.mxu0
    %2867 = vdwg.mxu0
    %2868 = vmatpush.bf16.msra.mxu0 0
    %2869 = vmatpush.bf16.msra.mxu0 0
    %2870 = vmatpush.bf16.msra.mxu0 0
    %2871 = vmatpush.bf16.msra.mxu0 0
    %2872 = vmatpush.bf16.msra.mxu0 0
    %2873 = vmatpush.bf16.msra.mxu0 0
    %2874 = vmatpush.bf16.msra.mxu0 %v2733
    %2875 = vmatpush.bf16.msra.mxu0 %v2717
    %2876 = vmatmul.bf16.gmra.mxu0 %v2775
    %v2877 = vpop.f32.mrf.mxu0
    %v2878 = vadd.f32 %v2589, %v2877
    %v2879 = vpop.f32.mrf.mxu0
    %2880 = vdwg.mxu0
    %2881 = vmatpush.bf16.msra.mxu0 0
    %2882 = vmatpush.bf16.msra.mxu0 0
    %2883 = vmatpush.bf16.msra.mxu0 0
    %2884 = vmatpush.bf16.msra.mxu0 0
    %2885 = vmatpush.bf16.msra.mxu0 0
    %2886 = vmatpush.bf16.msra.mxu0 0
    %2887 = vmatpush.bf16.msra.mxu0 %v2734
    %2888 = vmatpush.bf16.msra.mxu0 %v2718
    %2889 = vmatmul.bf16.gmra.mxu0 %v2775
    %v2890 = vpop.f32.mrf.mxu0
    %v2891 = vadd.f32 %v2590, %v2890
    %v2892 = vpop.f32.mrf.mxu0
    %2893 = vdwg.mxu0
    %2894 = vmatpush.bf16.msra.mxu0 0
    %2895 = vmatpush.bf16.msra.mxu0 0
    %2896 = vmatpush.bf16.msra.mxu0 0
    %2897 = vmatpush.bf16.msra.mxu0 0
    %2898 = vmatpush.bf16.msra.mxu0 0
    %2899 = vmatpush.bf16.msra.mxu0 0
    %2900 = vmatpush.bf16.msra.mxu0 %v2735
    %2901 = vmatpush.bf16.msra.mxu0 %v2719
    %2902 = vmatmul.bf16.gmra.mxu0 %v2775
    %v2903 = vpop.f32.mrf.mxu0
    %v2904 = vadd.f32 %v2591, %v2903
    %v2905 = vpop.f32.mrf.mxu0
    %2906 = vdwg.mxu0
    %2907 = vmatpush.bf16.msra.mxu0 0
    %2908 = vmatpush.bf16.msra.mxu0 0
    %2909 = vmatpush.bf16.msra.mxu0 0
    %2910 = vmatpush.bf16.msra.mxu0 0
    %2911 = vmatpush.bf16.msra.mxu0 0
    %2912 = vmatpush.bf16.msra.mxu0 0
    %2913 = vmatpush.bf16.msra.mxu0 %v2736
    %2914 = vmatpush.bf16.msra.mxu0 %v2720
    %2915 = vmatmul.bf16.gmra.mxu0 %v2775
    %v2916 = vpop.f32.mrf.mxu0
    %v2917 = vadd.f32 %v2592, %v2916
    %v2918 = vpop.f32.mrf.mxu0
    %2919 = vdwg.mxu0
    %2920 = vmatpush.bf16.msra.mxu0 0
    %2921 = vmatpush.bf16.msra.mxu0 0
    %2922 = vmatpush.bf16.msra.mxu0 0
    %2923 = vmatpush.bf16.msra.mxu0 0
    %2924 = vmatpush.bf16.msra.mxu0 0
    %2925 = vmatpush.bf16.msra.mxu0 0
    %2926 = vmatpush.bf16.msra.mxu0 %v2737
    %2927 = vmatpush.bf16.msra.mxu0 %v2721
    %2928 = vmatmul.bf16.gmra.mxu0 %v2775
    %v2929 = vpop.f32.mrf.mxu0
    %v2930 = vadd.f32 %v2593, %v2929
    %v2931 = vpop.f32.mrf.mxu0
    %2932 = vdwg.mxu0
    %2933 = vmatpush.bf16.msra.mxu0 0
    %2934 = vmatpush.bf16.msra.mxu0 0
    %2935 = vmatpush.bf16.msra.mxu0 0
    %2936 = vmatpush.bf16.msra.mxu0 0
    %2937 = vmatpush.bf16.msra.mxu0 0
    %2938 = vmatpush.bf16.msra.mxu0 0
    %2939 = vmatpush.bf16.msra.mxu0 %v2738
    %2940 = vmatpush.bf16.msra.mxu0 %v2722
    %2941 = vmatmul.bf16.gmra.mxu0 %v2775
    %v2942 = vpop.f32.mrf.mxu0
    %v2943 = vadd.f32 %v2594, %v2942
    %v2944 = vpop.f32.mrf.mxu0
    %2945 = vdwg.mxu0
    %2946 = vmatpush.bf16.msra.mxu0 0
    %2947 = vmatpush.bf16.msra.mxu0 0
    %2948 = vmatpush.bf16.msra.mxu0 0
    %2949 = vmatpush.bf16.msra.mxu0 0
    %2950 = vmatpush.bf16.msra.mxu0 0
    %2951 = vmatpush.bf16.msra.mxu0 0
    %2952 = vmatpush.bf16.msra.mxu0 %v2739
    %2953 = vmatpush.bf16.msra.mxu0 %v2723
    %2954 = vmatmul.bf16.gmra.mxu0 %v2775
    %v2955 = vpop.f32.mrf.mxu0
    %v2956 = vadd.f32 %v2595, %v2955
    %v2957 = vpop.f32.mrf.mxu0
    %2958 = vdwg.mxu0
    %2959 = vmatpush.bf16.msra.mxu0 0
    %2960 = vmatpush.bf16.msra.mxu0 0
    %2961 = vmatpush.bf16.msra.mxu0 0
    %2962 = vmatpush.bf16.msra.mxu0 0
    %2963 = vmatpush.bf16.msra.mxu0 0
    %2964 = vmatpush.bf16.msra.mxu0 0
    %2965 = vmatpush.bf16.msra.mxu0 %v2740
    %2966 = vmatpush.bf16.msra.mxu0 %v2724
    %2967 = vmatmul.bf16.gmra.mxu0 %v2775
    %v2968 = vpop.f32.mrf.mxu0
    %v2969 = vadd.f32 %v2596, %v2968
    %v2970 = vpop.f32.mrf.mxu0
    %2971 = vdwg.mxu0
    %2972 = vmatpush.bf16.msra.mxu0 0
    %2973 = vmatpush.bf16.msra.mxu0 0
    %2974 = vmatpush.bf16.msra.mxu0 0
    %2975 = vmatpush.bf16.msra.mxu0 0
    %2976 = vmatpush.bf16.msra.mxu0 0
    %2977 = vmatpush.bf16.msra.mxu0 0
    %2978 = vmatpush.bf16.msra.mxu0 %v2741
    %2979 = vmatpush.bf16.msra.mxu0 %v2725
    %2980 = vmatmul.bf16.gmra.mxu0 %v2775
    %v2981 = vpop.f32.mrf.mxu0
    %v2982 = vadd.f32 %v2597, %v2981
    %v2983 = vpop.f32.mrf.mxu0
    %2984 = vdwg.mxu0
    %v2985 = vmax.f32 %v2787, 0.0
    %v2986 = vmax.f32 %v2800, 0.0
    %v2987 = vmax.f32 %v2813, 0.0
    %v2988 = vmax.f32 %v2826, 0.0
    %v2989 = vmax.f32 %v2839, 0.0
    %v2990 = vmax.f32 %v2852, 0.0
    %v2991 = vmax.f32 %v2865, 0.0
    %v2992 = vmax.f32 %v2878, 0.0
    %v2993 = vmax.f32 %v2891, 0.0
    %v2994 = vmax.f32 %v2904, 0.0
    %v2995 = vmax.f32 %v2917, 0.0
    %v2996 = vmax.f32 %v2930, 0.0
    %v2997 = vmax.f32 %v2943, 0.0
    %v2998 = vmax.f32 %v2956, 0.0
    %v2999 = vmax.f32 %v2969, 0.0
    %v3000 = vmax.f32 %v2982, 0.0
    %s3001 = scalar_lea.vmem %s18, 1024
    %v3002 = vld [vmem:[%s3001] sm:$0xf]
    %v3003 = vld [vmem:[%s3001 + $0x4] sm:$0xf]
    %v3004 = vld [vmem:[%s3001 + $0x8] sm:$0xf]
    %v3005 = vld [vmem:[%s3001 + $0xc] sm:$0xf]
    %v3006 = vld [vmem:[%s3001 + $0x10] sm:$0xf]
    %v3007 = vld [vmem:[%s3001 + $0x14] sm:$0xf]
    %v3008 = vld [vmem:[%s3001 + $0x18] sm:$0xf]
    %v3009 = vld [vmem:[%s3001 + $0x1c] sm:$0xf]
    %v3010 = vld [vmem:[%s3001 + $0x20] sm:$0xf]
    %v3011 = vld [vmem:[%s3001 + $0x24] sm:$0xf]
    %v3012 = vld [vmem:[%s3001 + $0x28] sm:$0xf]
    %v3013 = vld [vmem:[%s3001 + $0x2c] sm:$0xf]
    %v3014 = vld [vmem:[%s3001 + $0x30] sm:$0xf]
    %v3015 = vld [vmem:[%s3001 + $0x34] sm:$0xf]
    %v3016 = vld [vmem:[%s3001 + $0x38] sm:$0xf]
    %v3017 = vld [vmem:[%s3001 + $0x3c] sm:$0xf]
    %v3018 = vld [vmem:[%s3001 + $0x40] sm:$0xf]
    %v3019 = vld [vmem:[%s3001 + $0x44] sm:$0xf]
    %v3020 = vld [vmem:[%s3001 + $0x48] sm:$0xf]
    %v3021 = vld [vmem:[%s3001 + $0x4c] sm:$0xf]
    %v3022 = vld [vmem:[%s3001 + $0x50] sm:$0xf]
    %v3023 = vld [vmem:[%s3001 + $0x54] sm:$0xf]
    %v3024 = vld [vmem:[%s3001 + $0x58] sm:$0xf]
    %v3025 = vld [vmem:[%s3001 + $0x5c] sm:$0xf]
    %v3026 = vld [vmem:[%s3001 + $0x60] sm:$0xf]
    %v3027 = vld [vmem:[%s3001 + $0x64] sm:$0xf]
    %v3028 = vld [vmem:[%s3001 + $0x68] sm:$0xf]
    %v3029 = vld [vmem:[%s3001 + $0x6c] sm:$0xf]
    %v3030 = vld [vmem:[%s3001 + $0x70] sm:$0xf]
    %v3031 = vld [vmem:[%s3001 + $0x74] sm:$0xf]
    %v3032 = vld [vmem:[%s3001 + $0x78] sm:$0xf]
    %v3033 = vld [vmem:[%s3001 + $0x7c] sm:$0xf]
    %v3034 = vld [vmem:[%s3001 + $0x80] sm:$0xf]
    %v3035 = vld [vmem:[%s3001 + $0x84] sm:$0xf]
    %v3036 = vld [vmem:[%s3001 + $0x88] sm:$0xf]
    %v3037 = vld [vmem:[%s3001 + $0x8c] sm:$0xf]
    %v3038 = vld [vmem:[%s3001 + $0x90] sm:$0xf]
    %v3039 = vld [vmem:[%s3001 + $0x94] sm:$0xf]
    %v3040 = vld [vmem:[%s3001 + $0x98] sm:$0xf]
    %v3041 = vld [vmem:[%s3001 + $0x9c] sm:$0xf]
    %v3042 = vld [vmem:[%s3001 + $0xa0] sm:$0xf]
    %v3043 = vld [vmem:[%s3001 + $0xa4] sm:$0xf]
    %v3044 = vld [vmem:[%s3001 + $0xa8] sm:$0xf]
    %v3045 = vld [vmem:[%s3001 + $0xac] sm:$0xf]
    %v3046 = vld [vmem:[%s3001 + $0xb0] sm:$0xf]
    %v3047 = vld [vmem:[%s3001 + $0xb4] sm:$0xf]
    %v3048 = vld [vmem:[%s3001 + $0xb8] sm:$0xf]
    %v3049 = vld [vmem:[%s3001 + $0xbc] sm:$0xf]
    %v3050 = vld [vmem:[%s3001 + $0xc0] sm:$0xf]
    %v3051 = vld [vmem:[%s3001 + $0xc4] sm:$0xf]
    %v3052 = vld [vmem:[%s3001 + $0xc8] sm:$0xf]
    %v3053 = vld [vmem:[%s3001 + $0xcc] sm:$0xf]
    %v3054 = vld [vmem:[%s3001 + $0xd0] sm:$0xf]
    %v3055 = vld [vmem:[%s3001 + $0xd4] sm:$0xf]
    %v3056 = vld [vmem:[%s3001 + $0xd8] sm:$0xf]
    %v3057 = vld [vmem:[%s3001 + $0xdc] sm:$0xf]
    %v3058 = vld [vmem:[%s3001 + $0xe0] sm:$0xf]
    %v3059 = vld [vmem:[%s3001 + $0xe4] sm:$0xf]
    %v3060 = vld [vmem:[%s3001 + $0xe8] sm:$0xf]
    %v3061 = vld [vmem:[%s3001 + $0xec] sm:$0xf]
    %v3062 = vld [vmem:[%s3001 + $0xf0] sm:$0xf]
    %v3063 = vld [vmem:[%s3001 + $0xf4] sm:$0xf]
    %v3064 = vld [vmem:[%s3001 + $0xf8] sm:$0xf]
    %v3065 = vld [vmem:[%s3001 + $0xfc] sm:$0xf]
    %v3066 = vld [vmem:[%s3001 + $0x100] sm:$0xf]
    %v3067 = vld [vmem:[%s3001 + $0x104] sm:$0xf]
    %v3068 = vld [vmem:[%s3001 + $0x108] sm:$0xf]
    %v3069 = vld [vmem:[%s3001 + $0x10c] sm:$0xf]
    %v3070 = vld [vmem:[%s3001 + $0x110] sm:$0xf]
    %v3071 = vld [vmem:[%s3001 + $0x114] sm:$0xf]
    %v3072 = vld [vmem:[%s3001 + $0x118] sm:$0xf]
    %v3073 = vld [vmem:[%s3001 + $0x11c] sm:$0xf]
    %v3074 = vld [vmem:[%s3001 + $0x120] sm:$0xf]
    %v3075 = vld [vmem:[%s3001 + $0x124] sm:$0xf]
    %v3076 = vld [vmem:[%s3001 + $0x128] sm:$0xf]
    %v3077 = vld [vmem:[%s3001 + $0x12c] sm:$0xf]
    %v3078 = vld [vmem:[%s3001 + $0x130] sm:$0xf]
    %v3079 = vld [vmem:[%s3001 + $0x134] sm:$0xf]
    %v3080 = vld [vmem:[%s3001 + $0x138] sm:$0xf]
    %v3081 = vld [vmem:[%s3001 + $0x13c] sm:$0xf]
    %v3082 = vld [vmem:[%s3001 + $0x140] sm:$0xf]
    %v3083 = vld [vmem:[%s3001 + $0x144] sm:$0xf]
    %v3084 = vld [vmem:[%s3001 + $0x148] sm:$0xf]
    %v3085 = vld [vmem:[%s3001 + $0x14c] sm:$0xf]
    %v3086 = vld [vmem:[%s3001 + $0x150] sm:$0xf]
    %v3087 = vld [vmem:[%s3001 + $0x154] sm:$0xf]
    %v3088 = vld [vmem:[%s3001 + $0x158] sm:$0xf]
    %v3089 = vld [vmem:[%s3001 + $0x15c] sm:$0xf]
    %v3090 = vld [vmem:[%s3001 + $0x160] sm:$0xf]
    %v3091 = vld [vmem:[%s3001 + $0x164] sm:$0xf]
    %v3092 = vld [vmem:[%s3001 + $0x168] sm:$0xf]
    %v3093 = vld [vmem:[%s3001 + $0x16c] sm:$0xf]
    %v3094 = vld [vmem:[%s3001 + $0x170] sm:$0xf]
    %v3095 = vld [vmem:[%s3001 + $0x174] sm:$0xf]
    %v3096 = vld [vmem:[%s3001 + $0x178] sm:$0xf]
    %v3097 = vld [vmem:[%s3001 + $0x17c] sm:$0xf]
    %v3098 = vld [vmem:[%s3001 + $0x180] sm:$0xf]
    %v3099 = vld [vmem:[%s3001 + $0x184] sm:$0xf]
    %v3100 = vld [vmem:[%s3001 + $0x188] sm:$0xf]
    %v3101 = vld [vmem:[%s3001 + $0x18c] sm:$0xf]
    %v3102 = vld [vmem:[%s3001 + $0x190] sm:$0xf]
    %v3103 = vld [vmem:[%s3001 + $0x194] sm:$0xf]
    %v3104 = vld [vmem:[%s3001 + $0x198] sm:$0xf]
    %v3105 = vld [vmem:[%s3001 + $0x19c] sm:$0xf]
    %v3106 = vld [vmem:[%s3001 + $0x1a0] sm:$0xf]
    %v3107 = vld [vmem:[%s3001 + $0x1a4] sm:$0xf]
    %v3108 = vld [vmem:[%s3001 + $0x1a8] sm:$0xf]
    %v3109 = vld [vmem:[%s3001 + $0x1ac] sm:$0xf]
    %v3110 = vld [vmem:[%s3001 + $0x1b0] sm:$0xf]
    %v3111 = vld [vmem:[%s3001 + $0x1b4] sm:$0xf]
    %v3112 = vld [vmem:[%s3001 + $0x1b8] sm:$0xf]
    %v3113 = vld [vmem:[%s3001 + $0x1bc] sm:$0xf]
    %v3114 = vld [vmem:[%s3001 + $0x1c0] sm:$0xf]
    %v3115 = vld [vmem:[%s3001 + $0x1c4] sm:$0xf]
    %v3116 = vld [vmem:[%s3001 + $0x1c8] sm:$0xf]
    %v3117 = vld [vmem:[%s3001 + $0x1cc] sm:$0xf]
    %v3118 = vld [vmem:[%s3001 + $0x1d0] sm:$0xf]
    %v3119 = vld [vmem:[%s3001 + $0x1d4] sm:$0xf]
    %v3120 = vld [vmem:[%s3001 + $0x1d8] sm:$0xf]
    %v3121 = vld [vmem:[%s3001 + $0x1dc] sm:$0xf]
    %v3122 = vld [vmem:[%s3001 + $0x1e0] sm:$0xf]
    %v3123 = vld [vmem:[%s3001 + $0x1e4] sm:$0xf]
    %v3124 = vld [vmem:[%s3001 + $0x1e8] sm:$0xf]
    %v3125 = vld [vmem:[%s3001 + $0x1ec] sm:$0xf]
    %v3126 = vld [vmem:[%s3001 + $0x1f0] sm:$0xf]
    %v3127 = vld [vmem:[%s3001 + $0x1f4] sm:$0xf]
    %v3128 = vld [vmem:[%s3001 + $0x1f8] sm:$0xf]
    %v3129 = vld [vmem:[%s3001 + $0x1fc] sm:$0xf]
    %v3130 = vld [vmem:[%s3001 + $0x200] sm:$0xf]
    %v3131 = vld [vmem:[%s3001 + $0x204] sm:$0xf]
    %v3132 = vld [vmem:[%s3001 + $0x208] sm:$0xf]
    %v3133 = vld [vmem:[%s3001 + $0x20c] sm:$0xf]
    %v3134 = vld [vmem:[%s3001 + $0x210] sm:$0xf]
    %v3135 = vld [vmem:[%s3001 + $0x214] sm:$0xf]
    %v3136 = vld [vmem:[%s3001 + $0x218] sm:$0xf]
    %v3137 = vld [vmem:[%s3001 + $0x21c] sm:$0xf]
    %v3138 = vld [vmem:[%s3001 + $0x220] sm:$0xf]
    %v3139 = vld [vmem:[%s3001 + $0x224] sm:$0xf]
    %v3140 = vld [vmem:[%s3001 + $0x228] sm:$0xf]
    %v3141 = vld [vmem:[%s3001 + $0x22c] sm:$0xf]
    %v3142 = vld [vmem:[%s3001 + $0x230] sm:$0xf]
    %v3143 = vld [vmem:[%s3001 + $0x234] sm:$0xf]
    %v3144 = vld [vmem:[%s3001 + $0x238] sm:$0xf]
    %v3145 = vld [vmem:[%s3001 + $0x23c] sm:$0xf]
    %v3146 = vld [vmem:[%s3001 + $0x240] sm:$0xf]
    %v3147 = vld [vmem:[%s3001 + $0x244] sm:$0xf]
    %v3148 = vld [vmem:[%s3001 + $0x248] sm:$0xf]
    %v3149 = vld [vmem:[%s3001 + $0x24c] sm:$0xf]
    %v3150 = vld [vmem:[%s3001 + $0x250] sm:$0xf]
    %v3151 = vld [vmem:[%s3001 + $0x254] sm:$0xf]
    %v3152 = vld [vmem:[%s3001 + $0x258] sm:$0xf]
    %v3153 = vld [vmem:[%s3001 + $0x25c] sm:$0xf]
    %v3154 = vld [vmem:[%s3001 + $0x260] sm:$0xf]
    %v3155 = vld [vmem:[%s3001 + $0x264] sm:$0xf]
    %v3156 = vld [vmem:[%s3001 + $0x268] sm:$0xf]
    %v3157 = vld [vmem:[%s3001 + $0x26c] sm:$0xf]
    %v3158 = vld [vmem:[%s3001 + $0x270] sm:$0xf]
    %v3159 = vld [vmem:[%s3001 + $0x274] sm:$0xf]
    %v3160 = vld [vmem:[%s3001 + $0x278] sm:$0xf]
    %v3161 = vld [vmem:[%s3001 + $0x27c] sm:$0xf]
    %v3162 = vld [vmem:[%s3001 + $0x280] sm:$0xf]
    %v3163 = vld [vmem:[%s3001 + $0x284] sm:$0xf]
    %v3164 = vld [vmem:[%s3001 + $0x288] sm:$0xf]
    %v3165 = vld [vmem:[%s3001 + $0x28c] sm:$0xf]
    %v3166 = vld [vmem:[%s3001 + $0x290] sm:$0xf]
    %v3167 = vld [vmem:[%s3001 + $0x294] sm:$0xf]
    %v3168 = vld [vmem:[%s3001 + $0x298] sm:$0xf]
    %v3169 = vld [vmem:[%s3001 + $0x29c] sm:$0xf]
    %v3170 = vld [vmem:[%s3001 + $0x2a0] sm:$0xf]
    %v3171 = vld [vmem:[%s3001 + $0x2a4] sm:$0xf]
    %v3172 = vld [vmem:[%s3001 + $0x2a8] sm:$0xf]
    %v3173 = vld [vmem:[%s3001 + $0x2ac] sm:$0xf]
    %v3174 = vld [vmem:[%s3001 + $0x2b0] sm:$0xf]
    %v3175 = vld [vmem:[%s3001 + $0x2b4] sm:$0xf]
    %v3176 = vld [vmem:[%s3001 + $0x2b8] sm:$0xf]
    %v3177 = vld [vmem:[%s3001 + $0x2bc] sm:$0xf]
    %v3178 = vld [vmem:[%s3001 + $0x2c0] sm:$0xf]
    %v3179 = vld [vmem:[%s3001 + $0x2c4] sm:$0xf]
    %v3180 = vld [vmem:[%s3001 + $0x2c8] sm:$0xf]
    %v3181 = vld [vmem:[%s3001 + $0x2cc] sm:$0xf]
    %v3182 = vld [vmem:[%s3001 + $0x2d0] sm:$0xf]
    %v3183 = vld [vmem:[%s3001 + $0x2d4] sm:$0xf]
    %v3184 = vld [vmem:[%s3001 + $0x2d8] sm:$0xf]
    %v3185 = vld [vmem:[%s3001 + $0x2dc] sm:$0xf]
    %v3186 = vld [vmem:[%s3001 + $0x2e0] sm:$0xf]
    %v3187 = vld [vmem:[%s3001 + $0x2e4] sm:$0xf]
    %v3188 = vld [vmem:[%s3001 + $0x2e8] sm:$0xf]
    %v3189 = vld [vmem:[%s3001 + $0x2ec] sm:$0xf]
    %v3190 = vld [vmem:[%s3001 + $0x2f0] sm:$0xf]
    %v3191 = vld [vmem:[%s3001 + $0x2f4] sm:$0xf]
    %v3192 = vld [vmem:[%s3001 + $0x2f8] sm:$0xf]
    %v3193 = vld [vmem:[%s3001 + $0x2fc] sm:$0xf]
    %v3194 = vld [vmem:[%s3001 + $0x300] sm:$0xf]
    %v3195 = vld [vmem:[%s3001 + $0x304] sm:$0xf]
    %v3196 = vld [vmem:[%s3001 + $0x308] sm:$0xf]
    %v3197 = vld [vmem:[%s3001 + $0x30c] sm:$0xf]
    %v3198 = vld [vmem:[%s3001 + $0x310] sm:$0xf]
    %v3199 = vld [vmem:[%s3001 + $0x314] sm:$0xf]
    %v3200 = vld [vmem:[%s3001 + $0x318] sm:$0xf]
    %v3201 = vld [vmem:[%s3001 + $0x31c] sm:$0xf]
    %v3202 = vld [vmem:[%s3001 + $0x320] sm:$0xf]
    %v3203 = vld [vmem:[%s3001 + $0x324] sm:$0xf]
    %v3204 = vld [vmem:[%s3001 + $0x328] sm:$0xf]
    %v3205 = vld [vmem:[%s3001 + $0x32c] sm:$0xf]
    %v3206 = vld [vmem:[%s3001 + $0x330] sm:$0xf]
    %v3207 = vld [vmem:[%s3001 + $0x334] sm:$0xf]
    %v3208 = vld [vmem:[%s3001 + $0x338] sm:$0xf]
    %v3209 = vld [vmem:[%s3001 + $0x33c] sm:$0xf]
    %v3210 = vld [vmem:[%s3001 + $0x340] sm:$0xf]
    %v3211 = vld [vmem:[%s3001 + $0x344] sm:$0xf]
    %v3212 = vld [vmem:[%s3001 + $0x348] sm:$0xf]
    %v3213 = vld [vmem:[%s3001 + $0x34c] sm:$0xf]
    %v3214 = vld [vmem:[%s3001 + $0x350] sm:$0xf]
    %v3215 = vld [vmem:[%s3001 + $0x354] sm:$0xf]
    %v3216 = vld [vmem:[%s3001 + $0x358] sm:$0xf]
    %v3217 = vld [vmem:[%s3001 + $0x35c] sm:$0xf]
    %v3218 = vld [vmem:[%s3001 + $0x360] sm:$0xf]
    %v3219 = vld [vmem:[%s3001 + $0x364] sm:$0xf]
    %v3220 = vld [vmem:[%s3001 + $0x368] sm:$0xf]
    %v3221 = vld [vmem:[%s3001 + $0x36c] sm:$0xf]
    %v3222 = vld [vmem:[%s3001 + $0x370] sm:$0xf]
    %v3223 = vld [vmem:[%s3001 + $0x374] sm:$0xf]
    %v3224 = vld [vmem:[%s3001 + $0x378] sm:$0xf]
    %v3225 = vld [vmem:[%s3001 + $0x37c] sm:$0xf]
    %v3226 = vld [vmem:[%s3001 + $0x380] sm:$0xf]
    %v3227 = vld [vmem:[%s3001 + $0x384] sm:$0xf]
    %v3228 = vld [vmem:[%s3001 + $0x388] sm:$0xf]
    %v3229 = vld [vmem:[%s3001 + $0x38c] sm:$0xf]
    %v3230 = vld [vmem:[%s3001 + $0x390] sm:$0xf]
    %v3231 = vld [vmem:[%s3001 + $0x394] sm:$0xf]
    %v3232 = vld [vmem:[%s3001 + $0x398] sm:$0xf]
    %v3233 = vld [vmem:[%s3001 + $0x39c] sm:$0xf]
    %v3234 = vld [vmem:[%s3001 + $0x3a0] sm:$0xf]
    %v3235 = vld [vmem:[%s3001 + $0x3a4] sm:$0xf]
    %v3236 = vld [vmem:[%s3001 + $0x3a8] sm:$0xf]
    %v3237 = vld [vmem:[%s3001 + $0x3ac] sm:$0xf]
    %v3238 = vld [vmem:[%s3001 + $0x3b0] sm:$0xf]
    %v3239 = vld [vmem:[%s3001 + $0x3b4] sm:$0xf]
    %v3240 = vld [vmem:[%s3001 + $0x3b8] sm:$0xf]
    %v3241 = vld [vmem:[%s3001 + $0x3bc] sm:$0xf]
    %v3242 = vld [vmem:[%s3001 + $0x3c0] sm:$0xf]
    %v3243 = vld [vmem:[%s3001 + $0x3c4] sm:$0xf]
    %v3244 = vld [vmem:[%s3001 + $0x3c8] sm:$0xf]
    %v3245 = vld [vmem:[%s3001 + $0x3cc] sm:$0xf]
    %v3246 = vld [vmem:[%s3001 + $0x3d0] sm:$0xf]
    %v3247 = vld [vmem:[%s3001 + $0x3d4] sm:$0xf]
    %v3248 = vld [vmem:[%s3001 + $0x3d8] sm:$0xf]
    %v3249 = vld [vmem:[%s3001 + $0x3dc] sm:$0xf]
    %v3250 = vld [vmem:[%s3001 + $0x3e0] sm:$0xf]
    %v3251 = vld [vmem:[%s3001 + $0x3e4] sm:$0xf]
    %v3252 = vld [vmem:[%s3001 + $0x3e8] sm:$0xf]
    %v3253 = vld [vmem:[%s3001 + $0x3ec] sm:$0xf]
    %v3254 = vld [vmem:[%s3001 + $0x3f0] sm:$0xf]
    %v3255 = vld [vmem:[%s3001 + $0x3f4] sm:$0xf]
    %v3256 = vld [vmem:[%s3001 + $0x3f8] sm:$0xf]
    %v3257 = vld [vmem:[%s3001 + $0x3fc] sm:$0xf]
    %s3258 = scalar_lea.vmem %s19, 1
    %v3259 = vld [vmem:[%s3258] sm:$0x1]
    %v3260 = vpack.c.bf16 %v2985, %v2985
    %v3261 = vpack.c.bf16 %v2986, %v2986
    %v3262 = vpack.c.bf16 %v2987, %v2987
    %v3263 = vpack.c.bf16 %v2988, %v2988
    %v3264 = vpack.c.bf16 %v2989, %v2989
    %v3265 = vpack.c.bf16 %v2990, %v2990
    %v3266 = vpack.c.bf16 %v2991, %v2991
    %v3267 = vpack.c.bf16 %v2992, %v2992
    %v3268 = vpack.c.bf16 %v2993, %v2993
    %v3269 = vpack.c.bf16 %v2994, %v2994
    %v3270 = vpack.c.bf16 %v2995, %v2995
    %v3271 = vpack.c.bf16 %v2996, %v2996
    %v3272 = vpack.c.bf16 %v2997, %v2997
    %v3273 = vpack.c.bf16 %v2998, %v2998
    %v3274 = vpack.c.bf16 %v2999, %v2999
    %v3275 = vpack.c.bf16 %v3000, %v3000
    %v3277 = vperm.slane %v3259, 0
    %v3535 = vunpack.c.l.b16 %v3002
    %v3536 = vunpack.c.l.b16 %v3003
    %v3537 = vunpack.c.l.b16 %v3004
    %v3538 = vunpack.c.l.b16 %v3005
    %v3539 = vunpack.c.l.b16 %v3006
    %v3540 = vunpack.c.l.b16 %v3007
    %v3541 = vunpack.c.l.b16 %v3008
    %v3542 = vunpack.c.l.b16 %v3009
    %v3543 = vunpack.c.l.b16 %v3010
    %v3544 = vunpack.c.l.b16 %v3011
    %v3545 = vunpack.c.l.b16 %v3012
    %v3546 = vunpack.c.l.b16 %v3013
    %v3547 = vunpack.c.l.b16 %v3014
    %v3548 = vunpack.c.l.b16 %v3015
    %v3549 = vunpack.c.l.b16 %v3016
    %v3550 = vunpack.c.l.b16 %v3017
    %v3551 = vunpack.c.l.b16 %v3018
    %v3552 = vunpack.c.l.b16 %v3019
    %v3553 = vunpack.c.l.b16 %v3020
    %v3554 = vunpack.c.l.b16 %v3021
    %v3555 = vunpack.c.l.b16 %v3022
    %v3556 = vunpack.c.l.b16 %v3023
    %v3557 = vunpack.c.l.b16 %v3024
    %v3558 = vunpack.c.l.b16 %v3025
    %v3559 = vunpack.c.l.b16 %v3026
    %v3560 = vunpack.c.l.b16 %v3027
    %v3561 = vunpack.c.l.b16 %v3028
    %v3562 = vunpack.c.l.b16 %v3029
    %v3563 = vunpack.c.l.b16 %v3030
    %v3564 = vunpack.c.l.b16 %v3031
    %v3565 = vunpack.c.l.b16 %v3032
    %v3566 = vunpack.c.l.b16 %v3033
    %v3567 = vunpack.c.l.b16 %v3034
    %v3568 = vunpack.c.l.b16 %v3035
    %v3569 = vunpack.c.l.b16 %v3036
    %v3570 = vunpack.c.l.b16 %v3037
    %v3571 = vunpack.c.l.b16 %v3038
    %v3572 = vunpack.c.l.b16 %v3039
    %v3573 = vunpack.c.l.b16 %v3040
    %v3574 = vunpack.c.l.b16 %v3041
    %v3575 = vunpack.c.l.b16 %v3042
    %v3576 = vunpack.c.l.b16 %v3043
    %v3577 = vunpack.c.l.b16 %v3044
    %v3578 = vunpack.c.l.b16 %v3045
    %v3579 = vunpack.c.l.b16 %v3046
    %v3580 = vunpack.c.l.b16 %v3047
    %v3581 = vunpack.c.l.b16 %v3048
    %v3582 = vunpack.c.l.b16 %v3049
    %v3583 = vunpack.c.l.b16 %v3050
    %v3584 = vunpack.c.l.b16 %v3051
    %v3585 = vunpack.c.l.b16 %v3052
    %v3586 = vunpack.c.l.b16 %v3053
    %v3587 = vunpack.c.l.b16 %v3054
    %v3588 = vunpack.c.l.b16 %v3055
    %v3589 = vunpack.c.l.b16 %v3056
    %v3590 = vunpack.c.l.b16 %v3057
    %v3591 = vunpack.c.l.b16 %v3058
    %v3592 = vunpack.c.l.b16 %v3059
    %v3593 = vunpack.c.l.b16 %v3060
    %v3594 = vunpack.c.l.b16 %v3061
    %v3595 = vunpack.c.l.b16 %v3062
    %v3596 = vunpack.c.l.b16 %v3063
    %v3597 = vunpack.c.l.b16 %v3064
    %v3598 = vunpack.c.l.b16 %v3065
    %v3599 = vunpack.c.l.b16 %v3066
    %v3600 = vunpack.c.l.b16 %v3067
    %v3601 = vunpack.c.l.b16 %v3068
    %v3602 = vunpack.c.l.b16 %v3069
    %v3603 = vunpack.c.l.b16 %v3070
    %v3604 = vunpack.c.l.b16 %v3071
    %v3605 = vunpack.c.l.b16 %v3072
    %v3606 = vunpack.c.l.b16 %v3073
    %v3607 = vunpack.c.l.b16 %v3074
    %v3608 = vunpack.c.l.b16 %v3075
    %v3609 = vunpack.c.l.b16 %v3076
    %v3610 = vunpack.c.l.b16 %v3077
    %v3611 = vunpack.c.l.b16 %v3078
    %v3612 = vunpack.c.l.b16 %v3079
    %v3613 = vunpack.c.l.b16 %v3080
    %v3614 = vunpack.c.l.b16 %v3081
    %v3615 = vunpack.c.l.b16 %v3082
    %v3616 = vunpack.c.l.b16 %v3083
    %v3617 = vunpack.c.l.b16 %v3084
    %v3618 = vunpack.c.l.b16 %v3085
    %v3619 = vunpack.c.l.b16 %v3086
    %v3620 = vunpack.c.l.b16 %v3087
    %v3621 = vunpack.c.l.b16 %v3088
    %v3622 = vunpack.c.l.b16 %v3089
    %v3623 = vunpack.c.l.b16 %v3090
    %v3624 = vunpack.c.l.b16 %v3091
    %v3625 = vunpack.c.l.b16 %v3092
    %v3626 = vunpack.c.l.b16 %v3093
    %v3627 = vunpack.c.l.b16 %v3094
    %v3628 = vunpack.c.l.b16 %v3095
    %v3629 = vunpack.c.l.b16 %v3096
    %v3630 = vunpack.c.l.b16 %v3097
    %v3631 = vunpack.c.l.b16 %v3098
    %v3632 = vunpack.c.l.b16 %v3099
    %v3633 = vunpack.c.l.b16 %v3100
    %v3634 = vunpack.c.l.b16 %v3101
    %v3635 = vunpack.c.l.b16 %v3102
    %v3636 = vunpack.c.l.b16 %v3103
    %v3637 = vunpack.c.l.b16 %v3104
    %v3638 = vunpack.c.l.b16 %v3105
    %v3639 = vunpack.c.l.b16 %v3106
    %v3640 = vunpack.c.l.b16 %v3107
    %v3641 = vunpack.c.l.b16 %v3108
    %v3642 = vunpack.c.l.b16 %v3109
    %v3643 = vunpack.c.l.b16 %v3110
    %v3644 = vunpack.c.l.b16 %v3111
    %v3645 = vunpack.c.l.b16 %v3112
    %v3646 = vunpack.c.l.b16 %v3113
    %v3647 = vunpack.c.l.b16 %v3114
    %v3648 = vunpack.c.l.b16 %v3115
    %v3649 = vunpack.c.l.b16 %v3116
    %v3650 = vunpack.c.l.b16 %v3117
    %v3651 = vunpack.c.l.b16 %v3118
    %v3652 = vunpack.c.l.b16 %v3119
    %v3653 = vunpack.c.l.b16 %v3120
    %v3654 = vunpack.c.l.b16 %v3121
    %v3655 = vunpack.c.l.b16 %v3122
    %v3656 = vunpack.c.l.b16 %v3123
    %v3657 = vunpack.c.l.b16 %v3124
    %v3658 = vunpack.c.l.b16 %v3125
    %v3659 = vunpack.c.l.b16 %v3126
    %v3660 = vunpack.c.l.b16 %v3127
    %v3661 = vunpack.c.l.b16 %v3128
    %v3662 = vunpack.c.l.b16 %v3129
    %v3663 = vunpack.c.l.b16 %v3130
    %v3664 = vunpack.c.l.b16 %v3131
    %v3665 = vunpack.c.l.b16 %v3132
    %v3666 = vunpack.c.l.b16 %v3133
    %v3667 = vunpack.c.l.b16 %v3134
    %v3668 = vunpack.c.l.b16 %v3135
    %v3669 = vunpack.c.l.b16 %v3136
    %v3670 = vunpack.c.l.b16 %v3137
    %v3671 = vunpack.c.l.b16 %v3138
    %v3672 = vunpack.c.l.b16 %v3139
    %v3673 = vunpack.c.l.b16 %v3140
    %v3674 = vunpack.c.l.b16 %v3141
    %v3675 = vunpack.c.l.b16 %v3142
    %v3676 = vunpack.c.l.b16 %v3143
    %v3677 = vunpack.c.l.b16 %v3144
    %v3678 = vunpack.c.l.b16 %v3145
    %v3679 = vunpack.c.l.b16 %v3146
    %v3680 = vunpack.c.l.b16 %v3147
    %v3681 = vunpack.c.l.b16 %v3148
    %v3682 = vunpack.c.l.b16 %v3149
    %v3683 = vunpack.c.l.b16 %v3150
    %v3684 = vunpack.c.l.b16 %v3151
    %v3685 = vunpack.c.l.b16 %v3152
    %v3686 = vunpack.c.l.b16 %v3153
    %v3687 = vunpack.c.l.b16 %v3154
    %v3688 = vunpack.c.l.b16 %v3155
    %v3689 = vunpack.c.l.b16 %v3156
    %v3690 = vunpack.c.l.b16 %v3157
    %v3691 = vunpack.c.l.b16 %v3158
    %v3692 = vunpack.c.l.b16 %v3159
    %v3693 = vunpack.c.l.b16 %v3160
    %v3694 = vunpack.c.l.b16 %v3161
    %v3695 = vunpack.c.l.b16 %v3162
    %v3696 = vunpack.c.l.b16 %v3163
    %v3697 = vunpack.c.l.b16 %v3164
    %v3698 = vunpack.c.l.b16 %v3165
    %v3699 = vunpack.c.l.b16 %v3166
    %v3700 = vunpack.c.l.b16 %v3167
    %v3701 = vunpack.c.l.b16 %v3168
    %v3702 = vunpack.c.l.b16 %v3169
    %v3703 = vunpack.c.l.b16 %v3170
    %v3704 = vunpack.c.l.b16 %v3171
    %v3705 = vunpack.c.l.b16 %v3172
    %v3706 = vunpack.c.l.b16 %v3173
    %v3707 = vunpack.c.l.b16 %v3174
    %v3708 = vunpack.c.l.b16 %v3175
    %v3709 = vunpack.c.l.b16 %v3176
    %v3710 = vunpack.c.l.b16 %v3177
    %v3711 = vunpack.c.l.b16 %v3178
    %v3712 = vunpack.c.l.b16 %v3179
    %v3713 = vunpack.c.l.b16 %v3180
    %v3714 = vunpack.c.l.b16 %v3181
    %v3715 = vunpack.c.l.b16 %v3182
    %v3716 = vunpack.c.l.b16 %v3183
    %v3717 = vunpack.c.l.b16 %v3184
    %v3718 = vunpack.c.l.b16 %v3185
    %v3719 = vunpack.c.l.b16 %v3186
    %v3720 = vunpack.c.l.b16 %v3187
    %v3721 = vunpack.c.l.b16 %v3188
    %v3722 = vunpack.c.l.b16 %v3189
    %v3723 = vunpack.c.l.b16 %v3190
    %v3724 = vunpack.c.l.b16 %v3191
    %v3725 = vunpack.c.l.b16 %v3192
    %v3726 = vunpack.c.l.b16 %v3193
    %v3727 = vunpack.c.l.b16 %v3194
    %v3728 = vunpack.c.l.b16 %v3195
    %v3729 = vunpack.c.l.b16 %v3196
    %v3730 = vunpack.c.l.b16 %v3197
    %v3731 = vunpack.c.l.b16 %v3198
    %v3732 = vunpack.c.l.b16 %v3199
    %v3733 = vunpack.c.l.b16 %v3200
    %v3734 = vunpack.c.l.b16 %v3201
    %v3735 = vunpack.c.l.b16 %v3202
    %v3736 = vunpack.c.l.b16 %v3203
    %v3737 = vunpack.c.l.b16 %v3204
    %v3738 = vunpack.c.l.b16 %v3205
    %v3739 = vunpack.c.l.b16 %v3206
    %v3740 = vunpack.c.l.b16 %v3207
    %v3741 = vunpack.c.l.b16 %v3208
    %v3742 = vunpack.c.l.b16 %v3209
    %v3743 = vunpack.c.l.b16 %v3210
    %v3744 = vunpack.c.l.b16 %v3211
    %v3745 = vunpack.c.l.b16 %v3212
    %v3746 = vunpack.c.l.b16 %v3213
    %v3747 = vunpack.c.l.b16 %v3214
    %v3748 = vunpack.c.l.b16 %v3215
    %v3749 = vunpack.c.l.b16 %v3216
    %v3750 = vunpack.c.l.b16 %v3217
    %v3751 = vunpack.c.l.b16 %v3218
    %v3752 = vunpack.c.l.b16 %v3219
    %v3753 = vunpack.c.l.b16 %v3220
    %v3754 = vunpack.c.l.b16 %v3221
    %v3755 = vunpack.c.l.b16 %v3222
    %v3756 = vunpack.c.l.b16 %v3223
    %v3757 = vunpack.c.l.b16 %v3224
    %v3758 = vunpack.c.l.b16 %v3225
    %v3759 = vunpack.c.l.b16 %v3226
    %v3760 = vunpack.c.l.b16 %v3227
    %v3761 = vunpack.c.l.b16 %v3228
    %v3762 = vunpack.c.l.b16 %v3229
    %v3763 = vunpack.c.l.b16 %v3230
    %v3764 = vunpack.c.l.b16 %v3231
    %v3765 = vunpack.c.l.b16 %v3232
    %v3766 = vunpack.c.l.b16 %v3233
    %v3767 = vunpack.c.l.b16 %v3234
    %v3768 = vunpack.c.l.b16 %v3235
    %v3769 = vunpack.c.l.b16 %v3236
    %v3770 = vunpack.c.l.b16 %v3237
    %v3771 = vunpack.c.l.b16 %v3238
    %v3772 = vunpack.c.l.b16 %v3239
    %v3773 = vunpack.c.l.b16 %v3240
    %v3774 = vunpack.c.l.b16 %v3241
    %v3775 = vunpack.c.l.b16 %v3242
    %v3776 = vunpack.c.l.b16 %v3243
    %v3777 = vunpack.c.l.b16 %v3244
    %v3778 = vunpack.c.l.b16 %v3245
    %v3779 = vunpack.c.l.b16 %v3246
    %v3780 = vunpack.c.l.b16 %v3247
    %v3781 = vunpack.c.l.b16 %v3248
    %v3782 = vunpack.c.l.b16 %v3249
    %v3783 = vunpack.c.l.b16 %v3250
    %v3784 = vunpack.c.l.b16 %v3251
    %v3785 = vunpack.c.l.b16 %v3252
    %v3786 = vunpack.c.l.b16 %v3253
    %v3787 = vunpack.c.l.b16 %v3254
    %v3788 = vunpack.c.l.b16 %v3255
    %v3789 = vunpack.c.l.b16 %v3256
    %v3790 = vunpack.c.l.b16 %v3257
    %v3791 = vpack.c.b16 %v3536, %v3535
    %v3792 = vpack.c.b16 %v3538, %v3537
    %v3793 = vpack.c.b16 %v3540, %v3539
    %v3794 = vpack.c.b16 %v3542, %v3541
    %v3795 = vpack.c.b16 %v3544, %v3543
    %v3796 = vpack.c.b16 %v3546, %v3545
    %v3797 = vpack.c.b16 %v3548, %v3547
    %v3798 = vpack.c.b16 %v3550, %v3549
    %v3799 = vpack.c.b16 %v3552, %v3551
    %v3800 = vpack.c.b16 %v3554, %v3553
    %v3801 = vpack.c.b16 %v3556, %v3555
    %v3802 = vpack.c.b16 %v3558, %v3557
    %v3803 = vpack.c.b16 %v3560, %v3559
    %v3804 = vpack.c.b16 %v3562, %v3561
    %v3805 = vpack.c.b16 %v3564, %v3563
    %v3806 = vpack.c.b16 %v3566, %v3565
    %v3807 = vpack.c.b16 %v3568, %v3567
    %v3808 = vpack.c.b16 %v3570, %v3569
    %v3809 = vpack.c.b16 %v3572, %v3571
    %v3810 = vpack.c.b16 %v3574, %v3573
    %v3811 = vpack.c.b16 %v3576, %v3575
    %v3812 = vpack.c.b16 %v3578, %v3577
    %v3813 = vpack.c.b16 %v3580, %v3579
    %v3814 = vpack.c.b16 %v3582, %v3581
    %v3815 = vpack.c.b16 %v3584, %v3583
    %v3816 = vpack.c.b16 %v3586, %v3585
    %v3817 = vpack.c.b16 %v3588, %v3587
    %v3818 = vpack.c.b16 %v3590, %v3589
    %v3819 = vpack.c.b16 %v3592, %v3591
    %v3820 = vpack.c.b16 %v3594, %v3593
    %v3821 = vpack.c.b16 %v3596, %v3595
    %v3822 = vpack.c.b16 %v3598, %v3597
    %v3823 = vpack.c.b16 %v3600, %v3599
    %v3824 = vpack.c.b16 %v3602, %v3601
    %v3825 = vpack.c.b16 %v3604, %v3603
    %v3826 = vpack.c.b16 %v3606, %v3605
    %v3827 = vpack.c.b16 %v3608, %v3607
    %v3828 = vpack.c.b16 %v3610, %v3609
    %v3829 = vpack.c.b16 %v3612, %v3611
    %v3830 = vpack.c.b16 %v3614, %v3613
    %v3831 = vpack.c.b16 %v3616, %v3615
    %v3832 = vpack.c.b16 %v3618, %v3617
    %v3833 = vpack.c.b16 %v3620, %v3619
    %v3834 = vpack.c.b16 %v3622, %v3621
    %v3835 = vpack.c.b16 %v3624, %v3623
    %v3836 = vpack.c.b16 %v3626, %v3625
    %v3837 = vpack.c.b16 %v3628, %v3627
    %v3838 = vpack.c.b16 %v3630, %v3629
    %v3839 = vpack.c.b16 %v3632, %v3631
    %v3840 = vpack.c.b16 %v3634, %v3633
    %v3841 = vpack.c.b16 %v3636, %v3635
    %v3842 = vpack.c.b16 %v3638, %v3637
    %v3843 = vpack.c.b16 %v3640, %v3639
    %v3844 = vpack.c.b16 %v3642, %v3641
    %v3845 = vpack.c.b16 %v3644, %v3643
    %v3846 = vpack.c.b16 %v3646, %v3645
    %v3847 = vpack.c.b16 %v3648, %v3647
    %v3848 = vpack.c.b16 %v3650, %v3649
    %v3849 = vpack.c.b16 %v3652, %v3651
    %v3850 = vpack.c.b16 %v3654, %v3653
    %v3851 = vpack.c.b16 %v3656, %v3655
    %v3852 = vpack.c.b16 %v3658, %v3657
    %v3853 = vpack.c.b16 %v3660, %v3659
    %v3854 = vpack.c.b16 %v3662, %v3661
    %v3855 = vpack.c.b16 %v3664, %v3663
    %v3856 = vpack.c.b16 %v3666, %v3665
    %v3857 = vpack.c.b16 %v3668, %v3667
    %v3858 = vpack.c.b16 %v3670, %v3669
    %v3859 = vpack.c.b16 %v3672, %v3671
    %v3860 = vpack.c.b16 %v3674, %v3673
    %v3861 = vpack.c.b16 %v3676, %v3675
    %v3862 = vpack.c.b16 %v3678, %v3677
    %v3863 = vpack.c.b16 %v3680, %v3679
    %v3864 = vpack.c.b16 %v3682, %v3681
    %v3865 = vpack.c.b16 %v3684, %v3683
    %v3866 = vpack.c.b16 %v3686, %v3685
    %v3867 = vpack.c.b16 %v3688, %v3687
    %v3868 = vpack.c.b16 %v3690, %v3689
    %v3869 = vpack.c.b16 %v3692, %v3691
    %v3870 = vpack.c.b16 %v3694, %v3693
    %v3871 = vpack.c.b16 %v3696, %v3695
    %v3872 = vpack.c.b16 %v3698, %v3697
    %v3873 = vpack.c.b16 %v3700, %v3699
    %v3874 = vpack.c.b16 %v3702, %v3701
    %v3875 = vpack.c.b16 %v3704, %v3703
    %v3876 = vpack.c.b16 %v3706, %v3705
    %v3877 = vpack.c.b16 %v3708, %v3707
    %v3878 = vpack.c.b16 %v3710, %v3709
    %v3879 = vpack.c.b16 %v3712, %v3711
    %v3880 = vpack.c.b16 %v3714, %v3713
    %v3881 = vpack.c.b16 %v3716, %v3715
    %v3882 = vpack.c.b16 %v3718, %v3717
    %v3883 = vpack.c.b16 %v3720, %v3719
    %v3884 = vpack.c.b16 %v3722, %v3721
    %v3885 = vpack.c.b16 %v3724, %v3723
    %v3886 = vpack.c.b16 %v3726, %v3725
    %v3887 = vpack.c.b16 %v3728, %v3727
    %v3888 = vpack.c.b16 %v3730, %v3729
    %v3889 = vpack.c.b16 %v3732, %v3731
    %v3890 = vpack.c.b16 %v3734, %v3733
    %v3891 = vpack.c.b16 %v3736, %v3735
    %v3892 = vpack.c.b16 %v3738, %v3737
    %v3893 = vpack.c.b16 %v3740, %v3739
    %v3894 = vpack.c.b16 %v3742, %v3741
    %v3895 = vpack.c.b16 %v3744, %v3743
    %v3896 = vpack.c.b16 %v3746, %v3745
    %v3897 = vpack.c.b16 %v3748, %v3747
    %v3898 = vpack.c.b16 %v3750, %v3749
    %v3899 = vpack.c.b16 %v3752, %v3751
    %v3900 = vpack.c.b16 %v3754, %v3753
    %v3901 = vpack.c.b16 %v3756, %v3755
    %v3902 = vpack.c.b16 %v3758, %v3757
    %v3903 = vpack.c.b16 %v3760, %v3759
    %v3904 = vpack.c.b16 %v3762, %v3761
    %v3905 = vpack.c.b16 %v3764, %v3763
    %v3906 = vpack.c.b16 %v3766, %v3765
    %v3907 = vpack.c.b16 %v3768, %v3767
    %v3908 = vpack.c.b16 %v3770, %v3769
    %v3909 = vpack.c.b16 %v3772, %v3771
    %v3910 = vpack.c.b16 %v3774, %v3773
    %v3911 = vpack.c.b16 %v3776, %v3775
    %v3912 = vpack.c.b16 %v3778, %v3777
    %v3913 = vpack.c.b16 %v3780, %v3779
    %v3914 = vpack.c.b16 %v3782, %v3781
    %v3915 = vpack.c.b16 %v3784, %v3783
    %v3916 = vpack.c.b16 %v3786, %v3785
    %v3917 = vpack.c.b16 %v3788, %v3787
    %v3918 = vpack.c.b16 %v3790, %v3789
    %4047 = vmatpush.bf16.msra.mxu0 %v3798
    %4048 = vmatpush.bf16.msra.mxu0 %v3797
    %4049 = vmatpush.bf16.msra.mxu0 %v3796
    %4050 = vmatpush.bf16.msra.mxu0 %v3795
    %4051 = vmatpush.bf16.msra.mxu0 %v3794
    %4052 = vmatpush.bf16.msra.mxu0 %v3793
    %4053 = vmatpush.bf16.msra.mxu0 %v3792
    %4054 = vmatpush.bf16.msra.mxu0 %v3791
    %4055 = vmatmul.bf16.gmra.mxu0 %v3260
    %v4056 = vpop.f32.mrf.mxu0
    %v4057 = vadd.f32 %v3277, %v4056
    %v4058 = vpop.f32.mrf.mxu0
    %4059 = vdwg.mxu0
    %4060 = vmatpush.bf16.msra.mxu0 %v3806
    %4061 = vmatpush.bf16.msra.mxu0 %v3805
    %4062 = vmatpush.bf16.msra.mxu0 %v3804
    %4063 = vmatpush.bf16.msra.mxu0 %v3803
    %4064 = vmatpush.bf16.msra.mxu0 %v3802
    %4065 = vmatpush.bf16.msra.mxu0 %v3801
    %4066 = vmatpush.bf16.msra.mxu0 %v3800
    %4067 = vmatpush.bf16.msra.mxu0 %v3799
    %4068 = vmatmul.bf16.gmra.mxu0 %v3261
    %v4069 = vpop.f32.mrf.mxu0
    %v4070 = vadd.f32 %v4057, %v4069
    %v4071 = vpop.f32.mrf.mxu0
    %4072 = vdwg.mxu0
    %4073 = vmatpush.bf16.msra.mxu0 %v3814
    %4074 = vmatpush.bf16.msra.mxu0 %v3813
    %4075 = vmatpush.bf16.msra.mxu0 %v3812
    %4076 = vmatpush.bf16.msra.mxu0 %v3811
    %4077 = vmatpush.bf16.msra.mxu0 %v3810
    %4078 = vmatpush.bf16.msra.mxu0 %v3809
    %4079 = vmatpush.bf16.msra.mxu0 %v3808
    %4080 = vmatpush.bf16.msra.mxu0 %v3807
    %4081 = vmatmul.bf16.gmra.mxu0 %v3262
    %v4082 = vpop.f32.mrf.mxu0
    %v4083 = vadd.f32 %v4070, %v4082
    %v4084 = vpop.f32.mrf.mxu0
    %4085 = vdwg.mxu0
    %4086 = vmatpush.bf16.msra.mxu0 %v3822
    %4087 = vmatpush.bf16.msra.mxu0 %v3821
    %4088 = vmatpush.bf16.msra.mxu0 %v3820
    %4089 = vmatpush.bf16.msra.mxu0 %v3819
    %4090 = vmatpush.bf16.msra.mxu0 %v3818
    %4091 = vmatpush.bf16.msra.mxu0 %v3817
    %4092 = vmatpush.bf16.msra.mxu0 %v3816
    %4093 = vmatpush.bf16.msra.mxu0 %v3815
    %4094 = vmatmul.bf16.gmra.mxu0 %v3263
    %v4095 = vpop.f32.mrf.mxu0
    %v4096 = vadd.f32 %v4083, %v4095
    %v4097 = vpop.f32.mrf.mxu0
    %4098 = vdwg.mxu0
    %4099 = vmatpush.bf16.msra.mxu0 %v3830
    %4100 = vmatpush.bf16.msra.mxu0 %v3829
    %4101 = vmatpush.bf16.msra.mxu0 %v3828
    %4102 = vmatpush.bf16.msra.mxu0 %v3827
    %4103 = vmatpush.bf16.msra.mxu0 %v3826
    %4104 = vmatpush.bf16.msra.mxu0 %v3825
    %4105 = vmatpush.bf16.msra.mxu0 %v3824
    %4106 = vmatpush.bf16.msra.mxu0 %v3823
    %4107 = vmatmul.bf16.gmra.mxu0 %v3264
    %v4108 = vpop.f32.mrf.mxu0
    %v4109 = vadd.f32 %v4096, %v4108
    %v4110 = vpop.f32.mrf.mxu0
    %4111 = vdwg.mxu0
    %4112 = vmatpush.bf16.msra.mxu0 %v3838
    %4113 = vmatpush.bf16.msra.mxu0 %v3837
    %4114 = vmatpush.bf16.msra.mxu0 %v3836
    %4115 = vmatpush.bf16.msra.mxu0 %v3835
    %4116 = vmatpush.bf16.msra.mxu0 %v3834
    %4117 = vmatpush.bf16.msra.mxu0 %v3833
    %4118 = vmatpush.bf16.msra.mxu0 %v3832
    %4119 = vmatpush.bf16.msra.mxu0 %v3831
    %4120 = vmatmul.bf16.gmra.mxu0 %v3265
    %v4121 = vpop.f32.mrf.mxu0
    %v4122 = vadd.f32 %v4109, %v4121
    %v4123 = vpop.f32.mrf.mxu0
    %4124 = vdwg.mxu0
    %4125 = vmatpush.bf16.msra.mxu0 %v3846
    %4126 = vmatpush.bf16.msra.mxu0 %v3845
    %4127 = vmatpush.bf16.msra.mxu0 %v3844
    %4128 = vmatpush.bf16.msra.mxu0 %v3843
    %4129 = vmatpush.bf16.msra.mxu0 %v3842
    %4130 = vmatpush.bf16.msra.mxu0 %v3841
    %4131 = vmatpush.bf16.msra.mxu0 %v3840
    %4132 = vmatpush.bf16.msra.mxu0 %v3839
    %4133 = vmatmul.bf16.gmra.mxu0 %v3266
    %v4134 = vpop.f32.mrf.mxu0
    %v4135 = vadd.f32 %v4122, %v4134
    %v4136 = vpop.f32.mrf.mxu0
    %4137 = vdwg.mxu0
    %4138 = vmatpush.bf16.msra.mxu0 %v3854
    %4139 = vmatpush.bf16.msra.mxu0 %v3853
    %4140 = vmatpush.bf16.msra.mxu0 %v3852
    %4141 = vmatpush.bf16.msra.mxu0 %v3851
    %4142 = vmatpush.bf16.msra.mxu0 %v3850
    %4143 = vmatpush.bf16.msra.mxu0 %v3849
    %4144 = vmatpush.bf16.msra.mxu0 %v3848
    %4145 = vmatpush.bf16.msra.mxu0 %v3847
    %4146 = vmatmul.bf16.gmra.mxu0 %v3267
    %v4147 = vpop.f32.mrf.mxu0
    %v4148 = vadd.f32 %v4135, %v4147
    %v4149 = vpop.f32.mrf.mxu0
    %4150 = vdwg.mxu0
    %4151 = vmatpush.bf16.msra.mxu0 %v3862
    %4152 = vmatpush.bf16.msra.mxu0 %v3861
    %4153 = vmatpush.bf16.msra.mxu0 %v3860
    %4154 = vmatpush.bf16.msra.mxu0 %v3859
    %4155 = vmatpush.bf16.msra.mxu0 %v3858
    %4156 = vmatpush.bf16.msra.mxu0 %v3857
    %4157 = vmatpush.bf16.msra.mxu0 %v3856
    %4158 = vmatpush.bf16.msra.mxu0 %v3855
    %4159 = vmatmul.bf16.gmra.mxu0 %v3268
    %v4160 = vpop.f32.mrf.mxu0
    %v4161 = vadd.f32 %v4148, %v4160
    %v4162 = vpop.f32.mrf.mxu0
    %4163 = vdwg.mxu0
    %4164 = vmatpush.bf16.msra.mxu0 %v3870
    %4165 = vmatpush.bf16.msra.mxu0 %v3869
    %4166 = vmatpush.bf16.msra.mxu0 %v3868
    %4167 = vmatpush.bf16.msra.mxu0 %v3867
    %4168 = vmatpush.bf16.msra.mxu0 %v3866
    %4169 = vmatpush.bf16.msra.mxu0 %v3865
    %4170 = vmatpush.bf16.msra.mxu0 %v3864
    %4171 = vmatpush.bf16.msra.mxu0 %v3863
    %4172 = vmatmul.bf16.gmra.mxu0 %v3269
    %v4173 = vpop.f32.mrf.mxu0
    %v4174 = vadd.f32 %v4161, %v4173
    %v4175 = vpop.f32.mrf.mxu0
    %4176 = vdwg.mxu0
    %4177 = vmatpush.bf16.msra.mxu0 %v3878
    %4178 = vmatpush.bf16.msra.mxu0 %v3877
    %4179 = vmatpush.bf16.msra.mxu0 %v3876
    %4180 = vmatpush.bf16.msra.mxu0 %v3875
    %4181 = vmatpush.bf16.msra.mxu0 %v3874
    %4182 = vmatpush.bf16.msra.mxu0 %v3873
    %4183 = vmatpush.bf16.msra.mxu0 %v3872
    %4184 = vmatpush.bf16.msra.mxu0 %v3871
    %4185 = vmatmul.bf16.gmra.mxu0 %v3270
    %v4186 = vpop.f32.mrf.mxu0
    %v4187 = vadd.f32 %v4174, %v4186
    %v4188 = vpop.f32.mrf.mxu0
    %4189 = vdwg.mxu0
    %4190 = vmatpush.bf16.msra.mxu0 %v3886
    %4191 = vmatpush.bf16.msra.mxu0 %v3885
    %4192 = vmatpush.bf16.msra.mxu0 %v3884
    %4193 = vmatpush.bf16.msra.mxu0 %v3883
    %4194 = vmatpush.bf16.msra.mxu0 %v3882
    %4195 = vmatpush.bf16.msra.mxu0 %v3881
    %4196 = vmatpush.bf16.msra.mxu0 %v3880
    %4197 = vmatpush.bf16.msra.mxu0 %v3879
    %4198 = vmatmul.bf16.gmra.mxu0 %v3271
    %v4199 = vpop.f32.mrf.mxu0
    %v4200 = vadd.f32 %v4187, %v4199
    %v4201 = vpop.f32.mrf.mxu0
    %4202 = vdwg.mxu0
    %4203 = vmatpush.bf16.msra.mxu0 %v3894
    %4204 = vmatpush.bf16.msra.mxu0 %v3893
    %4205 = vmatpush.bf16.msra.mxu0 %v3892
    %4206 = vmatpush.bf16.msra.mxu0 %v3891
    %4207 = vmatpush.bf16.msra.mxu0 %v3890
    %4208 = vmatpush.bf16.msra.mxu0 %v3889
    %4209 = vmatpush.bf16.msra.mxu0 %v3888
    %4210 = vmatpush.bf16.msra.mxu0 %v3887
    %4211 = vmatmul.bf16.gmra.mxu0 %v3272
    %v4212 = vpop.f32.mrf.mxu0
    %v4213 = vadd.f32 %v4200, %v4212
    %v4214 = vpop.f32.mrf.mxu0
    %4215 = vdwg.mxu0
    %4216 = vmatpush.bf16.msra.mxu0 %v3902
    %4217 = vmatpush.bf16.msra.mxu0 %v3901
    %4218 = vmatpush.bf16.msra.mxu0 %v3900
    %4219 = vmatpush.bf16.msra.mxu0 %v3899
    %4220 = vmatpush.bf16.msra.mxu0 %v3898
    %4221 = vmatpush.bf16.msra.mxu0 %v3897
    %4222 = vmatpush.bf16.msra.mxu0 %v3896
    %4223 = vmatpush.bf16.msra.mxu0 %v3895
    %4224 = vmatmul.bf16.gmra.mxu0 %v3273
    %v4225 = vpop.f32.mrf.mxu0
    %v4226 = vadd.f32 %v4213, %v4225
    %v4227 = vpop.f32.mrf.mxu0
    %4228 = vdwg.mxu0
    %4229 = vmatpush.bf16.msra.mxu0 %v3910
    %4230 = vmatpush.bf16.msra.mxu0 %v3909
    %4231 = vmatpush.bf16.msra.mxu0 %v3908
    %4232 = vmatpush.bf16.msra.mxu0 %v3907
    %4233 = vmatpush.bf16.msra.mxu0 %v3906
    %4234 = vmatpush.bf16.msra.mxu0 %v3905
    %4235 = vmatpush.bf16.msra.mxu0 %v3904
    %4236 = vmatpush.bf16.msra.mxu0 %v3903
    %4237 = vmatmul.bf16.gmra.mxu0 %v3274
    %v4238 = vpop.f32.mrf.mxu0
    %v4239 = vadd.f32 %v4226, %v4238
    %v4240 = vpop.f32.mrf.mxu0
    %4241 = vdwg.mxu0
    %4242 = vmatpush.bf16.msra.mxu0 %v3918
    %4243 = vmatpush.bf16.msra.mxu0 %v3917
    %4244 = vmatpush.bf16.msra.mxu0 %v3916
    %4245 = vmatpush.bf16.msra.mxu0 %v3915
    %4246 = vmatpush.bf16.msra.mxu0 %v3914
    %4247 = vmatpush.bf16.msra.mxu0 %v3913
    %4248 = vmatpush.bf16.msra.mxu0 %v3912
    %4249 = vmatpush.bf16.msra.mxu0 %v3911
    %4250 = vmatmul.bf16.gmra.mxu0 %v3275
    %v4251 = vpop.f32.mrf.mxu0
    %v4252 = vadd.f32 %v4239, %v4251
    %v4253 = vpop.f32.mrf.mxu0
    %4254 = vdwg.mxu0
    %v4255 = vadd.f32 %v2542, %v4252
    %s4256 = scalar_lea.vmem %s20, 1
    %v4257 = vld [vmem:[%s4256] sm:$0x1]
    %s4258 = scalar_lea.vmem %s21, 1
    %v4259 = vld [vmem:[%s4258] sm:$0x1]
    %v4260 = vsel %vm475, %v4255, 0.0
    %4261 = vadd.xlane.f32.xlu0 %v4260
    %v4262 = vpop.xlane.xlu0 %4261
    %v4263 = vmul.f32 %v4262, %v485
    %v4264 = vsub.f32 %v4255, %v4263
    %v4265 = vmul.f32 %v4264, %v4264
    %v4266 = vsel %vm475, %v4265, 0.0
    %4267 = vadd.xlane.f32.xlu0 %v4266
    %v4268 = vpop.xlane.xlu0 %4267
    %v4269 = vmul.f32 %v4268, %v485
    %v4270 = vadd.f32 %v4269, 1e-05
    %v4271 = vrsqrt.pop %v4270
    %v4272 = vmul.f32 %v4271, %v4270
    %v4273 = vmul.f32 %v4272, %v4271
    %v4274 = vmul.f32 0.5, %v4273
    %v4275 = vsub.f32 1.5, %v4274
    %v4276 = vmul.f32 %v4271, %v4275
    %vm4277 = vweird.f32 %v4270
    %vm4278 = vweird.f32 %v4271
    %vm4279 = vmor %vm4277, %vm4278
    %v4280 = vsel %vm4279, %v4271, %v4276
    %v4281 = vmul.f32 %v4264, %v4280
    %v4283 = vperm.slane %v4257, 0
    %v4285 = vmul.f32 %v4281, %v4283
    %v4287 = vperm.slane %v4259, 0
    %v4289 = vadd.f32 %v4285, %v4287
    %s4290 = scalar_lea.vmem %s10, 32
    %v4291 = vld [vmem:[%s4290] sm:$0xf]
    %v4292 = vld [vmem:[%s4290 + $0x4] sm:$0xf]
    %v4293 = vld [vmem:[%s4290 + $0x8] sm:$0xf]
    %v4294 = vld [vmem:[%s4290 + $0xc] sm:$0xf]
    %s4295 = scalar_lea.vmem %s11, 2
    %v4296 = vld [vmem:[%s4295] sm:$0x1]
    %v4297 = vpack.c.bf16 %v4289, %v4289
    %v4299 = vperm.slane %v4296, 0
    %v4305 = vunpack.c.l.b16 %v4291
    %v4306 = vunpack.c.l.b16 %v4292
    %v4307 = vunpack.c.l.b16 %v4293
    %v4308 = vunpack.c.l.b16 %v4294
    %v4309 = vpack.c.b16 %v4306, %v4305
    %v4310 = vpack.c.b16 %v4308, %v4307
    %v4314 = vsel %vm242, %v4297, 0
    %4316 = vmatpush.bf16.msra.mxu0 0
    %4317 = vmatpush.bf16.msra.mxu0 0
    %4318 = vmatpush.bf16.msra.mxu0 0
    %4319 = vmatpush.bf16.msra.mxu0 0
    %4320 = vmatpush.bf16.msra.mxu0 0
    %4321 = vmatpush.bf16.msra.mxu0 0
    %4322 = vmatpush.bf16.msra.mxu0 %v4310
    %4323 = vmatpush.bf16.msra.mxu0 %v4309
    %4324 = vmatmul.bf16.gmra.mxu0 %v4314
    %v4325 = vpop.f32.mrf.mxu0
    %v4326 = vadd.f32 %v4299, %v4325
    %v4327 = vpop.f32.mrf.mxu0
    %4328 = vdwg.mxu0
    %4330 = vrot.lane.b32.xlu0 %v4326, 96
    %v4331 = vpop.permute.xlu0 %4330
    %4333 = vxpose.xlu0.b32.start [1/16] %v4331, 128
    %4334 = vxpose.xlu0.b32.cont [2/16] 0.0, 128
    %4335 = vxpose.xlu0.b32.cont [3/16] 0.0, 128
    %4336 = vxpose.xlu0.b32.cont [4/16] 0.0, 128
    %4337 = vxpose.xlu0.b32.cont [5/16] 0.0, 128
    %4338 = vxpose.xlu0.b32.cont [6/16] 0.0, 128
    %4339 = vxpose.xlu0.b32.cont [7/16] 0.0, 128
    %4340 = vxpose.xlu0.b32.cont [8/16] 0.0, 128
    %4341 = vxpose.xlu0.b32.cont [9/16] 0.0, 128
    %4342 = vxpose.xlu0.b32.cont [10/16] 0.0, 128
    %4343 = vxpose.xlu0.b32.cont [11/16] 0.0, 128
    %4344 = vxpose.xlu0.b32.cont [12/16] 0.0, 128
    %4345 = vxpose.xlu0.b32.cont [13/16] 0.0, 128
    %4346 = vxpose.xlu0.b32.cont [14/16] 0.0, 128
    %4347 = vxpose.xlu0.b32.cont [15/16] 0.0, 128
    %4348 = vxpose.xlu0.b32.end [16/16] 0.0, 128
    %v4349 = vpop.trf.xlu0
    %v4350 = vpop.trf.xlu0
    %v4351 = vpop.trf.xlu0
    %v4352 = vpop.trf.xlu0
    %v4353 = vpop.trf.xlu0
    %v4354 = vpop.trf.xlu0
    %v4355 = vpop.trf.xlu0
    %v4356 = vpop.trf.xlu0
    %v4357 = vpop.trf.xlu0
    %v4358 = vpop.trf.xlu0
    %v4359 = vpop.trf.xlu0
    %v4360 = vpop.trf.xlu0
    %v4361 = vpop.trf.xlu0
    %v4362 = vpop.trf.xlu0
    %v4363 = vpop.trf.xlu0
    %v4364 = vpop.trf.xlu0
    %v4365 = vmul.f32 %v4326, %v205
    %v4366 = vmul.f32 %v4326, %v210
    %v4367 = vmul.f32 %v4326, %v215
    %v4368 = vmul.f32 %v4326, %v220
    %v4370 = vrot.slane %v4366, 2
    %v4373 = vrot.slane %v4367, 4
    %v4376 = vrot.slane %v4368, 6
    %v4378 = vsel %vm96, %v4365, %v4370
    %v4379 = vsel %vm174, %v4370, %v4373
    %v4380 = vsel %vm172, %v4373, %v4376
    %v4381 = vpack.c.bf16 %v4379, %v4378
    %v4382 = vpack.c.bf16 %v4380, %v4380
    %v4383 = vpack.c.bf16 %v4350, %v4349
    %v4384 = vpack.c.bf16 %v4352, %v4351
    %v4386 = vsel %vm242, %v4381, 0
    %v4389 = vsel %vm242, %v4382, 0
    %4391 = vmatpush.bf16.msra.mxu0 0
    %4392 = vmatpush.bf16.msra.mxu0 0
    %4393 = vmatpush.bf16.msra.mxu0 0
    %4394 = vmatpush.bf16.msra.mxu0 0
    %4395 = vmatpush.bf16.msra.mxu0 0
    %4396 = vmatpush.bf16.msra.mxu0 0
    %4397 = vmatpush.bf16.msra.mxu0 %v4384
    %4398 = vmatpush.bf16.msra.mxu0 %v4383
    %4399 = vmatmul.bf16.gmra.mxu0 %v4386
    %v4400 = vpop.f32.mrf.mxu0
    %v4401 = vadd.f32 0.0, %v4400
    %v4402 = vpop.f32.mrf.mxu0
    %v4403 = vadd.f32 0.0, %v4402
    %4404 = vmatmul.bf16.gmra.mxu0 %v4389
    %v4405 = vpop.f32.mrf.mxu0
    %v4406 = vadd.f32 0.0, %v4405
    %v4407 = vpop.f32.mrf.mxu0
    %4408 = vdwg.mxu0
    %v4409 = vmul.f32 %v4401, 0.35355338
    %v4410 = vmul.f32 %v4403, 0.35355338
    %v4411 = vmul.f32 %v4406, 0.35355338
    %v4412 = vadd.f32 %v4409, %v198
    %v4413 = vadd.f32 %v4410, %v199
    %v4414 = vadd.f32 %v4411, %v200
    %v4415 = vsel %vm123, %v4412, -inf
    %4416 = vmax.xlane.f32.xlu0 %v4415
    %v4417 = vpop.xlane.xlu0 %4416
    %v4418 = vsel %vm123, %v4413, -inf
    %4419 = vmax.xlane.f32.xlu0 %v4418
    %v4420 = vpop.xlane.xlu0 %4419
    %v4421 = vsel %vm123, %v4414, -inf
    %4422 = vmax.xlane.f32.xlu0 %v4421
    %v4423 = vpop.xlane.xlu0 %4422
    %v4424 = vsub.f32 %v4412, %v4417
    %v4425 = vsub.f32 %v4413, %v4420
    %v4426 = vsub.f32 %v4414, %v4423
    %v4427 = vmul.f32 %v4424, 1.442695
    %v4428 = vpow.pop %v4427
    %v4429 = vmul.f32 %v4425, 1.442695
    %v4430 = vpow.pop %v4429
    %v4431 = vmul.f32 %v4426, 1.442695
    %v4432 = vpow.pop %v4431
    %v4433 = vsel %vm123, %v4428, 0.0
    %4434 = vadd.xlane.f32.xlu0 %v4433
    %v4435 = vpop.xlane.xlu0 %4434
    %v4436 = vsel %vm123, %v4430, 0.0
    %4437 = vadd.xlane.f32.xlu0 %v4436
    %v4438 = vpop.xlane.xlu0 %4437
    %v4439 = vsel %vm123, %v4432, 0.0
    %4440 = vadd.xlane.f32.xlu0 %v4439
    %v4441 = vpop.xlane.xlu0 %4440
    %v4442 = vrcp.pop %v4435
    %v4443 = vrcp.pop %v4438
    %v4444 = vrcp.pop %v4441
    %v4445 = vmul.f32 %v4428, %v4442
    %v4446 = vmul.f32 %v4430, %v4443
    %v4447 = vmul.f32 %v4432, %v4444
    %v4448 = vpack.c.bf16 %v4446, %v4445
    %v4449 = vpack.c.bf16 %v4447, %v4447
    %v4450 = vpack.c.bf16 %v4326, %v4326
    %4452 = vrot.lane.b32.xlu0 %v4450, 64
    %v4453 = vpop.permute.xlu0 %4452
    %v4455 = vsel %vm123, %v4448, 0
    %v4458 = vsel %vm123, %v4449, 0
    %v4461 = vsel %vm127, %v4453, 0
    %4463 = vmatpush.bf16.msra.mxu0 0
    %4464 = vmatpush.bf16.msra.mxu0 0
    %4465 = vmatpush.bf16.msra.mxu0 0
    %4466 = vmatpush.bf16.msra.mxu0 0
    %4467 = vmatpush.bf16.msra.mxu0 0
    %4468 = vmatpush.bf16.msra.mxu0 0
    %4469 = vmatpush.bf16.msra.mxu0 0
    %4470 = vmatpush.bf16.msra.mxu0 %v4461
    %4471 = vmatmul.bf16.gmra.mxu0 %v4455
    %v4472 = vpop.f32.mrf.mxu0
    %v4473 = vadd.f32 0.0, %v4472
    %v4474 = vpop.f32.mrf.mxu0
    %v4475 = vadd.f32 0.0, %v4474
    %4476 = vmatmul.bf16.gmra.mxu0 %v4458
    %v4477 = vpop.f32.mrf.mxu0
    %v4478 = vadd.f32 0.0, %v4477
    %v4479 = vpop.f32.mrf.mxu0
    %4480 = vdwg.mxu0
    %v4481 = vmul.f32 %v4473, %v205
    %v4482 = vmul.f32 %v4473, %v210
    %v4483 = vmul.f32 %v4475, %v210
    %v4484 = vmul.f32 %v4475, %v215
    %v4485 = vmul.f32 %v4478, %v215
    %v4486 = vmul.f32 %v4478, %v220
    %v4489 = vrot.slane %v4482, 6
    %v4490 = vrot.slane %v4483, 6
    %v4491 = vsel %vm172, %v4489, %v4490
    %v4493 = vadd.f32 %v4481, %v4491
    %v4496 = vrot.slane %v4484, 4
    %v4497 = vrot.slane %v4485, 4
    %v4498 = vsel %vm174, %v4496, %v4497
    %v4500 = vadd.f32 %v4493, %v4498
    %v4502 = vrot.slane %v4486, 2
    %v4504 = vadd.f32 %v4500, %v4502
    %s4505 = scalar_lea.vmem %s12, 32
    %v4506 = vld [vmem:[%s4505] sm:$0xf]
    %v4507 = vld [vmem:[%s4505 + $0x4] sm:$0xf]
    %v4508 = vld [vmem:[%s4505 + $0x8] sm:$0xf]
    %v4509 = vld [vmem:[%s4505 + $0xc] sm:$0xf]
    %s4510 = scalar_lea.vmem %s13, 2
    %v4511 = vld [vmem:[%s4510] sm:$0x1]
    %v4512 = vpack.c.bf16 %v4504, %v4504
    %v4514 = vperm.slane %v4511, 0
    %v4520 = vunpack.c.l.b16 %v4506
    %v4521 = vunpack.c.l.b16 %v4507
    %v4522 = vunpack.c.l.b16 %v4508
    %v4523 = vunpack.c.l.b16 %v4509
    %v4524 = vpack.c.b16 %v4521, %v4520
    %v4525 = vpack.c.b16 %v4523, %v4522
    %v4529 = vsel %vm242, %v4512, 0
    %4531 = vmatpush.bf16.msra.mxu0 0
    %4532 = vmatpush.bf16.msra.mxu0 0
    %4533 = vmatpush.bf16.msra.mxu0 0
    %4534 = vmatpush.bf16.msra.mxu0 0
    %4535 = vmatpush.bf16.msra.mxu0 0
    %4536 = vmatpush.bf16.msra.mxu0 0
    %4537 = vmatpush.bf16.msra.mxu0 %v4525
    %4538 = vmatpush.bf16.msra.mxu0 %v4524
    %4539 = vmatmul.bf16.gmra.mxu0 %v4529
    %v4540 = vpop.f32.mrf.mxu0
    %v4541 = vadd.f32 %v4514, %v4540
    %v4542 = vpop.f32.mrf.mxu0
    %4543 = vdwg.mxu0
    %v4544 = vadd.f32 %v4289, %v4541
    %s4545 = scalar_lea.vmem %s14, 2
    %v4546 = vld [vmem:[%s4545] sm:$0x1]
    %s4547 = scalar_lea.vmem %s15, 2
    %v4548 = vld [vmem:[%s4547] sm:$0x1]
    %v4549 = vsel %vm475, %v4544, 0.0
    %4550 = vadd.xlane.f32.xlu0 %v4549
    %v4551 = vpop.xlane.xlu0 %4550
    %v4552 = vmul.f32 %v4551, %v485
    %v4553 = vsub.f32 %v4544, %v4552
    %v4554 = vmul.f32 %v4553, %v4553
    %v4555 = vsel %vm475, %v4554, 0.0
    %4556 = vadd.xlane.f32.xlu0 %v4555
    %v4557 = vpop.xlane.xlu0 %4556
    %v4558 = vmul.f32 %v4557, %v485
    %v4559 = vadd.f32 %v4558, 1e-05
    %v4560 = vrsqrt.pop %v4559
    %v4561 = vmul.f32 %v4560, %v4559
    %v4562 = vmul.f32 %v4561, %v4560
    %v4563 = vmul.f32 0.5, %v4562
    %v4564 = vsub.f32 1.5, %v4563
    %v4565 = vmul.f32 %v4560, %v4564
    %vm4566 = vweird.f32 %v4559
    %vm4567 = vweird.f32 %v4560
    %vm4568 = vmor %vm4566, %vm4567
    %v4569 = vsel %vm4568, %v4560, %v4565
    %v4570 = vmul.f32 %v4553, %v4569
    %v4572 = vperm.slane %v4546, 0
    %v4574 = vmul.f32 %v4570, %v4572
    %v4576 = vperm.slane %v4548, 0
    %v4578 = vadd.f32 %v4574, %v4576
    %s4579 = scalar_lea.vmem %s16, 512
    %v4580 = vld [vmem:[%s4579] sm:$0xff]
    %v4581 = vld [vmem:[%s4579 + $0x8] sm:$0xff]
    %v4582 = vld [vmem:[%s4579 + $0x10] sm:$0xff]
    %v4583 = vld [vmem:[%s4579 + $0x18] sm:$0xff]
    %v4584 = vld [vmem:[%s4579 + $0x20] sm:$0xff]
    %v4585 = vld [vmem:[%s4579 + $0x28] sm:$0xff]
    %v4586 = vld [vmem:[%s4579 + $0x30] sm:$0xff]
    %v4587 = vld [vmem:[%s4579 + $0x38] sm:$0xff]
    %v4588 = vld [vmem:[%s4579 + $0x40] sm:$0xff]
    %v4589 = vld [vmem:[%s4579 + $0x48] sm:$0xff]
    %v4590 = vld [vmem:[%s4579 + $0x50] sm:$0xff]
    %v4591 = vld [vmem:[%s4579 + $0x58] sm:$0xff]
    %v4592 = vld [vmem:[%s4579 + $0x60] sm:$0xff]
    %v4593 = vld [vmem:[%s4579 + $0x68] sm:$0xff]
    %v4594 = vld [vmem:[%s4579 + $0x70] sm:$0xff]
    %v4595 = vld [vmem:[%s4579 + $0x78] sm:$0xff]
    %v4596 = vld [vmem:[%s4579 + $0x80] sm:$0xff]
    %v4597 = vld [vmem:[%s4579 + $0x88] sm:$0xff]
    %v4598 = vld [vmem:[%s4579 + $0x90] sm:$0xff]
    %v4599 = vld [vmem:[%s4579 + $0x98] sm:$0xff]
    %v4600 = vld [vmem:[%s4579 + $0xa0] sm:$0xff]
    %v4601 = vld [vmem:[%s4579 + $0xa8] sm:$0xff]
    %v4602 = vld [vmem:[%s4579 + $0xb0] sm:$0xff]
    %v4603 = vld [vmem:[%s4579 + $0xb8] sm:$0xff]
    %v4604 = vld [vmem:[%s4579 + $0xc0] sm:$0xff]
    %v4605 = vld [vmem:[%s4579 + $0xc8] sm:$0xff]
    %v4606 = vld [vmem:[%s4579 + $0xd0] sm:$0xff]
    %v4607 = vld [vmem:[%s4579 + $0xd8] sm:$0xff]
    %v4608 = vld [vmem:[%s4579 + $0xe0] sm:$0xff]
    %v4609 = vld [vmem:[%s4579 + $0xe8] sm:$0xff]
    %v4610 = vld [vmem:[%s4579 + $0xf0] sm:$0xff]
    %v4611 = vld [vmem:[%s4579 + $0xf8] sm:$0xff]
    %s4612 = scalar_lea.vmem %s17, 32
    %v4613 = vld [vmem:[%s4612] sm:$0xff]
    %v4614 = vld [vmem:[%s4612 + $0x8] sm:$0xff]
    %v4615 = vpack.c.bf16 %v4578, %v4578
    %v4618 = vperm.slane %v4613, 0
    %v4619 = vperm.slane %v4613, 1
    %v4620 = vperm.slane %v4613, 2
    %v4621 = vperm.slane %v4613, 3
    %v4622 = vperm.slane %v4613, 4
    %v4623 = vperm.slane %v4613, 5
    %v4624 = vperm.slane %v4613, 6
    %v4625 = vperm.slane %v4613, 7
    %v4626 = vperm.slane %v4614, 0
    %v4627 = vperm.slane %v4614, 1
    %v4628 = vperm.slane %v4614, 2
    %v4629 = vperm.slane %v4614, 3
    %v4630 = vperm.slane %v4614, 4
    %v4631 = vperm.slane %v4614, 5
    %v4632 = vperm.slane %v4614, 6
    %v4633 = vperm.slane %v4614, 7
    %v4682 = vunpack.c.l.b16 %v4580
    %v4683 = vunpack.c.h.b16 %v4580
    %v4684 = vunpack.c.l.b16 %v4581
    %v4685 = vunpack.c.h.b16 %v4581
    %v4686 = vunpack.c.l.b16 %v4582
    %v4687 = vunpack.c.h.b16 %v4582
    %v4688 = vunpack.c.l.b16 %v4583
    %v4689 = vunpack.c.h.b16 %v4583
    %v4690 = vunpack.c.l.b16 %v4584
    %v4691 = vunpack.c.h.b16 %v4584
    %v4692 = vunpack.c.l.b16 %v4585
    %v4693 = vunpack.c.h.b16 %v4585
    %v4694 = vunpack.c.l.b16 %v4586
    %v4695 = vunpack.c.h.b16 %v4586
    %v4696 = vunpack.c.l.b16 %v4587
    %v4697 = vunpack.c.h.b16 %v4587
    %v4698 = vunpack.c.l.b16 %v4588
    %v4699 = vunpack.c.h.b16 %v4588
    %v4700 = vunpack.c.l.b16 %v4589
    %v4701 = vunpack.c.h.b16 %v4589
    %v4702 = vunpack.c.l.b16 %v4590
    %v4703 = vunpack.c.h.b16 %v4590
    %v4704 = vunpack.c.l.b16 %v4591
    %v4705 = vunpack.c.h.b16 %v4591
    %v4706 = vunpack.c.l.b16 %v4592
    %v4707 = vunpack.c.h.b16 %v4592
    %v4708 = vunpack.c.l.b16 %v4593
    %v4709 = vunpack.c.h.b16 %v4593
    %v4710 = vunpack.c.l.b16 %v4594
    %v4711 = vunpack.c.h.b16 %v4594
    %v4712 = vunpack.c.l.b16 %v4595
    %v4713 = vunpack.c.h.b16 %v4595
    %v4714 = vunpack.c.l.b16 %v4596
    %v4715 = vunpack.c.h.b16 %v4596
    %v4716 = vunpack.c.l.b16 %v4597
    %v4717 = vunpack.c.h.b16 %v4597
    %v4718 = vunpack.c.l.b16 %v4598
    %v4719 = vunpack.c.h.b16 %v4598
    %v4720 = vunpack.c.l.b16 %v4599
    %v4721 = vunpack.c.h.b16 %v4599
    %v4722 = vunpack.c.l.b16 %v4600
    %v4723 = vunpack.c.h.b16 %v4600
    %v4724 = vunpack.c.l.b16 %v4601
    %v4725 = vunpack.c.h.b16 %v4601
    %v4726 = vunpack.c.l.b16 %v4602
    %v4727 = vunpack.c.h.b16 %v4602
    %v4728 = vunpack.c.l.b16 %v4603
    %v4729 = vunpack.c.h.b16 %v4603
    %v4730 = vunpack.c.l.b16 %v4604
    %v4731 = vunpack.c.h.b16 %v4604
    %v4732 = vunpack.c.l.b16 %v4605
    %v4733 = vunpack.c.h.b16 %v4605
    %v4734 = vunpack.c.l.b16 %v4606
    %v4735 = vunpack.c.h.b16 %v4606
    %v4736 = vunpack.c.l.b16 %v4607
    %v4737 = vunpack.c.h.b16 %v4607
    %v4738 = vunpack.c.l.b16 %v4608
    %v4739 = vunpack.c.h.b16 %v4608
    %v4740 = vunpack.c.l.b16 %v4609
    %v4741 = vunpack.c.h.b16 %v4609
    %v4742 = vunpack.c.l.b16 %v4610
    %v4743 = vunpack.c.h.b16 %v4610
    %v4744 = vunpack.c.l.b16 %v4611
    %v4745 = vunpack.c.h.b16 %v4611
    %v4746 = vpack.c.b16 %v4698, %v4682
    %v4747 = vpack.c.b16 %v4699, %v4683
    %v4748 = vpack.c.b16 %v4700, %v4684
    %v4749 = vpack.c.b16 %v4701, %v4685
    %v4750 = vpack.c.b16 %v4702, %v4686
    %v4751 = vpack.c.b16 %v4703, %v4687
    %v4752 = vpack.c.b16 %v4704, %v4688
    %v4753 = vpack.c.b16 %v4705, %v4689
    %v4754 = vpack.c.b16 %v4706, %v4690
    %v4755 = vpack.c.b16 %v4707, %v4691
    %v4756 = vpack.c.b16 %v4708, %v4692
    %v4757 = vpack.c.b16 %v4709, %v4693
    %v4758 = vpack.c.b16 %v4710, %v4694
    %v4759 = vpack.c.b16 %v4711, %v4695
    %v4760 = vpack.c.b16 %v4712, %v4696
    %v4761 = vpack.c.b16 %v4713, %v4697
    %v4762 = vpack.c.b16 %v4730, %v4714
    %v4763 = vpack.c.b16 %v4731, %v4715
    %v4764 = vpack.c.b16 %v4732, %v4716
    %v4765 = vpack.c.b16 %v4733, %v4717
    %v4766 = vpack.c.b16 %v4734, %v4718
    %v4767 = vpack.c.b16 %v4735, %v4719
    %v4768 = vpack.c.b16 %v4736, %v4720
    %v4769 = vpack.c.b16 %v4737, %v4721
    %v4770 = vpack.c.b16 %v4738, %v4722
    %v4771 = vpack.c.b16 %v4739, %v4723
    %v4772 = vpack.c.b16 %v4740, %v4724
    %v4773 = vpack.c.b16 %v4741, %v4725
    %v4774 = vpack.c.b16 %v4742, %v4726
    %v4775 = vpack.c.b16 %v4743, %v4727
    %v4776 = vpack.c.b16 %v4744, %v4728
    %v4777 = vpack.c.b16 %v4745, %v4729
    %v4811 = vsel %vm242, %v4615, 0
    %4813 = vmatpush.bf16.msra.mxu0 0
    %4814 = vmatpush.bf16.msra.mxu0 0
    %4815 = vmatpush.bf16.msra.mxu0 0
    %4816 = vmatpush.bf16.msra.mxu0 0
    %4817 = vmatpush.bf16.msra.mxu0 0
    %4818 = vmatpush.bf16.msra.mxu0 0
    %4819 = vmatpush.bf16.msra.mxu0 %v4762
    %4820 = vmatpush.bf16.msra.mxu0 %v4746
    %4821 = vmatmul.bf16.gmra.mxu0 %v4811
    %v4822 = vpop.f32.mrf.mxu0
    %v4823 = vadd.f32 %v4618, %v4822
    %v4824 = vpop.f32.mrf.mxu0
    %4825 = vdwg.mxu0
    %4826 = vmatpush.bf16.msra.mxu0 0
    %4827 = vmatpush.bf16.msra.mxu0 0
    %4828 = vmatpush.bf16.msra.mxu0 0
    %4829 = vmatpush.bf16.msra.mxu0 0
    %4830 = vmatpush.bf16.msra.mxu0 0
    %4831 = vmatpush.bf16.msra.mxu0 0
    %4832 = vmatpush.bf16.msra.mxu0 %v4763
    %4833 = vmatpush.bf16.msra.mxu0 %v4747
    %4834 = vmatmul.bf16.gmra.mxu0 %v4811
    %v4835 = vpop.f32.mrf.mxu0
    %v4836 = vadd.f32 %v4619, %v4835
    %v4837 = vpop.f32.mrf.mxu0
    %4838 = vdwg.mxu0
    %4839 = vmatpush.bf16.msra.mxu0 0
    %4840 = vmatpush.bf16.msra.mxu0 0
    %4841 = vmatpush.bf16.msra.mxu0 0
    %4842 = vmatpush.bf16.msra.mxu0 0
    %4843 = vmatpush.bf16.msra.mxu0 0
    %4844 = vmatpush.bf16.msra.mxu0 0
    %4845 = vmatpush.bf16.msra.mxu0 %v4764
    %4846 = vmatpush.bf16.msra.mxu0 %v4748
    %4847 = vmatmul.bf16.gmra.mxu0 %v4811
    %v4848 = vpop.f32.mrf.mxu0
    %v4849 = vadd.f32 %v4620, %v4848
    %v4850 = vpop.f32.mrf.mxu0
    %4851 = vdwg.mxu0
    %4852 = vmatpush.bf16.msra.mxu0 0
    %4853 = vmatpush.bf16.msra.mxu0 0
    %4854 = vmatpush.bf16.msra.mxu0 0
    %4855 = vmatpush.bf16.msra.mxu0 0
    %4856 = vmatpush.bf16.msra.mxu0 0
    %4857 = vmatpush.bf16.msra.mxu0 0
    %4858 = vmatpush.bf16.msra.mxu0 %v4765
    %4859 = vmatpush.bf16.msra.mxu0 %v4749
    %4860 = vmatmul.bf16.gmra.mxu0 %v4811
    %v4861 = vpop.f32.mrf.mxu0
    %v4862 = vadd.f32 %v4621, %v4861
    %v4863 = vpop.f32.mrf.mxu0
    %4864 = vdwg.mxu0
    %4865 = vmatpush.bf16.msra.mxu0 0
    %4866 = vmatpush.bf16.msra.mxu0 0
    %4867 = vmatpush.bf16.msra.mxu0 0
    %4868 = vmatpush.bf16.msra.mxu0 0
    %4869 = vmatpush.bf16.msra.mxu0 0
    %4870 = vmatpush.bf16.msra.mxu0 0
    %4871 = vmatpush.bf16.msra.mxu0 %v4766
    %4872 = vmatpush.bf16.msra.mxu0 %v4750
    %4873 = vmatmul.bf16.gmra.mxu0 %v4811
    %v4874 = vpop.f32.mrf.mxu0
    %v4875 = vadd.f32 %v4622, %v4874
    %v4876 = vpop.f32.mrf.mxu0
    %4877 = vdwg.mxu0
    %4878 = vmatpush.bf16.msra.mxu0 0
    %4879 = vmatpush.bf16.msra.mxu0 0
    %4880 = vmatpush.bf16.msra.mxu0 0
    %4881 = vmatpush.bf16.msra.mxu0 0
    %4882 = vmatpush.bf16.msra.mxu0 0
    %4883 = vmatpush.bf16.msra.mxu0 0
    %4884 = vmatpush.bf16.msra.mxu0 %v4767
    %4885 = vmatpush.bf16.msra.mxu0 %v4751
    %4886 = vmatmul.bf16.gmra.mxu0 %v4811
    %v4887 = vpop.f32.mrf.mxu0
    %v4888 = vadd.f32 %v4623, %v4887
    %v4889 = vpop.f32.mrf.mxu0
    %4890 = vdwg.mxu0
    %4891 = vmatpush.bf16.msra.mxu0 0
    %4892 = vmatpush.bf16.msra.mxu0 0
    %4893 = vmatpush.bf16.msra.mxu0 0
    %4894 = vmatpush.bf16.msra.mxu0 0
    %4895 = vmatpush.bf16.msra.mxu0 0
    %4896 = vmatpush.bf16.msra.mxu0 0
    %4897 = vmatpush.bf16.msra.mxu0 %v4768
    %4898 = vmatpush.bf16.msra.mxu0 %v4752
    %4899 = vmatmul.bf16.gmra.mxu0 %v4811
    %v4900 = vpop.f32.mrf.mxu0
    %v4901 = vadd.f32 %v4624, %v4900
    %v4902 = vpop.f32.mrf.mxu0
    %4903 = vdwg.mxu0
    %4904 = vmatpush.bf16.msra.mxu0 0
    %4905 = vmatpush.bf16.msra.mxu0 0
    %4906 = vmatpush.bf16.msra.mxu0 0
    %4907 = vmatpush.bf16.msra.mxu0 0
    %4908 = vmatpush.bf16.msra.mxu0 0
    %4909 = vmatpush.bf16.msra.mxu0 0
    %4910 = vmatpush.bf16.msra.mxu0 %v4769
    %4911 = vmatpush.bf16.msra.mxu0 %v4753
    %4912 = vmatmul.bf16.gmra.mxu0 %v4811
    %v4913 = vpop.f32.mrf.mxu0
    %v4914 = vadd.f32 %v4625, %v4913
    %v4915 = vpop.f32.mrf.mxu0
    %4916 = vdwg.mxu0
    %4917 = vmatpush.bf16.msra.mxu0 0
    %4918 = vmatpush.bf16.msra.mxu0 0
    %4919 = vmatpush.bf16.msra.mxu0 0
    %4920 = vmatpush.bf16.msra.mxu0 0
    %4921 = vmatpush.bf16.msra.mxu0 0
    %4922 = vmatpush.bf16.msra.mxu0 0
    %4923 = vmatpush.bf16.msra.mxu0 %v4770
    %4924 = vmatpush.bf16.msra.mxu0 %v4754
    %4925 = vmatmul.bf16.gmra.mxu0 %v4811
    %v4926 = vpop.f32.mrf.mxu0
    %v4927 = vadd.f32 %v4626, %v4926
    %v4928 = vpop.f32.mrf.mxu0
    %4929 = vdwg.mxu0
    %4930 = vmatpush.bf16.msra.mxu0 0
    %4931 = vmatpush.bf16.msra.mxu0 0
    %4932 = vmatpush.bf16.msra.mxu0 0
    %4933 = vmatpush.bf16.msra.mxu0 0
    %4934 = vmatpush.bf16.msra.mxu0 0
    %4935 = vmatpush.bf16.msra.mxu0 0
    %4936 = vmatpush.bf16.msra.mxu0 %v4771
    %4937 = vmatpush.bf16.msra.mxu0 %v4755
    %4938 = vmatmul.bf16.gmra.mxu0 %v4811
    %v4939 = vpop.f32.mrf.mxu0
    %v4940 = vadd.f32 %v4627, %v4939
    %v4941 = vpop.f32.mrf.mxu0
    %4942 = vdwg.mxu0
    %4943 = vmatpush.bf16.msra.mxu0 0
    %4944 = vmatpush.bf16.msra.mxu0 0
    %4945 = vmatpush.bf16.msra.mxu0 0
    %4946 = vmatpush.bf16.msra.mxu0 0
    %4947 = vmatpush.bf16.msra.mxu0 0
    %4948 = vmatpush.bf16.msra.mxu0 0
    %4949 = vmatpush.bf16.msra.mxu0 %v4772
    %4950 = vmatpush.bf16.msra.mxu0 %v4756
    %4951 = vmatmul.bf16.gmra.mxu0 %v4811
    %v4952 = vpop.f32.mrf.mxu0
    %v4953 = vadd.f32 %v4628, %v4952
    %v4954 = vpop.f32.mrf.mxu0
    %4955 = vdwg.mxu0
    %4956 = vmatpush.bf16.msra.mxu0 0
    %4957 = vmatpush.bf16.msra.mxu0 0
    %4958 = vmatpush.bf16.msra.mxu0 0
    %4959 = vmatpush.bf16.msra.mxu0 0
    %4960 = vmatpush.bf16.msra.mxu0 0
    %4961 = vmatpush.bf16.msra.mxu0 0
    %4962 = vmatpush.bf16.msra.mxu0 %v4773
    %4963 = vmatpush.bf16.msra.mxu0 %v4757
    %4964 = vmatmul.bf16.gmra.mxu0 %v4811
    %v4965 = vpop.f32.mrf.mxu0
    %v4966 = vadd.f32 %v4629, %v4965
    %v4967 = vpop.f32.mrf.mxu0
    %4968 = vdwg.mxu0
    %4969 = vmatpush.bf16.msra.mxu0 0
    %4970 = vmatpush.bf16.msra.mxu0 0
    %4971 = vmatpush.bf16.msra.mxu0 0
    %4972 = vmatpush.bf16.msra.mxu0 0
    %4973 = vmatpush.bf16.msra.mxu0 0
    %4974 = vmatpush.bf16.msra.mxu0 0
    %4975 = vmatpush.bf16.msra.mxu0 %v4774
    %4976 = vmatpush.bf16.msra.mxu0 %v4758
    %4977 = vmatmul.bf16.gmra.mxu0 %v4811
    %v4978 = vpop.f32.mrf.mxu0
    %v4979 = vadd.f32 %v4630, %v4978
    %v4980 = vpop.f32.mrf.mxu0
    %4981 = vdwg.mxu0
    %4982 = vmatpush.bf16.msra.mxu0 0
    %4983 = vmatpush.bf16.msra.mxu0 0
    %4984 = vmatpush.bf16.msra.mxu0 0
    %4985 = vmatpush.bf16.msra.mxu0 0
    %4986 = vmatpush.bf16.msra.mxu0 0
    %4987 = vmatpush.bf16.msra.mxu0 0
    %4988 = vmatpush.bf16.msra.mxu0 %v4775
    %4989 = vmatpush.bf16.msra.mxu0 %v4759
    %4990 = vmatmul.bf16.gmra.mxu0 %v4811
    %v4991 = vpop.f32.mrf.mxu0
    %v4992 = vadd.f32 %v4631, %v4991
    %v4993 = vpop.f32.mrf.mxu0
    %4994 = vdwg.mxu0
    %4995 = vmatpush.bf16.msra.mxu0 0
    %4996 = vmatpush.bf16.msra.mxu0 0
    %4997 = vmatpush.bf16.msra.mxu0 0
    %4998 = vmatpush.bf16.msra.mxu0 0
    %4999 = vmatpush.bf16.msra.mxu0 0
    %5000 = vmatpush.bf16.msra.mxu0 0
    %5001 = vmatpush.bf16.msra.mxu0 %v4776
    %5002 = vmatpush.bf16.msra.mxu0 %v4760
    %5003 = vmatmul.bf16.gmra.mxu0 %v4811
    %v5004 = vpop.f32.mrf.mxu0
    %v5005 = vadd.f32 %v4632, %v5004
    %v5006 = vpop.f32.mrf.mxu0
    %5007 = vdwg.mxu0
    %5008 = vmatpush.bf16.msra.mxu0 0
    %5009 = vmatpush.bf16.msra.mxu0 0
    %5010 = vmatpush.bf16.msra.mxu0 0
    %5011 = vmatpush.bf16.msra.mxu0 0
    %5012 = vmatpush.bf16.msra.mxu0 0
    %5013 = vmatpush.bf16.msra.mxu0 0
    %5014 = vmatpush.bf16.msra.mxu0 %v4777
    %5015 = vmatpush.bf16.msra.mxu0 %v4761
    %5016 = vmatmul.bf16.gmra.mxu0 %v4811
    %v5017 = vpop.f32.mrf.mxu0
    %v5018 = vadd.f32 %v4633, %v5017
    %v5019 = vpop.f32.mrf.mxu0
    %5020 = vdwg.mxu0
    %v5021 = vmax.f32 %v4823, 0.0
    %v5022 = vmax.f32 %v4836, 0.0
    %v5023 = vmax.f32 %v4849, 0.0
    %v5024 = vmax.f32 %v4862, 0.0
    %v5025 = vmax.f32 %v4875, 0.0
    %v5026 = vmax.f32 %v4888, 0.0
    %v5027 = vmax.f32 %v4901, 0.0
    %v5028 = vmax.f32 %v4914, 0.0
    %v5029 = vmax.f32 %v4927, 0.0
    %v5030 = vmax.f32 %v4940, 0.0
    %v5031 = vmax.f32 %v4953, 0.0
    %v5032 = vmax.f32 %v4966, 0.0
    %v5033 = vmax.f32 %v4979, 0.0
    %v5034 = vmax.f32 %v4992, 0.0
    %v5035 = vmax.f32 %v5005, 0.0
    %v5036 = vmax.f32 %v5018, 0.0
    %s5037 = scalar_lea.vmem %s18, 2048
    %v5038 = vld [vmem:[%s5037] sm:$0xf]
    %v5039 = vld [vmem:[%s5037 + $0x4] sm:$0xf]
    %v5040 = vld [vmem:[%s5037 + $0x8] sm:$0xf]
    %v5041 = vld [vmem:[%s5037 + $0xc] sm:$0xf]
    %v5042 = vld [vmem:[%s5037 + $0x10] sm:$0xf]
    %v5043 = vld [vmem:[%s5037 + $0x14] sm:$0xf]
    %v5044 = vld [vmem:[%s5037 + $0x18] sm:$0xf]
    %v5045 = vld [vmem:[%s5037 + $0x1c] sm:$0xf]
    %v5046 = vld [vmem:[%s5037 + $0x20] sm:$0xf]
    %v5047 = vld [vmem:[%s5037 + $0x24] sm:$0xf]
    %v5048 = vld [vmem:[%s5037 + $0x28] sm:$0xf]
    %v5049 = vld [vmem:[%s5037 + $0x2c] sm:$0xf]
    %v5050 = vld [vmem:[%s5037 + $0x30] sm:$0xf]
    %v5051 = vld [vmem:[%s5037 + $0x34] sm:$0xf]
    %v5052 = vld [vmem:[%s5037 + $0x38] sm:$0xf]
    %v5053 = vld [vmem:[%s5037 + $0x3c] sm:$0xf]
    %v5054 = vld [vmem:[%s5037 + $0x40] sm:$0xf]
    %v5055 = vld [vmem:[%s5037 + $0x44] sm:$0xf]
    %v5056 = vld [vmem:[%s5037 + $0x48] sm:$0xf]
    %v5057 = vld [vmem:[%s5037 + $0x4c] sm:$0xf]
    %v5058 = vld [vmem:[%s5037 + $0x50] sm:$0xf]
    %v5059 = vld [vmem:[%s5037 + $0x54] sm:$0xf]
    %v5060 = vld [vmem:[%s5037 + $0x58] sm:$0xf]
    %v5061 = vld [vmem:[%s5037 + $0x5c] sm:$0xf]
    %v5062 = vld [vmem:[%s5037 + $0x60] sm:$0xf]
    %v5063 = vld [vmem:[%s5037 + $0x64] sm:$0xf]
    %v5064 = vld [vmem:[%s5037 + $0x68] sm:$0xf]
    %v5065 = vld [vmem:[%s5037 + $0x6c] sm:$0xf]
    %v5066 = vld [vmem:[%s5037 + $0x70] sm:$0xf]
    %v5067 = vld [vmem:[%s5037 + $0x74] sm:$0xf]
    %v5068 = vld [vmem:[%s5037 + $0x78] sm:$0xf]
    %v5069 = vld [vmem:[%s5037 + $0x7c] sm:$0xf]
    %v5070 = vld [vmem:[%s5037 + $0x80] sm:$0xf]
    %v5071 = vld [vmem:[%s5037 + $0x84] sm:$0xf]
    %v5072 = vld [vmem:[%s5037 + $0x88] sm:$0xf]
    %v5073 = vld [vmem:[%s5037 + $0x8c] sm:$0xf]
    %v5074 = vld [vmem:[%s5037 + $0x90] sm:$0xf]
    %v5075 = vld [vmem:[%s5037 + $0x94] sm:$0xf]
    %v5076 = vld [vmem:[%s5037 + $0x98] sm:$0xf]
    %v5077 = vld [vmem:[%s5037 + $0x9c] sm:$0xf]
    %v5078 = vld [vmem:[%s5037 + $0xa0] sm:$0xf]
    %v5079 = vld [vmem:[%s5037 + $0xa4] sm:$0xf]
    %v5080 = vld [vmem:[%s5037 + $0xa8] sm:$0xf]
    %v5081 = vld [vmem:[%s5037 + $0xac] sm:$0xf]
    %v5082 = vld [vmem:[%s5037 + $0xb0] sm:$0xf]
    %v5083 = vld [vmem:[%s5037 + $0xb4] sm:$0xf]
    %v5084 = vld [vmem:[%s5037 + $0xb8] sm:$0xf]
    %v5085 = vld [vmem:[%s5037 + $0xbc] sm:$0xf]
    %v5086 = vld [vmem:[%s5037 + $0xc0] sm:$0xf]
    %v5087 = vld [vmem:[%s5037 + $0xc4] sm:$0xf]
    %v5088 = vld [vmem:[%s5037 + $0xc8] sm:$0xf]
    %v5089 = vld [vmem:[%s5037 + $0xcc] sm:$0xf]
    %v5090 = vld [vmem:[%s5037 + $0xd0] sm:$0xf]
    %v5091 = vld [vmem:[%s5037 + $0xd4] sm:$0xf]
    %v5092 = vld [vmem:[%s5037 + $0xd8] sm:$0xf]
    %v5093 = vld [vmem:[%s5037 + $0xdc] sm:$0xf]
    %v5094 = vld [vmem:[%s5037 + $0xe0] sm:$0xf]
    %v5095 = vld [vmem:[%s5037 + $0xe4] sm:$0xf]
    %v5096 = vld [vmem:[%s5037 + $0xe8] sm:$0xf]
    %v5097 = vld [vmem:[%s5037 + $0xec] sm:$0xf]
    %v5098 = vld [vmem:[%s5037 + $0xf0] sm:$0xf]
    %v5099 = vld [vmem:[%s5037 + $0xf4] sm:$0xf]
    %v5100 = vld [vmem:[%s5037 + $0xf8] sm:$0xf]
    %v5101 = vld [vmem:[%s5037 + $0xfc] sm:$0xf]
    %v5102 = vld [vmem:[%s5037 + $0x100] sm:$0xf]
    %v5103 = vld [vmem:[%s5037 + $0x104] sm:$0xf]
    %v5104 = vld [vmem:[%s5037 + $0x108] sm:$0xf]
    %v5105 = vld [vmem:[%s5037 + $0x10c] sm:$0xf]
    %v5106 = vld [vmem:[%s5037 + $0x110] sm:$0xf]
    %v5107 = vld [vmem:[%s5037 + $0x114] sm:$0xf]
    %v5108 = vld [vmem:[%s5037 + $0x118] sm:$0xf]
    %v5109 = vld [vmem:[%s5037 + $0x11c] sm:$0xf]
    %v5110 = vld [vmem:[%s5037 + $0x120] sm:$0xf]
    %v5111 = vld [vmem:[%s5037 + $0x124] sm:$0xf]
    %v5112 = vld [vmem:[%s5037 + $0x128] sm:$0xf]
    %v5113 = vld [vmem:[%s5037 + $0x12c] sm:$0xf]
    %v5114 = vld [vmem:[%s5037 + $0x130] sm:$0xf]
    %v5115 = vld [vmem:[%s5037 + $0x134] sm:$0xf]
    %v5116 = vld [vmem:[%s5037 + $0x138] sm:$0xf]
    %v5117 = vld [vmem:[%s5037 + $0x13c] sm:$0xf]
    %v5118 = vld [vmem:[%s5037 + $0x140] sm:$0xf]
    %v5119 = vld [vmem:[%s5037 + $0x144] sm:$0xf]
    %v5120 = vld [vmem:[%s5037 + $0x148] sm:$0xf]
    %v5121 = vld [vmem:[%s5037 + $0x14c] sm:$0xf]
    %v5122 = vld [vmem:[%s5037 + $0x150] sm:$0xf]
    %v5123 = vld [vmem:[%s5037 + $0x154] sm:$0xf]
    %v5124 = vld [vmem:[%s5037 + $0x158] sm:$0xf]
    %v5125 = vld [vmem:[%s5037 + $0x15c] sm:$0xf]
    %v5126 = vld [vmem:[%s5037 + $0x160] sm:$0xf]
    %v5127 = vld [vmem:[%s5037 + $0x164] sm:$0xf]
    %v5128 = vld [vmem:[%s5037 + $0x168] sm:$0xf]
    %v5129 = vld [vmem:[%s5037 + $0x16c] sm:$0xf]
    %v5130 = vld [vmem:[%s5037 + $0x170] sm:$0xf]
    %v5131 = vld [vmem:[%s5037 + $0x174] sm:$0xf]
    %v5132 = vld [vmem:[%s5037 + $0x178] sm:$0xf]
    %v5133 = vld [vmem:[%s5037 + $0x17c] sm:$0xf]
    %v5134 = vld [vmem:[%s5037 + $0x180] sm:$0xf]
    %v5135 = vld [vmem:[%s5037 + $0x184] sm:$0xf]
    %v5136 = vld [vmem:[%s5037 + $0x188] sm:$0xf]
    %v5137 = vld [vmem:[%s5037 + $0x18c] sm:$0xf]
    %v5138 = vld [vmem:[%s5037 + $0x190] sm:$0xf]
    %v5139 = vld [vmem:[%s5037 + $0x194] sm:$0xf]
    %v5140 = vld [vmem:[%s5037 + $0x198] sm:$0xf]
    %v5141 = vld [vmem:[%s5037 + $0x19c] sm:$0xf]
    %v5142 = vld [vmem:[%s5037 + $0x1a0] sm:$0xf]
    %v5143 = vld [vmem:[%s5037 + $0x1a4] sm:$0xf]
    %v5144 = vld [vmem:[%s5037 + $0x1a8] sm:$0xf]
    %v5145 = vld [vmem:[%s5037 + $0x1ac] sm:$0xf]
    %v5146 = vld [vmem:[%s5037 + $0x1b0] sm:$0xf]
    %v5147 = vld [vmem:[%s5037 + $0x1b4] sm:$0xf]
    %v5148 = vld [vmem:[%s5037 + $0x1b8] sm:$0xf]
    %v5149 = vld [vmem:[%s5037 + $0x1bc] sm:$0xf]
    %v5150 = vld [vmem:[%s5037 + $0x1c0] sm:$0xf]
    %v5151 = vld [vmem:[%s5037 + $0x1c4] sm:$0xf]
    %v5152 = vld [vmem:[%s5037 + $0x1c8] sm:$0xf]
    %v5153 = vld [vmem:[%s5037 + $0x1cc] sm:$0xf]
    %v5154 = vld [vmem:[%s5037 + $0x1d0] sm:$0xf]
    %v5155 = vld [vmem:[%s5037 + $0x1d4] sm:$0xf]
    %v5156 = vld [vmem:[%s5037 + $0x1d8] sm:$0xf]
    %v5157 = vld [vmem:[%s5037 + $0x1dc] sm:$0xf]
    %v5158 = vld [vmem:[%s5037 + $0x1e0] sm:$0xf]
    %v5159 = vld [vmem:[%s5037 + $0x1e4] sm:$0xf]
    %v5160 = vld [vmem:[%s5037 + $0x1e8] sm:$0xf]
    %v5161 = vld [vmem:[%s5037 + $0x1ec] sm:$0xf]
    %v5162 = vld [vmem:[%s5037 + $0x1f0] sm:$0xf]
    %v5163 = vld [vmem:[%s5037 + $0x1f4] sm:$0xf]
    %v5164 = vld [vmem:[%s5037 + $0x1f8] sm:$0xf]
    %v5165 = vld [vmem:[%s5037 + $0x1fc] sm:$0xf]
    %v5166 = vld [vmem:[%s5037 + $0x200] sm:$0xf]
    %v5167 = vld [vmem:[%s5037 + $0x204] sm:$0xf]
    %v5168 = vld [vmem:[%s5037 + $0x208] sm:$0xf]
    %v5169 = vld [vmem:[%s5037 + $0x20c] sm:$0xf]
    %v5170 = vld [vmem:[%s5037 + $0x210] sm:$0xf]
    %v5171 = vld [vmem:[%s5037 + $0x214] sm:$0xf]
    %v5172 = vld [vmem:[%s5037 + $0x218] sm:$0xf]
    %v5173 = vld [vmem:[%s5037 + $0x21c] sm:$0xf]
    %v5174 = vld [vmem:[%s5037 + $0x220] sm:$0xf]
    %v5175 = vld [vmem:[%s5037 + $0x224] sm:$0xf]
    %v5176 = vld [vmem:[%s5037 + $0x228] sm:$0xf]
    %v5177 = vld [vmem:[%s5037 + $0x22c] sm:$0xf]
    %v5178 = vld [vmem:[%s5037 + $0x230] sm:$0xf]
    %v5179 = vld [vmem:[%s5037 + $0x234] sm:$0xf]
    %v5180 = vld [vmem:[%s5037 + $0x238] sm:$0xf]
    %v5181 = vld [vmem:[%s5037 + $0x23c] sm:$0xf]
    %v5182 = vld [vmem:[%s5037 + $0x240] sm:$0xf]
    %v5183 = vld [vmem:[%s5037 + $0x244] sm:$0xf]
    %v5184 = vld [vmem:[%s5037 + $0x248] sm:$0xf]
    %v5185 = vld [vmem:[%s5037 + $0x24c] sm:$0xf]
    %v5186 = vld [vmem:[%s5037 + $0x250] sm:$0xf]
    %v5187 = vld [vmem:[%s5037 + $0x254] sm:$0xf]
    %v5188 = vld [vmem:[%s5037 + $0x258] sm:$0xf]
    %v5189 = vld [vmem:[%s5037 + $0x25c] sm:$0xf]
    %v5190 = vld [vmem:[%s5037 + $0x260] sm:$0xf]
    %v5191 = vld [vmem:[%s5037 + $0x264] sm:$0xf]
    %v5192 = vld [vmem:[%s5037 + $0x268] sm:$0xf]
    %v5193 = vld [vmem:[%s5037 + $0x26c] sm:$0xf]
    %v5194 = vld [vmem:[%s5037 + $0x270] sm:$0xf]
    %v5195 = vld [vmem:[%s5037 + $0x274] sm:$0xf]
    %v5196 = vld [vmem:[%s5037 + $0x278] sm:$0xf]
    %v5197 = vld [vmem:[%s5037 + $0x27c] sm:$0xf]
    %v5198 = vld [vmem:[%s5037 + $0x280] sm:$0xf]
    %v5199 = vld [vmem:[%s5037 + $0x284] sm:$0xf]
    %v5200 = vld [vmem:[%s5037 + $0x288] sm:$0xf]
    %v5201 = vld [vmem:[%s5037 + $0x28c] sm:$0xf]
    %v5202 = vld [vmem:[%s5037 + $0x290] sm:$0xf]
    %v5203 = vld [vmem:[%s5037 + $0x294] sm:$0xf]
    %v5204 = vld [vmem:[%s5037 + $0x298] sm:$0xf]
    %v5205 = vld [vmem:[%s5037 + $0x29c] sm:$0xf]
    %v5206 = vld [vmem:[%s5037 + $0x2a0] sm:$0xf]
    %v5207 = vld [vmem:[%s5037 + $0x2a4] sm:$0xf]
    %v5208 = vld [vmem:[%s5037 + $0x2a8] sm:$0xf]
    %v5209 = vld [vmem:[%s5037 + $0x2ac] sm:$0xf]
    %v5210 = vld [vmem:[%s5037 + $0x2b0] sm:$0xf]
    %v5211 = vld [vmem:[%s5037 + $0x2b4] sm:$0xf]
    %v5212 = vld [vmem:[%s5037 + $0x2b8] sm:$0xf]
    %v5213 = vld [vmem:[%s5037 + $0x2bc] sm:$0xf]
    %v5214 = vld [vmem:[%s5037 + $0x2c0] sm:$0xf]
    %v5215 = vld [vmem:[%s5037 + $0x2c4] sm:$0xf]
    %v5216 = vld [vmem:[%s5037 + $0x2c8] sm:$0xf]
    %v5217 = vld [vmem:[%s5037 + $0x2cc] sm:$0xf]
    %v5218 = vld [vmem:[%s5037 + $0x2d0] sm:$0xf]
    %v5219 = vld [vmem:[%s5037 + $0x2d4] sm:$0xf]
    %v5220 = vld [vmem:[%s5037 + $0x2d8] sm:$0xf]
    %v5221 = vld [vmem:[%s5037 + $0x2dc] sm:$0xf]
    %v5222 = vld [vmem:[%s5037 + $0x2e0] sm:$0xf]
    %v5223 = vld [vmem:[%s5037 + $0x2e4] sm:$0xf]
    %v5224 = vld [vmem:[%s5037 + $0x2e8] sm:$0xf]
    %v5225 = vld [vmem:[%s5037 + $0x2ec] sm:$0xf]
    %v5226 = vld [vmem:[%s5037 + $0x2f0] sm:$0xf]
    %v5227 = vld [vmem:[%s5037 + $0x2f4] sm:$0xf]
    %v5228 = vld [vmem:[%s5037 + $0x2f8] sm:$0xf]
    %v5229 = vld [vmem:[%s5037 + $0x2fc] sm:$0xf]
    %v5230 = vld [vmem:[%s5037 + $0x300] sm:$0xf]
    %v5231 = vld [vmem:[%s5037 + $0x304] sm:$0xf]
    %v5232 = vld [vmem:[%s5037 + $0x308] sm:$0xf]
    %v5233 = vld [vmem:[%s5037 + $0x30c] sm:$0xf]
    %v5234 = vld [vmem:[%s5037 + $0x310] sm:$0xf]
    %v5235 = vld [vmem:[%s5037 + $0x314] sm:$0xf]
    %v5236 = vld [vmem:[%s5037 + $0x318] sm:$0xf]
    %v5237 = vld [vmem:[%s5037 + $0x31c] sm:$0xf]
    %v5238 = vld [vmem:[%s5037 + $0x320] sm:$0xf]
    %v5239 = vld [vmem:[%s5037 + $0x324] sm:$0xf]
    %v5240 = vld [vmem:[%s5037 + $0x328] sm:$0xf]
    %v5241 = vld [vmem:[%s5037 + $0x32c] sm:$0xf]
    %v5242 = vld [vmem:[%s5037 + $0x330] sm:$0xf]
    %v5243 = vld [vmem:[%s5037 + $0x334] sm:$0xf]
    %v5244 = vld [vmem:[%s5037 + $0x338] sm:$0xf]
    %v5245 = vld [vmem:[%s5037 + $0x33c] sm:$0xf]
    %v5246 = vld [vmem:[%s5037 + $0x340] sm:$0xf]
    %v5247 = vld [vmem:[%s5037 + $0x344] sm:$0xf]
    %v5248 = vld [vmem:[%s5037 + $0x348] sm:$0xf]
    %v5249 = vld [vmem:[%s5037 + $0x34c] sm:$0xf]
    %v5250 = vld [vmem:[%s5037 + $0x350] sm:$0xf]
    %v5251 = vld [vmem:[%s5037 + $0x354] sm:$0xf]
    %v5252 = vld [vmem:[%s5037 + $0x358] sm:$0xf]
    %v5253 = vld [vmem:[%s5037 + $0x35c] sm:$0xf]
    %v5254 = vld [vmem:[%s5037 + $0x360] sm:$0xf]
    %v5255 = vld [vmem:[%s5037 + $0x364] sm:$0xf]
    %v5256 = vld [vmem:[%s5037 + $0x368] sm:$0xf]
    %v5257 = vld [vmem:[%s5037 + $0x36c] sm:$0xf]
    %v5258 = vld [vmem:[%s5037 + $0x370] sm:$0xf]
    %v5259 = vld [vmem:[%s5037 + $0x374] sm:$0xf]
    %v5260 = vld [vmem:[%s5037 + $0x378] sm:$0xf]
    %v5261 = vld [vmem:[%s5037 + $0x37c] sm:$0xf]
    %v5262 = vld [vmem:[%s5037 + $0x380] sm:$0xf]
    %v5263 = vld [vmem:[%s5037 + $0x384] sm:$0xf]
    %v5264 = vld [vmem:[%s5037 + $0x388] sm:$0xf]
    %v5265 = vld [vmem:[%s5037 + $0x38c] sm:$0xf]
    %v5266 = vld [vmem:[%s5037 + $0x390] sm:$0xf]
    %v5267 = vld [vmem:[%s5037 + $0x394] sm:$0xf]
    %v5268 = vld [vmem:[%s5037 + $0x398] sm:$0xf]
    %v5269 = vld [vmem:[%s5037 + $0x39c] sm:$0xf]
    %v5270 = vld [vmem:[%s5037 + $0x3a0] sm:$0xf]
    %v5271 = vld [vmem:[%s5037 + $0x3a4] sm:$0xf]
    %v5272 = vld [vmem:[%s5037 + $0x3a8] sm:$0xf]
    %v5273 = vld [vmem:[%s5037 + $0x3ac] sm:$0xf]
    %v5274 = vld [vmem:[%s5037 + $0x3b0] sm:$0xf]
    %v5275 = vld [vmem:[%s5037 + $0x3b4] sm:$0xf]
    %v5276 = vld [vmem:[%s5037 + $0x3b8] sm:$0xf]
    %v5277 = vld [vmem:[%s5037 + $0x3bc] sm:$0xf]
    %v5278 = vld [vmem:[%s5037 + $0x3c0] sm:$0xf]
    %v5279 = vld [vmem:[%s5037 + $0x3c4] sm:$0xf]
    %v5280 = vld [vmem:[%s5037 + $0x3c8] sm:$0xf]
    %v5281 = vld [vmem:[%s5037 + $0x3cc] sm:$0xf]
    %v5282 = vld [vmem:[%s5037 + $0x3d0] sm:$0xf]
    %v5283 = vld [vmem:[%s5037 + $0x3d4] sm:$0xf]
    %v5284 = vld [vmem:[%s5037 + $0x3d8] sm:$0xf]
    %v5285 = vld [vmem:[%s5037 + $0x3dc] sm:$0xf]
    %v5286 = vld [vmem:[%s5037 + $0x3e0] sm:$0xf]
    %v5287 = vld [vmem:[%s5037 + $0x3e4] sm:$0xf]
    %v5288 = vld [vmem:[%s5037 + $0x3e8] sm:$0xf]
    %v5289 = vld [vmem:[%s5037 + $0x3ec] sm:$0xf]
    %v5290 = vld [vmem:[%s5037 + $0x3f0] sm:$0xf]
    %v5291 = vld [vmem:[%s5037 + $0x3f4] sm:$0xf]
    %v5292 = vld [vmem:[%s5037 + $0x3f8] sm:$0xf]
    %v5293 = vld [vmem:[%s5037 + $0x3fc] sm:$0xf]
    %s5294 = scalar_lea.vmem %s19, 2
    %v5295 = vld [vmem:[%s5294] sm:$0x1]
    %v5296 = vpack.c.bf16 %v5021, %v5021
    %v5297 = vpack.c.bf16 %v5022, %v5022
    %v5298 = vpack.c.bf16 %v5023, %v5023
    %v5299 = vpack.c.bf16 %v5024, %v5024
    %v5300 = vpack.c.bf16 %v5025, %v5025
    %v5301 = vpack.c.bf16 %v5026, %v5026
    %v5302 = vpack.c.bf16 %v5027, %v5027
    %v5303 = vpack.c.bf16 %v5028, %v5028
    %v5304 = vpack.c.bf16 %v5029, %v5029
    %v5305 = vpack.c.bf16 %v5030, %v5030
    %v5306 = vpack.c.bf16 %v5031, %v5031
    %v5307 = vpack.c.bf16 %v5032, %v5032
    %v5308 = vpack.c.bf16 %v5033, %v5033
    %v5309 = vpack.c.bf16 %v5034, %v5034
    %v5310 = vpack.c.bf16 %v5035, %v5035
    %v5311 = vpack.c.bf16 %v5036, %v5036
    %v5313 = vperm.slane %v5295, 0
    %v5571 = vunpack.c.l.b16 %v5038
    %v5572 = vunpack.c.l.b16 %v5039
    %v5573 = vunpack.c.l.b16 %v5040
    %v5574 = vunpack.c.l.b16 %v5041
    %v5575 = vunpack.c.l.b16 %v5042
    %v5576 = vunpack.c.l.b16 %v5043
    %v5577 = vunpack.c.l.b16 %v5044
    %v5578 = vunpack.c.l.b16 %v5045
    %v5579 = vunpack.c.l.b16 %v5046
    %v5580 = vunpack.c.l.b16 %v5047
    %v5581 = vunpack.c.l.b16 %v5048
    %v5582 = vunpack.c.l.b16 %v5049
    %v5583 = vunpack.c.l.b16 %v5050
    %v5584 = vunpack.c.l.b16 %v5051
    %v5585 = vunpack.c.l.b16 %v5052
    %v5586 = vunpack.c.l.b16 %v5053
    %v5587 = vunpack.c.l.b16 %v5054
    %v5588 = vunpack.c.l.b16 %v5055
    %v5589 = vunpack.c.l.b16 %v5056
    %v5590 = vunpack.c.l.b16 %v5057
    %v5591 = vunpack.c.l.b16 %v5058
    %v5592 = vunpack.c.l.b16 %v5059
    %v5593 = vunpack.c.l.b16 %v5060
    %v5594 = vunpack.c.l.b16 %v5061
    %v5595 = vunpack.c.l.b16 %v5062
    %v5596 = vunpack.c.l.b16 %v5063
    %v5597 = vunpack.c.l.b16 %v5064
    %v5598 = vunpack.c.l.b16 %v5065
    %v5599 = vunpack.c.l.b16 %v5066
    %v5600 = vunpack.c.l.b16 %v5067
    %v5601 = vunpack.c.l.b16 %v5068
    %v5602 = vunpack.c.l.b16 %v5069
    %v5603 = vunpack.c.l.b16 %v5070
    %v5604 = vunpack.c.l.b16 %v5071
    %v5605 = vunpack.c.l.b16 %v5072
    %v5606 = vunpack.c.l.b16 %v5073
    %v5607 = vunpack.c.l.b16 %v5074
    %v5608 = vunpack.c.l.b16 %v5075
    %v5609 = vunpack.c.l.b16 %v5076
    %v5610 = vunpack.c.l.b16 %v5077
    %v5611 = vunpack.c.l.b16 %v5078
    %v5612 = vunpack.c.l.b16 %v5079
    %v5613 = vunpack.c.l.b16 %v5080
    %v5614 = vunpack.c.l.b16 %v5081
    %v5615 = vunpack.c.l.b16 %v5082
    %v5616 = vunpack.c.l.b16 %v5083
    %v5617 = vunpack.c.l.b16 %v5084
    %v5618 = vunpack.c.l.b16 %v5085
    %v5619 = vunpack.c.l.b16 %v5086
    %v5620 = vunpack.c.l.b16 %v5087
    %v5621 = vunpack.c.l.b16 %v5088
    %v5622 = vunpack.c.l.b16 %v5089
    %v5623 = vunpack.c.l.b16 %v5090
    %v5624 = vunpack.c.l.b16 %v5091
    %v5625 = vunpack.c.l.b16 %v5092
    %v5626 = vunpack.c.l.b16 %v5093
    %v5627 = vunpack.c.l.b16 %v5094
    %v5628 = vunpack.c.l.b16 %v5095
    %v5629 = vunpack.c.l.b16 %v5096
    %v5630 = vunpack.c.l.b16 %v5097
    %v5631 = vunpack.c.l.b16 %v5098
    %v5632 = vunpack.c.l.b16 %v5099
    %v5633 = vunpack.c.l.b16 %v5100
    %v5634 = vunpack.c.l.b16 %v5101
    %v5635 = vunpack.c.l.b16 %v5102
    %v5636 = vunpack.c.l.b16 %v5103
    %v5637 = vunpack.c.l.b16 %v5104
    %v5638 = vunpack.c.l.b16 %v5105
    %v5639 = vunpack.c.l.b16 %v5106
    %v5640 = vunpack.c.l.b16 %v5107
    %v5641 = vunpack.c.l.b16 %v5108
    %v5642 = vunpack.c.l.b16 %v5109
    %v5643 = vunpack.c.l.b16 %v5110
    %v5644 = vunpack.c.l.b16 %v5111
    %v5645 = vunpack.c.l.b16 %v5112
    %v5646 = vunpack.c.l.b16 %v5113
    %v5647 = vunpack.c.l.b16 %v5114
    %v5648 = vunpack.c.l.b16 %v5115
    %v5649 = vunpack.c.l.b16 %v5116
    %v5650 = vunpack.c.l.b16 %v5117
    %v5651 = vunpack.c.l.b16 %v5118
    %v5652 = vunpack.c.l.b16 %v5119
    %v5653 = vunpack.c.l.b16 %v5120
    %v5654 = vunpack.c.l.b16 %v5121
    %v5655 = vunpack.c.l.b16 %v5122
    %v5656 = vunpack.c.l.b16 %v5123
    %v5657 = vunpack.c.l.b16 %v5124
    %v5658 = vunpack.c.l.b16 %v5125
    %v5659 = vunpack.c.l.b16 %v5126
    %v5660 = vunpack.c.l.b16 %v5127
    %v5661 = vunpack.c.l.b16 %v5128
    %v5662 = vunpack.c.l.b16 %v5129
    %v5663 = vunpack.c.l.b16 %v5130
    %v5664 = vunpack.c.l.b16 %v5131
    %v5665 = vunpack.c.l.b16 %v5132
    %v5666 = vunpack.c.l.b16 %v5133
    %v5667 = vunpack.c.l.b16 %v5134
    %v5668 = vunpack.c.l.b16 %v5135
    %v5669 = vunpack.c.l.b16 %v5136
    %v5670 = vunpack.c.l.b16 %v5137
    %v5671 = vunpack.c.l.b16 %v5138
    %v5672 = vunpack.c.l.b16 %v5139
    %v5673 = vunpack.c.l.b16 %v5140
    %v5674 = vunpack.c.l.b16 %v5141
    %v5675 = vunpack.c.l.b16 %v5142
    %v5676 = vunpack.c.l.b16 %v5143
    %v5677 = vunpack.c.l.b16 %v5144
    %v5678 = vunpack.c.l.b16 %v5145
    %v5679 = vunpack.c.l.b16 %v5146
    %v5680 = vunpack.c.l.b16 %v5147
    %v5681 = vunpack.c.l.b16 %v5148
    %v5682 = vunpack.c.l.b16 %v5149
    %v5683 = vunpack.c.l.b16 %v5150
    %v5684 = vunpack.c.l.b16 %v5151
    %v5685 = vunpack.c.l.b16 %v5152
    %v5686 = vunpack.c.l.b16 %v5153
    %v5687 = vunpack.c.l.b16 %v5154
    %v5688 = vunpack.c.l.b16 %v5155
    %v5689 = vunpack.c.l.b16 %v5156
    %v5690 = vunpack.c.l.b16 %v5157
    %v5691 = vunpack.c.l.b16 %v5158
    %v5692 = vunpack.c.l.b16 %v5159
    %v5693 = vunpack.c.l.b16 %v5160
    %v5694 = vunpack.c.l.b16 %v5161
    %v5695 = vunpack.c.l.b16 %v5162
    %v5696 = vunpack.c.l.b16 %v5163
    %v5697 = vunpack.c.l.b16 %v5164
    %v5698 = vunpack.c.l.b16 %v5165
    %v5699 = vunpack.c.l.b16 %v5166
    %v5700 = vunpack.c.l.b16 %v5167
    %v5701 = vunpack.c.l.b16 %v5168
    %v5702 = vunpack.c.l.b16 %v5169
    %v5703 = vunpack.c.l.b16 %v5170
    %v5704 = vunpack.c.l.b16 %v5171
    %v5705 = vunpack.c.l.b16 %v5172
    %v5706 = vunpack.c.l.b16 %v5173
    %v5707 = vunpack.c.l.b16 %v5174
    %v5708 = vunpack.c.l.b16 %v5175
    %v5709 = vunpack.c.l.b16 %v5176
    %v5710 = vunpack.c.l.b16 %v5177
    %v5711 = vunpack.c.l.b16 %v5178
    %v5712 = vunpack.c.l.b16 %v5179
    %v5713 = vunpack.c.l.b16 %v5180
    %v5714 = vunpack.c.l.b16 %v5181
    %v5715 = vunpack.c.l.b16 %v5182
    %v5716 = vunpack.c.l.b16 %v5183
    %v5717 = vunpack.c.l.b16 %v5184
    %v5718 = vunpack.c.l.b16 %v5185
    %v5719 = vunpack.c.l.b16 %v5186
    %v5720 = vunpack.c.l.b16 %v5187
    %v5721 = vunpack.c.l.b16 %v5188
    %v5722 = vunpack.c.l.b16 %v5189
    %v5723 = vunpack.c.l.b16 %v5190
    %v5724 = vunpack.c.l.b16 %v5191
    %v5725 = vunpack.c.l.b16 %v5192
    %v5726 = vunpack.c.l.b16 %v5193
    %v5727 = vunpack.c.l.b16 %v5194
    %v5728 = vunpack.c.l.b16 %v5195
    %v5729 = vunpack.c.l.b16 %v5196
    %v5730 = vunpack.c.l.b16 %v5197
    %v5731 = vunpack.c.l.b16 %v5198
    %v5732 = vunpack.c.l.b16 %v5199
    %v5733 = vunpack.c.l.b16 %v5200
    %v5734 = vunpack.c.l.b16 %v5201
    %v5735 = vunpack.c.l.b16 %v5202
    %v5736 = vunpack.c.l.b16 %v5203
    %v5737 = vunpack.c.l.b16 %v5204
    %v5738 = vunpack.c.l.b16 %v5205
    %v5739 = vunpack.c.l.b16 %v5206
    %v5740 = vunpack.c.l.b16 %v5207
    %v5741 = vunpack.c.l.b16 %v5208
    %v5742 = vunpack.c.l.b16 %v5209
    %v5743 = vunpack.c.l.b16 %v5210
    %v5744 = vunpack.c.l.b16 %v5211
    %v5745 = vunpack.c.l.b16 %v5212
    %v5746 = vunpack.c.l.b16 %v5213
    %v5747 = vunpack.c.l.b16 %v5214
    %v5748 = vunpack.c.l.b16 %v5215
    %v5749 = vunpack.c.l.b16 %v5216
    %v5750 = vunpack.c.l.b16 %v5217
    %v5751 = vunpack.c.l.b16 %v5218
    %v5752 = vunpack.c.l.b16 %v5219
    %v5753 = vunpack.c.l.b16 %v5220
    %v5754 = vunpack.c.l.b16 %v5221
    %v5755 = vunpack.c.l.b16 %v5222
    %v5756 = vunpack.c.l.b16 %v5223
    %v5757 = vunpack.c.l.b16 %v5224
    %v5758 = vunpack.c.l.b16 %v5225
    %v5759 = vunpack.c.l.b16 %v5226
    %v5760 = vunpack.c.l.b16 %v5227
    %v5761 = vunpack.c.l.b16 %v5228
    %v5762 = vunpack.c.l.b16 %v5229
    %v5763 = vunpack.c.l.b16 %v5230
    %v5764 = vunpack.c.l.b16 %v5231
    %v5765 = vunpack.c.l.b16 %v5232
    %v5766 = vunpack.c.l.b16 %v5233
    %v5767 = vunpack.c.l.b16 %v5234
    %v5768 = vunpack.c.l.b16 %v5235
    %v5769 = vunpack.c.l.b16 %v5236
    %v5770 = vunpack.c.l.b16 %v5237
    %v5771 = vunpack.c.l.b16 %v5238
    %v5772 = vunpack.c.l.b16 %v5239
    %v5773 = vunpack.c.l.b16 %v5240
    %v5774 = vunpack.c.l.b16 %v5241
    %v5775 = vunpack.c.l.b16 %v5242
    %v5776 = vunpack.c.l.b16 %v5243
    %v5777 = vunpack.c.l.b16 %v5244
    %v5778 = vunpack.c.l.b16 %v5245
    %v5779 = vunpack.c.l.b16 %v5246
    %v5780 = vunpack.c.l.b16 %v5247
    %v5781 = vunpack.c.l.b16 %v5248
    %v5782 = vunpack.c.l.b16 %v5249
    %v5783 = vunpack.c.l.b16 %v5250
    %v5784 = vunpack.c.l.b16 %v5251
    %v5785 = vunpack.c.l.b16 %v5252
    %v5786 = vunpack.c.l.b16 %v5253
    %v5787 = vunpack.c.l.b16 %v5254
    %v5788 = vunpack.c.l.b16 %v5255
    %v5789 = vunpack.c.l.b16 %v5256
    %v5790 = vunpack.c.l.b16 %v5257
    %v5791 = vunpack.c.l.b16 %v5258
    %v5792 = vunpack.c.l.b16 %v5259
    %v5793 = vunpack.c.l.b16 %v5260
    %v5794 = vunpack.c.l.b16 %v5261
    %v5795 = vunpack.c.l.b16 %v5262
    %v5796 = vunpack.c.l.b16 %v5263
    %v5797 = vunpack.c.l.b16 %v5264
    %v5798 = vunpack.c.l.b16 %v5265
    %v5799 = vunpack.c.l.b16 %v5266
    %v5800 = vunpack.c.l.b16 %v5267
    %v5801 = vunpack.c.l.b16 %v5268
    %v5802 = vunpack.c.l.b16 %v5269
    %v5803 = vunpack.c.l.b16 %v5270
    %v5804 = vunpack.c.l.b16 %v5271
    %v5805 = vunpack.c.l.b16 %v5272
    %v5806 = vunpack.c.l.b16 %v5273
    %v5807 = vunpack.c.l.b16 %v5274
    %v5808 = vunpack.c.l.b16 %v5275
    %v5809 = vunpack.c.l.b16 %v5276
    %v5810 = vunpack.c.l.b16 %v5277
    %v5811 = vunpack.c.l.b16 %v5278
    %v5812 = vunpack.c.l.b16 %v5279
    %v5813 = vunpack.c.l.b16 %v5280
    %v5814 = vunpack.c.l.b16 %v5281
    %v5815 = vunpack.c.l.b16 %v5282
    %v5816 = vunpack.c.l.b16 %v5283
    %v5817 = vunpack.c.l.b16 %v5284
    %v5818 = vunpack.c.l.b16 %v5285
    %v5819 = vunpack.c.l.b16 %v5286
    %v5820 = vunpack.c.l.b16 %v5287
    %v5821 = vunpack.c.l.b16 %v5288
    %v5822 = vunpack.c.l.b16 %v5289
    %v5823 = vunpack.c.l.b16 %v5290
    %v5824 = vunpack.c.l.b16 %v5291
    %v5825 = vunpack.c.l.b16 %v5292
    %v5826 = vunpack.c.l.b16 %v5293
    %v5827 = vpack.c.b16 %v5572, %v5571
    %v5828 = vpack.c.b16 %v5574, %v5573
    %v5829 = vpack.c.b16 %v5576, %v5575
    %v5830 = vpack.c.b16 %v5578, %v5577
    %v5831 = vpack.c.b16 %v5580, %v5579
    %v5832 = vpack.c.b16 %v5582, %v5581
    %v5833 = vpack.c.b16 %v5584, %v5583
    %v5834 = vpack.c.b16 %v5586, %v5585
    %v5835 = vpack.c.b16 %v5588, %v5587
    %v5836 = vpack.c.b16 %v5590, %v5589
    %v5837 = vpack.c.b16 %v5592, %v5591
    %v5838 = vpack.c.b16 %v5594, %v5593
    %v5839 = vpack.c.b16 %v5596, %v5595
    %v5840 = vpack.c.b16 %v5598, %v5597
    %v5841 = vpack.c.b16 %v5600, %v5599
    %v5842 = vpack.c.b16 %v5602, %v5601
    %v5843 = vpack.c.b16 %v5604, %v5603
    %v5844 = vpack.c.b16 %v5606, %v5605
    %v5845 = vpack.c.b16 %v5608, %v5607
    %v5846 = vpack.c.b16 %v5610, %v5609
    %v5847 = vpack.c.b16 %v5612, %v5611
    %v5848 = vpack.c.b16 %v5614, %v5613
    %v5849 = vpack.c.b16 %v5616, %v5615
    %v5850 = vpack.c.b16 %v5618, %v5617
    %v5851 = vpack.c.b16 %v5620, %v5619
    %v5852 = vpack.c.b16 %v5622, %v5621
    %v5853 = vpack.c.b16 %v5624, %v5623
    %v5854 = vpack.c.b16 %v5626, %v5625
    %v5855 = vpack.c.b16 %v5628, %v5627
    %v5856 = vpack.c.b16 %v5630, %v5629
    %v5857 = vpack.c.b16 %v5632, %v5631
    %v5858 = vpack.c.b16 %v5634, %v5633
    %v5859 = vpack.c.b16 %v5636, %v5635
    %v5860 = vpack.c.b16 %v5638, %v5637
    %v5861 = vpack.c.b16 %v5640, %v5639
    %v5862 = vpack.c.b16 %v5642, %v5641
    %v5863 = vpack.c.b16 %v5644, %v5643
    %v5864 = vpack.c.b16 %v5646, %v5645
    %v5865 = vpack.c.b16 %v5648, %v5647
    %v5866 = vpack.c.b16 %v5650, %v5649
    %v5867 = vpack.c.b16 %v5652, %v5651
    %v5868 = vpack.c.b16 %v5654, %v5653
    %v5869 = vpack.c.b16 %v5656, %v5655
    %v5870 = vpack.c.b16 %v5658, %v5657
    %v5871 = vpack.c.b16 %v5660, %v5659
    %v5872 = vpack.c.b16 %v5662, %v5661
    %v5873 = vpack.c.b16 %v5664, %v5663
    %v5874 = vpack.c.b16 %v5666, %v5665
    %v5875 = vpack.c.b16 %v5668, %v5667
    %v5876 = vpack.c.b16 %v5670, %v5669
    %v5877 = vpack.c.b16 %v5672, %v5671
    %v5878 = vpack.c.b16 %v5674, %v5673
    %v5879 = vpack.c.b16 %v5676, %v5675
    %v5880 = vpack.c.b16 %v5678, %v5677
    %v5881 = vpack.c.b16 %v5680, %v5679
    %v5882 = vpack.c.b16 %v5682, %v5681
    %v5883 = vpack.c.b16 %v5684, %v5683
    %v5884 = vpack.c.b16 %v5686, %v5685
    %v5885 = vpack.c.b16 %v5688, %v5687
    %v5886 = vpack.c.b16 %v5690, %v5689
    %v5887 = vpack.c.b16 %v5692, %v5691
    %v5888 = vpack.c.b16 %v5694, %v5693
    %v5889 = vpack.c.b16 %v5696, %v5695
    %v5890 = vpack.c.b16 %v5698, %v5697
    %v5891 = vpack.c.b16 %v5700, %v5699
    %v5892 = vpack.c.b16 %v5702, %v5701
    %v5893 = vpack.c.b16 %v5704, %v5703
    %v5894 = vpack.c.b16 %v5706, %v5705
    %v5895 = vpack.c.b16 %v5708, %v5707
    %v5896 = vpack.c.b16 %v5710, %v5709
    %v5897 = vpack.c.b16 %v5712, %v5711
    %v5898 = vpack.c.b16 %v5714, %v5713
    %v5899 = vpack.c.b16 %v5716, %v5715
    %v5900 = vpack.c.b16 %v5718, %v5717
    %v5901 = vpack.c.b16 %v5720, %v5719
    %v5902 = vpack.c.b16 %v5722, %v5721
    %v5903 = vpack.c.b16 %v5724, %v5723
    %v5904 = vpack.c.b16 %v5726, %v5725
    %v5905 = vpack.c.b16 %v5728, %v5727
    %v5906 = vpack.c.b16 %v5730, %v5729
    %v5907 = vpack.c.b16 %v5732, %v5731
    %v5908 = vpack.c.b16 %v5734, %v5733
    %v5909 = vpack.c.b16 %v5736, %v5735
    %v5910 = vpack.c.b16 %v5738, %v5737
    %v5911 = vpack.c.b16 %v5740, %v5739
    %v5912 = vpack.c.b16 %v5742, %v5741
    %v5913 = vpack.c.b16 %v5744, %v5743
    %v5914 = vpack.c.b16 %v5746, %v5745
    %v5915 = vpack.c.b16 %v5748, %v5747
    %v5916 = vpack.c.b16 %v5750, %v5749
    %v5917 = vpack.c.b16 %v5752, %v5751
    %v5918 = vpack.c.b16 %v5754, %v5753
    %v5919 = vpack.c.b16 %v5756, %v5755
    %v5920 = vpack.c.b16 %v5758, %v5757
    %v5921 = vpack.c.b16 %v5760, %v5759
    %v5922 = vpack.c.b16 %v5762, %v5761
    %v5923 = vpack.c.b16 %v5764, %v5763
    %v5924 = vpack.c.b16 %v5766, %v5765
    %v5925 = vpack.c.b16 %v5768, %v5767
    %v5926 = vpack.c.b16 %v5770, %v5769
    %v5927 = vpack.c.b16 %v5772, %v5771
    %v5928 = vpack.c.b16 %v5774, %v5773
    %v5929 = vpack.c.b16 %v5776, %v5775
    %v5930 = vpack.c.b16 %v5778, %v5777
    %v5931 = vpack.c.b16 %v5780, %v5779
    %v5932 = vpack.c.b16 %v5782, %v5781
    %v5933 = vpack.c.b16 %v5784, %v5783
    %v5934 = vpack.c.b16 %v5786, %v5785
    %v5935 = vpack.c.b16 %v5788, %v5787
    %v5936 = vpack.c.b16 %v5790, %v5789
    %v5937 = vpack.c.b16 %v5792, %v5791
    %v5938 = vpack.c.b16 %v5794, %v5793
    %v5939 = vpack.c.b16 %v5796, %v5795
    %v5940 = vpack.c.b16 %v5798, %v5797
    %v5941 = vpack.c.b16 %v5800, %v5799
    %v5942 = vpack.c.b16 %v5802, %v5801
    %v5943 = vpack.c.b16 %v5804, %v5803
    %v5944 = vpack.c.b16 %v5806, %v5805
    %v5945 = vpack.c.b16 %v5808, %v5807
    %v5946 = vpack.c.b16 %v5810, %v5809
    %v5947 = vpack.c.b16 %v5812, %v5811
    %v5948 = vpack.c.b16 %v5814, %v5813
    %v5949 = vpack.c.b16 %v5816, %v5815
    %v5950 = vpack.c.b16 %v5818, %v5817
    %v5951 = vpack.c.b16 %v5820, %v5819
    %v5952 = vpack.c.b16 %v5822, %v5821
    %v5953 = vpack.c.b16 %v5824, %v5823
    %v5954 = vpack.c.b16 %v5826, %v5825
    %6083 = vmatpush.bf16.msra.mxu0 %v5834
    %6084 = vmatpush.bf16.msra.mxu0 %v5833
    %6085 = vmatpush.bf16.msra.mxu0 %v5832
    %6086 = vmatpush.bf16.msra.mxu0 %v5831
    %6087 = vmatpush.bf16.msra.mxu0 %v5830
    %6088 = vmatpush.bf16.msra.mxu0 %v5829
    %6089 = vmatpush.bf16.msra.mxu0 %v5828
    %6090 = vmatpush.bf16.msra.mxu0 %v5827
    %6091 = vmatmul.bf16.gmra.mxu0 %v5296
    %v6092 = vpop.f32.mrf.mxu0
    %v6093 = vadd.f32 %v5313, %v6092
    %v6094 = vpop.f32.mrf.mxu0
    %6095 = vdwg.mxu0
    %6096 = vmatpush.bf16.msra.mxu0 %v5842
    %6097 = vmatpush.bf16.msra.mxu0 %v5841
    %6098 = vmatpush.bf16.msra.mxu0 %v5840
    %6099 = vmatpush.bf16.msra.mxu0 %v5839
    %6100 = vmatpush.bf16.msra.mxu0 %v5838
    %6101 = vmatpush.bf16.msra.mxu0 %v5837
    %6102 = vmatpush.bf16.msra.mxu0 %v5836
    %6103 = vmatpush.bf16.msra.mxu0 %v5835
    %6104 = vmatmul.bf16.gmra.mxu0 %v5297
    %v6105 = vpop.f32.mrf.mxu0
    %v6106 = vadd.f32 %v6093, %v6105
    %v6107 = vpop.f32.mrf.mxu0
    %6108 = vdwg.mxu0
    %6109 = vmatpush.bf16.msra.mxu0 %v5850
    %6110 = vmatpush.bf16.msra.mxu0 %v5849
    %6111 = vmatpush.bf16.msra.mxu0 %v5848
    %6112 = vmatpush.bf16.msra.mxu0 %v5847
    %6113 = vmatpush.bf16.msra.mxu0 %v5846
    %6114 = vmatpush.bf16.msra.mxu0 %v5845
    %6115 = vmatpush.bf16.msra.mxu0 %v5844
    %6116 = vmatpush.bf16.msra.mxu0 %v5843
    %6117 = vmatmul.bf16.gmra.mxu0 %v5298
    %v6118 = vpop.f32.mrf.mxu0
    %v6119 = vadd.f32 %v6106, %v6118
    %v6120 = vpop.f32.mrf.mxu0
    %6121 = vdwg.mxu0
    %6122 = vmatpush.bf16.msra.mxu0 %v5858
    %6123 = vmatpush.bf16.msra.mxu0 %v5857
    %6124 = vmatpush.bf16.msra.mxu0 %v5856
    %6125 = vmatpush.bf16.msra.mxu0 %v5855
    %6126 = vmatpush.bf16.msra.mxu0 %v5854
    %6127 = vmatpush.bf16.msra.mxu0 %v5853
    %6128 = vmatpush.bf16.msra.mxu0 %v5852
    %6129 = vmatpush.bf16.msra.mxu0 %v5851
    %6130 = vmatmul.bf16.gmra.mxu0 %v5299
    %v6131 = vpop.f32.mrf.mxu0
    %v6132 = vadd.f32 %v6119, %v6131
    %v6133 = vpop.f32.mrf.mxu0
    %6134 = vdwg.mxu0
    %6135 = vmatpush.bf16.msra.mxu0 %v5866
    %6136 = vmatpush.bf16.msra.mxu0 %v5865
    %6137 = vmatpush.bf16.msra.mxu0 %v5864
    %6138 = vmatpush.bf16.msra.mxu0 %v5863
    %6139 = vmatpush.bf16.msra.mxu0 %v5862
    %6140 = vmatpush.bf16.msra.mxu0 %v5861
    %6141 = vmatpush.bf16.msra.mxu0 %v5860
    %6142 = vmatpush.bf16.msra.mxu0 %v5859
    %6143 = vmatmul.bf16.gmra.mxu0 %v5300
    %v6144 = vpop.f32.mrf.mxu0
    %v6145 = vadd.f32 %v6132, %v6144
    %v6146 = vpop.f32.mrf.mxu0
    %6147 = vdwg.mxu0
    %6148 = vmatpush.bf16.msra.mxu0 %v5874
    %6149 = vmatpush.bf16.msra.mxu0 %v5873
    %6150 = vmatpush.bf16.msra.mxu0 %v5872
    %6151 = vmatpush.bf16.msra.mxu0 %v5871
    %6152 = vmatpush.bf16.msra.mxu0 %v5870
    %6153 = vmatpush.bf16.msra.mxu0 %v5869
    %6154 = vmatpush.bf16.msra.mxu0 %v5868
    %6155 = vmatpush.bf16.msra.mxu0 %v5867
    %6156 = vmatmul.bf16.gmra.mxu0 %v5301
    %v6157 = vpop.f32.mrf.mxu0
    %v6158 = vadd.f32 %v6145, %v6157
    %v6159 = vpop.f32.mrf.mxu0
    %6160 = vdwg.mxu0
    %6161 = vmatpush.bf16.msra.mxu0 %v5882
    %6162 = vmatpush.bf16.msra.mxu0 %v5881
    %6163 = vmatpush.bf16.msra.mxu0 %v5880
    %6164 = vmatpush.bf16.msra.mxu0 %v5879
    %6165 = vmatpush.bf16.msra.mxu0 %v5878
    %6166 = vmatpush.bf16.msra.mxu0 %v5877
    %6167 = vmatpush.bf16.msra.mxu0 %v5876
    %6168 = vmatpush.bf16.msra.mxu0 %v5875
    %6169 = vmatmul.bf16.gmra.mxu0 %v5302
    %v6170 = vpop.f32.mrf.mxu0
    %v6171 = vadd.f32 %v6158, %v6170
    %v6172 = vpop.f32.mrf.mxu0
    %6173 = vdwg.mxu0
    %6174 = vmatpush.bf16.msra.mxu0 %v5890
    %6175 = vmatpush.bf16.msra.mxu0 %v5889
    %6176 = vmatpush.bf16.msra.mxu0 %v5888
    %6177 = vmatpush.bf16.msra.mxu0 %v5887
    %6178 = vmatpush.bf16.msra.mxu0 %v5886
    %6179 = vmatpush.bf16.msra.mxu0 %v5885
    %6180 = vmatpush.bf16.msra.mxu0 %v5884
    %6181 = vmatpush.bf16.msra.mxu0 %v5883
    %6182 = vmatmul.bf16.gmra.mxu0 %v5303
    %v6183 = vpop.f32.mrf.mxu0
    %v6184 = vadd.f32 %v6171, %v6183
    %v6185 = vpop.f32.mrf.mxu0
    %6186 = vdwg.mxu0
    %6187 = vmatpush.bf16.msra.mxu0 %v5898
    %6188 = vmatpush.bf16.msra.mxu0 %v5897
    %6189 = vmatpush.bf16.msra.mxu0 %v5896
    %6190 = vmatpush.bf16.msra.mxu0 %v5895
    %6191 = vmatpush.bf16.msra.mxu0 %v5894
    %6192 = vmatpush.bf16.msra.mxu0 %v5893
    %6193 = vmatpush.bf16.msra.mxu0 %v5892
    %6194 = vmatpush.bf16.msra.mxu0 %v5891
    %6195 = vmatmul.bf16.gmra.mxu0 %v5304
    %v6196 = vpop.f32.mrf.mxu0
    %v6197 = vadd.f32 %v6184, %v6196
    %v6198 = vpop.f32.mrf.mxu0
    %6199 = vdwg.mxu0
    %6200 = vmatpush.bf16.msra.mxu0 %v5906
    %6201 = vmatpush.bf16.msra.mxu0 %v5905
    %6202 = vmatpush.bf16.msra.mxu0 %v5904
    %6203 = vmatpush.bf16.msra.mxu0 %v5903
    %6204 = vmatpush.bf16.msra.mxu0 %v5902
    %6205 = vmatpush.bf16.msra.mxu0 %v5901
    %6206 = vmatpush.bf16.msra.mxu0 %v5900
    %6207 = vmatpush.bf16.msra.mxu0 %v5899
    %6208 = vmatmul.bf16.gmra.mxu0 %v5305
    %v6209 = vpop.f32.mrf.mxu0
    %v6210 = vadd.f32 %v6197, %v6209
    %v6211 = vpop.f32.mrf.mxu0
    %6212 = vdwg.mxu0
    %6213 = vmatpush.bf16.msra.mxu0 %v5914
    %6214 = vmatpush.bf16.msra.mxu0 %v5913
    %6215 = vmatpush.bf16.msra.mxu0 %v5912
    %6216 = vmatpush.bf16.msra.mxu0 %v5911
    %6217 = vmatpush.bf16.msra.mxu0 %v5910
    %6218 = vmatpush.bf16.msra.mxu0 %v5909
    %6219 = vmatpush.bf16.msra.mxu0 %v5908
    %6220 = vmatpush.bf16.msra.mxu0 %v5907
    %6221 = vmatmul.bf16.gmra.mxu0 %v5306
    %v6222 = vpop.f32.mrf.mxu0
    %v6223 = vadd.f32 %v6210, %v6222
    %v6224 = vpop.f32.mrf.mxu0
    %6225 = vdwg.mxu0
    %6226 = vmatpush.bf16.msra.mxu0 %v5922
    %6227 = vmatpush.bf16.msra.mxu0 %v5921
    %6228 = vmatpush.bf16.msra.mxu0 %v5920
    %6229 = vmatpush.bf16.msra.mxu0 %v5919
    %6230 = vmatpush.bf16.msra.mxu0 %v5918
    %6231 = vmatpush.bf16.msra.mxu0 %v5917
    %6232 = vmatpush.bf16.msra.mxu0 %v5916
    %6233 = vmatpush.bf16.msra.mxu0 %v5915
    %6234 = vmatmul.bf16.gmra.mxu0 %v5307
    %v6235 = vpop.f32.mrf.mxu0
    %v6236 = vadd.f32 %v6223, %v6235
    %v6237 = vpop.f32.mrf.mxu0
    %6238 = vdwg.mxu0
    %6239 = vmatpush.bf16.msra.mxu0 %v5930
    %6240 = vmatpush.bf16.msra.mxu0 %v5929
    %6241 = vmatpush.bf16.msra.mxu0 %v5928
    %6242 = vmatpush.bf16.msra.mxu0 %v5927
    %6243 = vmatpush.bf16.msra.mxu0 %v5926
    %6244 = vmatpush.bf16.msra.mxu0 %v5925
    %6245 = vmatpush.bf16.msra.mxu0 %v5924
    %6246 = vmatpush.bf16.msra.mxu0 %v5923
    %6247 = vmatmul.bf16.gmra.mxu0 %v5308
    %v6248 = vpop.f32.mrf.mxu0
    %v6249 = vadd.f32 %v6236, %v6248
    %v6250 = vpop.f32.mrf.mxu0
    %6251 = vdwg.mxu0
    %6252 = vmatpush.bf16.msra.mxu0 %v5938
    %6253 = vmatpush.bf16.msra.mxu0 %v5937
    %6254 = vmatpush.bf16.msra.mxu0 %v5936
    %6255 = vmatpush.bf16.msra.mxu0 %v5935
    %6256 = vmatpush.bf16.msra.mxu0 %v5934
    %6257 = vmatpush.bf16.msra.mxu0 %v5933
    %6258 = vmatpush.bf16.msra.mxu0 %v5932
    %6259 = vmatpush.bf16.msra.mxu0 %v5931
    %6260 = vmatmul.bf16.gmra.mxu0 %v5309
    %v6261 = vpop.f32.mrf.mxu0
    %v6262 = vadd.f32 %v6249, %v6261
    %v6263 = vpop.f32.mrf.mxu0
    %6264 = vdwg.mxu0
    %6265 = vmatpush.bf16.msra.mxu0 %v5946
    %6266 = vmatpush.bf16.msra.mxu0 %v5945
    %6267 = vmatpush.bf16.msra.mxu0 %v5944
    %6268 = vmatpush.bf16.msra.mxu0 %v5943
    %6269 = vmatpush.bf16.msra.mxu0 %v5942
    %6270 = vmatpush.bf16.msra.mxu0 %v5941
    %6271 = vmatpush.bf16.msra.mxu0 %v5940
    %6272 = vmatpush.bf16.msra.mxu0 %v5939
    %6273 = vmatmul.bf16.gmra.mxu0 %v5310
    %v6274 = vpop.f32.mrf.mxu0
    %v6275 = vadd.f32 %v6262, %v6274
    %v6276 = vpop.f32.mrf.mxu0
    %6277 = vdwg.mxu0
    %6278 = vmatpush.bf16.msra.mxu0 %v5954
    %6279 = vmatpush.bf16.msra.mxu0 %v5953
    %6280 = vmatpush.bf16.msra.mxu0 %v5952
    %6281 = vmatpush.bf16.msra.mxu0 %v5951
    %6282 = vmatpush.bf16.msra.mxu0 %v5950
    %6283 = vmatpush.bf16.msra.mxu0 %v5949
    %6284 = vmatpush.bf16.msra.mxu0 %v5948
    %6285 = vmatpush.bf16.msra.mxu0 %v5947
    %6286 = vmatmul.bf16.gmra.mxu0 %v5311
    %v6287 = vpop.f32.mrf.mxu0
    %v6288 = vadd.f32 %v6275, %v6287
    %v6289 = vpop.f32.mrf.mxu0
    %6290 = vdwg.mxu0
    %v6291 = vadd.f32 %v4578, %v6288
    %s6292 = scalar_lea.vmem %s20, 2
    %v6293 = vld [vmem:[%s6292] sm:$0x1]
    %s6294 = scalar_lea.vmem %s21, 2
    %v6295 = vld [vmem:[%s6294] sm:$0x1]
    %v6296 = vsel %vm475, %v6291, 0.0
    %6297 = vadd.xlane.f32.xlu0 %v6296
    %v6298 = vpop.xlane.xlu0 %6297
    %v6299 = vmul.f32 %v6298, %v485
    %v6300 = vsub.f32 %v6291, %v6299
    %v6301 = vmul.f32 %v6300, %v6300
    %v6302 = vsel %vm475, %v6301, 0.0
    %6303 = vadd.xlane.f32.xlu0 %v6302
    %v6304 = vpop.xlane.xlu0 %6303
    %v6305 = vmul.f32 %v6304, %v485
    %v6306 = vadd.f32 %v6305, 1e-05
    %v6307 = vrsqrt.pop %v6306
    %v6308 = vmul.f32 %v6307, %v6306
    %v6309 = vmul.f32 %v6308, %v6307
    %v6310 = vmul.f32 0.5, %v6309
    %v6311 = vsub.f32 1.5, %v6310
    %v6312 = vmul.f32 %v6307, %v6311
    %vm6313 = vweird.f32 %v6306
    %vm6314 = vweird.f32 %v6307
    %vm6315 = vmor %vm6313, %vm6314
    %v6316 = vsel %vm6315, %v6307, %v6312
    %v6317 = vmul.f32 %v6300, %v6316
    %v6319 = vperm.slane %v6293, 0
    %v6321 = vmul.f32 %v6317, %v6319
    %v6323 = vperm.slane %v6295, 0
    %v6325 = vadd.f32 %v6321, %v6323
    %s6326 = scalar_lea.vmem %s10, 48
    %v6327 = vld [vmem:[%s6326] sm:$0xf]
    %v6328 = vld [vmem:[%s6326 + $0x4] sm:$0xf]
    %v6329 = vld [vmem:[%s6326 + $0x8] sm:$0xf]
    %v6330 = vld [vmem:[%s6326 + $0xc] sm:$0xf]
    %s6331 = scalar_lea.vmem %s11, 3
    %v6332 = vld [vmem:[%s6331] sm:$0x1]
    %v6333 = vpack.c.bf16 %v6325, %v6325
    %v6335 = vperm.slane %v6332, 0
    %v6341 = vunpack.c.l.b16 %v6327
    %v6342 = vunpack.c.l.b16 %v6328
    %v6343 = vunpack.c.l.b16 %v6329
    %v6344 = vunpack.c.l.b16 %v6330
    %v6345 = vpack.c.b16 %v6342, %v6341
    %v6346 = vpack.c.b16 %v6344, %v6343
    %v6350 = vsel %vm242, %v6333, 0
    %6352 = vmatpush.bf16.msra.mxu0 0
    %6353 = vmatpush.bf16.msra.mxu0 0
    %6354 = vmatpush.bf16.msra.mxu0 0
    %6355 = vmatpush.bf16.msra.mxu0 0
    %6356 = vmatpush.bf16.msra.mxu0 0
    %6357 = vmatpush.bf16.msra.mxu0 0
    %6358 = vmatpush.bf16.msra.mxu0 %v6346
    %6359 = vmatpush.bf16.msra.mxu0 %v6345
    %6360 = vmatmul.bf16.gmra.mxu0 %v6350
    %v6361 = vpop.f32.mrf.mxu0
    %v6362 = vadd.f32 %v6335, %v6361
    %v6363 = vpop.f32.mrf.mxu0
    %6364 = vdwg.mxu0
    %6366 = vrot.lane.b32.xlu0 %v6362, 96
    %v6367 = vpop.permute.xlu0 %6366
    %6369 = vxpose.xlu0.b32.start [1/16] %v6367, 128
    %6370 = vxpose.xlu0.b32.cont [2/16] 0.0, 128
    %6371 = vxpose.xlu0.b32.cont [3/16] 0.0, 128
    %6372 = vxpose.xlu0.b32.cont [4/16] 0.0, 128
    %6373 = vxpose.xlu0.b32.cont [5/16] 0.0, 128
    %6374 = vxpose.xlu0.b32.cont [6/16] 0.0, 128
    %6375 = vxpose.xlu0.b32.cont [7/16] 0.0, 128
    %6376 = vxpose.xlu0.b32.cont [8/16] 0.0, 128
    %6377 = vxpose.xlu0.b32.cont [9/16] 0.0, 128
    %6378 = vxpose.xlu0.b32.cont [10/16] 0.0, 128
    %6379 = vxpose.xlu0.b32.cont [11/16] 0.0, 128
    %6380 = vxpose.xlu0.b32.cont [12/16] 0.0, 128
    %6381 = vxpose.xlu0.b32.cont [13/16] 0.0, 128
    %6382 = vxpose.xlu0.b32.cont [14/16] 0.0, 128
    %6383 = vxpose.xlu0.b32.cont [15/16] 0.0, 128
    %6384 = vxpose.xlu0.b32.end [16/16] 0.0, 128
    %v6385 = vpop.trf.xlu0
    %v6386 = vpop.trf.xlu0
    %v6387 = vpop.trf.xlu0
    %v6388 = vpop.trf.xlu0
    %v6389 = vpop.trf.xlu0
    %v6390 = vpop.trf.xlu0
    %v6391 = vpop.trf.xlu0
    %v6392 = vpop.trf.xlu0
    %v6393 = vpop.trf.xlu0
    %v6394 = vpop.trf.xlu0
    %v6395 = vpop.trf.xlu0
    %v6396 = vpop.trf.xlu0
    %v6397 = vpop.trf.xlu0
    %v6398 = vpop.trf.xlu0
    %v6399 = vpop.trf.xlu0
    %v6400 = vpop.trf.xlu0
    %v6401 = vmul.f32 %v6362, %v205
    %v6402 = vmul.f32 %v6362, %v210
    %v6403 = vmul.f32 %v6362, %v215
    %v6404 = vmul.f32 %v6362, %v220
    %v6406 = vrot.slane %v6402, 2
    %v6409 = vrot.slane %v6403, 4
    %v6412 = vrot.slane %v6404, 6
    %v6414 = vsel %vm96, %v6401, %v6406
    %v6415 = vsel %vm174, %v6406, %v6409
    %v6416 = vsel %vm172, %v6409, %v6412
    %v6417 = vpack.c.bf16 %v6415, %v6414
    %v6418 = vpack.c.bf16 %v6416, %v6416
    %v6419 = vpack.c.bf16 %v6386, %v6385
    %v6420 = vpack.c.bf16 %v6388, %v6387
    %v6422 = vsel %vm242, %v6417, 0
    %v6425 = vsel %vm242, %v6418, 0
    %6427 = vmatpush.bf16.msra.mxu0 0
    %6428 = vmatpush.bf16.msra.mxu0 0
    %6429 = vmatpush.bf16.msra.mxu0 0
    %6430 = vmatpush.bf16.msra.mxu0 0
    %6431 = vmatpush.bf16.msra.mxu0 0
    %6432 = vmatpush.bf16.msra.mxu0 0
    %6433 = vmatpush.bf16.msra.mxu0 %v6420
    %6434 = vmatpush.bf16.msra.mxu0 %v6419
    %6435 = vmatmul.bf16.gmra.mxu0 %v6422
    %v6436 = vpop.f32.mrf.mxu0
    %v6437 = vadd.f32 0.0, %v6436
    %v6438 = vpop.f32.mrf.mxu0
    %v6439 = vadd.f32 0.0, %v6438
    %6440 = vmatmul.bf16.gmra.mxu0 %v6425
    %v6441 = vpop.f32.mrf.mxu0
    %v6442 = vadd.f32 0.0, %v6441
    %v6443 = vpop.f32.mrf.mxu0
    %6444 = vdwg.mxu0
    %v6445 = vmul.f32 %v6437, 0.35355338
    %v6446 = vmul.f32 %v6439, 0.35355338
    %v6447 = vmul.f32 %v6442, 0.35355338
    %v6448 = vadd.f32 %v6445, %v198
    %v6449 = vadd.f32 %v6446, %v199
    %v6450 = vadd.f32 %v6447, %v200
    %v6451 = vsel %vm123, %v6448, -inf
    %6452 = vmax.xlane.f32.xlu0 %v6451
    %v6453 = vpop.xlane.xlu0 %6452
    %v6454 = vsel %vm123, %v6449, -inf
    %6455 = vmax.xlane.f32.xlu0 %v6454
    %v6456 = vpop.xlane.xlu0 %6455
    %v6457 = vsel %vm123, %v6450, -inf
    %6458 = vmax.xlane.f32.xlu0 %v6457
    %v6459 = vpop.xlane.xlu0 %6458
    %v6460 = vsub.f32 %v6448, %v6453
    %v6461 = vsub.f32 %v6449, %v6456
    %v6462 = vsub.f32 %v6450, %v6459
    %v6463 = vmul.f32 %v6460, 1.442695
    %v6464 = vpow.pop %v6463
    %v6465 = vmul.f32 %v6461, 1.442695
    %v6466 = vpow.pop %v6465
    %v6467 = vmul.f32 %v6462, 1.442695
    %v6468 = vpow.pop %v6467
    %v6469 = vsel %vm123, %v6464, 0.0
    %6470 = vadd.xlane.f32.xlu0 %v6469
    %v6471 = vpop.xlane.xlu0 %6470
    %v6472 = vsel %vm123, %v6466, 0.0
    %6473 = vadd.xlane.f32.xlu0 %v6472
    %v6474 = vpop.xlane.xlu0 %6473
    %v6475 = vsel %vm123, %v6468, 0.0
    %6476 = vadd.xlane.f32.xlu0 %v6475
    %v6477 = vpop.xlane.xlu0 %6476
    %v6478 = vrcp.pop %v6471
    %v6479 = vrcp.pop %v6474
    %v6480 = vrcp.pop %v6477
    %v6481 = vmul.f32 %v6464, %v6478
    %v6482 = vmul.f32 %v6466, %v6479
    %v6483 = vmul.f32 %v6468, %v6480
    %v6484 = vpack.c.bf16 %v6482, %v6481
    %v6485 = vpack.c.bf16 %v6483, %v6483
    %v6486 = vpack.c.bf16 %v6362, %v6362
    %6488 = vrot.lane.b32.xlu0 %v6486, 64
    %v6489 = vpop.permute.xlu0 %6488
    %v6491 = vsel %vm123, %v6484, 0
    %v6494 = vsel %vm123, %v6485, 0
    %v6497 = vsel %vm127, %v6489, 0
    %6499 = vmatpush.bf16.msra.mxu0 0
    %6500 = vmatpush.bf16.msra.mxu0 0
    %6501 = vmatpush.bf16.msra.mxu0 0
    %6502 = vmatpush.bf16.msra.mxu0 0
    %6503 = vmatpush.bf16.msra.mxu0 0
    %6504 = vmatpush.bf16.msra.mxu0 0
    %6505 = vmatpush.bf16.msra.mxu0 0
    %6506 = vmatpush.bf16.msra.mxu0 %v6497
    %6507 = vmatmul.bf16.gmra.mxu0 %v6491
    %v6508 = vpop.f32.mrf.mxu0
    %v6509 = vadd.f32 0.0, %v6508
    %v6510 = vpop.f32.mrf.mxu0
    %v6511 = vadd.f32 0.0, %v6510
    %6512 = vmatmul.bf16.gmra.mxu0 %v6494
    %v6513 = vpop.f32.mrf.mxu0
    %v6514 = vadd.f32 0.0, %v6513
    %v6515 = vpop.f32.mrf.mxu0
    %6516 = vdwg.mxu0
    %v6517 = vmul.f32 %v6509, %v205
    %v6518 = vmul.f32 %v6509, %v210
    %v6519 = vmul.f32 %v6511, %v210
    %v6520 = vmul.f32 %v6511, %v215
    %v6521 = vmul.f32 %v6514, %v215
    %v6522 = vmul.f32 %v6514, %v220
    %v6525 = vrot.slane %v6518, 6
    %v6526 = vrot.slane %v6519, 6
    %v6527 = vsel %vm172, %v6525, %v6526
    %v6529 = vadd.f32 %v6517, %v6527
    %v6532 = vrot.slane %v6520, 4
    %v6533 = vrot.slane %v6521, 4
    %v6534 = vsel %vm174, %v6532, %v6533
    %v6536 = vadd.f32 %v6529, %v6534
    %v6538 = vrot.slane %v6522, 2
    %v6540 = vadd.f32 %v6536, %v6538
    %s6541 = scalar_lea.vmem %s12, 48
    %v6542 = vld [vmem:[%s6541] sm:$0xf]
    %v6543 = vld [vmem:[%s6541 + $0x4] sm:$0xf]
    %v6544 = vld [vmem:[%s6541 + $0x8] sm:$0xf]
    %v6545 = vld [vmem:[%s6541 + $0xc] sm:$0xf]
    %s6546 = scalar_lea.vmem %s13, 3
    %v6547 = vld [vmem:[%s6546] sm:$0x1]
    %v6548 = vpack.c.bf16 %v6540, %v6540
    %v6550 = vperm.slane %v6547, 0
    %v6556 = vunpack.c.l.b16 %v6542
    %v6557 = vunpack.c.l.b16 %v6543
    %v6558 = vunpack.c.l.b16 %v6544
    %v6559 = vunpack.c.l.b16 %v6545
    %v6560 = vpack.c.b16 %v6557, %v6556
    %v6561 = vpack.c.b16 %v6559, %v6558
    %v6565 = vsel %vm242, %v6548, 0
    %6567 = vmatpush.bf16.msra.mxu0 0
    %6568 = vmatpush.bf16.msra.mxu0 0
    %6569 = vmatpush.bf16.msra.mxu0 0
    %6570 = vmatpush.bf16.msra.mxu0 0
    %6571 = vmatpush.bf16.msra.mxu0 0
    %6572 = vmatpush.bf16.msra.mxu0 0
    %6573 = vmatpush.bf16.msra.mxu0 %v6561
    %6574 = vmatpush.bf16.msra.mxu0 %v6560
    %6575 = vmatmul.bf16.gmra.mxu0 %v6565
    %v6576 = vpop.f32.mrf.mxu0
    %v6577 = vadd.f32 %v6550, %v6576
    %v6578 = vpop.f32.mrf.mxu0
    %6579 = vdwg.mxu0
    %v6580 = vadd.f32 %v6325, %v6577
    %s6581 = scalar_lea.vmem %s14, 3
    %v6582 = vld [vmem:[%s6581] sm:$0x1]
    %s6583 = scalar_lea.vmem %s15, 3
    %v6584 = vld [vmem:[%s6583] sm:$0x1]
    %v6585 = vsel %vm475, %v6580, 0.0
    %6586 = vadd.xlane.f32.xlu0 %v6585
    %v6587 = vpop.xlane.xlu0 %6586
    %v6588 = vmul.f32 %v6587, %v485
    %v6589 = vsub.f32 %v6580, %v6588
    %v6590 = vmul.f32 %v6589, %v6589
    %v6591 = vsel %vm475, %v6590, 0.0
    %6592 = vadd.xlane.f32.xlu0 %v6591
    %v6593 = vpop.xlane.xlu0 %6592
    %v6594 = vmul.f32 %v6593, %v485
    %v6595 = vadd.f32 %v6594, 1e-05
    %v6596 = vrsqrt.pop %v6595
    %v6597 = vmul.f32 %v6596, %v6595
    %v6598 = vmul.f32 %v6597, %v6596
    %v6599 = vmul.f32 0.5, %v6598
    %v6600 = vsub.f32 1.5, %v6599
    %v6601 = vmul.f32 %v6596, %v6600
    %vm6602 = vweird.f32 %v6595
    %vm6603 = vweird.f32 %v6596
    %vm6604 = vmor %vm6602, %vm6603
    %v6605 = vsel %vm6604, %v6596, %v6601
    %v6606 = vmul.f32 %v6589, %v6605
    %v6608 = vperm.slane %v6582, 0
    %v6610 = vmul.f32 %v6606, %v6608
    %v6612 = vperm.slane %v6584, 0
    %v6614 = vadd.f32 %v6610, %v6612
    %s6615 = scalar_lea.vmem %s16, 768
    %v6616 = vld [vmem:[%s6615] sm:$0xff]
    %v6617 = vld [vmem:[%s6615 + $0x8] sm:$0xff]
    %v6618 = vld [vmem:[%s6615 + $0x10] sm:$0xff]
    %v6619 = vld [vmem:[%s6615 + $0x18] sm:$0xff]
    %v6620 = vld [vmem:[%s6615 + $0x20] sm:$0xff]
    %v6621 = vld [vmem:[%s6615 + $0x28] sm:$0xff]
    %v6622 = vld [vmem:[%s6615 + $0x30] sm:$0xff]
    %v6623 = vld [vmem:[%s6615 + $0x38] sm:$0xff]
    %v6624 = vld [vmem:[%s6615 + $0x40] sm:$0xff]
    %v6625 = vld [vmem:[%s6615 + $0x48] sm:$0xff]
    %v6626 = vld [vmem:[%s6615 + $0x50] sm:$0xff]
    %v6627 = vld [vmem:[%s6615 + $0x58] sm:$0xff]
    %v6628 = vld [vmem:[%s6615 + $0x60] sm:$0xff]
    %v6629 = vld [vmem:[%s6615 + $0x68] sm:$0xff]
    %v6630 = vld [vmem:[%s6615 + $0x70] sm:$0xff]
    %v6631 = vld [vmem:[%s6615 + $0x78] sm:$0xff]
    %v6632 = vld [vmem:[%s6615 + $0x80] sm:$0xff]
    %v6633 = vld [vmem:[%s6615 + $0x88] sm:$0xff]
    %v6634 = vld [vmem:[%s6615 + $0x90] sm:$0xff]
    %v6635 = vld [vmem:[%s6615 + $0x98] sm:$0xff]
    %v6636 = vld [vmem:[%s6615 + $0xa0] sm:$0xff]
    %v6637 = vld [vmem:[%s6615 + $0xa8] sm:$0xff]
    %v6638 = vld [vmem:[%s6615 + $0xb0] sm:$0xff]
    %v6639 = vld [vmem:[%s6615 + $0xb8] sm:$0xff]
    %v6640 = vld [vmem:[%s6615 + $0xc0] sm:$0xff]
    %v6641 = vld [vmem:[%s6615 + $0xc8] sm:$0xff]
    %v6642 = vld [vmem:[%s6615 + $0xd0] sm:$0xff]
    %v6643 = vld [vmem:[%s6615 + $0xd8] sm:$0xff]
    %v6644 = vld [vmem:[%s6615 + $0xe0] sm:$0xff]
    %v6645 = vld [vmem:[%s6615 + $0xe8] sm:$0xff]
    %v6646 = vld [vmem:[%s6615 + $0xf0] sm:$0xff]
    %v6647 = vld [vmem:[%s6615 + $0xf8] sm:$0xff]
    %s6648 = scalar_lea.vmem %s17, 48
    %v6649 = vld [vmem:[%s6648] sm:$0xff]
    %v6650 = vld [vmem:[%s6648 + $0x8] sm:$0xff]
    %v6651 = vpack.c.bf16 %v6614, %v6614
    %v6654 = vperm.slane %v6649, 0
    %v6655 = vperm.slane %v6649, 1
    %v6656 = vperm.slane %v6649, 2
    %v6657 = vperm.slane %v6649, 3
    %v6658 = vperm.slane %v6649, 4
    %v6659 = vperm.slane %v6649, 5
    %v6660 = vperm.slane %v6649, 6
    %v6661 = vperm.slane %v6649, 7
    %v6662 = vperm.slane %v6650, 0
    %v6663 = vperm.slane %v6650, 1
    %v6664 = vperm.slane %v6650, 2
    %v6665 = vperm.slane %v6650, 3
    %v6666 = vperm.slane %v6650, 4
    %v6667 = vperm.slane %v6650, 5
    %v6668 = vperm.slane %v6650, 6
    %v6669 = vperm.slane %v6650, 7
    %v6718 = vunpack.c.l.b16 %v6616
    %v6719 = vunpack.c.h.b16 %v6616
    %v6720 = vunpack.c.l.b16 %v6617
    %v6721 = vunpack.c.h.b16 %v6617
    %v6722 = vunpack.c.l.b16 %v6618
    %v6723 = vunpack.c.h.b16 %v6618
    %v6724 = vunpack.c.l.b16 %v6619
    %v6725 = vunpack.c.h.b16 %v6619
    %v6726 = vunpack.c.l.b16 %v6620
    %v6727 = vunpack.c.h.b16 %v6620
    %v6728 = vunpack.c.l.b16 %v6621
    %v6729 = vunpack.c.h.b16 %v6621
    %v6730 = vunpack.c.l.b16 %v6622
    %v6731 = vunpack.c.h.b16 %v6622
    %v6732 = vunpack.c.l.b16 %v6623
    %v6733 = vunpack.c.h.b16 %v6623
    %v6734 = vunpack.c.l.b16 %v6624
    %v6735 = vunpack.c.h.b16 %v6624
    %v6736 = vunpack.c.l.b16 %v6625
    %v6737 = vunpack.c.h.b16 %v6625
    %v6738 = vunpack.c.l.b16 %v6626
    %v6739 = vunpack.c.h.b16 %v6626
    %v6740 = vunpack.c.l.b16 %v6627
    %v6741 = vunpack.c.h.b16 %v6627
    %v6742 = vunpack.c.l.b16 %v6628
    %v6743 = vunpack.c.h.b16 %v6628
    %v6744 = vunpack.c.l.b16 %v6629
    %v6745 = vunpack.c.h.b16 %v6629
    %v6746 = vunpack.c.l.b16 %v6630
    %v6747 = vunpack.c.h.b16 %v6630
    %v6748 = vunpack.c.l.b16 %v6631
    %v6749 = vunpack.c.h.b16 %v6631
    %v6750 = vunpack.c.l.b16 %v6632
    %v6751 = vunpack.c.h.b16 %v6632
    %v6752 = vunpack.c.l.b16 %v6633
    %v6753 = vunpack.c.h.b16 %v6633
    %v6754 = vunpack.c.l.b16 %v6634
    %v6755 = vunpack.c.h.b16 %v6634
    %v6756 = vunpack.c.l.b16 %v6635
    %v6757 = vunpack.c.h.b16 %v6635
    %v6758 = vunpack.c.l.b16 %v6636
    %v6759 = vunpack.c.h.b16 %v6636
    %v6760 = vunpack.c.l.b16 %v6637
    %v6761 = vunpack.c.h.b16 %v6637
    %v6762 = vunpack.c.l.b16 %v6638
    %v6763 = vunpack.c.h.b16 %v6638
    %v6764 = vunpack.c.l.b16 %v6639
    %v6765 = vunpack.c.h.b16 %v6639
    %v6766 = vunpack.c.l.b16 %v6640
    %v6767 = vunpack.c.h.b16 %v6640
    %v6768 = vunpack.c.l.b16 %v6641
    %v6769 = vunpack.c.h.b16 %v6641
    %v6770 = vunpack.c.l.b16 %v6642
    %v6771 = vunpack.c.h.b16 %v6642
    %v6772 = vunpack.c.l.b16 %v6643
    %v6773 = vunpack.c.h.b16 %v6643
    %v6774 = vunpack.c.l.b16 %v6644
    %v6775 = vunpack.c.h.b16 %v6644
    %v6776 = vunpack.c.l.b16 %v6645
    %v6777 = vunpack.c.h.b16 %v6645
    %v6778 = vunpack.c.l.b16 %v6646
    %v6779 = vunpack.c.h.b16 %v6646
    %v6780 = vunpack.c.l.b16 %v6647
    %v6781 = vunpack.c.h.b16 %v6647
    %v6782 = vpack.c.b16 %v6734, %v6718
    %v6783 = vpack.c.b16 %v6735, %v6719
    %v6784 = vpack.c.b16 %v6736, %v6720
    %v6785 = vpack.c.b16 %v6737, %v6721
    %v6786 = vpack.c.b16 %v6738, %v6722
    %v6787 = vpack.c.b16 %v6739, %v6723
    %v6788 = vpack.c.b16 %v6740, %v6724
    %v6789 = vpack.c.b16 %v6741, %v6725
    %v6790 = vpack.c.b16 %v6742, %v6726
    %v6791 = vpack.c.b16 %v6743, %v6727
    %v6792 = vpack.c.b16 %v6744, %v6728
    %v6793 = vpack.c.b16 %v6745, %v6729
    %v6794 = vpack.c.b16 %v6746, %v6730
    %v6795 = vpack.c.b16 %v6747, %v6731
    %v6796 = vpack.c.b16 %v6748, %v6732
    %v6797 = vpack.c.b16 %v6749, %v6733
    %v6798 = vpack.c.b16 %v6766, %v6750
    %v6799 = vpack.c.b16 %v6767, %v6751
    %v6800 = vpack.c.b16 %v6768, %v6752
    %v6801 = vpack.c.b16 %v6769, %v6753
    %v6802 = vpack.c.b16 %v6770, %v6754
    %v6803 = vpack.c.b16 %v6771, %v6755
    %v6804 = vpack.c.b16 %v6772, %v6756
    %v6805 = vpack.c.b16 %v6773, %v6757
    %v6806 = vpack.c.b16 %v6774, %v6758
    %v6807 = vpack.c.b16 %v6775, %v6759
    %v6808 = vpack.c.b16 %v6776, %v6760
    %v6809 = vpack.c.b16 %v6777, %v6761
    %v6810 = vpack.c.b16 %v6778, %v6762
    %v6811 = vpack.c.b16 %v6779, %v6763
    %v6812 = vpack.c.b16 %v6780, %v6764
    %v6813 = vpack.c.b16 %v6781, %v6765
    %v6847 = vsel %vm242, %v6651, 0
    %6849 = vmatpush.bf16.msra.mxu0 0
    %6850 = vmatpush.bf16.msra.mxu0 0
    %6851 = vmatpush.bf16.msra.mxu0 0
    %6852 = vmatpush.bf16.msra.mxu0 0
    %6853 = vmatpush.bf16.msra.mxu0 0
    %6854 = vmatpush.bf16.msra.mxu0 0
    %6855 = vmatpush.bf16.msra.mxu0 %v6798
    %6856 = vmatpush.bf16.msra.mxu0 %v6782
    %6857 = vmatmul.bf16.gmra.mxu0 %v6847
    %v6858 = vpop.f32.mrf.mxu0
    %v6859 = vadd.f32 %v6654, %v6858
    %v6860 = vpop.f32.mrf.mxu0
    %6861 = vdwg.mxu0
    %6862 = vmatpush.bf16.msra.mxu0 0
    %6863 = vmatpush.bf16.msra.mxu0 0
    %6864 = vmatpush.bf16.msra.mxu0 0
    %6865 = vmatpush.bf16.msra.mxu0 0
    %6866 = vmatpush.bf16.msra.mxu0 0
    %6867 = vmatpush.bf16.msra.mxu0 0
    %6868 = vmatpush.bf16.msra.mxu0 %v6799
    %6869 = vmatpush.bf16.msra.mxu0 %v6783
    %6870 = vmatmul.bf16.gmra.mxu0 %v6847
    %v6871 = vpop.f32.mrf.mxu0
    %v6872 = vadd.f32 %v6655, %v6871
    %v6873 = vpop.f32.mrf.mxu0
    %6874 = vdwg.mxu0
    %6875 = vmatpush.bf16.msra.mxu0 0
    %6876 = vmatpush.bf16.msra.mxu0 0
    %6877 = vmatpush.bf16.msra.mxu0 0
    %6878 = vmatpush.bf16.msra.mxu0 0
    %6879 = vmatpush.bf16.msra.mxu0 0
    %6880 = vmatpush.bf16.msra.mxu0 0
    %6881 = vmatpush.bf16.msra.mxu0 %v6800
    %6882 = vmatpush.bf16.msra.mxu0 %v6784
    %6883 = vmatmul.bf16.gmra.mxu0 %v6847
    %v6884 = vpop.f32.mrf.mxu0
    %v6885 = vadd.f32 %v6656, %v6884
    %v6886 = vpop.f32.mrf.mxu0
    %6887 = vdwg.mxu0
    %6888 = vmatpush.bf16.msra.mxu0 0
    %6889 = vmatpush.bf16.msra.mxu0 0
    %6890 = vmatpush.bf16.msra.mxu0 0
    %6891 = vmatpush.bf16.msra.mxu0 0
    %6892 = vmatpush.bf16.msra.mxu0 0
    %6893 = vmatpush.bf16.msra.mxu0 0
    %6894 = vmatpush.bf16.msra.mxu0 %v6801
    %6895 = vmatpush.bf16.msra.mxu0 %v6785
    %6896 = vmatmul.bf16.gmra.mxu0 %v6847
    %v6897 = vpop.f32.mrf.mxu0
    %v6898 = vadd.f32 %v6657, %v6897
    %v6899 = vpop.f32.mrf.mxu0
    %6900 = vdwg.mxu0
    %6901 = vmatpush.bf16.msra.mxu0 0
    %6902 = vmatpush.bf16.msra.mxu0 0
    %6903 = vmatpush.bf16.msra.mxu0 0
    %6904 = vmatpush.bf16.msra.mxu0 0
    %6905 = vmatpush.bf16.msra.mxu0 0
    %6906 = vmatpush.bf16.msra.mxu0 0
    %6907 = vmatpush.bf16.msra.mxu0 %v6802
    %6908 = vmatpush.bf16.msra.mxu0 %v6786
    %6909 = vmatmul.bf16.gmra.mxu0 %v6847
    %v6910 = vpop.f32.mrf.mxu0
    %v6911 = vadd.f32 %v6658, %v6910
    %v6912 = vpop.f32.mrf.mxu0
    %6913 = vdwg.mxu0
    %6914 = vmatpush.bf16.msra.mxu0 0
    %6915 = vmatpush.bf16.msra.mxu0 0
    %6916 = vmatpush.bf16.msra.mxu0 0
    %6917 = vmatpush.bf16.msra.mxu0 0
    %6918 = vmatpush.bf16.msra.mxu0 0
    %6919 = vmatpush.bf16.msra.mxu0 0
    %6920 = vmatpush.bf16.msra.mxu0 %v6803
    %6921 = vmatpush.bf16.msra.mxu0 %v6787
    %6922 = vmatmul.bf16.gmra.mxu0 %v6847
    %v6923 = vpop.f32.mrf.mxu0
    %v6924 = vadd.f32 %v6659, %v6923
    %v6925 = vpop.f32.mrf.mxu0
    %6926 = vdwg.mxu0
    %6927 = vmatpush.bf16.msra.mxu0 0
    %6928 = vmatpush.bf16.msra.mxu0 0
    %6929 = vmatpush.bf16.msra.mxu0 0
    %6930 = vmatpush.bf16.msra.mxu0 0
    %6931 = vmatpush.bf16.msra.mxu0 0
    %6932 = vmatpush.bf16.msra.mxu0 0
    %6933 = vmatpush.bf16.msra.mxu0 %v6804
    %6934 = vmatpush.bf16.msra.mxu0 %v6788
    %6935 = vmatmul.bf16.gmra.mxu0 %v6847
    %v6936 = vpop.f32.mrf.mxu0
    %v6937 = vadd.f32 %v6660, %v6936
    %v6938 = vpop.f32.mrf.mxu0
    %6939 = vdwg.mxu0
    %6940 = vmatpush.bf16.msra.mxu0 0
    %6941 = vmatpush.bf16.msra.mxu0 0
    %6942 = vmatpush.bf16.msra.mxu0 0
    %6943 = vmatpush.bf16.msra.mxu0 0
    %6944 = vmatpush.bf16.msra.mxu0 0
    %6945 = vmatpush.bf16.msra.mxu0 0
    %6946 = vmatpush.bf16.msra.mxu0 %v6805
    %6947 = vmatpush.bf16.msra.mxu0 %v6789
    %6948 = vmatmul.bf16.gmra.mxu0 %v6847
    %v6949 = vpop.f32.mrf.mxu0
    %v6950 = vadd.f32 %v6661, %v6949
    %v6951 = vpop.f32.mrf.mxu0
    %6952 = vdwg.mxu0
    %6953 = vmatpush.bf16.msra.mxu0 0
    %6954 = vmatpush.bf16.msra.mxu0 0
    %6955 = vmatpush.bf16.msra.mxu0 0
    %6956 = vmatpush.bf16.msra.mxu0 0
    %6957 = vmatpush.bf16.msra.mxu0 0
    %6958 = vmatpush.bf16.msra.mxu0 0
    %6959 = vmatpush.bf16.msra.mxu0 %v6806
    %6960 = vmatpush.bf16.msra.mxu0 %v6790
    %6961 = vmatmul.bf16.gmra.mxu0 %v6847
    %v6962 = vpop.f32.mrf.mxu0
    %v6963 = vadd.f32 %v6662, %v6962
    %v6964 = vpop.f32.mrf.mxu0
    %6965 = vdwg.mxu0
    %6966 = vmatpush.bf16.msra.mxu0 0
    %6967 = vmatpush.bf16.msra.mxu0 0
    %6968 = vmatpush.bf16.msra.mxu0 0
    %6969 = vmatpush.bf16.msra.mxu0 0
    %6970 = vmatpush.bf16.msra.mxu0 0
    %6971 = vmatpush.bf16.msra.mxu0 0
    %6972 = vmatpush.bf16.msra.mxu0 %v6807
    %6973 = vmatpush.bf16.msra.mxu0 %v6791
    %6974 = vmatmul.bf16.gmra.mxu0 %v6847
    %v6975 = vpop.f32.mrf.mxu0
    %v6976 = vadd.f32 %v6663, %v6975
    %v6977 = vpop.f32.mrf.mxu0
    %6978 = vdwg.mxu0
    %6979 = vmatpush.bf16.msra.mxu0 0
    %6980 = vmatpush.bf16.msra.mxu0 0
    %6981 = vmatpush.bf16.msra.mxu0 0
    %6982 = vmatpush.bf16.msra.mxu0 0
    %6983 = vmatpush.bf16.msra.mxu0 0
    %6984 = vmatpush.bf16.msra.mxu0 0
    %6985 = vmatpush.bf16.msra.mxu0 %v6808
    %6986 = vmatpush.bf16.msra.mxu0 %v6792
    %6987 = vmatmul.bf16.gmra.mxu0 %v6847
    %v6988 = vpop.f32.mrf.mxu0
    %v6989 = vadd.f32 %v6664, %v6988
    %v6990 = vpop.f32.mrf.mxu0
    %6991 = vdwg.mxu0
    %6992 = vmatpush.bf16.msra.mxu0 0
    %6993 = vmatpush.bf16.msra.mxu0 0
    %6994 = vmatpush.bf16.msra.mxu0 0
    %6995 = vmatpush.bf16.msra.mxu0 0
    %6996 = vmatpush.bf16.msra.mxu0 0
    %6997 = vmatpush.bf16.msra.mxu0 0
    %6998 = vmatpush.bf16.msra.mxu0 %v6809
    %6999 = vmatpush.bf16.msra.mxu0 %v6793
    %7000 = vmatmul.bf16.gmra.mxu0 %v6847
    %v7001 = vpop.f32.mrf.mxu0
    %v7002 = vadd.f32 %v6665, %v7001
    %v7003 = vpop.f32.mrf.mxu0
    %7004 = vdwg.mxu0
    %7005 = vmatpush.bf16.msra.mxu0 0
    %7006 = vmatpush.bf16.msra.mxu0 0
    %7007 = vmatpush.bf16.msra.mxu0 0
    %7008 = vmatpush.bf16.msra.mxu0 0
    %7009 = vmatpush.bf16.msra.mxu0 0
    %7010 = vmatpush.bf16.msra.mxu0 0
    %7011 = vmatpush.bf16.msra.mxu0 %v6810
    %7012 = vmatpush.bf16.msra.mxu0 %v6794
    %7013 = vmatmul.bf16.gmra.mxu0 %v6847
    %v7014 = vpop.f32.mrf.mxu0
    %v7015 = vadd.f32 %v6666, %v7014
    %v7016 = vpop.f32.mrf.mxu0
    %7017 = vdwg.mxu0
    %7018 = vmatpush.bf16.msra.mxu0 0
    %7019 = vmatpush.bf16.msra.mxu0 0
    %7020 = vmatpush.bf16.msra.mxu0 0
    %7021 = vmatpush.bf16.msra.mxu0 0
    %7022 = vmatpush.bf16.msra.mxu0 0
    %7023 = vmatpush.bf16.msra.mxu0 0
    %7024 = vmatpush.bf16.msra.mxu0 %v6811
    %7025 = vmatpush.bf16.msra.mxu0 %v6795
    %7026 = vmatmul.bf16.gmra.mxu0 %v6847
    %v7027 = vpop.f32.mrf.mxu0
    %v7028 = vadd.f32 %v6667, %v7027
    %v7029 = vpop.f32.mrf.mxu0
    %7030 = vdwg.mxu0
    %7031 = vmatpush.bf16.msra.mxu0 0
    %7032 = vmatpush.bf16.msra.mxu0 0
    %7033 = vmatpush.bf16.msra.mxu0 0
    %7034 = vmatpush.bf16.msra.mxu0 0
    %7035 = vmatpush.bf16.msra.mxu0 0
    %7036 = vmatpush.bf16.msra.mxu0 0
    %7037 = vmatpush.bf16.msra.mxu0 %v6812
    %7038 = vmatpush.bf16.msra.mxu0 %v6796
    %7039 = vmatmul.bf16.gmra.mxu0 %v6847
    %v7040 = vpop.f32.mrf.mxu0
    %v7041 = vadd.f32 %v6668, %v7040
    %v7042 = vpop.f32.mrf.mxu0
    %7043 = vdwg.mxu0
    %7044 = vmatpush.bf16.msra.mxu0 0
    %7045 = vmatpush.bf16.msra.mxu0 0
    %7046 = vmatpush.bf16.msra.mxu0 0
    %7047 = vmatpush.bf16.msra.mxu0 0
    %7048 = vmatpush.bf16.msra.mxu0 0
    %7049 = vmatpush.bf16.msra.mxu0 0
    %7050 = vmatpush.bf16.msra.mxu0 %v6813
    %7051 = vmatpush.bf16.msra.mxu0 %v6797
    %7052 = vmatmul.bf16.gmra.mxu0 %v6847
    %v7053 = vpop.f32.mrf.mxu0
    %v7054 = vadd.f32 %v6669, %v7053
    %v7055 = vpop.f32.mrf.mxu0
    %7056 = vdwg.mxu0
    %v7057 = vmax.f32 %v6859, 0.0
    %v7058 = vmax.f32 %v6872, 0.0
    %v7059 = vmax.f32 %v6885, 0.0
    %v7060 = vmax.f32 %v6898, 0.0
    %v7061 = vmax.f32 %v6911, 0.0
    %v7062 = vmax.f32 %v6924, 0.0
    %v7063 = vmax.f32 %v6937, 0.0
    %v7064 = vmax.f32 %v6950, 0.0
    %v7065 = vmax.f32 %v6963, 0.0
    %v7066 = vmax.f32 %v6976, 0.0
    %v7067 = vmax.f32 %v6989, 0.0
    %v7068 = vmax.f32 %v7002, 0.0
    %v7069 = vmax.f32 %v7015, 0.0
    %v7070 = vmax.f32 %v7028, 0.0
    %v7071 = vmax.f32 %v7041, 0.0
    %v7072 = vmax.f32 %v7054, 0.0
    %s7073 = scalar_lea.vmem %s18, 3072
    %v7074 = vld [vmem:[%s7073] sm:$0xf]
    %v7075 = vld [vmem:[%s7073 + $0x4] sm:$0xf]
    %v7076 = vld [vmem:[%s7073 + $0x8] sm:$0xf]
    %v7077 = vld [vmem:[%s7073 + $0xc] sm:$0xf]
    %v7078 = vld [vmem:[%s7073 + $0x10] sm:$0xf]
    %v7079 = vld [vmem:[%s7073 + $0x14] sm:$0xf]
    %v7080 = vld [vmem:[%s7073 + $0x18] sm:$0xf]
    %v7081 = vld [vmem:[%s7073 + $0x1c] sm:$0xf]
    %v7082 = vld [vmem:[%s7073 + $0x20] sm:$0xf]
    %v7083 = vld [vmem:[%s7073 + $0x24] sm:$0xf]
    %v7084 = vld [vmem:[%s7073 + $0x28] sm:$0xf]
    %v7085 = vld [vmem:[%s7073 + $0x2c] sm:$0xf]
    %v7086 = vld [vmem:[%s7073 + $0x30] sm:$0xf]
    %v7087 = vld [vmem:[%s7073 + $0x34] sm:$0xf]
    %v7088 = vld [vmem:[%s7073 + $0x38] sm:$0xf]
    %v7089 = vld [vmem:[%s7073 + $0x3c] sm:$0xf]
    %v7090 = vld [vmem:[%s7073 + $0x40] sm:$0xf]
    %v7091 = vld [vmem:[%s7073 + $0x44] sm:$0xf]
    %v7092 = vld [vmem:[%s7073 + $0x48] sm:$0xf]
    %v7093 = vld [vmem:[%s7073 + $0x4c] sm:$0xf]
    %v7094 = vld [vmem:[%s7073 + $0x50] sm:$0xf]
    %v7095 = vld [vmem:[%s7073 + $0x54] sm:$0xf]
    %v7096 = vld [vmem:[%s7073 + $0x58] sm:$0xf]
    %v7097 = vld [vmem:[%s7073 + $0x5c] sm:$0xf]
    %v7098 = vld [vmem:[%s7073 + $0x60] sm:$0xf]
    %v7099 = vld [vmem:[%s7073 + $0x64] sm:$0xf]
    %v7100 = vld [vmem:[%s7073 + $0x68] sm:$0xf]
    %v7101 = vld [vmem:[%s7073 + $0x6c] sm:$0xf]
    %v7102 = vld [vmem:[%s7073 + $0x70] sm:$0xf]
    %v7103 = vld [vmem:[%s7073 + $0x74] sm:$0xf]
    %v7104 = vld [vmem:[%s7073 + $0x78] sm:$0xf]
    %v7105 = vld [vmem:[%s7073 + $0x7c] sm:$0xf]
    %v7106 = vld [vmem:[%s7073 + $0x80] sm:$0xf]
    %v7107 = vld [vmem:[%s7073 + $0x84] sm:$0xf]
    %v7108 = vld [vmem:[%s7073 + $0x88] sm:$0xf]
    %v7109 = vld [vmem:[%s7073 + $0x8c] sm:$0xf]
    %v7110 = vld [vmem:[%s7073 + $0x90] sm:$0xf]
    %v7111 = vld [vmem:[%s7073 + $0x94] sm:$0xf]
    %v7112 = vld [vmem:[%s7073 + $0x98] sm:$0xf]
    %v7113 = vld [vmem:[%s7073 + $0x9c] sm:$0xf]
    %v7114 = vld [vmem:[%s7073 + $0xa0] sm:$0xf]
    %v7115 = vld [vmem:[%s7073 + $0xa4] sm:$0xf]
    %v7116 = vld [vmem:[%s7073 + $0xa8] sm:$0xf]
    %v7117 = vld [vmem:[%s7073 + $0xac] sm:$0xf]
    %v7118 = vld [vmem:[%s7073 + $0xb0] sm:$0xf]
    %v7119 = vld [vmem:[%s7073 + $0xb4] sm:$0xf]
    %v7120 = vld [vmem:[%s7073 + $0xb8] sm:$0xf]
    %v7121 = vld [vmem:[%s7073 + $0xbc] sm:$0xf]
    %v7122 = vld [vmem:[%s7073 + $0xc0] sm:$0xf]
    %v7123 = vld [vmem:[%s7073 + $0xc4] sm:$0xf]
    %v7124 = vld [vmem:[%s7073 + $0xc8] sm:$0xf]
    %v7125 = vld [vmem:[%s7073 + $0xcc] sm:$0xf]
    %v7126 = vld [vmem:[%s7073 + $0xd0] sm:$0xf]
    %v7127 = vld [vmem:[%s7073 + $0xd4] sm:$0xf]
    %v7128 = vld [vmem:[%s7073 + $0xd8] sm:$0xf]
    %v7129 = vld [vmem:[%s7073 + $0xdc] sm:$0xf]
    %v7130 = vld [vmem:[%s7073 + $0xe0] sm:$0xf]
    %v7131 = vld [vmem:[%s7073 + $0xe4] sm:$0xf]
    %v7132 = vld [vmem:[%s7073 + $0xe8] sm:$0xf]
    %v7133 = vld [vmem:[%s7073 + $0xec] sm:$0xf]
    %v7134 = vld [vmem:[%s7073 + $0xf0] sm:$0xf]
    %v7135 = vld [vmem:[%s7073 + $0xf4] sm:$0xf]
    %v7136 = vld [vmem:[%s7073 + $0xf8] sm:$0xf]
    %v7137 = vld [vmem:[%s7073 + $0xfc] sm:$0xf]
    %v7138 = vld [vmem:[%s7073 + $0x100] sm:$0xf]
    %v7139 = vld [vmem:[%s7073 + $0x104] sm:$0xf]
    %v7140 = vld [vmem:[%s7073 + $0x108] sm:$0xf]
    %v7141 = vld [vmem:[%s7073 + $0x10c] sm:$0xf]
    %v7142 = vld [vmem:[%s7073 + $0x110] sm:$0xf]
    %v7143 = vld [vmem:[%s7073 + $0x114] sm:$0xf]
    %v7144 = vld [vmem:[%s7073 + $0x118] sm:$0xf]
    %v7145 = vld [vmem:[%s7073 + $0x11c] sm:$0xf]
    %v7146 = vld [vmem:[%s7073 + $0x120] sm:$0xf]
    %v7147 = vld [vmem:[%s7073 + $0x124] sm:$0xf]
    %v7148 = vld [vmem:[%s7073 + $0x128] sm:$0xf]
    %v7149 = vld [vmem:[%s7073 + $0x12c] sm:$0xf]
    %v7150 = vld [vmem:[%s7073 + $0x130] sm:$0xf]
    %v7151 = vld [vmem:[%s7073 + $0x134] sm:$0xf]
    %v7152 = vld [vmem:[%s7073 + $0x138] sm:$0xf]
    %v7153 = vld [vmem:[%s7073 + $0x13c] sm:$0xf]
    %v7154 = vld [vmem:[%s7073 + $0x140] sm:$0xf]
    %v7155 = vld [vmem:[%s7073 + $0x144] sm:$0xf]
    %v7156 = vld [vmem:[%s7073 + $0x148] sm:$0xf]
    %v7157 = vld [vmem:[%s7073 + $0x14c] sm:$0xf]
    %v7158 = vld [vmem:[%s7073 + $0x150] sm:$0xf]
    %v7159 = vld [vmem:[%s7073 + $0x154] sm:$0xf]
    %v7160 = vld [vmem:[%s7073 + $0x158] sm:$0xf]
    %v7161 = vld [vmem:[%s7073 + $0x15c] sm:$0xf]
    %v7162 = vld [vmem:[%s7073 + $0x160] sm:$0xf]
    %v7163 = vld [vmem:[%s7073 + $0x164] sm:$0xf]
    %v7164 = vld [vmem:[%s7073 + $0x168] sm:$0xf]
    %v7165 = vld [vmem:[%s7073 + $0x16c] sm:$0xf]
    %v7166 = vld [vmem:[%s7073 + $0x170] sm:$0xf]
    %v7167 = vld [vmem:[%s7073 + $0x174] sm:$0xf]
    %v7168 = vld [vmem:[%s7073 + $0x178] sm:$0xf]
    %v7169 = vld [vmem:[%s7073 + $0x17c] sm:$0xf]
    %v7170 = vld [vmem:[%s7073 + $0x180] sm:$0xf]
    %v7171 = vld [vmem:[%s7073 + $0x184] sm:$0xf]
    %v7172 = vld [vmem:[%s7073 + $0x188] sm:$0xf]
    %v7173 = vld [vmem:[%s7073 + $0x18c] sm:$0xf]
    %v7174 = vld [vmem:[%s7073 + $0x190] sm:$0xf]
    %v7175 = vld [vmem:[%s7073 + $0x194] sm:$0xf]
    %v7176 = vld [vmem:[%s7073 + $0x198] sm:$0xf]
    %v7177 = vld [vmem:[%s7073 + $0x19c] sm:$0xf]
    %v7178 = vld [vmem:[%s7073 + $0x1a0] sm:$0xf]
    %v7179 = vld [vmem:[%s7073 + $0x1a4] sm:$0xf]
    %v7180 = vld [vmem:[%s7073 + $0x1a8] sm:$0xf]
    %v7181 = vld [vmem:[%s7073 + $0x1ac] sm:$0xf]
    %v7182 = vld [vmem:[%s7073 + $0x1b0] sm:$0xf]
    %v7183 = vld [vmem:[%s7073 + $0x1b4] sm:$0xf]
    %v7184 = vld [vmem:[%s7073 + $0x1b8] sm:$0xf]
    %v7185 = vld [vmem:[%s7073 + $0x1bc] sm:$0xf]
    %v7186 = vld [vmem:[%s7073 + $0x1c0] sm:$0xf]
    %v7187 = vld [vmem:[%s7073 + $0x1c4] sm:$0xf]
    %v7188 = vld [vmem:[%s7073 + $0x1c8] sm:$0xf]
    %v7189 = vld [vmem:[%s7073 + $0x1cc] sm:$0xf]
    %v7190 = vld [vmem:[%s7073 + $0x1d0] sm:$0xf]
    %v7191 = vld [vmem:[%s7073 + $0x1d4] sm:$0xf]
    %v7192 = vld [vmem:[%s7073 + $0x1d8] sm:$0xf]
    %v7193 = vld [vmem:[%s7073 + $0x1dc] sm:$0xf]
    %v7194 = vld [vmem:[%s7073 + $0x1e0] sm:$0xf]
    %v7195 = vld [vmem:[%s7073 + $0x1e4] sm:$0xf]
    %v7196 = vld [vmem:[%s7073 + $0x1e8] sm:$0xf]
    %v7197 = vld [vmem:[%s7073 + $0x1ec] sm:$0xf]
    %v7198 = vld [vmem:[%s7073 + $0x1f0] sm:$0xf]
    %v7199 = vld [vmem:[%s7073 + $0x1f4] sm:$0xf]
    %v7200 = vld [vmem:[%s7073 + $0x1f8] sm:$0xf]
    %v7201 = vld [vmem:[%s7073 + $0x1fc] sm:$0xf]
    %v7202 = vld [vmem:[%s7073 + $0x200] sm:$0xf]
    %v7203 = vld [vmem:[%s7073 + $0x204] sm:$0xf]
    %v7204 = vld [vmem:[%s7073 + $0x208] sm:$0xf]
    %v7205 = vld [vmem:[%s7073 + $0x20c] sm:$0xf]
    %v7206 = vld [vmem:[%s7073 + $0x210] sm:$0xf]
    %v7207 = vld [vmem:[%s7073 + $0x214] sm:$0xf]
    %v7208 = vld [vmem:[%s7073 + $0x218] sm:$0xf]
    %v7209 = vld [vmem:[%s7073 + $0x21c] sm:$0xf]
    %v7210 = vld [vmem:[%s7073 + $0x220] sm:$0xf]
    %v7211 = vld [vmem:[%s7073 + $0x224] sm:$0xf]
    %v7212 = vld [vmem:[%s7073 + $0x228] sm:$0xf]
    %v7213 = vld [vmem:[%s7073 + $0x22c] sm:$0xf]
    %v7214 = vld [vmem:[%s7073 + $0x230] sm:$0xf]
    %v7215 = vld [vmem:[%s7073 + $0x234] sm:$0xf]
    %v7216 = vld [vmem:[%s7073 + $0x238] sm:$0xf]
    %v7217 = vld [vmem:[%s7073 + $0x23c] sm:$0xf]
    %v7218 = vld [vmem:[%s7073 + $0x240] sm:$0xf]
    %v7219 = vld [vmem:[%s7073 + $0x244] sm:$0xf]
    %v7220 = vld [vmem:[%s7073 + $0x248] sm:$0xf]
    %v7221 = vld [vmem:[%s7073 + $0x24c] sm:$0xf]
    %v7222 = vld [vmem:[%s7073 + $0x250] sm:$0xf]
    %v7223 = vld [vmem:[%s7073 + $0x254] sm:$0xf]
    %v7224 = vld [vmem:[%s7073 + $0x258] sm:$0xf]
    %v7225 = vld [vmem:[%s7073 + $0x25c] sm:$0xf]
    %v7226 = vld [vmem:[%s7073 + $0x260] sm:$0xf]
    %v7227 = vld [vmem:[%s7073 + $0x264] sm:$0xf]
    %v7228 = vld [vmem:[%s7073 + $0x268] sm:$0xf]
    %v7229 = vld [vmem:[%s7073 + $0x26c] sm:$0xf]
    %v7230 = vld [vmem:[%s7073 + $0x270] sm:$0xf]
    %v7231 = vld [vmem:[%s7073 + $0x274] sm:$0xf]
    %v7232 = vld [vmem:[%s7073 + $0x278] sm:$0xf]
    %v7233 = vld [vmem:[%s7073 + $0x27c] sm:$0xf]
    %v7234 = vld [vmem:[%s7073 + $0x280] sm:$0xf]
    %v7235 = vld [vmem:[%s7073 + $0x284] sm:$0xf]
    %v7236 = vld [vmem:[%s7073 + $0x288] sm:$0xf]
    %v7237 = vld [vmem:[%s7073 + $0x28c] sm:$0xf]
    %v7238 = vld [vmem:[%s7073 + $0x290] sm:$0xf]
    %v7239 = vld [vmem:[%s7073 + $0x294] sm:$0xf]
    %v7240 = vld [vmem:[%s7073 + $0x298] sm:$0xf]
    %v7241 = vld [vmem:[%s7073 + $0x29c] sm:$0xf]
    %v7242 = vld [vmem:[%s7073 + $0x2a0] sm:$0xf]
    %v7243 = vld [vmem:[%s7073 + $0x2a4] sm:$0xf]
    %v7244 = vld [vmem:[%s7073 + $0x2a8] sm:$0xf]
    %v7245 = vld [vmem:[%s7073 + $0x2ac] sm:$0xf]
    %v7246 = vld [vmem:[%s7073 + $0x2b0] sm:$0xf]
    %v7247 = vld [vmem:[%s7073 + $0x2b4] sm:$0xf]
    %v7248 = vld [vmem:[%s7073 + $0x2b8] sm:$0xf]
    %v7249 = vld [vmem:[%s7073 + $0x2bc] sm:$0xf]
    %v7250 = vld [vmem:[%s7073 + $0x2c0] sm:$0xf]
    %v7251 = vld [vmem:[%s7073 + $0x2c4] sm:$0xf]
    %v7252 = vld [vmem:[%s7073 + $0x2c8] sm:$0xf]
    %v7253 = vld [vmem:[%s7073 + $0x2cc] sm:$0xf]
    %v7254 = vld [vmem:[%s7073 + $0x2d0] sm:$0xf]
    %v7255 = vld [vmem:[%s7073 + $0x2d4] sm:$0xf]
    %v7256 = vld [vmem:[%s7073 + $0x2d8] sm:$0xf]
    %v7257 = vld [vmem:[%s7073 + $0x2dc] sm:$0xf]
    %v7258 = vld [vmem:[%s7073 + $0x2e0] sm:$0xf]
    %v7259 = vld [vmem:[%s7073 + $0x2e4] sm:$0xf]
    %v7260 = vld [vmem:[%s7073 + $0x2e8] sm:$0xf]
    %v7261 = vld [vmem:[%s7073 + $0x2ec] sm:$0xf]
    %v7262 = vld [vmem:[%s7073 + $0x2f0] sm:$0xf]
    %v7263 = vld [vmem:[%s7073 + $0x2f4] sm:$0xf]
    %v7264 = vld [vmem:[%s7073 + $0x2f8] sm:$0xf]
    %v7265 = vld [vmem:[%s7073 + $0x2fc] sm:$0xf]
    %v7266 = vld [vmem:[%s7073 + $0x300] sm:$0xf]
    %v7267 = vld [vmem:[%s7073 + $0x304] sm:$0xf]
    %v7268 = vld [vmem:[%s7073 + $0x308] sm:$0xf]
    %v7269 = vld [vmem:[%s7073 + $0x30c] sm:$0xf]
    %v7270 = vld [vmem:[%s7073 + $0x310] sm:$0xf]
    %v7271 = vld [vmem:[%s7073 + $0x314] sm:$0xf]
    %v7272 = vld [vmem:[%s7073 + $0x318] sm:$0xf]
    %v7273 = vld [vmem:[%s7073 + $0x31c] sm:$0xf]
    %v7274 = vld [vmem:[%s7073 + $0x320] sm:$0xf]
    %v7275 = vld [vmem:[%s7073 + $0x324] sm:$0xf]
    %v7276 = vld [vmem:[%s7073 + $0x328] sm:$0xf]
    %v7277 = vld [vmem:[%s7073 + $0x32c] sm:$0xf]
    %v7278 = vld [vmem:[%s7073 + $0x330] sm:$0xf]
    %v7279 = vld [vmem:[%s7073 + $0x334] sm:$0xf]
    %v7280 = vld [vmem:[%s7073 + $0x338] sm:$0xf]
    %v7281 = vld [vmem:[%s7073 + $0x33c] sm:$0xf]
    %v7282 = vld [vmem:[%s7073 + $0x340] sm:$0xf]
    %v7283 = vld [vmem:[%s7073 + $0x344] sm:$0xf]
    %v7284 = vld [vmem:[%s7073 + $0x348] sm:$0xf]
    %v7285 = vld [vmem:[%s7073 + $0x34c] sm:$0xf]
    %v7286 = vld [vmem:[%s7073 + $0x350] sm:$0xf]
    %v7287 = vld [vmem:[%s7073 + $0x354] sm:$0xf]
    %v7288 = vld [vmem:[%s7073 + $0x358] sm:$0xf]
    %v7289 = vld [vmem:[%s7073 + $0x35c] sm:$0xf]
    %v7290 = vld [vmem:[%s7073 + $0x360] sm:$0xf]
    %v7291 = vld [vmem:[%s7073 + $0x364] sm:$0xf]
    %v7292 = vld [vmem:[%s7073 + $0x368] sm:$0xf]
    %v7293 = vld [vmem:[%s7073 + $0x36c] sm:$0xf]
    %v7294 = vld [vmem:[%s7073 + $0x370] sm:$0xf]
    %v7295 = vld [vmem:[%s7073 + $0x374] sm:$0xf]
    %v7296 = vld [vmem:[%s7073 + $0x378] sm:$0xf]
    %v7297 = vld [vmem:[%s7073 + $0x37c] sm:$0xf]
    %v7298 = vld [vmem:[%s7073 + $0x380] sm:$0xf]
    %v7299 = vld [vmem:[%s7073 + $0x384] sm:$0xf]
    %v7300 = vld [vmem:[%s7073 + $0x388] sm:$0xf]
    %v7301 = vld [vmem:[%s7073 + $0x38c] sm:$0xf]
    %v7302 = vld [vmem:[%s7073 + $0x390] sm:$0xf]
    %v7303 = vld [vmem:[%s7073 + $0x394] sm:$0xf]
    %v7304 = vld [vmem:[%s7073 + $0x398] sm:$0xf]
    %v7305 = vld [vmem:[%s7073 + $0x39c] sm:$0xf]
    %v7306 = vld [vmem:[%s7073 + $0x3a0] sm:$0xf]
    %v7307 = vld [vmem:[%s7073 + $0x3a4] sm:$0xf]
    %v7308 = vld [vmem:[%s7073 + $0x3a8] sm:$0xf]
    %v7309 = vld [vmem:[%s7073 + $0x3ac] sm:$0xf]
    %v7310 = vld [vmem:[%s7073 + $0x3b0] sm:$0xf]
    %v7311 = vld [vmem:[%s7073 + $0x3b4] sm:$0xf]
    %v7312 = vld [vmem:[%s7073 + $0x3b8] sm:$0xf]
    %v7313 = vld [vmem:[%s7073 + $0x3bc] sm:$0xf]
    %v7314 = vld [vmem:[%s7073 + $0x3c0] sm:$0xf]
    %v7315 = vld [vmem:[%s7073 + $0x3c4] sm:$0xf]
    %v7316 = vld [vmem:[%s7073 + $0x3c8] sm:$0xf]
    %v7317 = vld [vmem:[%s7073 + $0x3cc] sm:$0xf]
    %v7318 = vld [vmem:[%s7073 + $0x3d0] sm:$0xf]
    %v7319 = vld [vmem:[%s7073 + $0x3d4] sm:$0xf]
    %v7320 = vld [vmem:[%s7073 + $0x3d8] sm:$0xf]
    %v7321 = vld [vmem:[%s7073 + $0x3dc] sm:$0xf]
    %v7322 = vld [vmem:[%s7073 + $0x3e0] sm:$0xf]
    %v7323 = vld [vmem:[%s7073 + $0x3e4] sm:$0xf]
    %v7324 = vld [vmem:[%s7073 + $0x3e8] sm:$0xf]
    %v7325 = vld [vmem:[%s7073 + $0x3ec] sm:$0xf]
    %v7326 = vld [vmem:[%s7073 + $0x3f0] sm:$0xf]
    %v7327 = vld [vmem:[%s7073 + $0x3f4] sm:$0xf]
    %v7328 = vld [vmem:[%s7073 + $0x3f8] sm:$0xf]
    %v7329 = vld [vmem:[%s7073 + $0x3fc] sm:$0xf]
    %s7330 = scalar_lea.vmem %s19, 3
    %v7331 = vld [vmem:[%s7330] sm:$0x1]
    %v7332 = vpack.c.bf16 %v7057, %v7057
    %v7333 = vpack.c.bf16 %v7058, %v7058
    %v7334 = vpack.c.bf16 %v7059, %v7059
    %v7335 = vpack.c.bf16 %v7060, %v7060
    %v7336 = vpack.c.bf16 %v7061, %v7061
    %v7337 = vpack.c.bf16 %v7062, %v7062
    %v7338 = vpack.c.bf16 %v7063, %v7063
    %v7339 = vpack.c.bf16 %v7064, %v7064
    %v7340 = vpack.c.bf16 %v7065, %v7065
    %v7341 = vpack.c.bf16 %v7066, %v7066
    %v7342 = vpack.c.bf16 %v7067, %v7067
    %v7343 = vpack.c.bf16 %v7068, %v7068
    %v7344 = vpack.c.bf16 %v7069, %v7069
    %v7345 = vpack.c.bf16 %v7070, %v7070
    %v7346 = vpack.c.bf16 %v7071, %v7071
    %v7347 = vpack.c.bf16 %v7072, %v7072
    %v7349 = vperm.slane %v7331, 0
    %v7607 = vunpack.c.l.b16 %v7074
    %v7608 = vunpack.c.l.b16 %v7075
    %v7609 = vunpack.c.l.b16 %v7076
    %v7610 = vunpack.c.l.b16 %v7077
    %v7611 = vunpack.c.l.b16 %v7078
    %v7612 = vunpack.c.l.b16 %v7079
    %v7613 = vunpack.c.l.b16 %v7080
    %v7614 = vunpack.c.l.b16 %v7081
    %v7615 = vunpack.c.l.b16 %v7082
    %v7616 = vunpack.c.l.b16 %v7083
    %v7617 = vunpack.c.l.b16 %v7084
    %v7618 = vunpack.c.l.b16 %v7085
    %v7619 = vunpack.c.l.b16 %v7086
    %v7620 = vunpack.c.l.b16 %v7087
    %v7621 = vunpack.c.l.b16 %v7088
    %v7622 = vunpack.c.l.b16 %v7089
    %v7623 = vunpack.c.l.b16 %v7090
    %v7624 = vunpack.c.l.b16 %v7091
    %v7625 = vunpack.c.l.b16 %v7092
    %v7626 = vunpack.c.l.b16 %v7093
    %v7627 = vunpack.c.l.b16 %v7094
    %v7628 = vunpack.c.l.b16 %v7095
    %v7629 = vunpack.c.l.b16 %v7096
    %v7630 = vunpack.c.l.b16 %v7097
    %v7631 = vunpack.c.l.b16 %v7098
    %v7632 = vunpack.c.l.b16 %v7099
    %v7633 = vunpack.c.l.b16 %v7100
    %v7634 = vunpack.c.l.b16 %v7101
    %v7635 = vunpack.c.l.b16 %v7102
    %v7636 = vunpack.c.l.b16 %v7103
    %v7637 = vunpack.c.l.b16 %v7104
    %v7638 = vunpack.c.l.b16 %v7105
    %v7639 = vunpack.c.l.b16 %v7106
    %v7640 = vunpack.c.l.b16 %v7107
    %v7641 = vunpack.c.l.b16 %v7108
    %v7642 = vunpack.c.l.b16 %v7109
    %v7643 = vunpack.c.l.b16 %v7110
    %v7644 = vunpack.c.l.b16 %v7111
    %v7645 = vunpack.c.l.b16 %v7112
    %v7646 = vunpack.c.l.b16 %v7113
    %v7647 = vunpack.c.l.b16 %v7114
    %v7648 = vunpack.c.l.b16 %v7115
    %v7649 = vunpack.c.l.b16 %v7116
    %v7650 = vunpack.c.l.b16 %v7117
    %v7651 = vunpack.c.l.b16 %v7118
    %v7652 = vunpack.c.l.b16 %v7119
    %v7653 = vunpack.c.l.b16 %v7120
    %v7654 = vunpack.c.l.b16 %v7121
    %v7655 = vunpack.c.l.b16 %v7122
    %v7656 = vunpack.c.l.b16 %v7123
    %v7657 = vunpack.c.l.b16 %v7124
    %v7658 = vunpack.c.l.b16 %v7125
    %v7659 = vunpack.c.l.b16 %v7126
    %v7660 = vunpack.c.l.b16 %v7127
    %v7661 = vunpack.c.l.b16 %v7128
    %v7662 = vunpack.c.l.b16 %v7129
    %v7663 = vunpack.c.l.b16 %v7130
    %v7664 = vunpack.c.l.b16 %v7131
    %v7665 = vunpack.c.l.b16 %v7132
    %v7666 = vunpack.c.l.b16 %v7133
    %v7667 = vunpack.c.l.b16 %v7134
    %v7668 = vunpack.c.l.b16 %v7135
    %v7669 = vunpack.c.l.b16 %v7136
    %v7670 = vunpack.c.l.b16 %v7137
    %v7671 = vunpack.c.l.b16 %v7138
    %v7672 = vunpack.c.l.b16 %v7139
    %v7673 = vunpack.c.l.b16 %v7140
    %v7674 = vunpack.c.l.b16 %v7141
    %v7675 = vunpack.c.l.b16 %v7142
    %v7676 = vunpack.c.l.b16 %v7143
    %v7677 = vunpack.c.l.b16 %v7144
    %v7678 = vunpack.c.l.b16 %v7145
    %v7679 = vunpack.c.l.b16 %v7146
    %v7680 = vunpack.c.l.b16 %v7147
    %v7681 = vunpack.c.l.b16 %v7148
    %v7682 = vunpack.c.l.b16 %v7149
    %v7683 = vunpack.c.l.b16 %v7150
    %v7684 = vunpack.c.l.b16 %v7151
    %v7685 = vunpack.c.l.b16 %v7152
    %v7686 = vunpack.c.l.b16 %v7153
    %v7687 = vunpack.c.l.b16 %v7154
    %v7688 = vunpack.c.l.b16 %v7155
    %v7689 = vunpack.c.l.b16 %v7156
    %v7690 = vunpack.c.l.b16 %v7157
    %v7691 = vunpack.c.l.b16 %v7158
    %v7692 = vunpack.c.l.b16 %v7159
    %v7693 = vunpack.c.l.b16 %v7160
    %v7694 = vunpack.c.l.b16 %v7161
    %v7695 = vunpack.c.l.b16 %v7162
    %v7696 = vunpack.c.l.b16 %v7163
    %v7697 = vunpack.c.l.b16 %v7164
    %v7698 = vunpack.c.l.b16 %v7165
    %v7699 = vunpack.c.l.b16 %v7166
    %v7700 = vunpack.c.l.b16 %v7167
    %v7701 = vunpack.c.l.b16 %v7168
    %v7702 = vunpack.c.l.b16 %v7169
    %v7703 = vunpack.c.l.b16 %v7170
    %v7704 = vunpack.c.l.b16 %v7171
    %v7705 = vunpack.c.l.b16 %v7172
    %v7706 = vunpack.c.l.b16 %v7173
    %v7707 = vunpack.c.l.b16 %v7174
    %v7708 = vunpack.c.l.b16 %v7175
    %v7709 = vunpack.c.l.b16 %v7176
    %v7710 = vunpack.c.l.b16 %v7177
    %v7711 = vunpack.c.l.b16 %v7178
    %v7712 = vunpack.c.l.b16 %v7179
    %v7713 = vunpack.c.l.b16 %v7180
    %v7714 = vunpack.c.l.b16 %v7181
    %v7715 = vunpack.c.l.b16 %v7182
    %v7716 = vunpack.c.l.b16 %v7183
    %v7717 = vunpack.c.l.b16 %v7184
    %v7718 = vunpack.c.l.b16 %v7185
    %v7719 = vunpack.c.l.b16 %v7186
    %v7720 = vunpack.c.l.b16 %v7187
    %v7721 = vunpack.c.l.b16 %v7188
    %v7722 = vunpack.c.l.b16 %v7189
    %v7723 = vunpack.c.l.b16 %v7190
    %v7724 = vunpack.c.l.b16 %v7191
    %v7725 = vunpack.c.l.b16 %v7192
    %v7726 = vunpack.c.l.b16 %v7193
    %v7727 = vunpack.c.l.b16 %v7194
    %v7728 = vunpack.c.l.b16 %v7195
    %v7729 = vunpack.c.l.b16 %v7196
    %v7730 = vunpack.c.l.b16 %v7197
    %v7731 = vunpack.c.l.b16 %v7198
    %v7732 = vunpack.c.l.b16 %v7199
    %v7733 = vunpack.c.l.b16 %v7200
    %v7734 = vunpack.c.l.b16 %v7201
    %v7735 = vunpack.c.l.b16 %v7202
    %v7736 = vunpack.c.l.b16 %v7203
    %v7737 = vunpack.c.l.b16 %v7204
    %v7738 = vunpack.c.l.b16 %v7205
    %v7739 = vunpack.c.l.b16 %v7206
    %v7740 = vunpack.c.l.b16 %v7207
    %v7741 = vunpack.c.l.b16 %v7208
    %v7742 = vunpack.c.l.b16 %v7209
    %v7743 = vunpack.c.l.b16 %v7210
    %v7744 = vunpack.c.l.b16 %v7211
    %v7745 = vunpack.c.l.b16 %v7212
    %v7746 = vunpack.c.l.b16 %v7213
    %v7747 = vunpack.c.l.b16 %v7214
    %v7748 = vunpack.c.l.b16 %v7215
    %v7749 = vunpack.c.l.b16 %v7216
    %v7750 = vunpack.c.l.b16 %v7217
    %v7751 = vunpack.c.l.b16 %v7218
    %v7752 = vunpack.c.l.b16 %v7219
    %v7753 = vunpack.c.l.b16 %v7220
    %v7754 = vunpack.c.l.b16 %v7221
    %v7755 = vunpack.c.l.b16 %v7222
    %v7756 = vunpack.c.l.b16 %v7223
    %v7757 = vunpack.c.l.b16 %v7224
    %v7758 = vunpack.c.l.b16 %v7225
    %v7759 = vunpack.c.l.b16 %v7226
    %v7760 = vunpack.c.l.b16 %v7227
    %v7761 = vunpack.c.l.b16 %v7228
    %v7762 = vunpack.c.l.b16 %v7229
    %v7763 = vunpack.c.l.b16 %v7230
    %v7764 = vunpack.c.l.b16 %v7231
    %v7765 = vunpack.c.l.b16 %v7232
    %v7766 = vunpack.c.l.b16 %v7233
    %v7767 = vunpack.c.l.b16 %v7234
    %v7768 = vunpack.c.l.b16 %v7235
    %v7769 = vunpack.c.l.b16 %v7236
    %v7770 = vunpack.c.l.b16 %v7237
    %v7771 = vunpack.c.l.b16 %v7238
    %v7772 = vunpack.c.l.b16 %v7239
    %v7773 = vunpack.c.l.b16 %v7240
    %v7774 = vunpack.c.l.b16 %v7241
    %v7775 = vunpack.c.l.b16 %v7242
    %v7776 = vunpack.c.l.b16 %v7243
    %v7777 = vunpack.c.l.b16 %v7244
    %v7778 = vunpack.c.l.b16 %v7245
    %v7779 = vunpack.c.l.b16 %v7246
    %v7780 = vunpack.c.l.b16 %v7247
    %v7781 = vunpack.c.l.b16 %v7248
    %v7782 = vunpack.c.l.b16 %v7249
    %v7783 = vunpack.c.l.b16 %v7250
    %v7784 = vunpack.c.l.b16 %v7251
    %v7785 = vunpack.c.l.b16 %v7252
    %v7786 = vunpack.c.l.b16 %v7253
    %v7787 = vunpack.c.l.b16 %v7254
    %v7788 = vunpack.c.l.b16 %v7255
    %v7789 = vunpack.c.l.b16 %v7256
    %v7790 = vunpack.c.l.b16 %v7257
    %v7791 = vunpack.c.l.b16 %v7258
    %v7792 = vunpack.c.l.b16 %v7259
    %v7793 = vunpack.c.l.b16 %v7260
    %v7794 = vunpack.c.l.b16 %v7261
    %v7795 = vunpack.c.l.b16 %v7262
    %v7796 = vunpack.c.l.b16 %v7263
    %v7797 = vunpack.c.l.b16 %v7264
    %v7798 = vunpack.c.l.b16 %v7265
    %v7799 = vunpack.c.l.b16 %v7266
    %v7800 = vunpack.c.l.b16 %v7267
    %v7801 = vunpack.c.l.b16 %v7268
    %v7802 = vunpack.c.l.b16 %v7269
    %v7803 = vunpack.c.l.b16 %v7270
    %v7804 = vunpack.c.l.b16 %v7271
    %v7805 = vunpack.c.l.b16 %v7272
    %v7806 = vunpack.c.l.b16 %v7273
    %v7807 = vunpack.c.l.b16 %v7274
    %v7808 = vunpack.c.l.b16 %v7275
    %v7809 = vunpack.c.l.b16 %v7276
    %v7810 = vunpack.c.l.b16 %v7277
    %v7811 = vunpack.c.l.b16 %v7278
    %v7812 = vunpack.c.l.b16 %v7279
    %v7813 = vunpack.c.l.b16 %v7280
    %v7814 = vunpack.c.l.b16 %v7281
    %v7815 = vunpack.c.l.b16 %v7282
    %v7816 = vunpack.c.l.b16 %v7283
    %v7817 = vunpack.c.l.b16 %v7284
    %v7818 = vunpack.c.l.b16 %v7285
    %v7819 = vunpack.c.l.b16 %v7286
    %v7820 = vunpack.c.l.b16 %v7287
    %v7821 = vunpack.c.l.b16 %v7288
    %v7822 = vunpack.c.l.b16 %v7289
    %v7823 = vunpack.c.l.b16 %v7290
    %v7824 = vunpack.c.l.b16 %v7291
    %v7825 = vunpack.c.l.b16 %v7292
    %v7826 = vunpack.c.l.b16 %v7293
    %v7827 = vunpack.c.l.b16 %v7294
    %v7828 = vunpack.c.l.b16 %v7295
    %v7829 = vunpack.c.l.b16 %v7296
    %v7830 = vunpack.c.l.b16 %v7297
    %v7831 = vunpack.c.l.b16 %v7298
    %v7832 = vunpack.c.l.b16 %v7299
    %v7833 = vunpack.c.l.b16 %v7300
    %v7834 = vunpack.c.l.b16 %v7301
    %v7835 = vunpack.c.l.b16 %v7302
    %v7836 = vunpack.c.l.b16 %v7303
    %v7837 = vunpack.c.l.b16 %v7304
    %v7838 = vunpack.c.l.b16 %v7305
    %v7839 = vunpack.c.l.b16 %v7306
    %v7840 = vunpack.c.l.b16 %v7307
    %v7841 = vunpack.c.l.b16 %v7308
    %v7842 = vunpack.c.l.b16 %v7309
    %v7843 = vunpack.c.l.b16 %v7310
    %v7844 = vunpack.c.l.b16 %v7311
    %v7845 = vunpack.c.l.b16 %v7312
    %v7846 = vunpack.c.l.b16 %v7313
    %v7847 = vunpack.c.l.b16 %v7314
    %v7848 = vunpack.c.l.b16 %v7315
    %v7849 = vunpack.c.l.b16 %v7316
    %v7850 = vunpack.c.l.b16 %v7317
    %v7851 = vunpack.c.l.b16 %v7318
    %v7852 = vunpack.c.l.b16 %v7319
    %v7853 = vunpack.c.l.b16 %v7320
    %v7854 = vunpack.c.l.b16 %v7321
    %v7855 = vunpack.c.l.b16 %v7322
    %v7856 = vunpack.c.l.b16 %v7323
    %v7857 = vunpack.c.l.b16 %v7324
    %v7858 = vunpack.c.l.b16 %v7325
    %v7859 = vunpack.c.l.b16 %v7326
    %v7860 = vunpack.c.l.b16 %v7327
    %v7861 = vunpack.c.l.b16 %v7328
    %v7862 = vunpack.c.l.b16 %v7329
    %v7863 = vpack.c.b16 %v7608, %v7607
    %v7864 = vpack.c.b16 %v7610, %v7609
    %v7865 = vpack.c.b16 %v7612, %v7611
    %v7866 = vpack.c.b16 %v7614, %v7613
    %v7867 = vpack.c.b16 %v7616, %v7615
    %v7868 = vpack.c.b16 %v7618, %v7617
    %v7869 = vpack.c.b16 %v7620, %v7619
    %v7870 = vpack.c.b16 %v7622, %v7621
    %v7871 = vpack.c.b16 %v7624, %v7623
    %v7872 = vpack.c.b16 %v7626, %v7625
    %v7873 = vpack.c.b16 %v7628, %v7627
    %v7874 = vpack.c.b16 %v7630, %v7629
    %v7875 = vpack.c.b16 %v7632, %v7631
    %v7876 = vpack.c.b16 %v7634, %v7633
    %v7877 = vpack.c.b16 %v7636, %v7635
    %v7878 = vpack.c.b16 %v7638, %v7637
    %v7879 = vpack.c.b16 %v7640, %v7639
    %v7880 = vpack.c.b16 %v7642, %v7641
    %v7881 = vpack.c.b16 %v7644, %v7643
    %v7882 = vpack.c.b16 %v7646, %v7645
    %v7883 = vpack.c.b16 %v7648, %v7647
    %v7884 = vpack.c.b16 %v7650, %v7649
    %v7885 = vpack.c.b16 %v7652, %v7651
    %v7886 = vpack.c.b16 %v7654, %v7653
    %v7887 = vpack.c.b16 %v7656, %v7655
    %v7888 = vpack.c.b16 %v7658, %v7657
    %v7889 = vpack.c.b16 %v7660, %v7659
    %v7890 = vpack.c.b16 %v7662, %v7661
    %v7891 = vpack.c.b16 %v7664, %v7663
    %v7892 = vpack.c.b16 %v7666, %v7665
    %v7893 = vpack.c.b16 %v7668, %v7667
    %v7894 = vpack.c.b16 %v7670, %v7669
    %v7895 = vpack.c.b16 %v7672, %v7671
    %v7896 = vpack.c.b16 %v7674, %v7673
    %v7897 = vpack.c.b16 %v7676, %v7675
    %v7898 = vpack.c.b16 %v7678, %v7677
    %v7899 = vpack.c.b16 %v7680, %v7679
    %v7900 = vpack.c.b16 %v7682, %v7681
    %v7901 = vpack.c.b16 %v7684, %v7683
    %v7902 = vpack.c.b16 %v7686, %v7685
    %v7903 = vpack.c.b16 %v7688, %v7687
    %v7904 = vpack.c.b16 %v7690, %v7689
    %v7905 = vpack.c.b16 %v7692, %v7691
    %v7906 = vpack.c.b16 %v7694, %v7693
    %v7907 = vpack.c.b16 %v7696, %v7695
    %v7908 = vpack.c.b16 %v7698, %v7697
    %v7909 = vpack.c.b16 %v7700, %v7699
    %v7910 = vpack.c.b16 %v7702, %v7701
    %v7911 = vpack.c.b16 %v7704, %v7703
    %v7912 = vpack.c.b16 %v7706, %v7705
    %v7913 = vpack.c.b16 %v7708, %v7707
    %v7914 = vpack.c.b16 %v7710, %v7709
    %v7915 = vpack.c.b16 %v7712, %v7711
    %v7916 = vpack.c.b16 %v7714, %v7713
    %v7917 = vpack.c.b16 %v7716, %v7715
    %v7918 = vpack.c.b16 %v7718, %v7717
    %v7919 = vpack.c.b16 %v7720, %v7719
    %v7920 = vpack.c.b16 %v7722, %v7721
    %v7921 = vpack.c.b16 %v7724, %v7723
    %v7922 = vpack.c.b16 %v7726, %v7725
    %v7923 = vpack.c.b16 %v7728, %v7727
    %v7924 = vpack.c.b16 %v7730, %v7729
    %v7925 = vpack.c.b16 %v7732, %v7731
    %v7926 = vpack.c.b16 %v7734, %v7733
    %v7927 = vpack.c.b16 %v7736, %v7735
    %v7928 = vpack.c.b16 %v7738, %v7737
    %v7929 = vpack.c.b16 %v7740, %v7739
    %v7930 = vpack.c.b16 %v7742, %v7741
    %v7931 = vpack.c.b16 %v7744, %v7743
    %v7932 = vpack.c.b16 %v7746, %v7745
    %v7933 = vpack.c.b16 %v7748, %v7747
    %v7934 = vpack.c.b16 %v7750, %v7749
    %v7935 = vpack.c.b16 %v7752, %v7751
    %v7936 = vpack.c.b16 %v7754, %v7753
    %v7937 = vpack.c.b16 %v7756, %v7755
    %v7938 = vpack.c.b16 %v7758, %v7757
    %v7939 = vpack.c.b16 %v7760, %v7759
    %v7940 = vpack.c.b16 %v7762, %v7761
    %v7941 = vpack.c.b16 %v7764, %v7763
    %v7942 = vpack.c.b16 %v7766, %v7765
    %v7943 = vpack.c.b16 %v7768, %v7767
    %v7944 = vpack.c.b16 %v7770, %v7769
    %v7945 = vpack.c.b16 %v7772, %v7771
    %v7946 = vpack.c.b16 %v7774, %v7773
    %v7947 = vpack.c.b16 %v7776, %v7775
    %v7948 = vpack.c.b16 %v7778, %v7777
    %v7949 = vpack.c.b16 %v7780, %v7779
    %v7950 = vpack.c.b16 %v7782, %v7781
    %v7951 = vpack.c.b16 %v7784, %v7783
    %v7952 = vpack.c.b16 %v7786, %v7785
    %v7953 = vpack.c.b16 %v7788, %v7787
    %v7954 = vpack.c.b16 %v7790, %v7789
    %v7955 = vpack.c.b16 %v7792, %v7791
    %v7956 = vpack.c.b16 %v7794, %v7793
    %v7957 = vpack.c.b16 %v7796, %v7795
    %v7958 = vpack.c.b16 %v7798, %v7797
    %v7959 = vpack.c.b16 %v7800, %v7799
    %v7960 = vpack.c.b16 %v7802, %v7801
    %v7961 = vpack.c.b16 %v7804, %v7803
    %v7962 = vpack.c.b16 %v7806, %v7805
    %v7963 = vpack.c.b16 %v7808, %v7807
    %v7964 = vpack.c.b16 %v7810, %v7809
    %v7965 = vpack.c.b16 %v7812, %v7811
    %v7966 = vpack.c.b16 %v7814, %v7813
    %v7967 = vpack.c.b16 %v7816, %v7815
    %v7968 = vpack.c.b16 %v7818, %v7817
    %v7969 = vpack.c.b16 %v7820, %v7819
    %v7970 = vpack.c.b16 %v7822, %v7821
    %v7971 = vpack.c.b16 %v7824, %v7823
    %v7972 = vpack.c.b16 %v7826, %v7825
    %v7973 = vpack.c.b16 %v7828, %v7827
    %v7974 = vpack.c.b16 %v7830, %v7829
    %v7975 = vpack.c.b16 %v7832, %v7831
    %v7976 = vpack.c.b16 %v7834, %v7833
    %v7977 = vpack.c.b16 %v7836, %v7835
    %v7978 = vpack.c.b16 %v7838, %v7837
    %v7979 = vpack.c.b16 %v7840, %v7839
    %v7980 = vpack.c.b16 %v7842, %v7841
    %v7981 = vpack.c.b16 %v7844, %v7843
    %v7982 = vpack.c.b16 %v7846, %v7845
    %v7983 = vpack.c.b16 %v7848, %v7847
    %v7984 = vpack.c.b16 %v7850, %v7849
    %v7985 = vpack.c.b16 %v7852, %v7851
    %v7986 = vpack.c.b16 %v7854, %v7853
    %v7987 = vpack.c.b16 %v7856, %v7855
    %v7988 = vpack.c.b16 %v7858, %v7857
    %v7989 = vpack.c.b16 %v7860, %v7859
    %v7990 = vpack.c.b16 %v7862, %v7861
    %8119 = vmatpush.bf16.msra.mxu0 %v7870
    %8120 = vmatpush.bf16.msra.mxu0 %v7869
    %8121 = vmatpush.bf16.msra.mxu0 %v7868
    %8122 = vmatpush.bf16.msra.mxu0 %v7867
    %8123 = vmatpush.bf16.msra.mxu0 %v7866
    %8124 = vmatpush.bf16.msra.mxu0 %v7865
    %8125 = vmatpush.bf16.msra.mxu0 %v7864
    %8126 = vmatpush.bf16.msra.mxu0 %v7863
    %8127 = vmatmul.bf16.gmra.mxu0 %v7332
    %v8128 = vpop.f32.mrf.mxu0
    %v8129 = vadd.f32 %v7349, %v8128
    %v8130 = vpop.f32.mrf.mxu0
    %8131 = vdwg.mxu0
    %8132 = vmatpush.bf16.msra.mxu0 %v7878
    %8133 = vmatpush.bf16.msra.mxu0 %v7877
    %8134 = vmatpush.bf16.msra.mxu0 %v7876
    %8135 = vmatpush.bf16.msra.mxu0 %v7875
    %8136 = vmatpush.bf16.msra.mxu0 %v7874
    %8137 = vmatpush.bf16.msra.mxu0 %v7873
    %8138 = vmatpush.bf16.msra.mxu0 %v7872
    %8139 = vmatpush.bf16.msra.mxu0 %v7871
    %8140 = vmatmul.bf16.gmra.mxu0 %v7333
    %v8141 = vpop.f32.mrf.mxu0
    %v8142 = vadd.f32 %v8129, %v8141
    %v8143 = vpop.f32.mrf.mxu0
    %8144 = vdwg.mxu0
    %8145 = vmatpush.bf16.msra.mxu0 %v7886
    %8146 = vmatpush.bf16.msra.mxu0 %v7885
    %8147 = vmatpush.bf16.msra.mxu0 %v7884
    %8148 = vmatpush.bf16.msra.mxu0 %v7883
    %8149 = vmatpush.bf16.msra.mxu0 %v7882
    %8150 = vmatpush.bf16.msra.mxu0 %v7881
    %8151 = vmatpush.bf16.msra.mxu0 %v7880
    %8152 = vmatpush.bf16.msra.mxu0 %v7879
    %8153 = vmatmul.bf16.gmra.mxu0 %v7334
    %v8154 = vpop.f32.mrf.mxu0
    %v8155 = vadd.f32 %v8142, %v8154
    %v8156 = vpop.f32.mrf.mxu0
    %8157 = vdwg.mxu0
    %8158 = vmatpush.bf16.msra.mxu0 %v7894
    %8159 = vmatpush.bf16.msra.mxu0 %v7893
    %8160 = vmatpush.bf16.msra.mxu0 %v7892
    %8161 = vmatpush.bf16.msra.mxu0 %v7891
    %8162 = vmatpush.bf16.msra.mxu0 %v7890
    %8163 = vmatpush.bf16.msra.mxu0 %v7889
    %8164 = vmatpush.bf16.msra.mxu0 %v7888
    %8165 = vmatpush.bf16.msra.mxu0 %v7887
    %8166 = vmatmul.bf16.gmra.mxu0 %v7335
    %v8167 = vpop.f32.mrf.mxu0
    %v8168 = vadd.f32 %v8155, %v8167
    %v8169 = vpop.f32.mrf.mxu0
    %8170 = vdwg.mxu0
    %8171 = vmatpush.bf16.msra.mxu0 %v7902
    %8172 = vmatpush.bf16.msra.mxu0 %v7901
    %8173 = vmatpush.bf16.msra.mxu0 %v7900
    %8174 = vmatpush.bf16.msra.mxu0 %v7899
    %8175 = vmatpush.bf16.msra.mxu0 %v7898
    %8176 = vmatpush.bf16.msra.mxu0 %v7897
    %8177 = vmatpush.bf16.msra.mxu0 %v7896
    %8178 = vmatpush.bf16.msra.mxu0 %v7895
    %8179 = vmatmul.bf16.gmra.mxu0 %v7336
    %v8180 = vpop.f32.mrf.mxu0
    %v8181 = vadd.f32 %v8168, %v8180
    %v8182 = vpop.f32.mrf.mxu0
    %8183 = vdwg.mxu0
    %8184 = vmatpush.bf16.msra.mxu0 %v7910
    %8185 = vmatpush.bf16.msra.mxu0 %v7909
    %8186 = vmatpush.bf16.msra.mxu0 %v7908
    %8187 = vmatpush.bf16.msra.mxu0 %v7907
    %8188 = vmatpush.bf16.msra.mxu0 %v7906
    %8189 = vmatpush.bf16.msra.mxu0 %v7905
    %8190 = vmatpush.bf16.msra.mxu0 %v7904
    %8191 = vmatpush.bf16.msra.mxu0 %v7903
    %8192 = vmatmul.bf16.gmra.mxu0 %v7337
    %v8193 = vpop.f32.mrf.mxu0
    %v8194 = vadd.f32 %v8181, %v8193
    %v8195 = vpop.f32.mrf.mxu0
    %8196 = vdwg.mxu0
    %8197 = vmatpush.bf16.msra.mxu0 %v7918
    %8198 = vmatpush.bf16.msra.mxu0 %v7917
    %8199 = vmatpush.bf16.msra.mxu0 %v7916
    %8200 = vmatpush.bf16.msra.mxu0 %v7915
    %8201 = vmatpush.bf16.msra.mxu0 %v7914
    %8202 = vmatpush.bf16.msra.mxu0 %v7913
    %8203 = vmatpush.bf16.msra.mxu0 %v7912
    %8204 = vmatpush.bf16.msra.mxu0 %v7911
    %8205 = vmatmul.bf16.gmra.mxu0 %v7338
    %v8206 = vpop.f32.mrf.mxu0
    %v8207 = vadd.f32 %v8194, %v8206
    %v8208 = vpop.f32.mrf.mxu0
    %8209 = vdwg.mxu0
    %8210 = vmatpush.bf16.msra.mxu0 %v7926
    %8211 = vmatpush.bf16.msra.mxu0 %v7925
    %8212 = vmatpush.bf16.msra.mxu0 %v7924
    %8213 = vmatpush.bf16.msra.mxu0 %v7923
    %8214 = vmatpush.bf16.msra.mxu0 %v7922
    %8215 = vmatpush.bf16.msra.mxu0 %v7921
    %8216 = vmatpush.bf16.msra.mxu0 %v7920
    %8217 = vmatpush.bf16.msra.mxu0 %v7919
    %8218 = vmatmul.bf16.gmra.mxu0 %v7339
    %v8219 = vpop.f32.mrf.mxu0
    %v8220 = vadd.f32 %v8207, %v8219
    %v8221 = vpop.f32.mrf.mxu0
    %8222 = vdwg.mxu0
    %8223 = vmatpush.bf16.msra.mxu0 %v7934
    %8224 = vmatpush.bf16.msra.mxu0 %v7933
    %8225 = vmatpush.bf16.msra.mxu0 %v7932
    %8226 = vmatpush.bf16.msra.mxu0 %v7931
    %8227 = vmatpush.bf16.msra.mxu0 %v7930
    %8228 = vmatpush.bf16.msra.mxu0 %v7929
    %8229 = vmatpush.bf16.msra.mxu0 %v7928
    %8230 = vmatpush.bf16.msra.mxu0 %v7927
    %8231 = vmatmul.bf16.gmra.mxu0 %v7340
    %v8232 = vpop.f32.mrf.mxu0
    %v8233 = vadd.f32 %v8220, %v8232
    %v8234 = vpop.f32.mrf.mxu0
    %8235 = vdwg.mxu0
    %8236 = vmatpush.bf16.msra.mxu0 %v7942
    %8237 = vmatpush.bf16.msra.mxu0 %v7941
    %8238 = vmatpush.bf16.msra.mxu0 %v7940
    %8239 = vmatpush.bf16.msra.mxu0 %v7939
    %8240 = vmatpush.bf16.msra.mxu0 %v7938
    %8241 = vmatpush.bf16.msra.mxu0 %v7937
    %8242 = vmatpush.bf16.msra.mxu0 %v7936
    %8243 = vmatpush.bf16.msra.mxu0 %v7935
    %8244 = vmatmul.bf16.gmra.mxu0 %v7341
    %v8245 = vpop.f32.mrf.mxu0
    %v8246 = vadd.f32 %v8233, %v8245
    %v8247 = vpop.f32.mrf.mxu0
    %8248 = vdwg.mxu0
    %8249 = vmatpush.bf16.msra.mxu0 %v7950
    %8250 = vmatpush.bf16.msra.mxu0 %v7949
    %8251 = vmatpush.bf16.msra.mxu0 %v7948
    %8252 = vmatpush.bf16.msra.mxu0 %v7947
    %8253 = vmatpush.bf16.msra.mxu0 %v7946
    %8254 = vmatpush.bf16.msra.mxu0 %v7945
    %8255 = vmatpush.bf16.msra.mxu0 %v7944
    %8256 = vmatpush.bf16.msra.mxu0 %v7943
    %8257 = vmatmul.bf16.gmra.mxu0 %v7342
    %v8258 = vpop.f32.mrf.mxu0
    %v8259 = vadd.f32 %v8246, %v8258
    %v8260 = vpop.f32.mrf.mxu0
    %8261 = vdwg.mxu0
    %8262 = vmatpush.bf16.msra.mxu0 %v7958
    %8263 = vmatpush.bf16.msra.mxu0 %v7957
    %8264 = vmatpush.bf16.msra.mxu0 %v7956
    %8265 = vmatpush.bf16.msra.mxu0 %v7955
    %8266 = vmatpush.bf16.msra.mxu0 %v7954
    %8267 = vmatpush.bf16.msra.mxu0 %v7953
    %8268 = vmatpush.bf16.msra.mxu0 %v7952
    %8269 = vmatpush.bf16.msra.mxu0 %v7951
    %8270 = vmatmul.bf16.gmra.mxu0 %v7343
    %v8271 = vpop.f32.mrf.mxu0
    %v8272 = vadd.f32 %v8259, %v8271
    %v8273 = vpop.f32.mrf.mxu0
    %8274 = vdwg.mxu0
    %8275 = vmatpush.bf16.msra.mxu0 %v7966
    %8276 = vmatpush.bf16.msra.mxu0 %v7965
    %8277 = vmatpush.bf16.msra.mxu0 %v7964
    %8278 = vmatpush.bf16.msra.mxu0 %v7963
    %8279 = vmatpush.bf16.msra.mxu0 %v7962
    %8280 = vmatpush.bf16.msra.mxu0 %v7961
    %8281 = vmatpush.bf16.msra.mxu0 %v7960
    %8282 = vmatpush.bf16.msra.mxu0 %v7959
    %8283 = vmatmul.bf16.gmra.mxu0 %v7344
    %v8284 = vpop.f32.mrf.mxu0
    %v8285 = vadd.f32 %v8272, %v8284
    %v8286 = vpop.f32.mrf.mxu0
    %8287 = vdwg.mxu0
    %8288 = vmatpush.bf16.msra.mxu0 %v7974
    %8289 = vmatpush.bf16.msra.mxu0 %v7973
    %8290 = vmatpush.bf16.msra.mxu0 %v7972
    %8291 = vmatpush.bf16.msra.mxu0 %v7971
    %8292 = vmatpush.bf16.msra.mxu0 %v7970
    %8293 = vmatpush.bf16.msra.mxu0 %v7969
    %8294 = vmatpush.bf16.msra.mxu0 %v7968
    %8295 = vmatpush.bf16.msra.mxu0 %v7967
    %8296 = vmatmul.bf16.gmra.mxu0 %v7345
    %v8297 = vpop.f32.mrf.mxu0
    %v8298 = vadd.f32 %v8285, %v8297
    %v8299 = vpop.f32.mrf.mxu0
    %8300 = vdwg.mxu0
    %8301 = vmatpush.bf16.msra.mxu0 %v7982
    %8302 = vmatpush.bf16.msra.mxu0 %v7981
    %8303 = vmatpush.bf16.msra.mxu0 %v7980
    %8304 = vmatpush.bf16.msra.mxu0 %v7979
    %8305 = vmatpush.bf16.msra.mxu0 %v7978
    %8306 = vmatpush.bf16.msra.mxu0 %v7977
    %8307 = vmatpush.bf16.msra.mxu0 %v7976
    %8308 = vmatpush.bf16.msra.mxu0 %v7975
    %8309 = vmatmul.bf16.gmra.mxu0 %v7346
    %v8310 = vpop.f32.mrf.mxu0
    %v8311 = vadd.f32 %v8298, %v8310
    %v8312 = vpop.f32.mrf.mxu0
    %8313 = vdwg.mxu0
    %8314 = vmatpush.bf16.msra.mxu0 %v7990
    %8315 = vmatpush.bf16.msra.mxu0 %v7989
    %8316 = vmatpush.bf16.msra.mxu0 %v7988
    %8317 = vmatpush.bf16.msra.mxu0 %v7987
    %8318 = vmatpush.bf16.msra.mxu0 %v7986
    %8319 = vmatpush.bf16.msra.mxu0 %v7985
    %8320 = vmatpush.bf16.msra.mxu0 %v7984
    %8321 = vmatpush.bf16.msra.mxu0 %v7983
    %8322 = vmatmul.bf16.gmra.mxu0 %v7347
    %v8323 = vpop.f32.mrf.mxu0
    %v8324 = vadd.f32 %v8311, %v8323
    %v8325 = vpop.f32.mrf.mxu0
    %8326 = vdwg.mxu0
    %v8327 = vadd.f32 %v6614, %v8324
    %s8328 = scalar_lea.vmem %s20, 3
    %v8329 = vld [vmem:[%s8328] sm:$0x1]
    %s8330 = scalar_lea.vmem %s21, 3
    %v8331 = vld [vmem:[%s8330] sm:$0x1]
    %v8332 = vsel %vm475, %v8327, 0.0
    %8333 = vadd.xlane.f32.xlu0 %v8332
    %v8334 = vpop.xlane.xlu0 %8333
    %v8335 = vmul.f32 %v8334, %v485
    %v8336 = vsub.f32 %v8327, %v8335
    %v8337 = vmul.f32 %v8336, %v8336
    %v8338 = vsel %vm475, %v8337, 0.0
    %8339 = vadd.xlane.f32.xlu0 %v8338
    %v8340 = vpop.xlane.xlu0 %8339
    %v8341 = vmul.f32 %v8340, %v485
    %v8342 = vadd.f32 %v8341, 1e-05
    %v8343 = vrsqrt.pop %v8342
    %v8344 = vmul.f32 %v8343, %v8342
    %v8345 = vmul.f32 %v8344, %v8343
    %v8346 = vmul.f32 0.5, %v8345
    %v8347 = vsub.f32 1.5, %v8346
    %v8348 = vmul.f32 %v8343, %v8347
    %vm8349 = vweird.f32 %v8342
    %vm8350 = vweird.f32 %v8343
    %vm8351 = vmor %vm8349, %vm8350
    %v8352 = vsel %vm8351, %v8343, %v8348
    %v8353 = vmul.f32 %v8336, %v8352
    %v8355 = vperm.slane %v8329, 0
    %v8357 = vmul.f32 %v8353, %v8355
    %v8359 = vperm.slane %v8331, 0
    %v8361 = vadd.f32 %v8357, %v8359
    %s8362 = scalar_lea.vmem %s10, 64
    %v8363 = vld [vmem:[%s8362] sm:$0xf]
    %v8364 = vld [vmem:[%s8362 + $0x4] sm:$0xf]
    %v8365 = vld [vmem:[%s8362 + $0x8] sm:$0xf]
    %v8366 = vld [vmem:[%s8362 + $0xc] sm:$0xf]
    %s8367 = scalar_lea.vmem %s11, 4
    %v8368 = vld [vmem:[%s8367] sm:$0x1]
    %v8369 = vpack.c.bf16 %v8361, %v8361
    %v8371 = vperm.slane %v8368, 0
    %v8377 = vunpack.c.l.b16 %v8363
    %v8378 = vunpack.c.l.b16 %v8364
    %v8379 = vunpack.c.l.b16 %v8365
    %v8380 = vunpack.c.l.b16 %v8366
    %v8381 = vpack.c.b16 %v8378, %v8377
    %v8382 = vpack.c.b16 %v8380, %v8379
    %v8386 = vsel %vm242, %v8369, 0
    %8388 = vmatpush.bf16.msra.mxu0 0
    %8389 = vmatpush.bf16.msra.mxu0 0
    %8390 = vmatpush.bf16.msra.mxu0 0
    %8391 = vmatpush.bf16.msra.mxu0 0
    %8392 = vmatpush.bf16.msra.mxu0 0
    %8393 = vmatpush.bf16.msra.mxu0 0
    %8394 = vmatpush.bf16.msra.mxu0 %v8382
    %8395 = vmatpush.bf16.msra.mxu0 %v8381
    %8396 = vmatmul.bf16.gmra.mxu0 %v8386
    %v8397 = vpop.f32.mrf.mxu0
    %v8398 = vadd.f32 %v8371, %v8397
    %v8399 = vpop.f32.mrf.mxu0
    %8400 = vdwg.mxu0
    %8402 = vrot.lane.b32.xlu0 %v8398, 96
    %v8403 = vpop.permute.xlu0 %8402
    %8405 = vxpose.xlu0.b32.start [1/16] %v8403, 128
    %8406 = vxpose.xlu0.b32.cont [2/16] 0.0, 128
    %8407 = vxpose.xlu0.b32.cont [3/16] 0.0, 128
    %8408 = vxpose.xlu0.b32.cont [4/16] 0.0, 128
    %8409 = vxpose.xlu0.b32.cont [5/16] 0.0, 128
    %8410 = vxpose.xlu0.b32.cont [6/16] 0.0, 128
    %8411 = vxpose.xlu0.b32.cont [7/16] 0.0, 128
    %8412 = vxpose.xlu0.b32.cont [8/16] 0.0, 128
    %8413 = vxpose.xlu0.b32.cont [9/16] 0.0, 128
    %8414 = vxpose.xlu0.b32.cont [10/16] 0.0, 128
    %8415 = vxpose.xlu0.b32.cont [11/16] 0.0, 128
    %8416 = vxpose.xlu0.b32.cont [12/16] 0.0, 128
    %8417 = vxpose.xlu0.b32.cont [13/16] 0.0, 128
    %8418 = vxpose.xlu0.b32.cont [14/16] 0.0, 128
    %8419 = vxpose.xlu0.b32.cont [15/16] 0.0, 128
    %8420 = vxpose.xlu0.b32.end [16/16] 0.0, 128
    %v8421 = vpop.trf.xlu0
    %v8422 = vpop.trf.xlu0
    %v8423 = vpop.trf.xlu0
    %v8424 = vpop.trf.xlu0
    %v8425 = vpop.trf.xlu0
    %v8426 = vpop.trf.xlu0
    %v8427 = vpop.trf.xlu0
    %v8428 = vpop.trf.xlu0
    %v8429 = vpop.trf.xlu0
    %v8430 = vpop.trf.xlu0
    %v8431 = vpop.trf.xlu0
    %v8432 = vpop.trf.xlu0
    %v8433 = vpop.trf.xlu0
    %v8434 = vpop.trf.xlu0
    %v8435 = vpop.trf.xlu0
    %v8436 = vpop.trf.xlu0
    %v8437 = vmul.f32 %v8398, %v205
    %v8438 = vmul.f32 %v8398, %v210
    %v8439 = vmul.f32 %v8398, %v215
    %v8440 = vmul.f32 %v8398, %v220
    %v8442 = vrot.slane %v8438, 2
    %v8445 = vrot.slane %v8439, 4
    %v8448 = vrot.slane %v8440, 6
    %v8450 = vsel %vm96, %v8437, %v8442
    %v8451 = vsel %vm174, %v8442, %v8445
    %v8452 = vsel %vm172, %v8445, %v8448
    %v8453 = vpack.c.bf16 %v8451, %v8450
    %v8454 = vpack.c.bf16 %v8452, %v8452
    %v8455 = vpack.c.bf16 %v8422, %v8421
    %v8456 = vpack.c.bf16 %v8424, %v8423
    %v8458 = vsel %vm242, %v8453, 0
    %v8461 = vsel %vm242, %v8454, 0
    %8463 = vmatpush.bf16.msra.mxu0 0
    %8464 = vmatpush.bf16.msra.mxu0 0
    %8465 = vmatpush.bf16.msra.mxu0 0
    %8466 = vmatpush.bf16.msra.mxu0 0
    %8467 = vmatpush.bf16.msra.mxu0 0
    %8468 = vmatpush.bf16.msra.mxu0 0
    %8469 = vmatpush.bf16.msra.mxu0 %v8456
    %8470 = vmatpush.bf16.msra.mxu0 %v8455
    %8471 = vmatmul.bf16.gmra.mxu0 %v8458
    %v8472 = vpop.f32.mrf.mxu0
    %v8473 = vadd.f32 0.0, %v8472
    %v8474 = vpop.f32.mrf.mxu0
    %v8475 = vadd.f32 0.0, %v8474
    %8476 = vmatmul.bf16.gmra.mxu0 %v8461
    %v8477 = vpop.f32.mrf.mxu0
    %v8478 = vadd.f32 0.0, %v8477
    %v8479 = vpop.f32.mrf.mxu0
    %8480 = vdwg.mxu0
    %v8481 = vmul.f32 %v8473, 0.35355338
    %v8482 = vmul.f32 %v8475, 0.35355338
    %v8483 = vmul.f32 %v8478, 0.35355338
    %v8484 = vadd.f32 %v8481, %v198
    %v8485 = vadd.f32 %v8482, %v199
    %v8486 = vadd.f32 %v8483, %v200
    %v8487 = vsel %vm123, %v8484, -inf
    %8488 = vmax.xlane.f32.xlu0 %v8487
    %v8489 = vpop.xlane.xlu0 %8488
    %v8490 = vsel %vm123, %v8485, -inf
    %8491 = vmax.xlane.f32.xlu0 %v8490
    %v8492 = vpop.xlane.xlu0 %8491
    %v8493 = vsel %vm123, %v8486, -inf
    %8494 = vmax.xlane.f32.xlu0 %v8493
    %v8495 = vpop.xlane.xlu0 %8494
    %v8496 = vsub.f32 %v8484, %v8489
    %v8497 = vsub.f32 %v8485, %v8492
    %v8498 = vsub.f32 %v8486, %v8495
    %v8499 = vmul.f32 %v8496, 1.442695
    %v8500 = vpow.pop %v8499
    %v8501 = vmul.f32 %v8497, 1.442695
    %v8502 = vpow.pop %v8501
    %v8503 = vmul.f32 %v8498, 1.442695
    %v8504 = vpow.pop %v8503
    %v8505 = vsel %vm123, %v8500, 0.0
    %8506 = vadd.xlane.f32.xlu0 %v8505
    %v8507 = vpop.xlane.xlu0 %8506
    %v8508 = vsel %vm123, %v8502, 0.0
    %8509 = vadd.xlane.f32.xlu0 %v8508
    %v8510 = vpop.xlane.xlu0 %8509
    %v8511 = vsel %vm123, %v8504, 0.0
    %8512 = vadd.xlane.f32.xlu0 %v8511
    %v8513 = vpop.xlane.xlu0 %8512
    %v8514 = vrcp.pop %v8507
    %v8515 = vrcp.pop %v8510
    %v8516 = vrcp.pop %v8513
    %v8517 = vmul.f32 %v8500, %v8514
    %v8518 = vmul.f32 %v8502, %v8515
    %v8519 = vmul.f32 %v8504, %v8516
    %v8520 = vpack.c.bf16 %v8518, %v8517
    %v8521 = vpack.c.bf16 %v8519, %v8519
    %v8522 = vpack.c.bf16 %v8398, %v8398
    %8524 = vrot.lane.b32.xlu0 %v8522, 64
    %v8525 = vpop.permute.xlu0 %8524
    %v8527 = vsel %vm123, %v8520, 0
    %v8530 = vsel %vm123, %v8521, 0
    %v8533 = vsel %vm127, %v8525, 0
    %8535 = vmatpush.bf16.msra.mxu0 0
    %8536 = vmatpush.bf16.msra.mxu0 0
    %8537 = vmatpush.bf16.msra.mxu0 0
    %8538 = vmatpush.bf16.msra.mxu0 0
    %8539 = vmatpush.bf16.msra.mxu0 0
    %8540 = vmatpush.bf16.msra.mxu0 0
    %8541 = vmatpush.bf16.msra.mxu0 0
    %8542 = vmatpush.bf16.msra.mxu0 %v8533
    %8543 = vmatmul.bf16.gmra.mxu0 %v8527
    %v8544 = vpop.f32.mrf.mxu0
    %v8545 = vadd.f32 0.0, %v8544
    %v8546 = vpop.f32.mrf.mxu0
    %v8547 = vadd.f32 0.0, %v8546
    %8548 = vmatmul.bf16.gmra.mxu0 %v8530
    %v8549 = vpop.f32.mrf.mxu0
    %v8550 = vadd.f32 0.0, %v8549
    %v8551 = vpop.f32.mrf.mxu0
    %8552 = vdwg.mxu0
    %v8553 = vmul.f32 %v8545, %v205
    %v8554 = vmul.f32 %v8545, %v210
    %v8555 = vmul.f32 %v8547, %v210
    %v8556 = vmul.f32 %v8547, %v215
    %v8557 = vmul.f32 %v8550, %v215
    %v8558 = vmul.f32 %v8550, %v220
    %v8561 = vrot.slane %v8554, 6
    %v8562 = vrot.slane %v8555, 6
    %v8563 = vsel %vm172, %v8561, %v8562
    %v8565 = vadd.f32 %v8553, %v8563
    %v8568 = vrot.slane %v8556, 4
    %v8569 = vrot.slane %v8557, 4
    %v8570 = vsel %vm174, %v8568, %v8569
    %v8572 = vadd.f32 %v8565, %v8570
    %v8574 = vrot.slane %v8558, 2
    %v8576 = vadd.f32 %v8572, %v8574
    %s8577 = scalar_lea.vmem %s12, 64
    %v8578 = vld [vmem:[%s8577] sm:$0xf]
    %v8579 = vld [vmem:[%s8577 + $0x4] sm:$0xf]
    %v8580 = vld [vmem:[%s8577 + $0x8] sm:$0xf]
    %v8581 = vld [vmem:[%s8577 + $0xc] sm:$0xf]
    %s8582 = scalar_lea.vmem %s13, 4
    %v8583 = vld [vmem:[%s8582] sm:$0x1]
    %v8584 = vpack.c.bf16 %v8576, %v8576
    %v8586 = vperm.slane %v8583, 0
    %v8592 = vunpack.c.l.b16 %v8578
    %v8593 = vunpack.c.l.b16 %v8579
    %v8594 = vunpack.c.l.b16 %v8580
    %v8595 = vunpack.c.l.b16 %v8581
    %v8596 = vpack.c.b16 %v8593, %v8592
    %v8597 = vpack.c.b16 %v8595, %v8594
    %v8601 = vsel %vm242, %v8584, 0
    %8603 = vmatpush.bf16.msra.mxu0 0
    %8604 = vmatpush.bf16.msra.mxu0 0
    %8605 = vmatpush.bf16.msra.mxu0 0
    %8606 = vmatpush.bf16.msra.mxu0 0
    %8607 = vmatpush.bf16.msra.mxu0 0
    %8608 = vmatpush.bf16.msra.mxu0 0
    %8609 = vmatpush.bf16.msra.mxu0 %v8597
    %8610 = vmatpush.bf16.msra.mxu0 %v8596
    %8611 = vmatmul.bf16.gmra.mxu0 %v8601
    %v8612 = vpop.f32.mrf.mxu0
    %v8613 = vadd.f32 %v8586, %v8612
    %v8614 = vpop.f32.mrf.mxu0
    %8615 = vdwg.mxu0
    %v8616 = vadd.f32 %v8361, %v8613
    %s8617 = scalar_lea.vmem %s14, 4
    %v8618 = vld [vmem:[%s8617] sm:$0x1]
    %s8619 = scalar_lea.vmem %s15, 4
    %v8620 = vld [vmem:[%s8619] sm:$0x1]
    %v8621 = vsel %vm475, %v8616, 0.0
    %8622 = vadd.xlane.f32.xlu0 %v8621
    %v8623 = vpop.xlane.xlu0 %8622
    %v8624 = vmul.f32 %v8623, %v485
    %v8625 = vsub.f32 %v8616, %v8624
    %v8626 = vmul.f32 %v8625, %v8625
    %v8627 = vsel %vm475, %v8626, 0.0
    %8628 = vadd.xlane.f32.xlu0 %v8627
    %v8629 = vpop.xlane.xlu0 %8628
    %v8630 = vmul.f32 %v8629, %v485
    %v8631 = vadd.f32 %v8630, 1e-05
    %v8632 = vrsqrt.pop %v8631
    %v8633 = vmul.f32 %v8632, %v8631
    %v8634 = vmul.f32 %v8633, %v8632
    %v8635 = vmul.f32 0.5, %v8634
    %v8636 = vsub.f32 1.5, %v8635
    %v8637 = vmul.f32 %v8632, %v8636
    %vm8638 = vweird.f32 %v8631
    %vm8639 = vweird.f32 %v8632
    %vm8640 = vmor %vm8638, %vm8639
    %v8641 = vsel %vm8640, %v8632, %v8637
    %v8642 = vmul.f32 %v8625, %v8641
    %v8644 = vperm.slane %v8618, 0
    %v8646 = vmul.f32 %v8642, %v8644
    %v8648 = vperm.slane %v8620, 0
    %v8650 = vadd.f32 %v8646, %v8648
    %s8651 = scalar_lea.vmem %s16, 1024
    %v8652 = vld [vmem:[%s8651] sm:$0xff]
    %v8653 = vld [vmem:[%s8651 + $0x8] sm:$0xff]
    %v8654 = vld [vmem:[%s8651 + $0x10] sm:$0xff]
    %v8655 = vld [vmem:[%s8651 + $0x18] sm:$0xff]
    %v8656 = vld [vmem:[%s8651 + $0x20] sm:$0xff]
    %v8657 = vld [vmem:[%s8651 + $0x28] sm:$0xff]
    %v8658 = vld [vmem:[%s8651 + $0x30] sm:$0xff]
    %v8659 = vld [vmem:[%s8651 + $0x38] sm:$0xff]
    %v8660 = vld [vmem:[%s8651 + $0x40] sm:$0xff]
    %v8661 = vld [vmem:[%s8651 + $0x48] sm:$0xff]
    %v8662 = vld [vmem:[%s8651 + $0x50] sm:$0xff]
    %v8663 = vld [vmem:[%s8651 + $0x58] sm:$0xff]
    %v8664 = vld [vmem:[%s8651 + $0x60] sm:$0xff]
    %v8665 = vld [vmem:[%s8651 + $0x68] sm:$0xff]
    %v8666 = vld [vmem:[%s8651 + $0x70] sm:$0xff]
    %v8667 = vld [vmem:[%s8651 + $0x78] sm:$0xff]
    %v8668 = vld [vmem:[%s8651 + $0x80] sm:$0xff]
    %v8669 = vld [vmem:[%s8651 + $0x88] sm:$0xff]
    %v8670 = vld [vmem:[%s8651 + $0x90] sm:$0xff]
    %v8671 = vld [vmem:[%s8651 + $0x98] sm:$0xff]
    %v8672 = vld [vmem:[%s8651 + $0xa0] sm:$0xff]
    %v8673 = vld [vmem:[%s8651 + $0xa8] sm:$0xff]
    %v8674 = vld [vmem:[%s8651 + $0xb0] sm:$0xff]
    %v8675 = vld [vmem:[%s8651 + $0xb8] sm:$0xff]
    %v8676 = vld [vmem:[%s8651 + $0xc0] sm:$0xff]
    %v8677 = vld [vmem:[%s8651 + $0xc8] sm:$0xff]
    %v8678 = vld [vmem:[%s8651 + $0xd0] sm:$0xff]
    %v8679 = vld [vmem:[%s8651 + $0xd8] sm:$0xff]
    %v8680 = vld [vmem:[%s8651 + $0xe0] sm:$0xff]
    %v8681 = vld [vmem:[%s8651 + $0xe8] sm:$0xff]
    %v8682 = vld [vmem:[%s8651 + $0xf0] sm:$0xff]
    %v8683 = vld [vmem:[%s8651 + $0xf8] sm:$0xff]
    %s8684 = scalar_lea.vmem %s17, 64
    %v8685 = vld [vmem:[%s8684] sm:$0xff]
    %v8686 = vld [vmem:[%s8684 + $0x8] sm:$0xff]
    %v8687 = vpack.c.bf16 %v8650, %v8650
    %v8690 = vperm.slane %v8685, 0
    %v8691 = vperm.slane %v8685, 1
    %v8692 = vperm.slane %v8685, 2
    %v8693 = vperm.slane %v8685, 3
    %v8694 = vperm.slane %v8685, 4
    %v8695 = vperm.slane %v8685, 5
    %v8696 = vperm.slane %v8685, 6
    %v8697 = vperm.slane %v8685, 7
    %v8698 = vperm.slane %v8686, 0
    %v8699 = vperm.slane %v8686, 1
    %v8700 = vperm.slane %v8686, 2
    %v8701 = vperm.slane %v8686, 3
    %v8702 = vperm.slane %v8686, 4
    %v8703 = vperm.slane %v8686, 5
    %v8704 = vperm.slane %v8686, 6
    %v8705 = vperm.slane %v8686, 7
    %v8754 = vunpack.c.l.b16 %v8652
    %v8755 = vunpack.c.h.b16 %v8652
    %v8756 = vunpack.c.l.b16 %v8653
    %v8757 = vunpack.c.h.b16 %v8653
    %v8758 = vunpack.c.l.b16 %v8654
    %v8759 = vunpack.c.h.b16 %v8654
    %v8760 = vunpack.c.l.b16 %v8655
    %v8761 = vunpack.c.h.b16 %v8655
    %v8762 = vunpack.c.l.b16 %v8656
    %v8763 = vunpack.c.h.b16 %v8656
    %v8764 = vunpack.c.l.b16 %v8657
    %v8765 = vunpack.c.h.b16 %v8657
    %v8766 = vunpack.c.l.b16 %v8658
    %v8767 = vunpack.c.h.b16 %v8658
    %v8768 = vunpack.c.l.b16 %v8659
    %v8769 = vunpack.c.h.b16 %v8659
    %v8770 = vunpack.c.l.b16 %v8660
    %v8771 = vunpack.c.h.b16 %v8660
    %v8772 = vunpack.c.l.b16 %v8661
    %v8773 = vunpack.c.h.b16 %v8661
    %v8774 = vunpack.c.l.b16 %v8662
    %v8775 = vunpack.c.h.b16 %v8662
    %v8776 = vunpack.c.l.b16 %v8663
    %v8777 = vunpack.c.h.b16 %v8663
    %v8778 = vunpack.c.l.b16 %v8664
    %v8779 = vunpack.c.h.b16 %v8664
    %v8780 = vunpack.c.l.b16 %v8665
    %v8781 = vunpack.c.h.b16 %v8665
    %v8782 = vunpack.c.l.b16 %v8666
    %v8783 = vunpack.c.h.b16 %v8666
    %v8784 = vunpack.c.l.b16 %v8667
    %v8785 = vunpack.c.h.b16 %v8667
    %v8786 = vunpack.c.l.b16 %v8668
    %v8787 = vunpack.c.h.b16 %v8668
    %v8788 = vunpack.c.l.b16 %v8669
    %v8789 = vunpack.c.h.b16 %v8669
    %v8790 = vunpack.c.l.b16 %v8670
    %v8791 = vunpack.c.h.b16 %v8670
    %v8792 = vunpack.c.l.b16 %v8671
    %v8793 = vunpack.c.h.b16 %v8671
    %v8794 = vunpack.c.l.b16 %v8672
    %v8795 = vunpack.c.h.b16 %v8672
    %v8796 = vunpack.c.l.b16 %v8673
    %v8797 = vunpack.c.h.b16 %v8673
    %v8798 = vunpack.c.l.b16 %v8674
    %v8799 = vunpack.c.h.b16 %v8674
    %v8800 = vunpack.c.l.b16 %v8675
    %v8801 = vunpack.c.h.b16 %v8675
    %v8802 = vunpack.c.l.b16 %v8676
    %v8803 = vunpack.c.h.b16 %v8676
    %v8804 = vunpack.c.l.b16 %v8677
    %v8805 = vunpack.c.h.b16 %v8677
    %v8806 = vunpack.c.l.b16 %v8678
    %v8807 = vunpack.c.h.b16 %v8678
    %v8808 = vunpack.c.l.b16 %v8679
    %v8809 = vunpack.c.h.b16 %v8679
    %v8810 = vunpack.c.l.b16 %v8680
    %v8811 = vunpack.c.h.b16 %v8680
    %v8812 = vunpack.c.l.b16 %v8681
    %v8813 = vunpack.c.h.b16 %v8681
    %v8814 = vunpack.c.l.b16 %v8682
    %v8815 = vunpack.c.h.b16 %v8682
    %v8816 = vunpack.c.l.b16 %v8683
    %v8817 = vunpack.c.h.b16 %v8683
    %v8818 = vpack.c.b16 %v8770, %v8754
    %v8819 = vpack.c.b16 %v8771, %v8755
    %v8820 = vpack.c.b16 %v8772, %v8756
    %v8821 = vpack.c.b16 %v8773, %v8757
    %v8822 = vpack.c.b16 %v8774, %v8758
    %v8823 = vpack.c.b16 %v8775, %v8759
    %v8824 = vpack.c.b16 %v8776, %v8760
    %v8825 = vpack.c.b16 %v8777, %v8761
    %v8826 = vpack.c.b16 %v8778, %v8762
    %v8827 = vpack.c.b16 %v8779, %v8763
    %v8828 = vpack.c.b16 %v8780, %v8764
    %v8829 = vpack.c.b16 %v8781, %v8765
    %v8830 = vpack.c.b16 %v8782, %v8766
    %v8831 = vpack.c.b16 %v8783, %v8767
    %v8832 = vpack.c.b16 %v8784, %v8768
    %v8833 = vpack.c.b16 %v8785, %v8769
    %v8834 = vpack.c.b16 %v8802, %v8786
    %v8835 = vpack.c.b16 %v8803, %v8787
    %v8836 = vpack.c.b16 %v8804, %v8788
    %v8837 = vpack.c.b16 %v8805, %v8789
    %v8838 = vpack.c.b16 %v8806, %v8790
    %v8839 = vpack.c.b16 %v8807, %v8791
    %v8840 = vpack.c.b16 %v8808, %v8792
    %v8841 = vpack.c.b16 %v8809, %v8793
    %v8842 = vpack.c.b16 %v8810, %v8794
    %v8843 = vpack.c.b16 %v8811, %v8795
    %v8844 = vpack.c.b16 %v8812, %v8796
    %v8845 = vpack.c.b16 %v8813, %v8797
    %v8846 = vpack.c.b16 %v8814, %v8798
    %v8847 = vpack.c.b16 %v8815, %v8799
    %v8848 = vpack.c.b16 %v8816, %v8800
    %v8849 = vpack.c.b16 %v8817, %v8801
    %v8883 = vsel %vm242, %v8687, 0
    %8885 = vmatpush.bf16.msra.mxu0 0
    %8886 = vmatpush.bf16.msra.mxu0 0
    %8887 = vmatpush.bf16.msra.mxu0 0
    %8888 = vmatpush.bf16.msra.mxu0 0
    %8889 = vmatpush.bf16.msra.mxu0 0
    %8890 = vmatpush.bf16.msra.mxu0 0
    %8891 = vmatpush.bf16.msra.mxu0 %v8834
    %8892 = vmatpush.bf16.msra.mxu0 %v8818
    %8893 = vmatmul.bf16.gmra.mxu0 %v8883
    %v8894 = vpop.f32.mrf.mxu0
    %v8895 = vadd.f32 %v8690, %v8894
    %v8896 = vpop.f32.mrf.mxu0
    %8897 = vdwg.mxu0
    %8898 = vmatpush.bf16.msra.mxu0 0
    %8899 = vmatpush.bf16.msra.mxu0 0
    %8900 = vmatpush.bf16.msra.mxu0 0
    %8901 = vmatpush.bf16.msra.mxu0 0
    %8902 = vmatpush.bf16.msra.mxu0 0
    %8903 = vmatpush.bf16.msra.mxu0 0
    %8904 = vmatpush.bf16.msra.mxu0 %v8835
    %8905 = vmatpush.bf16.msra.mxu0 %v8819
    %8906 = vmatmul.bf16.gmra.mxu0 %v8883
    %v8907 = vpop.f32.mrf.mxu0
    %v8908 = vadd.f32 %v8691, %v8907
    %v8909 = vpop.f32.mrf.mxu0
    %8910 = vdwg.mxu0
    %8911 = vmatpush.bf16.msra.mxu0 0
    %8912 = vmatpush.bf16.msra.mxu0 0
    %8913 = vmatpush.bf16.msra.mxu0 0
    %8914 = vmatpush.bf16.msra.mxu0 0
    %8915 = vmatpush.bf16.msra.mxu0 0
    %8916 = vmatpush.bf16.msra.mxu0 0
    %8917 = vmatpush.bf16.msra.mxu0 %v8836
    %8918 = vmatpush.bf16.msra.mxu0 %v8820
    %8919 = vmatmul.bf16.gmra.mxu0 %v8883
    %v8920 = vpop.f32.mrf.mxu0
    %v8921 = vadd.f32 %v8692, %v8920
    %v8922 = vpop.f32.mrf.mxu0
    %8923 = vdwg.mxu0
    %8924 = vmatpush.bf16.msra.mxu0 0
    %8925 = vmatpush.bf16.msra.mxu0 0
    %8926 = vmatpush.bf16.msra.mxu0 0
    %8927 = vmatpush.bf16.msra.mxu0 0
    %8928 = vmatpush.bf16.msra.mxu0 0
    %8929 = vmatpush.bf16.msra.mxu0 0
    %8930 = vmatpush.bf16.msra.mxu0 %v8837
    %8931 = vmatpush.bf16.msra.mxu0 %v8821
    %8932 = vmatmul.bf16.gmra.mxu0 %v8883
    %v8933 = vpop.f32.mrf.mxu0
    %v8934 = vadd.f32 %v8693, %v8933
    %v8935 = vpop.f32.mrf.mxu0
    %8936 = vdwg.mxu0
    %8937 = vmatpush.bf16.msra.mxu0 0
    %8938 = vmatpush.bf16.msra.mxu0 0
    %8939 = vmatpush.bf16.msra.mxu0 0
    %8940 = vmatpush.bf16.msra.mxu0 0
    %8941 = vmatpush.bf16.msra.mxu0 0
    %8942 = vmatpush.bf16.msra.mxu0 0
    %8943 = vmatpush.bf16.msra.mxu0 %v8838
    %8944 = vmatpush.bf16.msra.mxu0 %v8822
    %8945 = vmatmul.bf16.gmra.mxu0 %v8883
    %v8946 = vpop.f32.mrf.mxu0
    %v8947 = vadd.f32 %v8694, %v8946
    %v8948 = vpop.f32.mrf.mxu0
    %8949 = vdwg.mxu0
    %8950 = vmatpush.bf16.msra.mxu0 0
    %8951 = vmatpush.bf16.msra.mxu0 0
    %8952 = vmatpush.bf16.msra.mxu0 0
    %8953 = vmatpush.bf16.msra.mxu0 0
    %8954 = vmatpush.bf16.msra.mxu0 0
    %8955 = vmatpush.bf16.msra.mxu0 0
    %8956 = vmatpush.bf16.msra.mxu0 %v8839
    %8957 = vmatpush.bf16.msra.mxu0 %v8823
    %8958 = vmatmul.bf16.gmra.mxu0 %v8883
    %v8959 = vpop.f32.mrf.mxu0
    %v8960 = vadd.f32 %v8695, %v8959
    %v8961 = vpop.f32.mrf.mxu0
    %8962 = vdwg.mxu0
    %8963 = vmatpush.bf16.msra.mxu0 0
    %8964 = vmatpush.bf16.msra.mxu0 0
    %8965 = vmatpush.bf16.msra.mxu0 0
    %8966 = vmatpush.bf16.msra.mxu0 0
    %8967 = vmatpush.bf16.msra.mxu0 0
    %8968 = vmatpush.bf16.msra.mxu0 0
    %8969 = vmatpush.bf16.msra.mxu0 %v8840
    %8970 = vmatpush.bf16.msra.mxu0 %v8824
    %8971 = vmatmul.bf16.gmra.mxu0 %v8883
    %v8972 = vpop.f32.mrf.mxu0
    %v8973 = vadd.f32 %v8696, %v8972
    %v8974 = vpop.f32.mrf.mxu0
    %8975 = vdwg.mxu0
    %8976 = vmatpush.bf16.msra.mxu0 0
    %8977 = vmatpush.bf16.msra.mxu0 0
    %8978 = vmatpush.bf16.msra.mxu0 0
    %8979 = vmatpush.bf16.msra.mxu0 0
    %8980 = vmatpush.bf16.msra.mxu0 0
    %8981 = vmatpush.bf16.msra.mxu0 0
    %8982 = vmatpush.bf16.msra.mxu0 %v8841
    %8983 = vmatpush.bf16.msra.mxu0 %v8825
    %8984 = vmatmul.bf16.gmra.mxu0 %v8883
    %v8985 = vpop.f32.mrf.mxu0
    %v8986 = vadd.f32 %v8697, %v8985
    %v8987 = vpop.f32.mrf.mxu0
    %8988 = vdwg.mxu0
    %8989 = vmatpush.bf16.msra.mxu0 0
    %8990 = vmatpush.bf16.msra.mxu0 0
    %8991 = vmatpush.bf16.msra.mxu0 0
    %8992 = vmatpush.bf16.msra.mxu0 0
    %8993 = vmatpush.bf16.msra.mxu0 0
    %8994 = vmatpush.bf16.msra.mxu0 0
    %8995 = vmatpush.bf16.msra.mxu0 %v8842
    %8996 = vmatpush.bf16.msra.mxu0 %v8826
    %8997 = vmatmul.bf16.gmra.mxu0 %v8883
    %v8998 = vpop.f32.mrf.mxu0
    %v8999 = vadd.f32 %v8698, %v8998
    %v9000 = vpop.f32.mrf.mxu0
    %9001 = vdwg.mxu0
    %9002 = vmatpush.bf16.msra.mxu0 0
    %9003 = vmatpush.bf16.msra.mxu0 0
    %9004 = vmatpush.bf16.msra.mxu0 0
    %9005 = vmatpush.bf16.msra.mxu0 0
    %9006 = vmatpush.bf16.msra.mxu0 0
    %9007 = vmatpush.bf16.msra.mxu0 0
    %9008 = vmatpush.bf16.msra.mxu0 %v8843
    %9009 = vmatpush.bf16.msra.mxu0 %v8827
    %9010 = vmatmul.bf16.gmra.mxu0 %v8883
    %v9011 = vpop.f32.mrf.mxu0
    %v9012 = vadd.f32 %v8699, %v9011
    %v9013 = vpop.f32.mrf.mxu0
    %9014 = vdwg.mxu0
    %9015 = vmatpush.bf16.msra.mxu0 0
    %9016 = vmatpush.bf16.msra.mxu0 0
    %9017 = vmatpush.bf16.msra.mxu0 0
    %9018 = vmatpush.bf16.msra.mxu0 0
    %9019 = vmatpush.bf16.msra.mxu0 0
    %9020 = vmatpush.bf16.msra.mxu0 0
    %9021 = vmatpush.bf16.msra.mxu0 %v8844
    %9022 = vmatpush.bf16.msra.mxu0 %v8828
    %9023 = vmatmul.bf16.gmra.mxu0 %v8883
    %v9024 = vpop.f32.mrf.mxu0
    %v9025 = vadd.f32 %v8700, %v9024
    %v9026 = vpop.f32.mrf.mxu0
    %9027 = vdwg.mxu0
    %9028 = vmatpush.bf16.msra.mxu0 0
    %9029 = vmatpush.bf16.msra.mxu0 0
    %9030 = vmatpush.bf16.msra.mxu0 0
    %9031 = vmatpush.bf16.msra.mxu0 0
    %9032 = vmatpush.bf16.msra.mxu0 0
    %9033 = vmatpush.bf16.msra.mxu0 0
    %9034 = vmatpush.bf16.msra.mxu0 %v8845
    %9035 = vmatpush.bf16.msra.mxu0 %v8829
    %9036 = vmatmul.bf16.gmra.mxu0 %v8883
    %v9037 = vpop.f32.mrf.mxu0
    %v9038 = vadd.f32 %v8701, %v9037
    %v9039 = vpop.f32.mrf.mxu0
    %9040 = vdwg.mxu0
    %9041 = vmatpush.bf16.msra.mxu0 0
    %9042 = vmatpush.bf16.msra.mxu0 0
    %9043 = vmatpush.bf16.msra.mxu0 0
    %9044 = vmatpush.bf16.msra.mxu0 0
    %9045 = vmatpush.bf16.msra.mxu0 0
    %9046 = vmatpush.bf16.msra.mxu0 0
    %9047 = vmatpush.bf16.msra.mxu0 %v8846
    %9048 = vmatpush.bf16.msra.mxu0 %v8830
    %9049 = vmatmul.bf16.gmra.mxu0 %v8883
    %v9050 = vpop.f32.mrf.mxu0
    %v9051 = vadd.f32 %v8702, %v9050
    %v9052 = vpop.f32.mrf.mxu0
    %9053 = vdwg.mxu0
    %9054 = vmatpush.bf16.msra.mxu0 0
    %9055 = vmatpush.bf16.msra.mxu0 0
    %9056 = vmatpush.bf16.msra.mxu0 0
    %9057 = vmatpush.bf16.msra.mxu0 0
    %9058 = vmatpush.bf16.msra.mxu0 0
    %9059 = vmatpush.bf16.msra.mxu0 0
    %9060 = vmatpush.bf16.msra.mxu0 %v8847
    %9061 = vmatpush.bf16.msra.mxu0 %v8831
    %9062 = vmatmul.bf16.gmra.mxu0 %v8883
    %v9063 = vpop.f32.mrf.mxu0
    %v9064 = vadd.f32 %v8703, %v9063
    %v9065 = vpop.f32.mrf.mxu0
    %9066 = vdwg.mxu0
    %9067 = vmatpush.bf16.msra.mxu0 0
    %9068 = vmatpush.bf16.msra.mxu0 0
    %9069 = vmatpush.bf16.msra.mxu0 0
    %9070 = vmatpush.bf16.msra.mxu0 0
    %9071 = vmatpush.bf16.msra.mxu0 0
    %9072 = vmatpush.bf16.msra.mxu0 0
    %9073 = vmatpush.bf16.msra.mxu0 %v8848
    %9074 = vmatpush.bf16.msra.mxu0 %v8832
    %9075 = vmatmul.bf16.gmra.mxu0 %v8883
    %v9076 = vpop.f32.mrf.mxu0
    %v9077 = vadd.f32 %v8704, %v9076
    %v9078 = vpop.f32.mrf.mxu0
    %9079 = vdwg.mxu0
    %9080 = vmatpush.bf16.msra.mxu0 0
    %9081 = vmatpush.bf16.msra.mxu0 0
    %9082 = vmatpush.bf16.msra.mxu0 0
    %9083 = vmatpush.bf16.msra.mxu0 0
    %9084 = vmatpush.bf16.msra.mxu0 0
    %9085 = vmatpush.bf16.msra.mxu0 0
    %9086 = vmatpush.bf16.msra.mxu0 %v8849
    %9087 = vmatpush.bf16.msra.mxu0 %v8833
    %9088 = vmatmul.bf16.gmra.mxu0 %v8883
    %v9089 = vpop.f32.mrf.mxu0
    %v9090 = vadd.f32 %v8705, %v9089
    %v9091 = vpop.f32.mrf.mxu0
    %9092 = vdwg.mxu0
    %v9093 = vmax.f32 %v8895, 0.0
    %v9094 = vmax.f32 %v8908, 0.0
    %v9095 = vmax.f32 %v8921, 0.0
    %v9096 = vmax.f32 %v8934, 0.0
    %v9097 = vmax.f32 %v8947, 0.0
    %v9098 = vmax.f32 %v8960, 0.0
    %v9099 = vmax.f32 %v8973, 0.0
    %v9100 = vmax.f32 %v8986, 0.0
    %v9101 = vmax.f32 %v8999, 0.0
    %v9102 = vmax.f32 %v9012, 0.0
    %v9103 = vmax.f32 %v9025, 0.0
    %v9104 = vmax.f32 %v9038, 0.0
    %v9105 = vmax.f32 %v9051, 0.0
    %v9106 = vmax.f32 %v9064, 0.0
    %v9107 = vmax.f32 %v9077, 0.0
    %v9108 = vmax.f32 %v9090, 0.0
    %s9109 = scalar_lea.vmem %s18, 4096
    %v9110 = vld [vmem:[%s9109] sm:$0xf]
    %v9111 = vld [vmem:[%s9109 + $0x4] sm:$0xf]
    %v9112 = vld [vmem:[%s9109 + $0x8] sm:$0xf]
    %v9113 = vld [vmem:[%s9109 + $0xc] sm:$0xf]
    %v9114 = vld [vmem:[%s9109 + $0x10] sm:$0xf]
    %v9115 = vld [vmem:[%s9109 + $0x14] sm:$0xf]
    %v9116 = vld [vmem:[%s9109 + $0x18] sm:$0xf]
    %v9117 = vld [vmem:[%s9109 + $0x1c] sm:$0xf]
    %v9118 = vld [vmem:[%s9109 + $0x20] sm:$0xf]
    %v9119 = vld [vmem:[%s9109 + $0x24] sm:$0xf]
    %v9120 = vld [vmem:[%s9109 + $0x28] sm:$0xf]
    %v9121 = vld [vmem:[%s9109 + $0x2c] sm:$0xf]
    %v9122 = vld [vmem:[%s9109 + $0x30] sm:$0xf]
    %v9123 = vld [vmem:[%s9109 + $0x34] sm:$0xf]
    %v9124 = vld [vmem:[%s9109 + $0x38] sm:$0xf]
    %v9125 = vld [vmem:[%s9109 + $0x3c] sm:$0xf]
    %v9126 = vld [vmem:[%s9109 + $0x40] sm:$0xf]
    %v9127 = vld [vmem:[%s9109 + $0x44] sm:$0xf]
    %v9128 = vld [vmem:[%s9109 + $0x48] sm:$0xf]
    %v9129 = vld [vmem:[%s9109 + $0x4c] sm:$0xf]
    %v9130 = vld [vmem:[%s9109 + $0x50] sm:$0xf]
    %v9131 = vld [vmem:[%s9109 + $0x54] sm:$0xf]
    %v9132 = vld [vmem:[%s9109 + $0x58] sm:$0xf]
    %v9133 = vld [vmem:[%s9109 + $0x5c] sm:$0xf]
    %v9134 = vld [vmem:[%s9109 + $0x60] sm:$0xf]
    %v9135 = vld [vmem:[%s9109 + $0x64] sm:$0xf]
    %v9136 = vld [vmem:[%s9109 + $0x68] sm:$0xf]
    %v9137 = vld [vmem:[%s9109 + $0x6c] sm:$0xf]
    %v9138 = vld [vmem:[%s9109 + $0x70] sm:$0xf]
    %v9139 = vld [vmem:[%s9109 + $0x74] sm:$0xf]
    %v9140 = vld [vmem:[%s9109 + $0x78] sm:$0xf]
    %v9141 = vld [vmem:[%s9109 + $0x7c] sm:$0xf]
    %v9142 = vld [vmem:[%s9109 + $0x80] sm:$0xf]
    %v9143 = vld [vmem:[%s9109 + $0x84] sm:$0xf]
    %v9144 = vld [vmem:[%s9109 + $0x88] sm:$0xf]
    %v9145 = vld [vmem:[%s9109 + $0x8c] sm:$0xf]
    %v9146 = vld [vmem:[%s9109 + $0x90] sm:$0xf]
    %v9147 = vld [vmem:[%s9109 + $0x94] sm:$0xf]
    %v9148 = vld [vmem:[%s9109 + $0x98] sm:$0xf]
    %v9149 = vld [vmem:[%s9109 + $0x9c] sm:$0xf]
    %v9150 = vld [vmem:[%s9109 + $0xa0] sm:$0xf]
    %v9151 = vld [vmem:[%s9109 + $0xa4] sm:$0xf]
    %v9152 = vld [vmem:[%s9109 + $0xa8] sm:$0xf]
    %v9153 = vld [vmem:[%s9109 + $0xac] sm:$0xf]
    %v9154 = vld [vmem:[%s9109 + $0xb0] sm:$0xf]
    %v9155 = vld [vmem:[%s9109 + $0xb4] sm:$0xf]
    %v9156 = vld [vmem:[%s9109 + $0xb8] sm:$0xf]
    %v9157 = vld [vmem:[%s9109 + $0xbc] sm:$0xf]
    %v9158 = vld [vmem:[%s9109 + $0xc0] sm:$0xf]
    %v9159 = vld [vmem:[%s9109 + $0xc4] sm:$0xf]
    %v9160 = vld [vmem:[%s9109 + $0xc8] sm:$0xf]
    %v9161 = vld [vmem:[%s9109 + $0xcc] sm:$0xf]
    %v9162 = vld [vmem:[%s9109 + $0xd0] sm:$0xf]
    %v9163 = vld [vmem:[%s9109 + $0xd4] sm:$0xf]
    %v9164 = vld [vmem:[%s9109 + $0xd8] sm:$0xf]
    %v9165 = vld [vmem:[%s9109 + $0xdc] sm:$0xf]
    %v9166 = vld [vmem:[%s9109 + $0xe0] sm:$0xf]
    %v9167 = vld [vmem:[%s9109 + $0xe4] sm:$0xf]
    %v9168 = vld [vmem:[%s9109 + $0xe8] sm:$0xf]
    %v9169 = vld [vmem:[%s9109 + $0xec] sm:$0xf]
    %v9170 = vld [vmem:[%s9109 + $0xf0] sm:$0xf]
    %v9171 = vld [vmem:[%s9109 + $0xf4] sm:$0xf]
    %v9172 = vld [vmem:[%s9109 + $0xf8] sm:$0xf]
    %v9173 = vld [vmem:[%s9109 + $0xfc] sm:$0xf]
    %v9174 = vld [vmem:[%s9109 + $0x100] sm:$0xf]
    %v9175 = vld [vmem:[%s9109 + $0x104] sm:$0xf]
    %v9176 = vld [vmem:[%s9109 + $0x108] sm:$0xf]
    %v9177 = vld [vmem:[%s9109 + $0x10c] sm:$0xf]
    %v9178 = vld [vmem:[%s9109 + $0x110] sm:$0xf]
    %v9179 = vld [vmem:[%s9109 + $0x114] sm:$0xf]
    %v9180 = vld [vmem:[%s9109 + $0x118] sm:$0xf]
    %v9181 = vld [vmem:[%s9109 + $0x11c] sm:$0xf]
    %v9182 = vld [vmem:[%s9109 + $0x120] sm:$0xf]
    %v9183 = vld [vmem:[%s9109 + $0x124] sm:$0xf]
    %v9184 = vld [vmem:[%s9109 + $0x128] sm:$0xf]
    %v9185 = vld [vmem:[%s9109 + $0x12c] sm:$0xf]
    %v9186 = vld [vmem:[%s9109 + $0x130] sm:$0xf]
    %v9187 = vld [vmem:[%s9109 + $0x134] sm:$0xf]
    %v9188 = vld [vmem:[%s9109 + $0x138] sm:$0xf]
    %v9189 = vld [vmem:[%s9109 + $0x13c] sm:$0xf]
    %v9190 = vld [vmem:[%s9109 + $0x140] sm:$0xf]
    %v9191 = vld [vmem:[%s9109 + $0x144] sm:$0xf]
    %v9192 = vld [vmem:[%s9109 + $0x148] sm:$0xf]
    %v9193 = vld [vmem:[%s9109 + $0x14c] sm:$0xf]
    %v9194 = vld [vmem:[%s9109 + $0x150] sm:$0xf]
    %v9195 = vld [vmem:[%s9109 + $0x154] sm:$0xf]
    %v9196 = vld [vmem:[%s9109 + $0x158] sm:$0xf]
    %v9197 = vld [vmem:[%s9109 + $0x15c] sm:$0xf]
    %v9198 = vld [vmem:[%s9109 + $0x160] sm:$0xf]
    %v9199 = vld [vmem:[%s9109 + $0x164] sm:$0xf]
    %v9200 = vld [vmem:[%s9109 + $0x168] sm:$0xf]
    %v9201 = vld [vmem:[%s9109 + $0x16c] sm:$0xf]
    %v9202 = vld [vmem:[%s9109 + $0x170] sm:$0xf]
    %v9203 = vld [vmem:[%s9109 + $0x174] sm:$0xf]
    %v9204 = vld [vmem:[%s9109 + $0x178] sm:$0xf]
    %v9205 = vld [vmem:[%s9109 + $0x17c] sm:$0xf]
    %v9206 = vld [vmem:[%s9109 + $0x180] sm:$0xf]
    %v9207 = vld [vmem:[%s9109 + $0x184] sm:$0xf]
    %v9208 = vld [vmem:[%s9109 + $0x188] sm:$0xf]
    %v9209 = vld [vmem:[%s9109 + $0x18c] sm:$0xf]
    %v9210 = vld [vmem:[%s9109 + $0x190] sm:$0xf]
    %v9211 = vld [vmem:[%s9109 + $0x194] sm:$0xf]
    %v9212 = vld [vmem:[%s9109 + $0x198] sm:$0xf]
    %v9213 = vld [vmem:[%s9109 + $0x19c] sm:$0xf]
    %v9214 = vld [vmem:[%s9109 + $0x1a0] sm:$0xf]
    %v9215 = vld [vmem:[%s9109 + $0x1a4] sm:$0xf]
    %v9216 = vld [vmem:[%s9109 + $0x1a8] sm:$0xf]
    %v9217 = vld [vmem:[%s9109 + $0x1ac] sm:$0xf]
    %v9218 = vld [vmem:[%s9109 + $0x1b0] sm:$0xf]
    %v9219 = vld [vmem:[%s9109 + $0x1b4] sm:$0xf]
    %v9220 = vld [vmem:[%s9109 + $0x1b8] sm:$0xf]
    %v9221 = vld [vmem:[%s9109 + $0x1bc] sm:$0xf]
    %v9222 = vld [vmem:[%s9109 + $0x1c0] sm:$0xf]
    %v9223 = vld [vmem:[%s9109 + $0x1c4] sm:$0xf]
    %v9224 = vld [vmem:[%s9109 + $0x1c8] sm:$0xf]
    %v9225 = vld [vmem:[%s9109 + $0x1cc] sm:$0xf]
    %v9226 = vld [vmem:[%s9109 + $0x1d0] sm:$0xf]
    %v9227 = vld [vmem:[%s9109 + $0x1d4] sm:$0xf]
    %v9228 = vld [vmem:[%s9109 + $0x1d8] sm:$0xf]
    %v9229 = vld [vmem:[%s9109 + $0x1dc] sm:$0xf]
    %v9230 = vld [vmem:[%s9109 + $0x1e0] sm:$0xf]
    %v9231 = vld [vmem:[%s9109 + $0x1e4] sm:$0xf]
    %v9232 = vld [vmem:[%s9109 + $0x1e8] sm:$0xf]
    %v9233 = vld [vmem:[%s9109 + $0x1ec] sm:$0xf]
    %v9234 = vld [vmem:[%s9109 + $0x1f0] sm:$0xf]
    %v9235 = vld [vmem:[%s9109 + $0x1f4] sm:$0xf]
    %v9236 = vld [vmem:[%s9109 + $0x1f8] sm:$0xf]
    %v9237 = vld [vmem:[%s9109 + $0x1fc] sm:$0xf]
    %v9238 = vld [vmem:[%s9109 + $0x200] sm:$0xf]
    %v9239 = vld [vmem:[%s9109 + $0x204] sm:$0xf]
    %v9240 = vld [vmem:[%s9109 + $0x208] sm:$0xf]
    %v9241 = vld [vmem:[%s9109 + $0x20c] sm:$0xf]
    %v9242 = vld [vmem:[%s9109 + $0x210] sm:$0xf]
    %v9243 = vld [vmem:[%s9109 + $0x214] sm:$0xf]
    %v9244 = vld [vmem:[%s9109 + $0x218] sm:$0xf]
    %v9245 = vld [vmem:[%s9109 + $0x21c] sm:$0xf]
    %v9246 = vld [vmem:[%s9109 + $0x220] sm:$0xf]
    %v9247 = vld [vmem:[%s9109 + $0x224] sm:$0xf]
    %v9248 = vld [vmem:[%s9109 + $0x228] sm:$0xf]
    %v9249 = vld [vmem:[%s9109 + $0x22c] sm:$0xf]
    %v9250 = vld [vmem:[%s9109 + $0x230] sm:$0xf]
    %v9251 = vld [vmem:[%s9109 + $0x234] sm:$0xf]
    %v9252 = vld [vmem:[%s9109 + $0x238] sm:$0xf]
    %v9253 = vld [vmem:[%s9109 + $0x23c] sm:$0xf]
    %v9254 = vld [vmem:[%s9109 + $0x240] sm:$0xf]
    %v9255 = vld [vmem:[%s9109 + $0x244] sm:$0xf]
    %v9256 = vld [vmem:[%s9109 + $0x248] sm:$0xf]
    %v9257 = vld [vmem:[%s9109 + $0x24c] sm:$0xf]
    %v9258 = vld [vmem:[%s9109 + $0x250] sm:$0xf]
    %v9259 = vld [vmem:[%s9109 + $0x254] sm:$0xf]
    %v9260 = vld [vmem:[%s9109 + $0x258] sm:$0xf]
    %v9261 = vld [vmem:[%s9109 + $0x25c] sm:$0xf]
    %v9262 = vld [vmem:[%s9109 + $0x260] sm:$0xf]
    %v9263 = vld [vmem:[%s9109 + $0x264] sm:$0xf]
    %v9264 = vld [vmem:[%s9109 + $0x268] sm:$0xf]
    %v9265 = vld [vmem:[%s9109 + $0x26c] sm:$0xf]
    %v9266 = vld [vmem:[%s9109 + $0x270] sm:$0xf]
    %v9267 = vld [vmem:[%s9109 + $0x274] sm:$0xf]
    %v9268 = vld [vmem:[%s9109 + $0x278] sm:$0xf]
    %v9269 = vld [vmem:[%s9109 + $0x27c] sm:$0xf]
    %v9270 = vld [vmem:[%s9109 + $0x280] sm:$0xf]
    %v9271 = vld [vmem:[%s9109 + $0x284] sm:$0xf]
    %v9272 = vld [vmem:[%s9109 + $0x288] sm:$0xf]
    %v9273 = vld [vmem:[%s9109 + $0x28c] sm:$0xf]
    %v9274 = vld [vmem:[%s9109 + $0x290] sm:$0xf]
    %v9275 = vld [vmem:[%s9109 + $0x294] sm:$0xf]
    %v9276 = vld [vmem:[%s9109 + $0x298] sm:$0xf]
    %v9277 = vld [vmem:[%s9109 + $0x29c] sm:$0xf]
    %v9278 = vld [vmem:[%s9109 + $0x2a0] sm:$0xf]
    %v9279 = vld [vmem:[%s9109 + $0x2a4] sm:$0xf]
    %v9280 = vld [vmem:[%s9109 + $0x2a8] sm:$0xf]
    %v9281 = vld [vmem:[%s9109 + $0x2ac] sm:$0xf]
    %v9282 = vld [vmem:[%s9109 + $0x2b0] sm:$0xf]
    %v9283 = vld [vmem:[%s9109 + $0x2b4] sm:$0xf]
    %v9284 = vld [vmem:[%s9109 + $0x2b8] sm:$0xf]
    %v9285 = vld [vmem:[%s9109 + $0x2bc] sm:$0xf]
    %v9286 = vld [vmem:[%s9109 + $0x2c0] sm:$0xf]
    %v9287 = vld [vmem:[%s9109 + $0x2c4] sm:$0xf]
    %v9288 = vld [vmem:[%s9109 + $0x2c8] sm:$0xf]
    %v9289 = vld [vmem:[%s9109 + $0x2cc] sm:$0xf]
    %v9290 = vld [vmem:[%s9109 + $0x2d0] sm:$0xf]
    %v9291 = vld [vmem:[%s9109 + $0x2d4] sm:$0xf]
    %v9292 = vld [vmem:[%s9109 + $0x2d8] sm:$0xf]
    %v9293 = vld [vmem:[%s9109 + $0x2dc] sm:$0xf]
    %v9294 = vld [vmem:[%s9109 + $0x2e0] sm:$0xf]
    %v9295 = vld [vmem:[%s9109 + $0x2e4] sm:$0xf]
    %v9296 = vld [vmem:[%s9109 + $0x2e8] sm:$0xf]
    %v9297 = vld [vmem:[%s9109 + $0x2ec] sm:$0xf]
    %v9298 = vld [vmem:[%s9109 + $0x2f0] sm:$0xf]
    %v9299 = vld [vmem:[%s9109 + $0x2f4] sm:$0xf]
    %v9300 = vld [vmem:[%s9109 + $0x2f8] sm:$0xf]
    %v9301 = vld [vmem:[%s9109 + $0x2fc] sm:$0xf]
    %v9302 = vld [vmem:[%s9109 + $0x300] sm:$0xf]
    %v9303 = vld [vmem:[%s9109 + $0x304] sm:$0xf]
    %v9304 = vld [vmem:[%s9109 + $0x308] sm:$0xf]
    %v9305 = vld [vmem:[%s9109 + $0x30c] sm:$0xf]
    %v9306 = vld [vmem:[%s9109 + $0x310] sm:$0xf]
    %v9307 = vld [vmem:[%s9109 + $0x314] sm:$0xf]
    %v9308 = vld [vmem:[%s9109 + $0x318] sm:$0xf]
    %v9309 = vld [vmem:[%s9109 + $0x31c] sm:$0xf]
    %v9310 = vld [vmem:[%s9109 + $0x320] sm:$0xf]
    %v9311 = vld [vmem:[%s9109 + $0x324] sm:$0xf]
    %v9312 = vld [vmem:[%s9109 + $0x328] sm:$0xf]
    %v9313 = vld [vmem:[%s9109 + $0x32c] sm:$0xf]
    %v9314 = vld [vmem:[%s9109 + $0x330] sm:$0xf]
    %v9315 = vld [vmem:[%s9109 + $0x334] sm:$0xf]
    %v9316 = vld [vmem:[%s9109 + $0x338] sm:$0xf]
    %v9317 = vld [vmem:[%s9109 + $0x33c] sm:$0xf]
    %v9318 = vld [vmem:[%s9109 + $0x340] sm:$0xf]
    %v9319 = vld [vmem:[%s9109 + $0x344] sm:$0xf]
    %v9320 = vld [vmem:[%s9109 + $0x348] sm:$0xf]
    %v9321 = vld [vmem:[%s9109 + $0x34c] sm:$0xf]
    %v9322 = vld [vmem:[%s9109 + $0x350] sm:$0xf]
    %v9323 = vld [vmem:[%s9109 + $0x354] sm:$0xf]
    %v9324 = vld [vmem:[%s9109 + $0x358] sm:$0xf]
    %v9325 = vld [vmem:[%s9109 + $0x35c] sm:$0xf]
    %v9326 = vld [vmem:[%s9109 + $0x360] sm:$0xf]
    %v9327 = vld [vmem:[%s9109 + $0x364] sm:$0xf]
    %v9328 = vld [vmem:[%s9109 + $0x368] sm:$0xf]
    %v9329 = vld [vmem:[%s9109 + $0x36c] sm:$0xf]
    %v9330 = vld [vmem:[%s9109 + $0x370] sm:$0xf]
    %v9331 = vld [vmem:[%s9109 + $0x374] sm:$0xf]
    %v9332 = vld [vmem:[%s9109 + $0x378] sm:$0xf]
    %v9333 = vld [vmem:[%s9109 + $0x37c] sm:$0xf]
    %v9334 = vld [vmem:[%s9109 + $0x380] sm:$0xf]
    %v9335 = vld [vmem:[%s9109 + $0x384] sm:$0xf]
    %v9336 = vld [vmem:[%s9109 + $0x388] sm:$0xf]
    %v9337 = vld [vmem:[%s9109 + $0x38c] sm:$0xf]
    %v9338 = vld [vmem:[%s9109 + $0x390] sm:$0xf]
    %v9339 = vld [vmem:[%s9109 + $0x394] sm:$0xf]
    %v9340 = vld [vmem:[%s9109 + $0x398] sm:$0xf]
    %v9341 = vld [vmem:[%s9109 + $0x39c] sm:$0xf]
    %v9342 = vld [vmem:[%s9109 + $0x3a0] sm:$0xf]
    %v9343 = vld [vmem:[%s9109 + $0x3a4] sm:$0xf]
    %v9344 = vld [vmem:[%s9109 + $0x3a8] sm:$0xf]
    %v9345 = vld [vmem:[%s9109 + $0x3ac] sm:$0xf]
    %v9346 = vld [vmem:[%s9109 + $0x3b0] sm:$0xf]
    %v9347 = vld [vmem:[%s9109 + $0x3b4] sm:$0xf]
    %v9348 = vld [vmem:[%s9109 + $0x3b8] sm:$0xf]
    %v9349 = vld [vmem:[%s9109 + $0x3bc] sm:$0xf]
    %v9350 = vld [vmem:[%s9109 + $0x3c0] sm:$0xf]
    %v9351 = vld [vmem:[%s9109 + $0x3c4] sm:$0xf]
    %v9352 = vld [vmem:[%s9109 + $0x3c8] sm:$0xf]
    %v9353 = vld [vmem:[%s9109 + $0x3cc] sm:$0xf]
    %v9354 = vld [vmem:[%s9109 + $0x3d0] sm:$0xf]
    %v9355 = vld [vmem:[%s9109 + $0x3d4] sm:$0xf]
    %v9356 = vld [vmem:[%s9109 + $0x3d8] sm:$0xf]
    %v9357 = vld [vmem:[%s9109 + $0x3dc] sm:$0xf]
    %v9358 = vld [vmem:[%s9109 + $0x3e0] sm:$0xf]
    %v9359 = vld [vmem:[%s9109 + $0x3e4] sm:$0xf]
    %v9360 = vld [vmem:[%s9109 + $0x3e8] sm:$0xf]
    %v9361 = vld [vmem:[%s9109 + $0x3ec] sm:$0xf]
    %v9362 = vld [vmem:[%s9109 + $0x3f0] sm:$0xf]
    %v9363 = vld [vmem:[%s9109 + $0x3f4] sm:$0xf]
    %v9364 = vld [vmem:[%s9109 + $0x3f8] sm:$0xf]
    %v9365 = vld [vmem:[%s9109 + $0x3fc] sm:$0xf]
    %s9366 = scalar_lea.vmem %s19, 4
    %v9367 = vld [vmem:[%s9366] sm:$0x1]
    %v9368 = vpack.c.bf16 %v9093, %v9093
    %v9369 = vpack.c.bf16 %v9094, %v9094
    %v9370 = vpack.c.bf16 %v9095, %v9095
    %v9371 = vpack.c.bf16 %v9096, %v9096
    %v9372 = vpack.c.bf16 %v9097, %v9097
    %v9373 = vpack.c.bf16 %v9098, %v9098
    %v9374 = vpack.c.bf16 %v9099, %v9099
    %v9375 = vpack.c.bf16 %v9100, %v9100
    %v9376 = vpack.c.bf16 %v9101, %v9101
    %v9377 = vpack.c.bf16 %v9102, %v9102
    %v9378 = vpack.c.bf16 %v9103, %v9103
    %v9379 = vpack.c.bf16 %v9104, %v9104
    %v9380 = vpack.c.bf16 %v9105, %v9105
    %v9381 = vpack.c.bf16 %v9106, %v9106
    %v9382 = vpack.c.bf16 %v9107, %v9107
    %v9383 = vpack.c.bf16 %v9108, %v9108
    %v9385 = vperm.slane %v9367, 0
    %v9643 = vunpack.c.l.b16 %v9110
    %v9644 = vunpack.c.l.b16 %v9111
    %v9645 = vunpack.c.l.b16 %v9112
    %v9646 = vunpack.c.l.b16 %v9113
    %v9647 = vunpack.c.l.b16 %v9114
    %v9648 = vunpack.c.l.b16 %v9115
    %v9649 = vunpack.c.l.b16 %v9116
    %v9650 = vunpack.c.l.b16 %v9117
    %v9651 = vunpack.c.l.b16 %v9118
    %v9652 = vunpack.c.l.b16 %v9119
    %v9653 = vunpack.c.l.b16 %v9120
    %v9654 = vunpack.c.l.b16 %v9121
    %v9655 = vunpack.c.l.b16 %v9122
    %v9656 = vunpack.c.l.b16 %v9123
    %v9657 = vunpack.c.l.b16 %v9124
    %v9658 = vunpack.c.l.b16 %v9125
    %v9659 = vunpack.c.l.b16 %v9126
    %v9660 = vunpack.c.l.b16 %v9127
    %v9661 = vunpack.c.l.b16 %v9128
    %v9662 = vunpack.c.l.b16 %v9129
    %v9663 = vunpack.c.l.b16 %v9130
    %v9664 = vunpack.c.l.b16 %v9131
    %v9665 = vunpack.c.l.b16 %v9132
    %v9666 = vunpack.c.l.b16 %v9133
    %v9667 = vunpack.c.l.b16 %v9134
    %v9668 = vunpack.c.l.b16 %v9135
    %v9669 = vunpack.c.l.b16 %v9136
    %v9670 = vunpack.c.l.b16 %v9137
    %v9671 = vunpack.c.l.b16 %v9138
    %v9672 = vunpack.c.l.b16 %v9139
    %v9673 = vunpack.c.l.b16 %v9140
    %v9674 = vunpack.c.l.b16 %v9141
    %v9675 = vunpack.c.l.b16 %v9142
    %v9676 = vunpack.c.l.b16 %v9143
    %v9677 = vunpack.c.l.b16 %v9144
    %v9678 = vunpack.c.l.b16 %v9145
    %v9679 = vunpack.c.l.b16 %v9146
    %v9680 = vunpack.c.l.b16 %v9147
    %v9681 = vunpack.c.l.b16 %v9148
    %v9682 = vunpack.c.l.b16 %v9149
    %v9683 = vunpack.c.l.b16 %v9150
    %v9684 = vunpack.c.l.b16 %v9151
    %v9685 = vunpack.c.l.b16 %v9152
    %v9686 = vunpack.c.l.b16 %v9153
    %v9687 = vunpack.c.l.b16 %v9154
    %v9688 = vunpack.c.l.b16 %v9155
    %v9689 = vunpack.c.l.b16 %v9156
    %v9690 = vunpack.c.l.b16 %v9157
    %v9691 = vunpack.c.l.b16 %v9158
    %v9692 = vunpack.c.l.b16 %v9159
    %v9693 = vunpack.c.l.b16 %v9160
    %v9694 = vunpack.c.l.b16 %v9161
    %v9695 = vunpack.c.l.b16 %v9162
    %v9696 = vunpack.c.l.b16 %v9163
    %v9697 = vunpack.c.l.b16 %v9164
    %v9698 = vunpack.c.l.b16 %v9165
    %v9699 = vunpack.c.l.b16 %v9166
    %v9700 = vunpack.c.l.b16 %v9167
    %v9701 = vunpack.c.l.b16 %v9168
    %v9702 = vunpack.c.l.b16 %v9169
    %v9703 = vunpack.c.l.b16 %v9170
    %v9704 = vunpack.c.l.b16 %v9171
    %v9705 = vunpack.c.l.b16 %v9172
    %v9706 = vunpack.c.l.b16 %v9173
    %v9707 = vunpack.c.l.b16 %v9174
    %v9708 = vunpack.c.l.b16 %v9175
    %v9709 = vunpack.c.l.b16 %v9176
    %v9710 = vunpack.c.l.b16 %v9177
    %v9711 = vunpack.c.l.b16 %v9178
    %v9712 = vunpack.c.l.b16 %v9179
    %v9713 = vunpack.c.l.b16 %v9180
    %v9714 = vunpack.c.l.b16 %v9181
    %v9715 = vunpack.c.l.b16 %v9182
    %v9716 = vunpack.c.l.b16 %v9183
    %v9717 = vunpack.c.l.b16 %v9184
    %v9718 = vunpack.c.l.b16 %v9185
    %v9719 = vunpack.c.l.b16 %v9186
    %v9720 = vunpack.c.l.b16 %v9187
    %v9721 = vunpack.c.l.b16 %v9188
    %v9722 = vunpack.c.l.b16 %v9189
    %v9723 = vunpack.c.l.b16 %v9190
    %v9724 = vunpack.c.l.b16 %v9191
    %v9725 = vunpack.c.l.b16 %v9192
    %v9726 = vunpack.c.l.b16 %v9193
    %v9727 = vunpack.c.l.b16 %v9194
    %v9728 = vunpack.c.l.b16 %v9195
    %v9729 = vunpack.c.l.b16 %v9196
    %v9730 = vunpack.c.l.b16 %v9197
    %v9731 = vunpack.c.l.b16 %v9198
    %v9732 = vunpack.c.l.b16 %v9199
    %v9733 = vunpack.c.l.b16 %v9200
    %v9734 = vunpack.c.l.b16 %v9201
    %v9735 = vunpack.c.l.b16 %v9202
    %v9736 = vunpack.c.l.b16 %v9203
    %v9737 = vunpack.c.l.b16 %v9204
    %v9738 = vunpack.c.l.b16 %v9205
    %v9739 = vunpack.c.l.b16 %v9206
    %v9740 = vunpack.c.l.b16 %v9207
    %v9741 = vunpack.c.l.b16 %v9208
    %v9742 = vunpack.c.l.b16 %v9209
    %v9743 = vunpack.c.l.b16 %v9210
    %v9744 = vunpack.c.l.b16 %v9211
    %v9745 = vunpack.c.l.b16 %v9212
    %v9746 = vunpack.c.l.b16 %v9213
    %v9747 = vunpack.c.l.b16 %v9214
    %v9748 = vunpack.c.l.b16 %v9215
    %v9749 = vunpack.c.l.b16 %v9216
    %v9750 = vunpack.c.l.b16 %v9217
    %v9751 = vunpack.c.l.b16 %v9218
    %v9752 = vunpack.c.l.b16 %v9219
    %v9753 = vunpack.c.l.b16 %v9220
    %v9754 = vunpack.c.l.b16 %v9221
    %v9755 = vunpack.c.l.b16 %v9222
    %v9756 = vunpack.c.l.b16 %v9223
    %v9757 = vunpack.c.l.b16 %v9224
    %v9758 = vunpack.c.l.b16 %v9225
    %v9759 = vunpack.c.l.b16 %v9226
    %v9760 = vunpack.c.l.b16 %v9227
    %v9761 = vunpack.c.l.b16 %v9228
    %v9762 = vunpack.c.l.b16 %v9229
    %v9763 = vunpack.c.l.b16 %v9230
    %v9764 = vunpack.c.l.b16 %v9231
    %v9765 = vunpack.c.l.b16 %v9232
    %v9766 = vunpack.c.l.b16 %v9233
    %v9767 = vunpack.c.l.b16 %v9234
    %v9768 = vunpack.c.l.b16 %v9235
    %v9769 = vunpack.c.l.b16 %v9236
    %v9770 = vunpack.c.l.b16 %v9237
    %v9771 = vunpack.c.l.b16 %v9238
    %v9772 = vunpack.c.l.b16 %v9239
    %v9773 = vunpack.c.l.b16 %v9240
    %v9774 = vunpack.c.l.b16 %v9241
    %v9775 = vunpack.c.l.b16 %v9242
    %v9776 = vunpack.c.l.b16 %v9243
    %v9777 = vunpack.c.l.b16 %v9244
    %v9778 = vunpack.c.l.b16 %v9245
    %v9779 = vunpack.c.l.b16 %v9246
    %v9780 = vunpack.c.l.b16 %v9247
    %v9781 = vunpack.c.l.b16 %v9248
    %v9782 = vunpack.c.l.b16 %v9249
    %v9783 = vunpack.c.l.b16 %v9250
    %v9784 = vunpack.c.l.b16 %v9251
    %v9785 = vunpack.c.l.b16 %v9252
    %v9786 = vunpack.c.l.b16 %v9253
    %v9787 = vunpack.c.l.b16 %v9254
    %v9788 = vunpack.c.l.b16 %v9255
    %v9789 = vunpack.c.l.b16 %v9256
    %v9790 = vunpack.c.l.b16 %v9257
    %v9791 = vunpack.c.l.b16 %v9258
    %v9792 = vunpack.c.l.b16 %v9259
    %v9793 = vunpack.c.l.b16 %v9260
    %v9794 = vunpack.c.l.b16 %v9261
    %v9795 = vunpack.c.l.b16 %v9262
    %v9796 = vunpack.c.l.b16 %v9263
    %v9797 = vunpack.c.l.b16 %v9264
    %v9798 = vunpack.c.l.b16 %v9265
    %v9799 = vunpack.c.l.b16 %v9266
    %v9800 = vunpack.c.l.b16 %v9267
    %v9801 = vunpack.c.l.b16 %v9268
    %v9802 = vunpack.c.l.b16 %v9269
    %v9803 = vunpack.c.l.b16 %v9270
    %v9804 = vunpack.c.l.b16 %v9271
    %v9805 = vunpack.c.l.b16 %v9272
    %v9806 = vunpack.c.l.b16 %v9273
    %v9807 = vunpack.c.l.b16 %v9274
    %v9808 = vunpack.c.l.b16 %v9275
    %v9809 = vunpack.c.l.b16 %v9276
    %v9810 = vunpack.c.l.b16 %v9277
    %v9811 = vunpack.c.l.b16 %v9278
    %v9812 = vunpack.c.l.b16 %v9279
    %v9813 = vunpack.c.l.b16 %v9280
    %v9814 = vunpack.c.l.b16 %v9281
    %v9815 = vunpack.c.l.b16 %v9282
    %v9816 = vunpack.c.l.b16 %v9283
    %v9817 = vunpack.c.l.b16 %v9284
    %v9818 = vunpack.c.l.b16 %v9285
    %v9819 = vunpack.c.l.b16 %v9286
    %v9820 = vunpack.c.l.b16 %v9287
    %v9821 = vunpack.c.l.b16 %v9288
    %v9822 = vunpack.c.l.b16 %v9289
    %v9823 = vunpack.c.l.b16 %v9290
    %v9824 = vunpack.c.l.b16 %v9291
    %v9825 = vunpack.c.l.b16 %v9292
    %v9826 = vunpack.c.l.b16 %v9293
    %v9827 = vunpack.c.l.b16 %v9294
    %v9828 = vunpack.c.l.b16 %v9295
    %v9829 = vunpack.c.l.b16 %v9296
    %v9830 = vunpack.c.l.b16 %v9297
    %v9831 = vunpack.c.l.b16 %v9298
    %v9832 = vunpack.c.l.b16 %v9299
    %v9833 = vunpack.c.l.b16 %v9300
    %v9834 = vunpack.c.l.b16 %v9301
    %v9835 = vunpack.c.l.b16 %v9302
    %v9836 = vunpack.c.l.b16 %v9303
    %v9837 = vunpack.c.l.b16 %v9304
    %v9838 = vunpack.c.l.b16 %v9305
    %v9839 = vunpack.c.l.b16 %v9306
    %v9840 = vunpack.c.l.b16 %v9307
    %v9841 = vunpack.c.l.b16 %v9308
    %v9842 = vunpack.c.l.b16 %v9309
    %v9843 = vunpack.c.l.b16 %v9310
    %v9844 = vunpack.c.l.b16 %v9311
    %v9845 = vunpack.c.l.b16 %v9312
    %v9846 = vunpack.c.l.b16 %v9313
    %v9847 = vunpack.c.l.b16 %v9314
    %v9848 = vunpack.c.l.b16 %v9315
    %v9849 = vunpack.c.l.b16 %v9316
    %v9850 = vunpack.c.l.b16 %v9317
    %v9851 = vunpack.c.l.b16 %v9318
    %v9852 = vunpack.c.l.b16 %v9319
    %v9853 = vunpack.c.l.b16 %v9320
    %v9854 = vunpack.c.l.b16 %v9321
    %v9855 = vunpack.c.l.b16 %v9322
    %v9856 = vunpack.c.l.b16 %v9323
    %v9857 = vunpack.c.l.b16 %v9324
    %v9858 = vunpack.c.l.b16 %v9325
    %v9859 = vunpack.c.l.b16 %v9326
    %v9860 = vunpack.c.l.b16 %v9327
    %v9861 = vunpack.c.l.b16 %v9328
    %v9862 = vunpack.c.l.b16 %v9329
    %v9863 = vunpack.c.l.b16 %v9330
    %v9864 = vunpack.c.l.b16 %v9331
    %v9865 = vunpack.c.l.b16 %v9332
    %v9866 = vunpack.c.l.b16 %v9333
    %v9867 = vunpack.c.l.b16 %v9334
    %v9868 = vunpack.c.l.b16 %v9335
    %v9869 = vunpack.c.l.b16 %v9336
    %v9870 = vunpack.c.l.b16 %v9337
    %v9871 = vunpack.c.l.b16 %v9338
    %v9872 = vunpack.c.l.b16 %v9339
    %v9873 = vunpack.c.l.b16 %v9340
    %v9874 = vunpack.c.l.b16 %v9341
    %v9875 = vunpack.c.l.b16 %v9342
    %v9876 = vunpack.c.l.b16 %v9343
    %v9877 = vunpack.c.l.b16 %v9344
    %v9878 = vunpack.c.l.b16 %v9345
    %v9879 = vunpack.c.l.b16 %v9346
    %v9880 = vunpack.c.l.b16 %v9347
    %v9881 = vunpack.c.l.b16 %v9348
    %v9882 = vunpack.c.l.b16 %v9349
    %v9883 = vunpack.c.l.b16 %v9350
    %v9884 = vunpack.c.l.b16 %v9351
    %v9885 = vunpack.c.l.b16 %v9352
    %v9886 = vunpack.c.l.b16 %v9353
    %v9887 = vunpack.c.l.b16 %v9354
    %v9888 = vunpack.c.l.b16 %v9355
    %v9889 = vunpack.c.l.b16 %v9356
    %v9890 = vunpack.c.l.b16 %v9357
    %v9891 = vunpack.c.l.b16 %v9358
    %v9892 = vunpack.c.l.b16 %v9359
    %v9893 = vunpack.c.l.b16 %v9360
    %v9894 = vunpack.c.l.b16 %v9361
    %v9895 = vunpack.c.l.b16 %v9362
    %v9896 = vunpack.c.l.b16 %v9363
    %v9897 = vunpack.c.l.b16 %v9364
    %v9898 = vunpack.c.l.b16 %v9365
    %v9899 = vpack.c.b16 %v9644, %v9643
    %v9900 = vpack.c.b16 %v9646, %v9645
    %v9901 = vpack.c.b16 %v9648, %v9647
    %v9902 = vpack.c.b16 %v9650, %v9649
    %v9903 = vpack.c.b16 %v9652, %v9651
    %v9904 = vpack.c.b16 %v9654, %v9653
    %v9905 = vpack.c.b16 %v9656, %v9655
    %v9906 = vpack.c.b16 %v9658, %v9657
    %v9907 = vpack.c.b16 %v9660, %v9659
    %v9908 = vpack.c.b16 %v9662, %v9661
    %v9909 = vpack.c.b16 %v9664, %v9663
    %v9910 = vpack.c.b16 %v9666, %v9665
    %v9911 = vpack.c.b16 %v9668, %v9667
    %v9912 = vpack.c.b16 %v9670, %v9669
    %v9913 = vpack.c.b16 %v9672, %v9671
    %v9914 = vpack.c.b16 %v9674, %v9673
    %v9915 = vpack.c.b16 %v9676, %v9675
    %v9916 = vpack.c.b16 %v9678, %v9677
    %v9917 = vpack.c.b16 %v9680, %v9679
    %v9918 = vpack.c.b16 %v9682, %v9681
    %v9919 = vpack.c.b16 %v9684, %v9683
    %v9920 = vpack.c.b16 %v9686, %v9685
    %v9921 = vpack.c.b16 %v9688, %v9687
    %v9922 = vpack.c.b16 %v9690, %v9689
    %v9923 = vpack.c.b16 %v9692, %v9691
    %v9924 = vpack.c.b16 %v9694, %v9693
    %v9925 = vpack.c.b16 %v9696, %v9695
    %v9926 = vpack.c.b16 %v9698, %v9697
    %v9927 = vpack.c.b16 %v9700, %v9699
    %v9928 = vpack.c.b16 %v9702, %v9701
    %v9929 = vpack.c.b16 %v9704, %v9703
    %v9930 = vpack.c.b16 %v9706, %v9705
    %v9931 = vpack.c.b16 %v9708, %v9707
    %v9932 = vpack.c.b16 %v9710, %v9709
    %v9933 = vpack.c.b16 %v9712, %v9711
    %v9934 = vpack.c.b16 %v9714, %v9713
    %v9935 = vpack.c.b16 %v9716, %v9715
    %v9936 = vpack.c.b16 %v9718, %v9717
    %v9937 = vpack.c.b16 %v9720, %v9719
    %v9938 = vpack.c.b16 %v9722, %v9721
    %v9939 = vpack.c.b16 %v9724, %v9723
    %v9940 = vpack.c.b16 %v9726, %v9725
    %v9941 = vpack.c.b16 %v9728, %v9727
    %v9942 = vpack.c.b16 %v9730, %v9729
    %v9943 = vpack.c.b16 %v9732, %v9731
    %v9944 = vpack.c.b16 %v9734, %v9733
    %v9945 = vpack.c.b16 %v9736, %v9735
    %v9946 = vpack.c.b16 %v9738, %v9737
    %v9947 = vpack.c.b16 %v9740, %v9739
    %v9948 = vpack.c.b16 %v9742, %v9741
    %v9949 = vpack.c.b16 %v9744, %v9743
    %v9950 = vpack.c.b16 %v9746, %v9745
    %v9951 = vpack.c.b16 %v9748, %v9747
    %v9952 = vpack.c.b16 %v9750, %v9749
    %v9953 = vpack.c.b16 %v9752, %v9751
    %v9954 = vpack.c.b16 %v9754, %v9753
    %v9955 = vpack.c.b16 %v9756, %v9755
    %v9956 = vpack.c.b16 %v9758, %v9757
    %v9957 = vpack.c.b16 %v9760, %v9759
    %v9958 = vpack.c.b16 %v9762, %v9761
    %v9959 = vpack.c.b16 %v9764, %v9763
    %v9960 = vpack.c.b16 %v9766, %v9765
    %v9961 = vpack.c.b16 %v9768, %v9767
    %v9962 = vpack.c.b16 %v9770, %v9769
    %v9963 = vpack.c.b16 %v9772, %v9771
    %v9964 = vpack.c.b16 %v9774, %v9773
    %v9965 = vpack.c.b16 %v9776, %v9775
    %v9966 = vpack.c.b16 %v9778, %v9777
    %v9967 = vpack.c.b16 %v9780, %v9779
    %v9968 = vpack.c.b16 %v9782, %v9781
    %v9969 = vpack.c.b16 %v9784, %v9783
    %v9970 = vpack.c.b16 %v9786, %v9785
    %v9971 = vpack.c.b16 %v9788, %v9787
    %v9972 = vpack.c.b16 %v9790, %v9789
    %v9973 = vpack.c.b16 %v9792, %v9791
    %v9974 = vpack.c.b16 %v9794, %v9793
    %v9975 = vpack.c.b16 %v9796, %v9795
    %v9976 = vpack.c.b16 %v9798, %v9797
    %v9977 = vpack.c.b16 %v9800, %v9799
    %v9978 = vpack.c.b16 %v9802, %v9801
    %v9979 = vpack.c.b16 %v9804, %v9803
    %v9980 = vpack.c.b16 %v9806, %v9805
    %v9981 = vpack.c.b16 %v9808, %v9807
    %v9982 = vpack.c.b16 %v9810, %v9809
    %v9983 = vpack.c.b16 %v9812, %v9811
    %v9984 = vpack.c.b16 %v9814, %v9813
    %v9985 = vpack.c.b16 %v9816, %v9815
    %v9986 = vpack.c.b16 %v9818, %v9817
    %v9987 = vpack.c.b16 %v9820, %v9819
    %v9988 = vpack.c.b16 %v9822, %v9821
    %v9989 = vpack.c.b16 %v9824, %v9823
    %v9990 = vpack.c.b16 %v9826, %v9825
    %v9991 = vpack.c.b16 %v9828, %v9827
    %v9992 = vpack.c.b16 %v9830, %v9829
    %v9993 = vpack.c.b16 %v9832, %v9831
    %v9994 = vpack.c.b16 %v9834, %v9833
    %v9995 = vpack.c.b16 %v9836, %v9835
    %v9996 = vpack.c.b16 %v9838, %v9837
    %v9997 = vpack.c.b16 %v9840, %v9839
    %v9998 = vpack.c.b16 %v9842, %v9841
    %v9999 = vpack.c.b16 %v9844, %v9843
    %v10000 = vpack.c.b16 %v9846, %v9845
    %v10001 = vpack.c.b16 %v9848, %v9847
    %v10002 = vpack.c.b16 %v9850, %v9849
    %v10003 = vpack.c.b16 %v9852, %v9851
    %v10004 = vpack.c.b16 %v9854, %v9853
    %v10005 = vpack.c.b16 %v9856, %v9855
    %v10006 = vpack.c.b16 %v9858, %v9857
    %v10007 = vpack.c.b16 %v9860, %v9859
    %v10008 = vpack.c.b16 %v9862, %v9861
    %v10009 = vpack.c.b16 %v9864, %v9863
    %v10010 = vpack.c.b16 %v9866, %v9865
    %v10011 = vpack.c.b16 %v9868, %v9867
    %v10012 = vpack.c.b16 %v9870, %v9869
    %v10013 = vpack.c.b16 %v9872, %v9871
    %v10014 = vpack.c.b16 %v9874, %v9873
    %v10015 = vpack.c.b16 %v9876, %v9875
    %v10016 = vpack.c.b16 %v9878, %v9877
    %v10017 = vpack.c.b16 %v9880, %v9879
    %v10018 = vpack.c.b16 %v9882, %v9881
    %v10019 = vpack.c.b16 %v9884, %v9883
    %v10020 = vpack.c.b16 %v9886, %v9885
    %v10021 = vpack.c.b16 %v9888, %v9887
    %v10022 = vpack.c.b16 %v9890, %v9889
    %v10023 = vpack.c.b16 %v9892, %v9891
    %v10024 = vpack.c.b16 %v9894, %v9893
    %v10025 = vpack.c.b16 %v9896, %v9895
    %v10026 = vpack.c.b16 %v9898, %v9897
    %10155 = vmatpush.bf16.msra.mxu0 %v9906
    %10156 = vmatpush.bf16.msra.mxu0 %v9905
    %10157 = vmatpush.bf16.msra.mxu0 %v9904
    %10158 = vmatpush.bf16.msra.mxu0 %v9903
    %10159 = vmatpush.bf16.msra.mxu0 %v9902
    %10160 = vmatpush.bf16.msra.mxu0 %v9901
    %10161 = vmatpush.bf16.msra.mxu0 %v9900
    %10162 = vmatpush.bf16.msra.mxu0 %v9899
    %10163 = vmatmul.bf16.gmra.mxu0 %v9368
    %v10164 = vpop.f32.mrf.mxu0
    %v10165 = vadd.f32 %v9385, %v10164
    %v10166 = vpop.f32.mrf.mxu0
    %10167 = vdwg.mxu0
    %10168 = vmatpush.bf16.msra.mxu0 %v9914
    %10169 = vmatpush.bf16.msra.mxu0 %v9913
    %10170 = vmatpush.bf16.msra.mxu0 %v9912
    %10171 = vmatpush.bf16.msra.mxu0 %v9911
    %10172 = vmatpush.bf16.msra.mxu0 %v9910
    %10173 = vmatpush.bf16.msra.mxu0 %v9909
    %10174 = vmatpush.bf16.msra.mxu0 %v9908
    %10175 = vmatpush.bf16.msra.mxu0 %v9907
    %10176 = vmatmul.bf16.gmra.mxu0 %v9369
    %v10177 = vpop.f32.mrf.mxu0
    %v10178 = vadd.f32 %v10165, %v10177
    %v10179 = vpop.f32.mrf.mxu0
    %10180 = vdwg.mxu0
    %10181 = vmatpush.bf16.msra.mxu0 %v9922
    %10182 = vmatpush.bf16.msra.mxu0 %v9921
    %10183 = vmatpush.bf16.msra.mxu0 %v9920
    %10184 = vmatpush.bf16.msra.mxu0 %v9919
    %10185 = vmatpush.bf16.msra.mxu0 %v9918
    %10186 = vmatpush.bf16.msra.mxu0 %v9917
    %10187 = vmatpush.bf16.msra.mxu0 %v9916
    %10188 = vmatpush.bf16.msra.mxu0 %v9915
    %10189 = vmatmul.bf16.gmra.mxu0 %v9370
    %v10190 = vpop.f32.mrf.mxu0
    %v10191 = vadd.f32 %v10178, %v10190
    %v10192 = vpop.f32.mrf.mxu0
    %10193 = vdwg.mxu0
    %10194 = vmatpush.bf16.msra.mxu0 %v9930
    %10195 = vmatpush.bf16.msra.mxu0 %v9929
    %10196 = vmatpush.bf16.msra.mxu0 %v9928
    %10197 = vmatpush.bf16.msra.mxu0 %v9927
    %10198 = vmatpush.bf16.msra.mxu0 %v9926
    %10199 = vmatpush.bf16.msra.mxu0 %v9925
    %10200 = vmatpush.bf16.msra.mxu0 %v9924
    %10201 = vmatpush.bf16.msra.mxu0 %v9923
    %10202 = vmatmul.bf16.gmra.mxu0 %v9371
    %v10203 = vpop.f32.mrf.mxu0
    %v10204 = vadd.f32 %v10191, %v10203
    %v10205 = vpop.f32.mrf.mxu0
    %10206 = vdwg.mxu0
    %10207 = vmatpush.bf16.msra.mxu0 %v9938
    %10208 = vmatpush.bf16.msra.mxu0 %v9937
    %10209 = vmatpush.bf16.msra.mxu0 %v9936
    %10210 = vmatpush.bf16.msra.mxu0 %v9935
    %10211 = vmatpush.bf16.msra.mxu0 %v9934
    %10212 = vmatpush.bf16.msra.mxu0 %v9933
    %10213 = vmatpush.bf16.msra.mxu0 %v9932
    %10214 = vmatpush.bf16.msra.mxu0 %v9931
    %10215 = vmatmul.bf16.gmra.mxu0 %v9372
    %v10216 = vpop.f32.mrf.mxu0
    %v10217 = vadd.f32 %v10204, %v10216
    %v10218 = vpop.f32.mrf.mxu0
    %10219 = vdwg.mxu0
    %10220 = vmatpush.bf16.msra.mxu0 %v9946
    %10221 = vmatpush.bf16.msra.mxu0 %v9945
    %10222 = vmatpush.bf16.msra.mxu0 %v9944
    %10223 = vmatpush.bf16.msra.mxu0 %v9943
    %10224 = vmatpush.bf16.msra.mxu0 %v9942
    %10225 = vmatpush.bf16.msra.mxu0 %v9941
    %10226 = vmatpush.bf16.msra.mxu0 %v9940
    %10227 = vmatpush.bf16.msra.mxu0 %v9939
    %10228 = vmatmul.bf16.gmra.mxu0 %v9373
    %v10229 = vpop.f32.mrf.mxu0
    %v10230 = vadd.f32 %v10217, %v10229
    %v10231 = vpop.f32.mrf.mxu0
    %10232 = vdwg.mxu0
    %10233 = vmatpush.bf16.msra.mxu0 %v9954
    %10234 = vmatpush.bf16.msra.mxu0 %v9953
    %10235 = vmatpush.bf16.msra.mxu0 %v9952
    %10236 = vmatpush.bf16.msra.mxu0 %v9951
    %10237 = vmatpush.bf16.msra.mxu0 %v9950
    %10238 = vmatpush.bf16.msra.mxu0 %v9949
    %10239 = vmatpush.bf16.msra.mxu0 %v9948
    %10240 = vmatpush.bf16.msra.mxu0 %v9947
    %10241 = vmatmul.bf16.gmra.mxu0 %v9374
    %v10242 = vpop.f32.mrf.mxu0
    %v10243 = vadd.f32 %v10230, %v10242
    %v10244 = vpop.f32.mrf.mxu0
    %10245 = vdwg.mxu0
    %10246 = vmatpush.bf16.msra.mxu0 %v9962
    %10247 = vmatpush.bf16.msra.mxu0 %v9961
    %10248 = vmatpush.bf16.msra.mxu0 %v9960
    %10249 = vmatpush.bf16.msra.mxu0 %v9959
    %10250 = vmatpush.bf16.msra.mxu0 %v9958
    %10251 = vmatpush.bf16.msra.mxu0 %v9957
    %10252 = vmatpush.bf16.msra.mxu0 %v9956
    %10253 = vmatpush.bf16.msra.mxu0 %v9955
    %10254 = vmatmul.bf16.gmra.mxu0 %v9375
    %v10255 = vpop.f32.mrf.mxu0
    %v10256 = vadd.f32 %v10243, %v10255
    %v10257 = vpop.f32.mrf.mxu0
    %10258 = vdwg.mxu0
    %10259 = vmatpush.bf16.msra.mxu0 %v9970
    %10260 = vmatpush.bf16.msra.mxu0 %v9969
    %10261 = vmatpush.bf16.msra.mxu0 %v9968
    %10262 = vmatpush.bf16.msra.mxu0 %v9967
    %10263 = vmatpush.bf16.msra.mxu0 %v9966
    %10264 = vmatpush.bf16.msra.mxu0 %v9965
    %10265 = vmatpush.bf16.msra.mxu0 %v9964
    %10266 = vmatpush.bf16.msra.mxu0 %v9963
    %10267 = vmatmul.bf16.gmra.mxu0 %v9376
    %v10268 = vpop.f32.mrf.mxu0
    %v10269 = vadd.f32 %v10256, %v10268
    %v10270 = vpop.f32.mrf.mxu0
    %10271 = vdwg.mxu0
    %10272 = vmatpush.bf16.msra.mxu0 %v9978
    %10273 = vmatpush.bf16.msra.mxu0 %v9977
    %10274 = vmatpush.bf16.msra.mxu0 %v9976
    %10275 = vmatpush.bf16.msra.mxu0 %v9975
    %10276 = vmatpush.bf16.msra.mxu0 %v9974
    %10277 = vmatpush.bf16.msra.mxu0 %v9973
    %10278 = vmatpush.bf16.msra.mxu0 %v9972
    %10279 = vmatpush.bf16.msra.mxu0 %v9971
    %10280 = vmatmul.bf16.gmra.mxu0 %v9377
    %v10281 = vpop.f32.mrf.mxu0
    %v10282 = vadd.f32 %v10269, %v10281
    %v10283 = vpop.f32.mrf.mxu0
    %10284 = vdwg.mxu0
    %10285 = vmatpush.bf16.msra.mxu0 %v9986
    %10286 = vmatpush.bf16.msra.mxu0 %v9985
    %10287 = vmatpush.bf16.msra.mxu0 %v9984
    %10288 = vmatpush.bf16.msra.mxu0 %v9983
    %10289 = vmatpush.bf16.msra.mxu0 %v9982
    %10290 = vmatpush.bf16.msra.mxu0 %v9981
    %10291 = vmatpush.bf16.msra.mxu0 %v9980
    %10292 = vmatpush.bf16.msra.mxu0 %v9979
    %10293 = vmatmul.bf16.gmra.mxu0 %v9378
    %v10294 = vpop.f32.mrf.mxu0
    %v10295 = vadd.f32 %v10282, %v10294
    %v10296 = vpop.f32.mrf.mxu0
    %10297 = vdwg.mxu0
    %10298 = vmatpush.bf16.msra.mxu0 %v9994
    %10299 = vmatpush.bf16.msra.mxu0 %v9993
    %10300 = vmatpush.bf16.msra.mxu0 %v9992
    %10301 = vmatpush.bf16.msra.mxu0 %v9991
    %10302 = vmatpush.bf16.msra.mxu0 %v9990
    %10303 = vmatpush.bf16.msra.mxu0 %v9989
    %10304 = vmatpush.bf16.msra.mxu0 %v9988
    %10305 = vmatpush.bf16.msra.mxu0 %v9987
    %10306 = vmatmul.bf16.gmra.mxu0 %v9379
    %v10307 = vpop.f32.mrf.mxu0
    %v10308 = vadd.f32 %v10295, %v10307
    %v10309 = vpop.f32.mrf.mxu0
    %10310 = vdwg.mxu0
    %10311 = vmatpush.bf16.msra.mxu0 %v10002
    %10312 = vmatpush.bf16.msra.mxu0 %v10001
    %10313 = vmatpush.bf16.msra.mxu0 %v10000
    %10314 = vmatpush.bf16.msra.mxu0 %v9999
    %10315 = vmatpush.bf16.msra.mxu0 %v9998
    %10316 = vmatpush.bf16.msra.mxu0 %v9997
    %10317 = vmatpush.bf16.msra.mxu0 %v9996
    %10318 = vmatpush.bf16.msra.mxu0 %v9995
    %10319 = vmatmul.bf16.gmra.mxu0 %v9380
    %v10320 = vpop.f32.mrf.mxu0
    %v10321 = vadd.f32 %v10308, %v10320
    %v10322 = vpop.f32.mrf.mxu0
    %10323 = vdwg.mxu0
    %10324 = vmatpush.bf16.msra.mxu0 %v10010
    %10325 = vmatpush.bf16.msra.mxu0 %v10009
    %10326 = vmatpush.bf16.msra.mxu0 %v10008
    %10327 = vmatpush.bf16.msra.mxu0 %v10007
    %10328 = vmatpush.bf16.msra.mxu0 %v10006
    %10329 = vmatpush.bf16.msra.mxu0 %v10005
    %10330 = vmatpush.bf16.msra.mxu0 %v10004
    %10331 = vmatpush.bf16.msra.mxu0 %v10003
    %10332 = vmatmul.bf16.gmra.mxu0 %v9381
    %v10333 = vpop.f32.mrf.mxu0
    %v10334 = vadd.f32 %v10321, %v10333
    %v10335 = vpop.f32.mrf.mxu0
    %10336 = vdwg.mxu0
    %10337 = vmatpush.bf16.msra.mxu0 %v10018
    %10338 = vmatpush.bf16.msra.mxu0 %v10017
    %10339 = vmatpush.bf16.msra.mxu0 %v10016
    %10340 = vmatpush.bf16.msra.mxu0 %v10015
    %10341 = vmatpush.bf16.msra.mxu0 %v10014
    %10342 = vmatpush.bf16.msra.mxu0 %v10013
    %10343 = vmatpush.bf16.msra.mxu0 %v10012
    %10344 = vmatpush.bf16.msra.mxu0 %v10011
    %10345 = vmatmul.bf16.gmra.mxu0 %v9382
    %v10346 = vpop.f32.mrf.mxu0
    %v10347 = vadd.f32 %v10334, %v10346
    %v10348 = vpop.f32.mrf.mxu0
    %10349 = vdwg.mxu0
    %10350 = vmatpush.bf16.msra.mxu0 %v10026
    %10351 = vmatpush.bf16.msra.mxu0 %v10025
    %10352 = vmatpush.bf16.msra.mxu0 %v10024
    %10353 = vmatpush.bf16.msra.mxu0 %v10023
    %10354 = vmatpush.bf16.msra.mxu0 %v10022
    %10355 = vmatpush.bf16.msra.mxu0 %v10021
    %10356 = vmatpush.bf16.msra.mxu0 %v10020
    %10357 = vmatpush.bf16.msra.mxu0 %v10019
    %10358 = vmatmul.bf16.gmra.mxu0 %v9383
    %v10359 = vpop.f32.mrf.mxu0
    %v10360 = vadd.f32 %v10347, %v10359
    %v10361 = vpop.f32.mrf.mxu0
    %10362 = vdwg.mxu0
    %v10363 = vadd.f32 %v8650, %v10360
    %s10364 = scalar_lea.vmem %s20, 4
    %v10365 = vld [vmem:[%s10364] sm:$0x1]
    %s10366 = scalar_lea.vmem %s21, 4
    %v10367 = vld [vmem:[%s10366] sm:$0x1]
    %v10368 = vsel %vm475, %v10363, 0.0
    %10369 = vadd.xlane.f32.xlu0 %v10368
    %v10370 = vpop.xlane.xlu0 %10369
    %v10371 = vmul.f32 %v10370, %v485
    %v10372 = vsub.f32 %v10363, %v10371
    %v10373 = vmul.f32 %v10372, %v10372
    %v10374 = vsel %vm475, %v10373, 0.0
    %10375 = vadd.xlane.f32.xlu0 %v10374
    %v10376 = vpop.xlane.xlu0 %10375
    %v10377 = vmul.f32 %v10376, %v485
    %v10378 = vadd.f32 %v10377, 1e-05
    %v10379 = vrsqrt.pop %v10378
    %v10380 = vmul.f32 %v10379, %v10378
    %v10381 = vmul.f32 %v10380, %v10379
    %v10382 = vmul.f32 0.5, %v10381
    %v10383 = vsub.f32 1.5, %v10382
    %v10384 = vmul.f32 %v10379, %v10383
    %vm10385 = vweird.f32 %v10378
    %vm10386 = vweird.f32 %v10379
    %vm10387 = vmor %vm10385, %vm10386
    %v10388 = vsel %vm10387, %v10379, %v10384
    %v10389 = vmul.f32 %v10372, %v10388
    %v10391 = vperm.slane %v10365, 0
    %v10393 = vmul.f32 %v10389, %v10391
    %v10395 = vperm.slane %v10367, 0
    %v10397 = vadd.f32 %v10393, %v10395
    %v10398 = vld [vmem:[%s22] sm:$0xf]
    %v10399 = vld [vmem:[%s22 + $0x4] sm:$0xf]
    %v10400 = vld [vmem:[%s22 + $0x8] sm:$0xf]
    %v10401 = vld [vmem:[%s22 + $0xc] sm:$0xf]
    %v10402 = vld [vmem:[%s23] sm:$0x1]
    %v10403 = vpack.c.bf16 %v10397, %v10397
    %v10405 = vperm.slane %v10402, 0
    %v10408 = vrot.slane %v10403, 2
    %v10413 = vunpack.c.l.b16 %v10398
    %v10414 = vunpack.c.l.b16 %v10399
    %v10415 = vunpack.c.l.b16 %v10400
    %v10416 = vunpack.c.l.b16 %v10401
    %v10417 = vpack.c.b16 %v10414, %v10413
    %v10418 = vpack.c.b16 %v10416, %v10415
    %v10422 = vsel %vm242, %v10408, 0
    %10424 = vmatpush.bf16.msra.mxu0 0
    %10425 = vmatpush.bf16.msra.mxu0 0
    %10426 = vmatpush.bf16.msra.mxu0 0
    %10427 = vmatpush.bf16.msra.mxu0 0
    %10428 = vmatpush.bf16.msra.mxu0 0
    %10429 = vmatpush.bf16.msra.mxu0 0
    %10430 = vmatpush.bf16.msra.mxu0 %v10418
    %10431 = vmatpush.bf16.msra.mxu0 %v10417
    %10432 = vmatmul.bf16.gmra.mxu0 %v10422
    %v10433 = vpop.f32.mrf.mxu0
    %v10434 = vadd.f32 %v10405, %v10433
    %v10435 = vpop.f32.mrf.mxu0
    %10436 = vdwg.mxu0
    %vm10437 = vcmask 41984
    %10438 = vst.msk [vmem:[#allocation2] sm:$0x3] %vm10437, %v10434
    // Predicated region
    $region98: #{decision_transformer_forward.1} parent=1 // pred_check
      _
    $region99: #{decision_transformer_forward.1} parent=1 // pred_check_branch
      %10440 = sbr.rel (0) target = $region101
    $region100: #{decision_transformer_forward.1} parent=1 // pred_region
      %10442 = vsyncadd [#allocation3], 0
      %s10444 = sshll.u32 [#allocation2], 4
      %s10445 = int_to_ptr.vmem [resolvable:$true] %s10444
      %s10446 = sshll.u32 %s24, 4
      %s10447 = int_to_ptr.hbm [resolvable:$true] %s10446
      %10449 = dma.vmem_to_hbm [thread:$0]  %s10445, 32, %s10447, [#allocation3]
    $region101: #{decision_transformer_forward.1} parent=1 // pred_fallthru
      _
    // Predicated region
    $region102: #{decision_transformer_forward.1} parent=1 // pred_check
      _
    $region103: #{decision_transformer_forward.1} parent=1 // pred_check_branch
      %10451 = sbr.rel (0) target = $region105
    $region104: #{decision_transformer_forward.1} parent=1 // pred_region
      %10453 = dma.done [#allocation3], 32
    $region105: #{decision_transformer_forward.1} parent=1 // pred_fallthru
      _
    %10454 = vsyncpa [#allocation3], 1

</llo_original>
